<compile_context>
chip_gen: v7x
topology: tpu7x:2x2x1
jax: 0.10.0
libtpu: 0.0.40
codegen_flags: <defaults>
</compile_context>

<pallas_src>
import functools

import jax
import jax.numpy as jnp
from jax import lax
from jax.experimental import pallas as pl
from jax.experimental.pallas import tpu as pltpu

DIM = 128          # MoCo feature dim (default in the module)
K_QUEUE = 512      # queue size (small synthetic stand-in for 65536)
M_MOMENTUM = 0.9996
TEMP = 0.07
EPS_NORM = 1e-12   # torch.nn.functional.normalize default eps

QUEUE_DTYPE = jnp.bfloat16   # negatives queue storage dtype (HBM-roofline win)


@functools.lru_cache(maxsize=None)
def _scoped_vmem_limit_bytes():
    """Generation-aware scoped-VMEM cap (v7x only has 64 MiB physical per TC)."""
    try:
        cap = int(pltpu.get_tpu_info().vmem_capacity_bytes)
    except Exception:
        return 32 * 1024 * 1024          # universally safe fallback
    if cap >= 96 * 1024 * 1024:
        return 64 * 1024 * 1024          # v5e / v6e (128 MiB physical)
    return 48 * 1024 * 1024              # v7x (64 MiB physical)


def _pick_tile(dim, target):
    """Largest multiple of 128 that divides `dim` (128-aligned) and is <= target."""
    assert dim % 128 == 0, dim
    start = max(128, (min(target, dim) // 128) * 128)
    for cand in range(start, 0, -128):
        if dim % cand == 0:
            return cand
    return 128   # unreachable: 128 always divides a 128-aligned dim


def _flatten_pad(x, f_pad):
    """NCHW -> (N, C*H*W), zero-padded on the feature axis to a 128 multiple."""
    n = x.shape[0]
    xf = x.reshape(n, -1)
    f = xf.shape[1]
    if f != f_pad:
        xf = jnp.pad(xf, ((0, 0), (0, f_pad - f)))
    return xf


# --------------------------------------------------------------------------
# Kernel 1: fused momentum update + dual encode + normalize + l_pos
#   grid = (f_pad // tk,)   — contraction axis ("arbitrary")
# --------------------------------------------------------------------------
def _fused_encode_kernel(xq_ref, xk_ref, wq_ref, wk_ref, bq_ref, bk_ref,
                         q_ref, k_ref, lpos_ref, wk_new_ref, bk_new_ref,
                         acc_q, acc_k, *, m, inv_t):
    step = pl.program_id(0)

    @pl.when(step == 0)
    def _init():
        acc_q[...] = jnp.zeros_like(acc_q)
        acc_k[...] = jnp.zeros_like(acc_k)

    # Momentum update of this weight tile (fused: one read of w_q, one read of
    # w_k, one write of w_k_new), then use the updated tile for the k-encode.
    wq = wq_ref[...]
    wk_new = wk_ref[...] * m + wq * (1.0 - m)
    wk_new_ref[...] = wk_new                       # in-place (aliased) write-back

    acc_q[...] += jnp.dot(xq_ref[...], wq, preferred_element_type=jnp.float32)
    acc_k[...] += jnp.dot(xk_ref[...], wk_new, preferred_element_type=jnp.float32)

    @pl.when(step == pl.num_programs(0) - 1)
    def _finalize():
        bq = bq_ref[...]
        bk_new = bk_ref[...] * m + bq * (1.0 - m)
        bk_new_ref[...] = bk_new

        fq = acc_q[...] + bq                       # (N, D) + (1, D) broadcast
        fk = acc_k[...] + bk_new

        nq = jnp.sqrt(jnp.sum(fq * fq, axis=-1, keepdims=True))
        nk = jnp.sqrt(jnp.sum(fk * fk, axis=-1, keepdims=True))
        qn = fq / jnp.maximum(nq, EPS_NORM)        # torch F.normalize semantics
        kn = fk / jnp.maximum(nk, EPS_NORM)

        q_ref[...] = qn.astype(q_ref.dtype)
        k_ref[...] = kn.astype(k_ref.dtype)

        # l_pos / T, broadcast across a full 128-lane tile (lane-dense store);
        # the wrapper takes lane 0.
        lpos = jnp.sum(qn * kn, axis=-1, keepdims=True) * inv_t
        lpos_ref[...] = jnp.broadcast_to(lpos, lpos_ref.shape)


def fused_momentum_encode(x_q, x_k, w_q, w_k, b_q, b_k, *, m, t, block_f=None):
    n, f = x_q.shape
    d = w_q.shape[1]
    # DMA-bound on the weight stream: big tiles amortize the ~0.35us/step
    # pipeline overhead.  tk=4096 => ~12.6 MB of double-buffered weight tiles,
    # inside the scoped-VMEM cap on every generation (incl. v7x's 48 MiB).
    tk = _pick_tile(f, 4096) if block_f is None else block_f
    assert f % tk == 0, (f, tk)
    grid = (f // tk,)

    kernel = functools.partial(_fused_encode_kernel, m=float(m), inv_t=float(1.0 / t))
    out_shape = (
        jax.ShapeDtypeStruct((n, d), jnp.float32),     # q (normalized)
        jax.ShapeDtypeStruct((n, d), jnp.float32),     # k (normalized)
        jax.ShapeDtypeStruct((n, 128), jnp.float32),   # l_pos / T (lane-dense)
        jax.ShapeDtypeStruct((f, d), jnp.float32),     # updated w_k (f32 master copy)
        jax.ShapeDtypeStruct((1, d), jnp.float32),     # updated b_k
    )
    in_specs = [
        pl.BlockSpec((n, tk), lambda s: (0, s)),   # x_q
        pl.BlockSpec((n, tk), lambda s: (0, s)),   # x_k
        pl.BlockSpec((tk, d), lambda s: (s, 0)),   # w_q
        pl.BlockSpec((tk, d), lambda s: (s, 0)),   # w_k
        pl.BlockSpec((1, d), lambda s: (0, 0)),    # b_q
        pl.BlockSpec((1, d), lambda s: (0, 0)),    # b_k
    ]
    out_specs = (
        pl.BlockSpec((n, d), lambda s: (0, 0)),
        pl.BlockSpec((n, d), lambda s: (0, 0)),
        pl.BlockSpec((n, 128), lambda s: (0, 0)),
        pl.BlockSpec((tk, d), lambda s: (s, 0)),
        pl.BlockSpec((1, d), lambda s: (0, 0)),
    )
    cost = pl.CostEstimate(
        flops=4 * n * f * d + 3 * f * d,
        transcendentals=2 * n,
        bytes_accessed=4 * (3 * f * d + 2 * n * f + 2 * n * d + n * 128 + 4 * d))
    return pl.pallas_call(
        kernel,
        out_shape=out_shape,
        grid=grid,
        in_specs=in_specs,
        out_specs=out_specs,
        scratch_shapes=[pltpu.VMEM((n, d), jnp.float32),   # acc_q
                        pltpu.VMEM((n, d), jnp.float32)],  # acc_k
        # momentum update writes w_k / b_k in place (donates those buffers)
        input_output_aliases={3: 3, 5: 4},
        cost_estimate=cost,
        compiler_params=pltpu.CompilerParams(
            dimension_semantics=("arbitrary",),
            vmem_limit_bytes=_scoped_vmem_limit_bytes()),
    )(x_q, x_k, w_q, w_k, b_q, b_k)


# --------------------------------------------------------------------------
# Kernel 2: l_neg = (q @ queue^T) / T, tiled over queue rows (negatives)
#   grid = (K // tn,)   — independent output tiles ("parallel", megacore-split)
# --------------------------------------------------------------------------
def _lneg_kernel(q_ref, queue_ref, out_ref, *, inv_t):
    # The queue is *streamed* from HBM in bf16 (that stream is the bottleneck);
    # the tile is upcast in-VMEM and accumulated in f32 on the MXU, which has
    # huge slack at this batch size.
    # TODO(synk): at large batch also feed q in bf16 (bf16xbf16 MXU path).
    qtile = queue_ref[...].astype(jnp.float32)
    out_ref[...] = lax.dot_general(
        q_ref[...], qtile,
        dimension_numbers=(((1,), (1,)), ((), ())),     # contract feature dims
        preferred_element_type=jnp.float32) * inv_t


def moco_l_neg(q, queue, *, t, block_k=None):
    n, d = q.shape
    k_total, d2 = queue.shape
    assert d == d2, (d, d2)
    if block_k is None:
        # Cap at K/4 so v7x's two cores each get >=2 grid steps.
        tn = _pick_tile(k_total, max(128, min(4096, k_total // 4)))
    else:
        tn = block_k
    assert k_total % tn == 0, (k_total, tn)
    cost = pl.CostEstimate(
        flops=2 * n * d * k_total,
        transcendentals=0,
        bytes_accessed=(k_total * d * jnp.dtype(queue.dtype).itemsize
                        + n * d * 4 + n * k_total * 4))
    return pl.pallas_call(
        functools.partial(_lneg_kernel, inv_t=float(1.0 / t)),
        out_shape=jax.ShapeDtypeStruct((n, k_total), jnp.float32),
        grid=(k_total // tn,),
        in_specs=[pl.BlockSpec((n, d), lambda j: (0, 0)),      # q (resident)
                  pl.BlockSpec((tn, d), lambda j: (j, 0))],    # queue tile (bf16 stream)
        out_specs=pl.BlockSpec((n, tn), lambda j: (0, j)),     # lane-dense output tile
        cost_estimate=cost,
        compiler_params=pltpu.CompilerParams(
            dimension_semantics=("parallel",),
            vmem_limit_bytes=_scoped_vmem_limit_bytes()),
    )(q, queue)


# --------------------------------------------------------------------------
# MoCo module
# --------------------------------------------------------------------------
class MoCoPallas:
    def __init__(self, key, in_features, dim=DIM, K=K_QUEUE, m=M_MOMENTUM, T=TEMP,
                 block_f=None, block_k=None):
        k0, k1, k2 = jax.random.split(key, 3)
        self.in_features = in_features
        self.f_pad = ((in_features + 127) // 128) * 128   # 128-aligned feature axis

        scale = float(1.0 / (in_features ** 0.5))
        w = jax.random.uniform(k0, (self.f_pad, dim), jnp.float32, -scale, scale)
        if self.f_pad != in_features:
            # zero the padded weight rows: padded x columns are zero, and the
            # momentum update keeps zero rows at exactly zero.
            w = w * (jnp.arange(self.f_pad) < in_features)[:, None]
        self.w_q = w
        self.b_q = jax.random.uniform(k1, (1, dim), jnp.float32, -scale, scale)
        # key encoder = independent copy (torch: param_k.copy_(param_q));
        # must be a distinct buffer because forward updates it in place.
        self.w_k = jnp.array(self.w_q, copy=True)
        self.b_k = jnp.array(self.b_q, copy=True)

        # TODO(synk): support K not divisible by 128 via padding + a masked
        # remainder step; the module default (65536) and this toy (512) are fine.
        assert K % 128 == 0, "queue length must be a multiple of 128"
        # Queue stored ROW-major (K, dim), one normalized negative per row, in
        # bf16 (HBM-roofline win on the l_neg read and on the enqueue write).
        queue = jax.random.normal(k2, (K, dim), jnp.float32)
        queue = queue / jnp.linalg.norm(queue, axis=1, keepdims=True)
        self.queue = queue.astype(QUEUE_DTYPE)
        self.queue_ptr = 0
        self.K, self.m, self.T = K, m, T
        self.block_f, self.block_k = block_f, block_k

    def _dequeue_and_enqueue(self, keys):
        n = keys.shape[0]
        ptr = self.queue_ptr
        if ptr + n > self.K:            # wrap-around, same branch structure as torch
            first = self.K - ptr
            self.queue = lax.dynamic_update_slice(self.queue, keys[:first], (ptr, 0))
            self.queue = lax.dynamic_update_slice(self.queue, keys[first:], (0, 0))
        else:
            self.queue = lax.dynamic_update_slice(self.queue, keys, (ptr, 0))
        self.queue_ptr = int((ptr + n) % self.K)

    def forward(self, im_q, im_k, update_queue=True):
        n = im_q.shape[0]
        x_q = _flatten_pad(im_q, self.f_pad)   # NCHW -> (N, f_pad)
        x_k = _flatten_pad(im_k, self.f_pad)

        q, k, lpos, w_k_new, b_k_new = fused_momentum_encode(
            x_q, x_k, self.w_q, self.w_k, self.b_q, self.b_k,
            m=self.m, t=self.T, block_f=self.block_f)
        self.w_k, self.b_k = w_k_new, b_k_new       # momentum update done in-kernel

        l_neg = moco_l_neg(q, self.queue, t=self.T, block_k=self.block_k)

        # TODO(synk): at production K (65536) fuse this concat into the
        # downstream cross-entropy (or return l_pos / l_neg separately) to avoid
        # an extra HBM pass over the (N, K) slab; kept so the returned logits
        # layout matches the PyTorch module exactly.
        logits = jnp.concatenate([lpos[:, :1], l_neg], axis=1)
        # TODO(synk): torch returns int64 ("long") labels; int32 kept for TPU.
        labels = jnp.zeros((n,), dtype=jnp.int32)

        if update_queue:
            self._dequeue_and_enqueue(k.astype(self.queue.dtype))
        return logits, labels


# --------------------------------------------------------------------------
# reference (plain JAX)
# --------------------------------------------------------------------------
def _reference_forward(w_q, b_q, w_k, b_k, queue_rows, im_q, im_k, m, T, f_pad):
    n = im_q.shape[0]
    w_k = w_k * m + w_q * (1.0 - m)
    b_k = b_k * m + b_q * (1.0 - m)

    def enc_norm(x, w, b):
        f = jnp.dot(_flatten_pad(x, f_pad), w, precision=lax.Precision.HIGHEST) + b
        nrm = jnp.maximum(jnp.linalg.norm(f, axis=1, keepdims=True), EPS_NORM)
        return f / nrm

    q = enc_norm(im_q, w_q, b_q)
    k = enc_norm(im_k, w_k, b_k)
    l_pos = jnp.sum(q * k, axis=1, keepdims=True)
    # queue is stored bf16; the kernel upcasts the streamed tile, same here.
    l_neg = jnp.dot(q, queue_rows.astype(jnp.float32).T, precision=lax.Precision.HIGHEST)
    logits = jnp.concatenate([l_pos, l_neg], axis=1) / T
    return logits, jnp.zeros((n,), jnp.int32), k, w_k, b_k


# --------------------------------------------------------------------------
# main
# --------------------------------------------------------------------------
if __name__ == "__main__":
    key = jax.random.PRNGKey(0)
    k_model, k_q, k_k = jax.random.split(key, 3)

    # in_features = 8192 -> default tk = 4096 exercises the 2-step contraction;
    # K = 512 -> default tn = 128 exercises the 4-step "parallel" queue grid.
    N, C, H, W = 8, 8, 32, 32
    im_q = jax.random.normal(k_q, (N, C, H, W), jnp.float32)
    im_k = jax.random.normal(k_k, (N, C, H, W), jnp.float32)

    model = MoCoPallas(k_model, in_features=C * H * W)

    # snapshot-based reference before forward mutates state (w_k, b_k, queue);
    # block so the pre-update params are fully consumed before the in-place
    # (donated) w_k / b_k update inside forward().
    ref_logits, ref_labels, ref_k, ref_wk, ref_bk = _reference_forward(
        model.w_q, model.b_q, model.w_k, model.b_k, model.queue,
        im_q, im_k, model.m, model.T, model.f_pad)
    jax.block_until_ready((ref_logits, ref_k, ref_wk, ref_bk))

    logits, labels = model.forward(im_q, im_k, update_queue=True)
    logits = jax.block_until_ready(logits)
    labels = jax.block_until_ready(labels)

    assert logits.shape == (N, 1 + K_QUEUE), logits.shape
    assert labels.shape == (N,) and labels.dtype == jnp.int32
    err = float(jnp.max(jnp.abs(logits - ref_logits)))
    assert jnp.allclose(logits, ref_logits, atol=2e-3, rtol=2e-3), err
    assert jnp.allclose(model.w_k, ref_wk, atol=1e-5, rtol=1e-5)
    assert jnp.allclose(model.b_k, ref_bk, atol=1e-5, rtol=1e-5)
    # queue rows [0:N) now hold the freshly enqueued keys (bf16 storage,
    # hence the bf16-level tolerance on this check only)
    assert jnp.allclose(model.queue[:N].astype(jnp.float32), ref_k,
                        atol=4e-3, rtol=4e-3)
    assert model.queue_ptr == N

    print("KERNEL_OK")
</pallas_src>

<mosaic_0001>
module attributes {stable_mosaic.version = 11 : i64} {
  func.func @_fused_encode_kernel(%arg0: i32, %arg1: memref<8x4096xf32, #tpu.memory_space<vmem>>, %arg2: memref<8x4096xf32, #tpu.memory_space<vmem>>, %arg3: memref<4096x128xf32, #tpu.memory_space<vmem>>, %arg4: memref<4096x128xf32, #tpu.memory_space<vmem>>, %arg5: memref<1x128xf32, #tpu.memory_space<vmem>>, %arg6: memref<1x128xf32, #tpu.memory_space<vmem>>, %arg7: memref<8x128xf32, #tpu.memory_space<vmem>>, %arg8: memref<8x128xf32, #tpu.memory_space<vmem>>, %arg9: memref<8x128xf32, #tpu.memory_space<vmem>>, %arg10: memref<4096x128xf32, #tpu.memory_space<vmem>>, %arg11: memref<1x128xf32, #tpu.memory_space<vmem>>, %arg12: memref<8x128xf32, #tpu.memory_space<vmem>>, %arg13: memref<8x128xf32, #tpu.memory_space<vmem>>) attributes {dimension_semantics = [#tpu.dimension_semantics<arbitrary>], iteration_bounds = array<i64: 2>, scalar_prefetch = 0 : i64, scratch_operands = 2 : i64, tpu.core_type = #tpu.core_type<tc>, window_params = [{transform_indices = @transform_0, window_bounds = array<i64: 8, 4096>}, {transform_indices = @transform_1, window_bounds = array<i64: 8, 4096>}, {transform_indices = @transform_2, window_bounds = array<i64: 4096, 128>}, {transform_indices = @transform_3, window_bounds = array<i64: 4096, 128>}, {pipeline_mode = #tpu.pipeline_mode<synchronous>, transform_indices = @transform_4, window_bounds = array<i64: 1, 128>}, {pipeline_mode = #tpu.pipeline_mode<synchronous>, transform_indices = @transform_5, window_bounds = array<i64: 1, 128>}, {pipeline_mode = #tpu.pipeline_mode<synchronous>, transform_indices = @transform_6, window_bounds = array<i64: 8, 128>}, {pipeline_mode = #tpu.pipeline_mode<synchronous>, transform_indices = @transform_7, window_bounds = array<i64: 8, 128>}, {pipeline_mode = #tpu.pipeline_mode<synchronous>, transform_indices = @transform_8, window_bounds = array<i64: 8, 128>}, {transform_indices = @transform_9, window_bounds = array<i64: 4096, 128>}, {pipeline_mode = #tpu.pipeline_mode<synchronous>, transform_indices = @transform_10, window_bounds = array<i64: 1, 128>}]} {
    %c0_i32 = arith.constant 0 : i32
    %0 = arith.cmpi eq, %arg0, %c0_i32 : i32
    %1 = arith.extui %0 : i1 to i32
    %c0_i32_0 = arith.constant 0 : i32
    %2 = arith.cmpi ne, %1, %c0_i32_0 : i32
    scf.if %2 {
      %cst_22 = arith.constant 0.000000e+00 : f32
      %24 = vector.broadcast %cst_22 : f32 to vector<8x128xf32>
      %c0_23 = arith.constant 0 : index
      %c0_24 = arith.constant 0 : index
      %25 = vector.load %arg12[%c0_23, %c0_24] : memref<8x128xf32, #tpu.memory_space<vmem>>, vector<8x128xf32>
      tpu.vector_store %arg12[%c0_23, %c0_24], %24 {strides = array<i32>} : memref<8x128xf32, #tpu.memory_space<vmem>>, vector<8x128xf32>,
      %cst_25 = arith.constant 0.000000e+00 : f32
      %26 = vector.broadcast %cst_25 : f32 to vector<8x128xf32>
      %c0_26 = arith.constant 0 : index
      %c0_27 = arith.constant 0 : index
      %27 = vector.load %arg13[%c0_26, %c0_27] : memref<8x128xf32, #tpu.memory_space<vmem>>, vector<8x128xf32>
      tpu.vector_store %arg13[%c0_26, %c0_27], %26 {strides = array<i32>} : memref<8x128xf32, #tpu.memory_space<vmem>>, vector<8x128xf32>,
    } else {
    }
    %c0 = arith.constant 0 : index
    %c0_1 = arith.constant 0 : index
    %3 = vector.load %arg3[%c0, %c0_1] : memref<4096x128xf32, #tpu.memory_space<vmem>>, vector<4096x128xf32>
    %c0_2 = arith.constant 0 : index
    %c0_3 = arith.constant 0 : index
    %4 = vector.load %arg4[%c0_2, %c0_3] : memref<4096x128xf32, #tpu.memory_space<vmem>>, vector<4096x128xf32>
    %cst = arith.constant 0.999599993 : f32
    %5 = vector.broadcast %cst : f32 to vector<4096x128xf32>
    %6 = arith.mulf %4, %5 : vector<4096x128xf32>
    %cst_4 = arith.constant 4.000000e-04 : f32
    %7 = vector.broadcast %cst_4 : f32 to vector<4096x128xf32>
    %8 = arith.mulf %3, %7 : vector<4096x128xf32>
    %9 = arith.addf %6, %8 : vector<4096x128xf32>
    %c0_5 = arith.constant 0 : index
    %c0_6 = arith.constant 0 : index
    %10 = vector.load %arg10[%c0_5, %c0_6] : memref<4096x128xf32, #tpu.memory_space<vmem>>, vector<4096x128xf32>
    tpu.vector_store %arg10[%c0_5, %c0_6], %9 {strides = array<i32>} : memref<4096x128xf32, #tpu.memory_space<vmem>>, vector<4096x128xf32>,
    %c0_7 = arith.constant 0 : index
    %c0_8 = arith.constant 0 : index
    %11 = vector.load %arg12[%c0_7, %c0_8] : memref<8x128xf32, #tpu.memory_space<vmem>>, vector<8x128xf32>
    %c0_9 = arith.constant 0 : index
    %c0_10 = arith.constant 0 : index
    %12 = vector.load %arg1[%c0_9, %c0_10] : memref<8x4096xf32, #tpu.memory_space<vmem>>, vector<8x4096xf32>
    %cst_11 = arith.constant dense<0.000000e+00> : vector<8x128xf32>
    %13 = tpu.matmul %12, %3, %cst_11 {dimension_numbers = #tpu.dot_dimension_numbers<[1], [0], [0], [1], [0, 0, 1, 1], [], []>} : vector<8x4096xf32>, vector<4096x128xf32>, vector<8x128xf32> -> vector<8x128xf32>
    %14 = arith.addf %11, %13 : vector<8x128xf32>
    %c0_12 = arith.constant 0 : index
    %c0_13 = arith.constant 0 : index
    %15 = vector.load %arg12[%c0_12, %c0_13] : memref<8x128xf32, #tpu.memory_space<vmem>>, vector<8x128xf32>
    tpu.vector_store %arg12[%c0_12, %c0_13], %14 {strides = array<i32>} : memref<8x128xf32, #tpu.memory_space<vmem>>, vector<8x128xf32>,
    %c0_14 = arith.constant 0 : index
    %c0_15 = arith.constant 0 : index
    %16 = vector.load %arg13[%c0_14, %c0_15] : memref<8x128xf32, #tpu.memory_space<vmem>>, vector<8x128xf32>
    %c0_16 = arith.constant 0 : index
    %c0_17 = arith.constant 0 : index
    %17 = vector.load %arg2[%c0_16, %c0_17] : memref<8x4096xf32, #tpu.memory_space<vmem>>, vector<8x4096xf32>
    %cst_18 = arith.constant dense<0.000000e+00> : vector<8x128xf32>
    %18 = tpu.matmul %17, %9, %cst_18 {dimension_numbers = #tpu.dot_dimension_numbers<[1], [0], [0], [1], [0, 0, 1, 1], [], []>} : vector<8x4096xf32>, vector<4096x128xf32>, vector<8x128xf32> -> vector<8x128xf32>
    %19 = arith.addf %16, %18 : vector<8x128xf32>
    %c0_19 = arith.constant 0 : index
    %c0_20 = arith.constant 0 : index
    %20 = vector.load %arg13[%c0_19, %c0_20] : memref<8x128xf32, #tpu.memory_space<vmem>>, vector<8x128xf32>
    tpu.vector_store %arg13[%c0_19, %c0_20], %19 {strides = array<i32>} : memref<8x128xf32, #tpu.memory_space<vmem>>, vector<8x128xf32>,
    %c1_i32 = arith.constant 1 : i32
    %21 = arith.cmpi eq, %arg0, %c1_i32 : i32
    %22 = arith.extui %21 : i1 to i32
    %c0_i32_21 = arith.constant 0 : i32
    %23 = arith.cmpi ne, %22, %c0_i32_21 : i32
    scf.if %23 {
      %c0_22 = arith.constant 0 : index
      %c0_23 = arith.constant 0 : index
      %24 = vector.load %arg5[%c0_22, %c0_23] : memref<1x128xf32, #tpu.memory_space<vmem>>, vector<1x128xf32>
      %c0_24 = arith.constant 0 : index
      %c0_25 = arith.constant 0 : index
      %25 = vector.load %arg6[%c0_24, %c0_25] : memref<1x128xf32, #tpu.memory_space<vmem>>, vector<1x128xf32>
      %cst_26 = arith.constant 0.999599993 : f32
      %26 = vector.broadcast %cst_26 : f32 to vector<1x128xf32>
      %27 = arith.mulf %25, %26 : vector<1x128xf32>
      %cst_27 = arith.constant 4.000000e-04 : f32
      %28 = vector.broadcast %cst_27 : f32 to vector<1x128xf32>
      %29 = arith.mulf %24, %28 : vector<1x128xf32>
      %30 = arith.addf %27, %29 : vector<1x128xf32>
      %c0_28 = arith.constant 0 : index
      %c0_29 = arith.constant 0 : index
      %31 = vector.load %arg11[%c0_28, %c0_29] : memref<1x128xf32, #tpu.memory_space<vmem>>, vector<1x128xf32>
      tpu.vector_store %arg11[%c0_28, %c0_29], %30 {strides = array<i32>} : memref<1x128xf32, #tpu.memory_space<vmem>>, vector<1x128xf32>,
      %c0_30 = arith.constant 0 : index
      %c0_31 = arith.constant 0 : index
      %32 = vector.load %arg12[%c0_30, %c0_31] : memref<8x128xf32, #tpu.memory_space<vmem>>, vector<8x128xf32>
      %33 = vector.broadcast %24 : vector<1x128xf32> to vector<8x128xf32>
      %34 = arith.addf %32, %33 : vector<8x128xf32>
      %c0_32 = arith.constant 0 : index
      %c0_33 = arith.constant 0 : index
      %35 = vector.load %arg13[%c0_32, %c0_33] : memref<8x128xf32, #tpu.memory_space<vmem>>, vector<8x128xf32>
      %36 = vector.broadcast %30 : vector<1x128xf32> to vector<8x128xf32>
      %37 = arith.addf %35, %36 : vector<8x128xf32>
      %38 = arith.mulf %34, %34 : vector<8x128xf32>
      %cst_34 = arith.constant dense<0.000000e+00> : vector<8xf32>
      %39 = vector.multi_reduction <add>, %38, %cst_34 [1] : vector<8x128xf32> to vector<8xf32>
      %40 = vector.shape_cast %39 : vector<8xf32> to vector<8x1xf32>
      %41 = math.sqrt %40 : vector<8x1xf32>
      %42 = arith.mulf %37, %37 : vector<8x128xf32>
      %cst_35 = arith.constant dense<0.000000e+00> : vector<8xf32>
      %43 = vector.multi_reduction <add>, %42, %cst_35 [1] : vector<8x128xf32> to vector<8xf32>
      %44 = vector.shape_cast %43 : vector<8xf32> to vector<8x1xf32>
      %45 = math.sqrt %44 : vector<8x1xf32>
      %cst_36 = arith.constant 9.99999996E-13 : f32
      %46 = vector.broadcast %cst_36 : f32 to vector<8x1xf32>
      %47 = arith.maximumf %41, %46 : vector<8x1xf32>
      %48 = vector.broadcast %47 : vector<8x1xf32> to vector<8x128xf32>
      %49 = arith.divf %34, %48 : vector<8x128xf32>
      %cst_37 = arith.constant 9.99999996E-13 : f32
      %50 = vector.broadcast %cst_37 : f32 to vector<8x1xf32>
      %51 = arith.maximumf %45, %50 : vector<8x1xf32>
      %52 = vector.broadcast %51 : vector<8x1xf32> to vector<8x128xf32>
      %53 = arith.divf %37, %52 : vector<8x128xf32>
      %c0_38 = arith.constant 0 : index
      %c0_39 = arith.constant 0 : index
      %54 = vector.load %arg7[%c0_38, %c0_39] : memref<8x128xf32, #tpu.memory_space<vmem>>, vector<8x128xf32>
      tpu.vector_store %arg7[%c0_38, %c0_39], %49 {strides = array<i32>} : memref<8x128xf32, #tpu.memory_space<vmem>>, vector<8x128xf32>,
      %c0_40 = arith.constant 0 : index
      %c0_41 = arith.constant 0 : index
      %55 = vector.load %arg8[%c0_40, %c0_41] : memref<8x128xf32, #tpu.memory_space<vmem>>, vector<8x128xf32>
      tpu.vector_store %arg8[%c0_40, %c0_41], %53 {strides = array<i32>} : memref<8x128xf32, #tpu.memory_space<vmem>>, vector<8x128xf32>,
      %56 = arith.mulf %49, %53 : vector<8x128xf32>
      %cst_42 = arith.constant dense<0.000000e+00> : vector<8xf32>
      %57 = vector.multi_reduction <add>, %56, %cst_42 [1] : vector<8x128xf32> to vector<8xf32>
      %58 = vector.shape_cast %57 : vector<8xf32> to vector<8x1xf32>
      %cst_43 = arith.constant 14.2857141 : f32
      %59 = vector.broadcast %cst_43 : f32 to vector<8x1xf32>
      %60 = arith.mulf %58, %59 : vector<8x1xf32>
      %61 = vector.shape_cast %60 : vector<8x1xf32> to vector<8x1xf32>
      %62 = vector.broadcast %61 : vector<8x1xf32> to vector<8x128xf32>
      %c0_44 = arith.constant 0 : index
      %c0_45 = arith.constant 0 : index
      %63 = vector.load %arg9[%c0_44, %c0_45] : memref<8x128xf32, #tpu.memory_space<vmem>>, vector<8x128xf32>
      tpu.vector_store %arg9[%c0_44, %c0_45], %62 {strides = array<i32>} : memref<8x128xf32, #tpu.memory_space<vmem>>, vector<8x128xf32>,
    } else {
    }
    return
  }
  func.func @transform_0(%arg0: i32) -> (i32, i32) {
    %c0_i32 = arith.constant 0 : i32
    %c0_i32_0 = arith.constant 0 : i32
    return %c0_i32, %arg0 : i32, i32
  }
  func.func @transform_1(%arg0: i32) -> (i32, i32) {
    %c0_i32 = arith.constant 0 : i32
    %c0_i32_0 = arith.constant 0 : i32
    return %c0_i32, %arg0 : i32, i32
  }
  func.func @transform_2(%arg0: i32) -> (i32, i32) {
    %c0_i32 = arith.constant 0 : i32
    %c0_i32_0 = arith.constant 0 : i32
    return %arg0, %c0_i32 : i32, i32
  }
  func.func @transform_3(%arg0: i32) -> (i32, i32) {
    %c0_i32 = arith.constant 0 : i32
    %c0_i32_0 = arith.constant 0 : i32
    return %arg0, %c0_i32 : i32, i32
  }
  func.func @transform_4(%arg0: i32) -> (i32, i32) {
    %c0_i32 = arith.constant 0 : i32
    %c0_i32_0 = arith.constant 0 : i32
    %c0_i32_1 = arith.constant 0 : i32
    return %c0_i32, %c0_i32_0 : i32, i32
  }
  func.func @transform_5(%arg0: i32) -> (i32, i32) {
    %c0_i32 = arith.constant 0 : i32
    %c0_i32_0 = arith.constant 0 : i32
    %c0_i32_1 = arith.constant 0 : i32
    return %c0_i32, %c0_i32_0 : i32, i32
  }
  func.func @transform_6(%arg0: i32) -> (i32, i32) {
    %c0_i32 = arith.constant 0 : i32
    %c0_i32_0 = arith.constant 0 : i32
    %c0_i32_1 = arith.constant 0 : i32
    return %c0_i32, %c0_i32_0 : i32, i32
  }
  func.func @transform_7(%arg0: i32) -> (i32, i32) {
    %c0_i32 = arith.constant 0 : i32
    %c0_i32_0 = arith.constant 0 : i32
    %c0_i32_1 = arith.constant 0 : i32
    return %c0_i32, %c0_i32_0 : i32, i32
  }
  func.func @transform_8(%arg0: i32) -> (i32, i32) {
    %c0_i32 = arith.constant 0 : i32
    %c0_i32_0 = arith.constant 0 : i32
    %c0_i32_1 = arith.constant 0 : i32
    return %c0_i32, %c0_i32_0 : i32, i32
  }
  func.func @transform_9(%arg0: i32) -> (i32, i32) {
    %c0_i32 = arith.constant 0 : i32
    %c0_i32_0 = arith.constant 0 : i32
    return %arg0, %c0_i32 : i32, i32
  }
  func.func @transform_10(%arg0: i32) -> (i32, i32) {
    %c0_i32 = arith.constant 0 : i32
    %c0_i32_0 = arith.constant 0 : i32
    %c0_i32_1 = arith.constant 0 : i32
    return %c0_i32, %c0_i32_0 : i32, i32
  }
}

</mosaic_0001>

<llo_original>
// kernel: tpu_custom_call.1
$region0: #{tpu_custom_call.1}
  #allocation0 [shape = 'u32[]', space=smem, size = 0x4, offset = 0x4, fixed_abs, tag = 'smem constant byte address 0x4 - core index']
  #allocation1 [shape = 'u32[144,128]{1,0:T(1,128)}', space=vmem, size = 0x12000, scoped, tag = 'internal scratch']
  #allocation2 [shape = 'f32[8,128]{1,0:T(8,128)}', space=vmem, size = 0x1000, scoped, tag = 'scratch operand']
  #allocation3 [shape = 'f32[8,128]{1,0:T(8,128)}', space=vmem, size = 0x1000, scoped, tag = 'scratch operand']
  %s0 = inlined_call_operand.vmem [shape: f32[8,8192], index: 0, kind: input, shape index: {}]
  %s1 = inlined_call_operand.vmem [shape: f32[8,8192], index: 1, kind: input, shape index: {}]
  %s2 = inlined_call_operand.vmem [shape: f32[8192,128], index: 2, kind: input, shape index: {}]
  %s3 = inlined_call_operand.hbm [shape: f32[8192,128], index: 3, kind: input, shape index: {}, may-alias: {3,9}]
  %s4 = inlined_call_operand.vmem [shape: f32[1,128], index: 4, kind: input, shape index: {}]
  %s5 = inlined_call_operand.hbm [shape: f32[1,128], index: 5, kind: input, shape index: {}, may-alias: {5,10}]
  %s6 = inlined_call_operand.hbm [shape: f32[8,128], index: 6, kind: output, shape index: {0}]
  %s7 = inlined_call_operand.hbm [shape: f32[8,128], index: 7, kind: output, shape index: {1}]
  %s8 = inlined_call_operand.hbm [shape: f32[8,128], index: 8, kind: output, shape index: {2}]
  %s9 = inlined_call_operand.hbm [shape: f32[8192,128], index: 9, kind: output, shape index: {3}, may-alias: {3,9}]
  %s10 = inlined_call_operand.hbm [shape: f32[1,128], index: 10, kind: output, shape index: {4}, may-alias: {5,10}]
  %11 = xla_tuple %s6, %s7, %s8, %s9, %s10
  %s12 = sld [smem:[#allocation0]]
  $region105: #{tpu_custom_call.1} parent=0
    _
  %s14 = ssub.s32 1, %s12
  %s15 = scalar_select 0, %s14, %s12
  $region1: #{tpu_custom_call.1} parent=0
    #allocation4 [shape = 'u8[4194304]{0}', space=vmem, size = 0x400000, scoped, tag = 'input window, operand 3']
    #allocation5 [shape = 's32[2]{0}', space=sflag, size = 0x8, scoped, tag = 'scoped memory for tpu_custom_call.1']
    #allocation6 [shape = 's32[2]{0}', space=sflag, size = 0x8, scoped, tag = 'scoped memory for tpu_custom_call.1']
    #allocation7 [shape = 'u8[512]{0}', space=vmem, size = 0x400, scoped, tag = 'input window, operand 5, single buffered']
    #allocation8 [shape = 's32[1]{0}', space=sflag, size = 0x4, scoped, tag = 'scoped memory for tpu_custom_call.1']
    #allocation9 [shape = 'u8[4096]{0}', space=vmem, size = 0x1000, scoped, tag = 'output window, operand 0, single buffered']
    #allocation10 [shape = 'u8[4096]{0}', space=vmem, size = 0x1000, scoped, tag = 'output window, operand 1, single buffered']
    #allocation11 [shape = 's32[1]{0}', space=sflag, size = 0x4, scoped, tag = 'scoped memory for tpu_custom_call.1']
    #allocation12 [shape = 'u8[4096]{0}', space=vmem, size = 0x1000, scoped, tag = 'output window, operand 2, single buffered']
    #allocation13 [shape = 'u8[4194304]{0}', space=vmem, size = 0x400000, scoped, tag = 'output window, operand 3']
    #allocation14 [shape = 's32[2]{0}', space=sflag, size = 0x8, scoped, tag = 'scoped memory for tpu_custom_call.1']
    #allocation15 [shape = 'u8[512]{0}', space=vmem, size = 0x400, scoped, tag = 'output window, operand 4, single buffered']
    %16 = vsyncpa [#allocation5], 0
    %s17 = scalar_lea.sflag [#allocation5], 1
    %18 = vsyncpa %s17, 0
    %19 = vsyncpa [#allocation8], 0
    %20 = vsyncpa [#allocation6], 0
    %21 = vsyncpa [#allocation11], 0
    %22 = vsyncpa [#allocation14], 0
    %s23 = scalar_lea.sflag [#allocation14], 1
    %24 = vsyncpa %s23, 0
    loop: start=0, step=1, limit=4
    $region2: #{tpu_custom_call.1} parent=1 // loop_pre_header
      _
    $region3: #{tpu_custom_call.1} parent=1 // loop_header
      %s26 = sphi 0, %s30
      %p27 = scmp.ge.s32.totalorder %s26, 4
      %s36 = sphi 0, %s38
      %s39 = sphi 0, %s36
      %s40 = sphi 0, %s39
      %s56 = sphi 0, %s40
      %s62 = sphi 0, %s64
      %s65 = sphi 0, %s62
      %s66 = sphi 0, %s65
      %s82 = sphi 0, %s66
      %s88 = sphi 0, %s90
      %s91 = sphi 0, %s88
      %s92 = sphi 0, %s91
      %s108 = sphi 0, %s92
      %s114 = sphi 0, %s116
      %s117 = sphi 0, %s114
      %s118 = sphi 0, %s117
      %s134 = sphi 0, %s118
      %s138 = sphi 0, %s138
      %s140 = sphi 0, %s138
      %s141 = sphi 0, %s140
      %s155 = sphi 0, %s141
      %s159 = sphi 0, %s159
      %s161 = sphi 0, %s159
      %s162 = sphi 0, %s161
      %s176 = sphi 0, %s162
      %s180 = sphi 0, %s180
      %s182 = sphi 0, %s180
      %s183 = sphi 0, %s182
      %s197 = sphi 0, %s183
      %s201 = sphi 0, %s201
      %s203 = sphi 0, %s201
      %s204 = sphi 0, %s203
      %s218 = sphi 0, %s204
      %s222 = sphi 0, %s222
      %s224 = sphi 0, %s222
      %s225 = sphi 0, %s224
      %s239 = sphi 0, %s225
      %s245 = sphi 0, %s247
      %s248 = sphi 0, %s245
      %s249 = sphi 0, %s248
      %s265 = sphi 0, %s249
      %s269 = sphi 0, %s269
      %s271 = sphi 0, %s269
      %s272 = sphi 0, %s271
      %s286 = sphi 0, %s272
    $region4: #{tpu_custom_call.1} parent=1 // loop_header_branch
      %29 = sbr.rel (%p27) target = $region8
    $region5: #{tpu_custom_call.1} parent=1 // loop_body
      %s31 = ssub.s32 %s26, 1
      %s32 = ssub.s32 %s26, 2
      %s33 = sadd.s32 %s26, 1
      %s34 = ssub.s32 %s26, %s33
      %p35 = scmp.eq.s32.totalorder %s34, 0
      %s37 = sadd.s32 %s36, 1
      %s38 = scalar_select %p35, %s36, %s37
      %p41 = pneg %p35
      %p42 = scmp.eq.s32.totalorder %s26, 1
      %p43 = por %p41, %p42
      %p44 = scmp.ne.s32.totalorder %s36, %s39
      %p45 = scmp.eq.s32.totalorder %s26, 0
      %p46 = por %p44, %p45
      %p47 = scmp.ne.s32.totalorder %s36, %s39
      %p48 = scmp.eq.s32.totalorder %s31, 1
      %p49 = por %p47, %p48
      %p50 = scmp.ne.s32.totalorder %s39, %s40
      %p51 = scmp.eq.s32.totalorder %s31, 0
      %p52 = por %p50, %p51
      %p53 = scmp.ne.s32.totalorder %s39, %s40
      %p54 = scmp.eq.s32.totalorder %s32, 1
      %p55 = por %p53, %p54
      %p57 = scmp.ne.s32.totalorder %s40, %s56
      %p58 = scmp.eq.s32.totalorder %s32, 0
      %p59 = por %p57, %p58
      %s60 = ssub.s32 %s26, %s33
      %p61 = scmp.eq.s32.totalorder %s60, 0
      %s63 = sadd.s32 %s62, 1
      %s64 = scalar_select %p61, %s62, %s63
      %p67 = pneg %p61
      %p68 = scmp.eq.s32.totalorder %s26, 1
      %p69 = por %p67, %p68
      %p70 = scmp.ne.s32.totalorder %s62, %s65
      %p71 = scmp.eq.s32.totalorder %s26, 0
      %p72 = por %p70, %p71
      %p73 = scmp.ne.s32.totalorder %s62, %s65
      %p74 = scmp.eq.s32.totalorder %s31, 1
      %p75 = por %p73, %p74
      %p76 = scmp.ne.s32.totalorder %s65, %s66
      %p77 = scmp.eq.s32.totalorder %s31, 0
      %p78 = por %p76, %p77
      %p79 = scmp.ne.s32.totalorder %s65, %s66
      %p80 = scmp.eq.s32.totalorder %s32, 1
      %p81 = por %p79, %p80
      %p83 = scmp.ne.s32.totalorder %s66, %s82
      %p84 = scmp.eq.s32.totalorder %s32, 0
      %p85 = por %p83, %p84
      %s86 = ssub.s32 %s26, %s33
      %p87 = scmp.eq.s32.totalorder %s86, 0
      %s89 = sadd.s32 %s88, 1
      %s90 = scalar_select %p87, %s88, %s89
      %p93 = pneg %p87
      %p94 = scmp.eq.s32.totalorder %s26, 1
      %p95 = por %p93, %p94
      %p96 = scmp.ne.s32.totalorder %s88, %s91
      %p97 = scmp.eq.s32.totalorder %s26, 0
      %p98 = por %p96, %p97
      %p99 = scmp.ne.s32.totalorder %s88, %s91
      %p100 = scmp.eq.s32.totalorder %s31, 1
      %p101 = por %p99, %p100
      %p102 = scmp.ne.s32.totalorder %s91, %s92
      %p103 = scmp.eq.s32.totalorder %s31, 0
      %p104 = por %p102, %p103
      %p105 = scmp.ne.s32.totalorder %s91, %s92
      %p106 = scmp.eq.s32.totalorder %s32, 1
      %p107 = por %p105, %p106
      %p109 = scmp.ne.s32.totalorder %s92, %s108
      %p110 = scmp.eq.s32.totalorder %s32, 0
      %p111 = por %p109, %p110
      %s112 = ssub.s32 %s26, %s33
      %p113 = scmp.eq.s32.totalorder %s112, 0
      %s115 = sadd.s32 %s114, 1
      %s116 = scalar_select %p113, %s114, %s115
      %p119 = pneg %p113
      %p120 = scmp.eq.s32.totalorder %s26, 1
      %p121 = por %p119, %p120
      %p122 = scmp.ne.s32.totalorder %s114, %s117
      %p123 = scmp.eq.s32.totalorder %s26, 0
      %p124 = por %p122, %p123
      %p125 = scmp.ne.s32.totalorder %s114, %s117
      %p126 = scmp.eq.s32.totalorder %s31, 1
      %p127 = por %p125, %p126
      %p128 = scmp.ne.s32.totalorder %s117, %s118
      %p129 = scmp.eq.s32.totalorder %s31, 0
      %p130 = por %p128, %p129
      %p131 = scmp.ne.s32.totalorder %s117, %s118
      %p132 = scmp.eq.s32.totalorder %s32, 1
      %p133 = por %p131, %p132
      %p135 = scmp.ne.s32.totalorder %s118, %s134
      %p136 = scmp.eq.s32.totalorder %s32, 0
      %p137 = por %p135, %p136
      %s139 = sadd.s32 %s138, 1
      %p142 = scmp.eq.s32.totalorder %s26, 1
      %p143 = scmp.ne.s32.totalorder %s138, %s140
      %p144 = scmp.eq.s32.totalorder %s26, 0
      %p145 = por %p143, %p144
      %p146 = scmp.ne.s32.totalorder %s138, %s140
      %p147 = scmp.eq.s32.totalorder %s31, 1
      %p148 = por %p146, %p147
      %p149 = scmp.ne.s32.totalorder %s140, %s141
      %p150 = scmp.eq.s32.totalorder %s31, 0
      %p151 = por %p149, %p150
      %p152 = scmp.ne.s32.totalorder %s140, %s141
      %p153 = scmp.eq.s32.totalorder %s32, 1
      %p154 = por %p152, %p153
      %p156 = scmp.ne.s32.totalorder %s141, %s155
      %p157 = scmp.eq.s32.totalorder %s32, 0
      %p158 = por %p156, %p157
      %s160 = sadd.s32 %s159, 1
      %p163 = scmp.eq.s32.totalorder %s26, 1
      %p164 = scmp.ne.s32.totalorder %s159, %s161
      %p165 = scmp.eq.s32.totalorder %s26, 0
      %p166 = por %p164, %p165
      %p167 = scmp.ne.s32.totalorder %s159, %s161
      %p168 = scmp.eq.s32.totalorder %s31, 1
      %p169 = por %p167, %p168
      %p170 = scmp.ne.s32.totalorder %s161, %s162
      %p171 = scmp.eq.s32.totalorder %s31, 0
      %p172 = por %p170, %p171
      %p173 = scmp.ne.s32.totalorder %s161, %s162
      %p174 = scmp.eq.s32.totalorder %s32, 1
      %p175 = por %p173, %p174
      %p177 = scmp.ne.s32.totalorder %s162, %s176
      %p178 = scmp.eq.s32.totalorder %s32, 0
      %p179 = por %p177, %p178
      %s181 = sadd.s32 %s180, 1
      %p184 = scmp.eq.s32.totalorder %s26, 1
      %p185 = scmp.ne.s32.totalorder %s180, %s182
      %p186 = scmp.eq.s32.totalorder %s26, 0
      %p187 = por %p185, %p186
      %p188 = scmp.ne.s32.totalorder %s180, %s182
      %p189 = scmp.eq.s32.totalorder %s31, 1
      %p190 = por %p188, %p189
      %p191 = scmp.ne.s32.totalorder %s182, %s183
      %p192 = scmp.eq.s32.totalorder %s31, 0
      %p193 = por %p191, %p192
      %p194 = scmp.ne.s32.totalorder %s182, %s183
      %p195 = scmp.eq.s32.totalorder %s32, 1
      %p196 = por %p194, %p195
      %p198 = scmp.ne.s32.totalorder %s183, %s197
      %p199 = scmp.eq.s32.totalorder %s32, 0
      %p200 = por %p198, %p199
      %s202 = sadd.s32 %s201, 1
      %p205 = scmp.eq.s32.totalorder %s26, 1
      %p206 = scmp.ne.s32.totalorder %s201, %s203
      %p207 = scmp.eq.s32.totalorder %s26, 0
      %p208 = por %p206, %p207
      %p209 = scmp.ne.s32.totalorder %s201, %s203
      %p210 = scmp.eq.s32.totalorder %s31, 1
      %p211 = por %p209, %p210
      %p212 = scmp.ne.s32.totalorder %s203, %s204
      %p213 = scmp.eq.s32.totalorder %s31, 0
      %p214 = por %p212, %p213
      %p215 = scmp.ne.s32.totalorder %s203, %s204
      %p216 = scmp.eq.s32.totalorder %s32, 1
      %p217 = por %p215, %p216
      %p219 = scmp.ne.s32.totalorder %s204, %s218
      %p220 = scmp.eq.s32.totalorder %s32, 0
      %p221 = por %p219, %p220
      %s223 = sadd.s32 %s222, 1
      %p226 = scmp.eq.s32.totalorder %s26, 1
      %p227 = scmp.ne.s32.totalorder %s222, %s224
      %p228 = scmp.eq.s32.totalorder %s26, 0
      %p229 = por %p227, %p228
      %p230 = scmp.ne.s32.totalorder %s222, %s224
      %p231 = scmp.eq.s32.totalorder %s31, 1
      %p232 = por %p230, %p231
      %p233 = scmp.ne.s32.totalorder %s224, %s225
      %p234 = scmp.eq.s32.totalorder %s31, 0
      %p235 = por %p233, %p234
      %p236 = scmp.ne.s32.totalorder %s224, %s225
      %p237 = scmp.eq.s32.totalorder %s32, 1
      %p238 = por %p236, %p237
      %p240 = scmp.ne.s32.totalorder %s225, %s239
      %p241 = scmp.eq.s32.totalorder %s32, 0
      %p242 = por %p240, %p241
      %s243 = ssub.s32 %s26, %s33
      %p244 = scmp.eq.s32.totalorder %s243, 0
      %s246 = sadd.s32 %s245, 1
      %s247 = scalar_select %p244, %s245, %s246
      %p250 = pneg %p244
      %p251 = scmp.eq.s32.totalorder %s26, 1
      %p252 = por %p250, %p251
      %p253 = scmp.ne.s32.totalorder %s245, %s248
      %p254 = scmp.eq.s32.totalorder %s26, 0
      %p255 = por %p253, %p254
      %p256 = scmp.ne.s32.totalorder %s245, %s248
      %p257 = scmp.eq.s32.totalorder %s31, 1
      %p258 = por %p256, %p257
      %p259 = scmp.ne.s32.totalorder %s248, %s249
      %p260 = scmp.eq.s32.totalorder %s31, 0
      %p261 = por %p259, %p260
      %p262 = scmp.ne.s32.totalorder %s248, %s249
      %p263 = scmp.eq.s32.totalorder %s32, 1
      %p264 = por %p262, %p263
      %p266 = scmp.ne.s32.totalorder %s249, %s265
      %p267 = scmp.eq.s32.totalorder %s32, 0
      %p268 = por %p266, %p267
      %s270 = sadd.s32 %s269, 1
      %p273 = scmp.eq.s32.totalorder %s26, 1
      %p274 = scmp.ne.s32.totalorder %s269, %s271
      %p275 = scmp.eq.s32.totalorder %s26, 0
      %p276 = por %p274, %p275
      %p277 = scmp.ne.s32.totalorder %s269, %s271
      %p278 = scmp.eq.s32.totalorder %s31, 1
      %p279 = por %p277, %p278
      %p280 = scmp.ne.s32.totalorder %s271, %s272
      %p281 = scmp.eq.s32.totalorder %s31, 0
      %p282 = por %p280, %p281
      %p283 = scmp.ne.s32.totalorder %s271, %s272
      %p284 = scmp.eq.s32.totalorder %s32, 1
      %p285 = por %p283, %p284
      %p287 = scmp.ne.s32.totalorder %s272, %s286
      %p288 = scmp.eq.s32.totalorder %s32, 0
      %p289 = por %p287, %p288
      %p290 = scmp.le.s32.totalorder 1, %s26
      %p291 = scmp.lt.s32.totalorder %s26, 3
      %p292 = pnand %p290, %p291
      %p293 = pneg %p292
      // Predicated region
      $region9: #{tpu_custom_call.1} parent=5 // pred_check
        _
      $region10: #{tpu_custom_call.1} parent=5 // pred_check_branch
        %295 = sbr.rel (%p292) target = $region12
      $region11: #{tpu_custom_call.1} parent=5 // pred_region
        %s296 = ssub.s32 %s26, 1
        // Predicated region
        $region13: #{tpu_custom_call.1} parent=11 // pred_check
          %p297 = pneg %p151
        $region14: #{tpu_custom_call.1} parent=11 // pred_check_branch
          %299 = sbr.rel (%p297) target = $region16
        $region15: #{tpu_custom_call.1} parent=11 // pred_region
          _
        $region16: #{tpu_custom_call.1} parent=11 // pred_fallthru
          _
        // Predicated region
        $region17: #{tpu_custom_call.1} parent=11 // pred_check
          %p300 = pneg %p172
        $region18: #{tpu_custom_call.1} parent=11 // pred_check_branch
          %302 = sbr.rel (%p300) target = $region20
        $region19: #{tpu_custom_call.1} parent=11 // pred_region
          %s304 = ssub.s32 16, 16
          %305 = vsyncadd [#allocation8], %s304
          %s307 = sshll.u32 [#allocation7], 4
          %s308 = int_to_ptr.vmem [resolvable:$true] %s307
          %310 = dma.hbm_to_vmem [thread:$0]  %s5, 16, %s308, [#allocation8]
        $region20: #{tpu_custom_call.1} parent=11 // pred_fallthru
          _
      $region12: #{tpu_custom_call.1} parent=5 // pred_fallthru
        _
      %p311 = scmp.lt.s32.totalorder %s26, 2
      // Predicated region
      $region21: #{tpu_custom_call.1} parent=5 // pred_check
        %p312 = pneg %p311
      $region22: #{tpu_custom_call.1} parent=5 // pred_check_branch
        %314 = sbr.rel (%p312) target = $region24
      $region23: #{tpu_custom_call.1} parent=5 // pred_region
        // Predicated region
        $region25: #{tpu_custom_call.1} parent=23 // pred_check
          %p315 = pneg %p46
        $region26: #{tpu_custom_call.1} parent=23 // pred_check_branch
          %317 = sbr.rel (%p315) target = $region28
        $region27: #{tpu_custom_call.1} parent=23 // pred_region
          %s318 = smul.u32 32, %s26
          %p319 = scmp.lt.s32.totalorder %s318, 63
          %s320 = scalar_select %p319, %s318, 63
          %s321 = smul.addr %s320, 8
          %s322 = scalar_lea.vmem %s0, %s321
          %s323 = smul.u32 32, %s26
        $region28: #{tpu_custom_call.1} parent=23 // pred_fallthru
          _
        // Predicated region
        $region29: #{tpu_custom_call.1} parent=23 // pred_check
          %p324 = pneg %p72
        $region30: #{tpu_custom_call.1} parent=23 // pred_check_branch
          %326 = sbr.rel (%p324) target = $region32
        $region31: #{tpu_custom_call.1} parent=23 // pred_region
          %s327 = smul.u32 32, %s26
          %p328 = scmp.lt.s32.totalorder %s327, 63
          %s329 = scalar_select %p328, %s327, 63
          %s330 = smul.addr %s329, 8
          %s331 = scalar_lea.vmem %s1, %s330
          %s332 = smul.u32 32, %s26
        $region32: #{tpu_custom_call.1} parent=23 // pred_fallthru
          _
        // Predicated region
        $region33: #{tpu_custom_call.1} parent=23 // pred_check
          %p333 = pneg %p98
        $region34: #{tpu_custom_call.1} parent=23 // pred_check_branch
          %335 = sbr.rel (%p333) target = $region36
        $region35: #{tpu_custom_call.1} parent=23 // pred_region
          %s336 = smul.u32 512, %s26
          %p337 = scmp.lt.s32.totalorder %s336, 1023
          %s338 = scalar_select %p337, %s336, 1023
          %s339 = smul.addr %s338, 8
          %s340 = scalar_lea.vmem %s2, %s339
          %s341 = smul.u32 512, %s26
        $region36: #{tpu_custom_call.1} parent=23 // pred_fallthru
          _
        // Predicated region
        $region37: #{tpu_custom_call.1} parent=23 // pred_check
          %p342 = pneg %p124
        $region38: #{tpu_custom_call.1} parent=23 // pred_check_branch
          %344 = sbr.rel (%p342) target = $region40
        $region39: #{tpu_custom_call.1} parent=23 // pred_region
          %s345 = sand.u32 %s114, 1
          %s346 = scalar_lea.sflag [#allocation5], %s345
          %s347 = sand.u32 %s114, 1
          %s348 = smul.addr %s347, 4096
          %s349 = scalar_lea.vmem [#allocation4], %s348
          %s350 = smul.u32 512, %s26
          %s352 = ssub.s32 65536, 65536
          %353 = vsyncadd %s346, %s352
          %s354 = smul.addr %s350, 128
          %s355 = scalar_lea.hbm %s3, %s354
          %s356 = sshll.u32 %s349, 4
          %s357 = int_to_ptr.vmem [resolvable:$true] %s356
          %362 = dma.hbm_to_vmem [thread:$0]  %s355, 65536, %s357, %s346, 128, 128, 8
        $region40: #{tpu_custom_call.1} parent=23 // pred_fallthru
          _
      $region24: #{tpu_custom_call.1} parent=5 // pred_fallthru
        _
      %p363 = scmp.le.s32.totalorder 1, %s26
      %p364 = scmp.lt.s32.totalorder %s26, 3
      %p365 = pnand %p363, %p364
      %p366 = pneg %p365
      // Predicated region
      $region41: #{tpu_custom_call.1} parent=5 // pred_check
        _
      $region42: #{tpu_custom_call.1} parent=5 // pred_check_branch
        %368 = sbr.rel (%p365) target = $region44
      $region43: #{tpu_custom_call.1} parent=5 // pred_region
        %s369 = ssub.s32 %s26, 1
        %s370 = sand.u32 %s117, 1
        %s371 = scalar_lea.sflag [#allocation5], %s370
        %s372 = sand.u32 %s117, 1
        %s373 = smul.addr %s372, 4096
        %s374 = scalar_lea.vmem [#allocation4], %s373
        // Predicated region
        $region45: #{tpu_custom_call.1} parent=43 // pred_check
          %p375 = pneg %p130
        $region46: #{tpu_custom_call.1} parent=43 // pred_check_branch
          %377 = sbr.rel (%p375) target = $region48
        $region47: #{tpu_custom_call.1} parent=43 // pred_region
          %378 = dma.done %s371, 65536
        $region48: #{tpu_custom_call.1} parent=43 // pred_fallthru
          _
        // Predicated region
        $region49: #{tpu_custom_call.1} parent=43 // pred_check
          %p379 = pneg %p172
        $region50: #{tpu_custom_call.1} parent=43 // pred_check_branch
          %381 = sbr.rel (%p379) target = $region52
        $region51: #{tpu_custom_call.1} parent=43 // pred_region
          %382 = dma.done [#allocation8], 16
        $region52: #{tpu_custom_call.1} parent=43 // pred_fallthru
          _
        %s383 = smul.u32 32, %s31
        %p384 = scmp.lt.s32.totalorder %s383, 63
        %s385 = scalar_select %p384, %s383, 63
        %s386 = smul.addr %s385, 8
        %s387 = scalar_lea.vmem %s0, %s386
        %p388 = pneg %p52
        %p389 = pneg %p49
        %s390 = smul.u32 32, %s31
        %p391 = scmp.lt.s32.totalorder %s390, 63
        %s392 = scalar_select %p391, %s390, 63
        %s393 = smul.addr %s392, 8
        %s394 = scalar_lea.vmem %s1, %s393
        %p395 = pneg %p78
        %p396 = pneg %p75
        %s397 = smul.u32 512, %s31
        %p398 = scmp.lt.s32.totalorder %s397, 1023
        %s399 = scalar_select %p398, %s397, 1023
        %s400 = smul.addr %s399, 8
        %s401 = scalar_lea.vmem %s2, %s400
        %p402 = pneg %p104
        %p403 = pneg %p101
        %s404 = sand.u32 %s117, 1
        %s405 = scalar_lea.sflag [#allocation5], %s404
        %s406 = sand.u32 %s117, 1
        %s407 = smul.addr %s406, 4096
        %s408 = scalar_lea.vmem [#allocation4], %s407
        %p409 = pneg %p130
        %p410 = pneg %p127
        %p411 = pneg %p151
        %p412 = pneg %p148
        %p413 = pneg %p172
        %p414 = pneg %p169
        %p415 = pneg %p193
        %p416 = pneg %p190
        %p417 = pneg %p214
        %p418 = pneg %p211
        %p419 = pneg %p235
        %p420 = pneg %p232
        %p421 = pneg %p261
        %p422 = pneg %p258
        %s423 = sand.u32 %s31, 1
        %s424 = scalar_lea.sflag [#allocation14], %s423
        %s425 = sand.u32 %s248, 1
        %s426 = smul.addr %s425, 4096
        %s427 = scalar_lea.vmem [#allocation13], %s426
        %p428 = pneg %p282
        %p429 = pneg %p279
        %s430 = smul.u32 32, %s31
        %p431 = scmp.lt.s32.totalorder %s430, 63
        %s432 = scalar_select %p431, %s430, 63
        %s433 = smul.addr %s432, 8
        %s434 = scalar_lea.vmem %s0, %s433
        %s435 = smul.u32 32, %s31
        %s436 = smul.u32 32, %s31
        %p437 = scmp.lt.s32.totalorder %s436, 63
        %s438 = scalar_select %p437, %s436, 63
        %s439 = smul.addr %s438, 8
        %s440 = scalar_lea.vmem %s1, %s439
        %s441 = smul.u32 32, %s31
        %s442 = smul.u32 512, %s31
        %p443 = scmp.lt.s32.totalorder %s442, 1023
        %s444 = scalar_select %p443, %s442, 1023
        %s445 = smul.addr %s444, 8
        %s446 = scalar_lea.vmem %s2, %s445
        %s447 = smul.u32 512, %s31
        %s448 = smul.u32 512, %s31
        %s449 = smul.u32 512, %s31
        %p450 = scmp.eq.s32.totalorder %s31, 0
        // Predicated region
        $region53: #{tpu_custom_call.1} parent=43 // pred_check
          %p451 = pneg %p450
        $region54: #{tpu_custom_call.1} parent=43 // pred_check_branch
          %453 = sbr.rel (%p451) target = $region56
        $region55: #{tpu_custom_call.1} parent=43 // pred_region
          %454 = vst [vmem:[#allocation2] sm:$0xff] 0.0
          %455 = vst [vmem:[#allocation3] sm:$0xff] 0.0
        $region56: #{tpu_custom_call.1} parent=43 // pred_fallthru
          _
        %v456 = vld [vmem:[%s446] sm:$0xff]
        %v457 = vld [vmem:[%s446 + $0x8] sm:$0xff]
        %v458 = vld [vmem:[%s446 + $0x10] sm:$0xff]
        %v459 = vld [vmem:[%s446 + $0x18] sm:$0xff]
        %v460 = vld [vmem:[%s446 + $0x20] sm:$0xff]
        %v461 = vld [vmem:[%s446 + $0x28] sm:$0xff]
        %v462 = vld [vmem:[%s446 + $0x30] sm:$0xff]
        %v463 = vld [vmem:[%s446 + $0x38] sm:$0xff]
        %v464 = vld [vmem:[%s446 + $0x40] sm:$0xff]
        %v465 = vld [vmem:[%s446 + $0x48] sm:$0xff]
        %v466 = vld [vmem:[%s446 + $0x50] sm:$0xff]
        %v467 = vld [vmem:[%s446 + $0x58] sm:$0xff]
        %v468 = vld [vmem:[%s446 + $0x60] sm:$0xff]
        %v469 = vld [vmem:[%s446 + $0x68] sm:$0xff]
        %v470 = vld [vmem:[%s446 + $0x70] sm:$0xff]
        %v471 = vld [vmem:[%s446 + $0x78] sm:$0xff]
        %v472 = vld [vmem:[%s446 + $0x80] sm:$0xff]
        %v473 = vld [vmem:[%s446 + $0x88] sm:$0xff]
        %v474 = vld [vmem:[%s446 + $0x90] sm:$0xff]
        %v475 = vld [vmem:[%s446 + $0x98] sm:$0xff]
        %v476 = vld [vmem:[%s446 + $0xa0] sm:$0xff]
        %v477 = vld [vmem:[%s446 + $0xa8] sm:$0xff]
        %v478 = vld [vmem:[%s446 + $0xb0] sm:$0xff]
        %v479 = vld [vmem:[%s446 + $0xb8] sm:$0xff]
        %v480 = vld [vmem:[%s446 + $0xc0] sm:$0xff]
        %v481 = vld [vmem:[%s446 + $0xc8] sm:$0xff]
        %v482 = vld [vmem:[%s446 + $0xd0] sm:$0xff]
        %v483 = vld [vmem:[%s446 + $0xd8] sm:$0xff]
        %v484 = vld [vmem:[%s446 + $0xe0] sm:$0xff]
        %v485 = vld [vmem:[%s446 + $0xe8] sm:$0xff]
        %v486 = vld [vmem:[%s446 + $0xf0] sm:$0xff]
        %v487 = vld [vmem:[%s446 + $0xf8] sm:$0xff]
        %v488 = vld [vmem:[%s446 + $0x100] sm:$0xff]
        %v489 = vld [vmem:[%s446 + $0x108] sm:$0xff]
        %v490 = vld [vmem:[%s446 + $0x110] sm:$0xff]
        %v491 = vld [vmem:[%s446 + $0x118] sm:$0xff]
        %v492 = vld [vmem:[%s446 + $0x120] sm:$0xff]
        %v493 = vld [vmem:[%s446 + $0x128] sm:$0xff]
        %v494 = vld [vmem:[%s446 + $0x130] sm:$0xff]
        %v495 = vld [vmem:[%s446 + $0x138] sm:$0xff]
        %v496 = vld [vmem:[%s446 + $0x140] sm:$0xff]
        %v497 = vld [vmem:[%s446 + $0x148] sm:$0xff]
        %v498 = vld [vmem:[%s446 + $0x150] sm:$0xff]
        %v499 = vld [vmem:[%s446 + $0x158] sm:$0xff]
        %v500 = vld [vmem:[%s446 + $0x160] sm:$0xff]
        %v501 = vld [vmem:[%s446 + $0x168] sm:$0xff]
        %v502 = vld [vmem:[%s446 + $0x170] sm:$0xff]
        %v503 = vld [vmem:[%s446 + $0x178] sm:$0xff]
        %v504 = vld [vmem:[%s446 + $0x180] sm:$0xff]
        %v505 = vld [vmem:[%s446 + $0x188] sm:$0xff]
        %v506 = vld [vmem:[%s446 + $0x190] sm:$0xff]
        %v507 = vld [vmem:[%s446 + $0x198] sm:$0xff]
        %v508 = vld [vmem:[%s446 + $0x1a0] sm:$0xff]
        %v509 = vld [vmem:[%s446 + $0x1a8] sm:$0xff]
        %v510 = vld [vmem:[%s446 + $0x1b0] sm:$0xff]
        %v511 = vld [vmem:[%s446 + $0x1b8] sm:$0xff]
        %v512 = vld [vmem:[%s446 + $0x1c0] sm:$0xff]
        %v513 = vld [vmem:[%s446 + $0x1c8] sm:$0xff]
        %v514 = vld [vmem:[%s446 + $0x1d0] sm:$0xff]
        %v515 = vld [vmem:[%s446 + $0x1d8] sm:$0xff]
        %v516 = vld [vmem:[%s446 + $0x1e0] sm:$0xff]
        %v517 = vld [vmem:[%s446 + $0x1e8] sm:$0xff]
        %v518 = vld [vmem:[%s446 + $0x1f0] sm:$0xff]
        %v519 = vld [vmem:[%s446 + $0x1f8] sm:$0xff]
        %v520 = vld [vmem:[%s446 + $0x200] sm:$0xff]
        %v521 = vld [vmem:[%s446 + $0x208] sm:$0xff]
        %v522 = vld [vmem:[%s446 + $0x210] sm:$0xff]
        %v523 = vld [vmem:[%s446 + $0x218] sm:$0xff]
        %v524 = vld [vmem:[%s446 + $0x220] sm:$0xff]
        %v525 = vld [vmem:[%s446 + $0x228] sm:$0xff]
        %v526 = vld [vmem:[%s446 + $0x230] sm:$0xff]
        %v527 = vld [vmem:[%s446 + $0x238] sm:$0xff]
        %v528 = vld [vmem:[%s446 + $0x240] sm:$0xff]
        %v529 = vld [vmem:[%s446 + $0x248] sm:$0xff]
        %v530 = vld [vmem:[%s446 + $0x250] sm:$0xff]
        %v531 = vld [vmem:[%s446 + $0x258] sm:$0xff]
        %v532 = vld [vmem:[%s446 + $0x260] sm:$0xff]
        %v533 = vld [vmem:[%s446 + $0x268] sm:$0xff]
        %v534 = vld [vmem:[%s446 + $0x270] sm:$0xff]
        %v535 = vld [vmem:[%s446 + $0x278] sm:$0xff]
        %v536 = vld [vmem:[%s446 + $0x280] sm:$0xff]
        %v537 = vld [vmem:[%s446 + $0x288] sm:$0xff]
        %v538 = vld [vmem:[%s446 + $0x290] sm:$0xff]
        %v539 = vld [vmem:[%s446 + $0x298] sm:$0xff]
        %v540 = vld [vmem:[%s446 + $0x2a0] sm:$0xff]
        %v541 = vld [vmem:[%s446 + $0x2a8] sm:$0xff]
        %v542 = vld [vmem:[%s446 + $0x2b0] sm:$0xff]
        %v543 = vld [vmem:[%s446 + $0x2b8] sm:$0xff]
        %v544 = vld [vmem:[%s446 + $0x2c0] sm:$0xff]
        %v545 = vld [vmem:[%s446 + $0x2c8] sm:$0xff]
        %v546 = vld [vmem:[%s446 + $0x2d0] sm:$0xff]
        %v547 = vld [vmem:[%s446 + $0x2d8] sm:$0xff]
        %v548 = vld [vmem:[%s446 + $0x2e0] sm:$0xff]
        %v549 = vld [vmem:[%s446 + $0x2e8] sm:$0xff]
        %v550 = vld [vmem:[%s446 + $0x2f0] sm:$0xff]
        %v551 = vld [vmem:[%s446 + $0x2f8] sm:$0xff]
        %v552 = vld [vmem:[%s446 + $0x300] sm:$0xff]
        %v553 = vld [vmem:[%s446 + $0x308] sm:$0xff]
        %v554 = vld [vmem:[%s446 + $0x310] sm:$0xff]
        %v555 = vld [vmem:[%s446 + $0x318] sm:$0xff]
        %v556 = vld [vmem:[%s446 + $0x320] sm:$0xff]
        %v557 = vld [vmem:[%s446 + $0x328] sm:$0xff]
        %v558 = vld [vmem:[%s446 + $0x330] sm:$0xff]
        %v559 = vld [vmem:[%s446 + $0x338] sm:$0xff]
        %v560 = vld [vmem:[%s446 + $0x340] sm:$0xff]
        %v561 = vld [vmem:[%s446 + $0x348] sm:$0xff]
        %v562 = vld [vmem:[%s446 + $0x350] sm:$0xff]
        %v563 = vld [vmem:[%s446 + $0x358] sm:$0xff]
        %v564 = vld [vmem:[%s446 + $0x360] sm:$0xff]
        %v565 = vld [vmem:[%s446 + $0x368] sm:$0xff]
        %v566 = vld [vmem:[%s446 + $0x370] sm:$0xff]
        %v567 = vld [vmem:[%s446 + $0x378] sm:$0xff]
        %v568 = vld [vmem:[%s446 + $0x380] sm:$0xff]
        %v569 = vld [vmem:[%s446 + $0x388] sm:$0xff]
        %v570 = vld [vmem:[%s446 + $0x390] sm:$0xff]
        %v571 = vld [vmem:[%s446 + $0x398] sm:$0xff]
        %v572 = vld [vmem:[%s446 + $0x3a0] sm:$0xff]
        %v573 = vld [vmem:[%s446 + $0x3a8] sm:$0xff]
        %v574 = vld [vmem:[%s446 + $0x3b0] sm:$0xff]
        %v575 = vld [vmem:[%s446 + $0x3b8] sm:$0xff]
        %v576 = vld [vmem:[%s446 + $0x3c0] sm:$0xff]
        %v577 = vld [vmem:[%s446 + $0x3c8] sm:$0xff]
        %v578 = vld [vmem:[%s446 + $0x3d0] sm:$0xff]
        %v579 = vld [vmem:[%s446 + $0x3d8] sm:$0xff]
        %v580 = vld [vmem:[%s446 + $0x3e0] sm:$0xff]
        %v581 = vld [vmem:[%s446 + $0x3e8] sm:$0xff]
        %v582 = vld [vmem:[%s446 + $0x3f0] sm:$0xff]
        %v583 = vld [vmem:[%s446 + $0x3f8] sm:$0xff]
        %v584 = vld [vmem:[%s446 + $0x400] sm:$0xff]
        %v585 = vld [vmem:[%s446 + $0x408] sm:$0xff]
        %v586 = vld [vmem:[%s446 + $0x410] sm:$0xff]
        %v587 = vld [vmem:[%s446 + $0x418] sm:$0xff]
        %v588 = vld [vmem:[%s446 + $0x420] sm:$0xff]
        %v589 = vld [vmem:[%s446 + $0x428] sm:$0xff]
        %v590 = vld [vmem:[%s446 + $0x430] sm:$0xff]
        %v591 = vld [vmem:[%s446 + $0x438] sm:$0xff]
        %v592 = vld [vmem:[%s446 + $0x440] sm:$0xff]
        %v593 = vld [vmem:[%s446 + $0x448] sm:$0xff]
        %v594 = vld [vmem:[%s446 + $0x450] sm:$0xff]
        %v595 = vld [vmem:[%s446 + $0x458] sm:$0xff]
        %v596 = vld [vmem:[%s446 + $0x460] sm:$0xff]
        %v597 = vld [vmem:[%s446 + $0x468] sm:$0xff]
        %v598 = vld [vmem:[%s446 + $0x470] sm:$0xff]
        %v599 = vld [vmem:[%s446 + $0x478] sm:$0xff]
        %v600 = vld [vmem:[%s446 + $0x480] sm:$0xff]
        %v601 = vld [vmem:[%s446 + $0x488] sm:$0xff]
        %v602 = vld [vmem:[%s446 + $0x490] sm:$0xff]
        %v603 = vld [vmem:[%s446 + $0x498] sm:$0xff]
        %v604 = vld [vmem:[%s446 + $0x4a0] sm:$0xff]
        %v605 = vld [vmem:[%s446 + $0x4a8] sm:$0xff]
        %v606 = vld [vmem:[%s446 + $0x4b0] sm:$0xff]
        %v607 = vld [vmem:[%s446 + $0x4b8] sm:$0xff]
        %v608 = vld [vmem:[%s446 + $0x4c0] sm:$0xff]
        %v609 = vld [vmem:[%s446 + $0x4c8] sm:$0xff]
        %v610 = vld [vmem:[%s446 + $0x4d0] sm:$0xff]
        %v611 = vld [vmem:[%s446 + $0x4d8] sm:$0xff]
        %v612 = vld [vmem:[%s446 + $0x4e0] sm:$0xff]
        %v613 = vld [vmem:[%s446 + $0x4e8] sm:$0xff]
        %v614 = vld [vmem:[%s446 + $0x4f0] sm:$0xff]
        %v615 = vld [vmem:[%s446 + $0x4f8] sm:$0xff]
        %v616 = vld [vmem:[%s446 + $0x500] sm:$0xff]
        %v617 = vld [vmem:[%s446 + $0x508] sm:$0xff]
        %v618 = vld [vmem:[%s446 + $0x510] sm:$0xff]
        %v619 = vld [vmem:[%s446 + $0x518] sm:$0xff]
        %v620 = vld [vmem:[%s446 + $0x520] sm:$0xff]
        %v621 = vld [vmem:[%s446 + $0x528] sm:$0xff]
        %v622 = vld [vmem:[%s446 + $0x530] sm:$0xff]
        %v623 = vld [vmem:[%s446 + $0x538] sm:$0xff]
        %v624 = vld [vmem:[%s446 + $0x540] sm:$0xff]
        %v625 = vld [vmem:[%s446 + $0x548] sm:$0xff]
        %v626 = vld [vmem:[%s446 + $0x550] sm:$0xff]
        %v627 = vld [vmem:[%s446 + $0x558] sm:$0xff]
        %v628 = vld [vmem:[%s446 + $0x560] sm:$0xff]
        %v629 = vld [vmem:[%s446 + $0x568] sm:$0xff]
        %v630 = vld [vmem:[%s446 + $0x570] sm:$0xff]
        %v631 = vld [vmem:[%s446 + $0x578] sm:$0xff]
        %v632 = vld [vmem:[%s446 + $0x580] sm:$0xff]
        %v633 = vld [vmem:[%s446 + $0x588] sm:$0xff]
        %v634 = vld [vmem:[%s446 + $0x590] sm:$0xff]
        %v635 = vld [vmem:[%s446 + $0x598] sm:$0xff]
        %v636 = vld [vmem:[%s446 + $0x5a0] sm:$0xff]
        %v637 = vld [vmem:[%s446 + $0x5a8] sm:$0xff]
        %v638 = vld [vmem:[%s446 + $0x5b0] sm:$0xff]
        %v639 = vld [vmem:[%s446 + $0x5b8] sm:$0xff]
        %v640 = vld [vmem:[%s446 + $0x5c0] sm:$0xff]
        %v641 = vld [vmem:[%s446 + $0x5c8] sm:$0xff]
        %v642 = vld [vmem:[%s446 + $0x5d0] sm:$0xff]
        %v643 = vld [vmem:[%s446 + $0x5d8] sm:$0xff]
        %v644 = vld [vmem:[%s446 + $0x5e0] sm:$0xff]
        %v645 = vld [vmem:[%s446 + $0x5e8] sm:$0xff]
        %v646 = vld [vmem:[%s446 + $0x5f0] sm:$0xff]
        %v647 = vld [vmem:[%s446 + $0x5f8] sm:$0xff]
        %v648 = vld [vmem:[%s446 + $0x600] sm:$0xff]
        %v649 = vld [vmem:[%s446 + $0x608] sm:$0xff]
        %v650 = vld [vmem:[%s446 + $0x610] sm:$0xff]
        %v651 = vld [vmem:[%s446 + $0x618] sm:$0xff]
        %v652 = vld [vmem:[%s446 + $0x620] sm:$0xff]
        %v653 = vld [vmem:[%s446 + $0x628] sm:$0xff]
        %v654 = vld [vmem:[%s446 + $0x630] sm:$0xff]
        %v655 = vld [vmem:[%s446 + $0x638] sm:$0xff]
        %v656 = vld [vmem:[%s446 + $0x640] sm:$0xff]
        %v657 = vld [vmem:[%s446 + $0x648] sm:$0xff]
        %v658 = vld [vmem:[%s446 + $0x650] sm:$0xff]
        %v659 = vld [vmem:[%s446 + $0x658] sm:$0xff]
        %v660 = vld [vmem:[%s446 + $0x660] sm:$0xff]
        %v661 = vld [vmem:[%s446 + $0x668] sm:$0xff]
        %v662 = vld [vmem:[%s446 + $0x670] sm:$0xff]
        %v663 = vld [vmem:[%s446 + $0x678] sm:$0xff]
        %v664 = vld [vmem:[%s446 + $0x680] sm:$0xff]
        %v665 = vld [vmem:[%s446 + $0x688] sm:$0xff]
        %v666 = vld [vmem:[%s446 + $0x690] sm:$0xff]
        %v667 = vld [vmem:[%s446 + $0x698] sm:$0xff]
        %v668 = vld [vmem:[%s446 + $0x6a0] sm:$0xff]
        %v669 = vld [vmem:[%s446 + $0x6a8] sm:$0xff]
        %v670 = vld [vmem:[%s446 + $0x6b0] sm:$0xff]
        %v671 = vld [vmem:[%s446 + $0x6b8] sm:$0xff]
        %v672 = vld [vmem:[%s446 + $0x6c0] sm:$0xff]
        %v673 = vld [vmem:[%s446 + $0x6c8] sm:$0xff]
        %v674 = vld [vmem:[%s446 + $0x6d0] sm:$0xff]
        %v675 = vld [vmem:[%s446 + $0x6d8] sm:$0xff]
        %v676 = vld [vmem:[%s446 + $0x6e0] sm:$0xff]
        %v677 = vld [vmem:[%s446 + $0x6e8] sm:$0xff]
        %v678 = vld [vmem:[%s446 + $0x6f0] sm:$0xff]
        %v679 = vld [vmem:[%s446 + $0x6f8] sm:$0xff]
        %v680 = vld [vmem:[%s446 + $0x700] sm:$0xff]
        %v681 = vld [vmem:[%s446 + $0x708] sm:$0xff]
        %v682 = vld [vmem:[%s446 + $0x710] sm:$0xff]
        %v683 = vld [vmem:[%s446 + $0x718] sm:$0xff]
        %v684 = vld [vmem:[%s446 + $0x720] sm:$0xff]
        %v685 = vld [vmem:[%s446 + $0x728] sm:$0xff]
        %v686 = vld [vmem:[%s446 + $0x730] sm:$0xff]
        %v687 = vld [vmem:[%s446 + $0x738] sm:$0xff]
        %v688 = vld [vmem:[%s446 + $0x740] sm:$0xff]
        %v689 = vld [vmem:[%s446 + $0x748] sm:$0xff]
        %v690 = vld [vmem:[%s446 + $0x750] sm:$0xff]
        %v691 = vld [vmem:[%s446 + $0x758] sm:$0xff]
        %v692 = vld [vmem:[%s446 + $0x760] sm:$0xff]
        %v693 = vld [vmem:[%s446 + $0x768] sm:$0xff]
        %v694 = vld [vmem:[%s446 + $0x770] sm:$0xff]
        %v695 = vld [vmem:[%s446 + $0x778] sm:$0xff]
        %v696 = vld [vmem:[%s446 + $0x780] sm:$0xff]
        %v697 = vld [vmem:[%s446 + $0x788] sm:$0xff]
        %v698 = vld [vmem:[%s446 + $0x790] sm:$0xff]
        %v699 = vld [vmem:[%s446 + $0x798] sm:$0xff]
        %v700 = vld [vmem:[%s446 + $0x7a0] sm:$0xff]
        %v701 = vld [vmem:[%s446 + $0x7a8] sm:$0xff]
        %v702 = vld [vmem:[%s446 + $0x7b0] sm:$0xff]
        %v703 = vld [vmem:[%s446 + $0x7b8] sm:$0xff]
        %v704 = vld [vmem:[%s446 + $0x7c0] sm:$0xff]
        %v705 = vld [vmem:[%s446 + $0x7c8] sm:$0xff]
        %v706 = vld [vmem:[%s446 + $0x7d0] sm:$0xff]
        %v707 = vld [vmem:[%s446 + $0x7d8] sm:$0xff]
        %v708 = vld [vmem:[%s446 + $0x7e0] sm:$0xff]
        %v709 = vld [vmem:[%s446 + $0x7e8] sm:$0xff]
        %v710 = vld [vmem:[%s446 + $0x7f0] sm:$0xff]
        %v711 = vld [vmem:[%s446 + $0x7f8] sm:$0xff]
        %v712 = vld [vmem:[%s446 + $0x800] sm:$0xff]
        %v713 = vld [vmem:[%s446 + $0x808] sm:$0xff]
        %v714 = vld [vmem:[%s446 + $0x810] sm:$0xff]
        %v715 = vld [vmem:[%s446 + $0x818] sm:$0xff]
        %v716 = vld [vmem:[%s446 + $0x820] sm:$0xff]
        %v717 = vld [vmem:[%s446 + $0x828] sm:$0xff]
        %v718 = vld [vmem:[%s446 + $0x830] sm:$0xff]
        %v719 = vld [vmem:[%s446 + $0x838] sm:$0xff]
        %v720 = vld [vmem:[%s446 + $0x840] sm:$0xff]
        %v721 = vld [vmem:[%s446 + $0x848] sm:$0xff]
        %v722 = vld [vmem:[%s446 + $0x850] sm:$0xff]
        %v723 = vld [vmem:[%s446 + $0x858] sm:$0xff]
        %v724 = vld [vmem:[%s446 + $0x860] sm:$0xff]
        %v725 = vld [vmem:[%s446 + $0x868] sm:$0xff]
        %v726 = vld [vmem:[%s446 + $0x870] sm:$0xff]
        %v727 = vld [vmem:[%s446 + $0x878] sm:$0xff]
        %v728 = vld [vmem:[%s446 + $0x880] sm:$0xff]
        %v729 = vld [vmem:[%s446 + $0x888] sm:$0xff]
        %v730 = vld [vmem:[%s446 + $0x890] sm:$0xff]
        %v731 = vld [vmem:[%s446 + $0x898] sm:$0xff]
        %v732 = vld [vmem:[%s446 + $0x8a0] sm:$0xff]
        %v733 = vld [vmem:[%s446 + $0x8a8] sm:$0xff]
        %v734 = vld [vmem:[%s446 + $0x8b0] sm:$0xff]
        %v735 = vld [vmem:[%s446 + $0x8b8] sm:$0xff]
        %v736 = vld [vmem:[%s446 + $0x8c0] sm:$0xff]
        %v737 = vld [vmem:[%s446 + $0x8c8] sm:$0xff]
        %v738 = vld [vmem:[%s446 + $0x8d0] sm:$0xff]
        %v739 = vld [vmem:[%s446 + $0x8d8] sm:$0xff]
        %v740 = vld [vmem:[%s446 + $0x8e0] sm:$0xff]
        %v741 = vld [vmem:[%s446 + $0x8e8] sm:$0xff]
        %v742 = vld [vmem:[%s446 + $0x8f0] sm:$0xff]
        %v743 = vld [vmem:[%s446 + $0x8f8] sm:$0xff]
        %v744 = vld [vmem:[%s446 + $0x900] sm:$0xff]
        %v745 = vld [vmem:[%s446 + $0x908] sm:$0xff]
        %v746 = vld [vmem:[%s446 + $0x910] sm:$0xff]
        %v747 = vld [vmem:[%s446 + $0x918] sm:$0xff]
        %v748 = vld [vmem:[%s446 + $0x920] sm:$0xff]
        %v749 = vld [vmem:[%s446 + $0x928] sm:$0xff]
        %v750 = vld [vmem:[%s446 + $0x930] sm:$0xff]
        %v751 = vld [vmem:[%s446 + $0x938] sm:$0xff]
        %v752 = vld [vmem:[%s446 + $0x940] sm:$0xff]
        %v753 = vld [vmem:[%s446 + $0x948] sm:$0xff]
        %v754 = vld [vmem:[%s446 + $0x950] sm:$0xff]
        %v755 = vld [vmem:[%s446 + $0x958] sm:$0xff]
        %v756 = vld [vmem:[%s446 + $0x960] sm:$0xff]
        %v757 = vld [vmem:[%s446 + $0x968] sm:$0xff]
        %v758 = vld [vmem:[%s446 + $0x970] sm:$0xff]
        %v759 = vld [vmem:[%s446 + $0x978] sm:$0xff]
        %v760 = vld [vmem:[%s446 + $0x980] sm:$0xff]
        %v761 = vld [vmem:[%s446 + $0x988] sm:$0xff]
        %v762 = vld [vmem:[%s446 + $0x990] sm:$0xff]
        %v763 = vld [vmem:[%s446 + $0x998] sm:$0xff]
        %v764 = vld [vmem:[%s446 + $0x9a0] sm:$0xff]
        %v765 = vld [vmem:[%s446 + $0x9a8] sm:$0xff]
        %v766 = vld [vmem:[%s446 + $0x9b0] sm:$0xff]
        %v767 = vld [vmem:[%s446 + $0x9b8] sm:$0xff]
        %v768 = vld [vmem:[%s446 + $0x9c0] sm:$0xff]
        %v769 = vld [vmem:[%s446 + $0x9c8] sm:$0xff]
        %v770 = vld [vmem:[%s446 + $0x9d0] sm:$0xff]
        %v771 = vld [vmem:[%s446 + $0x9d8] sm:$0xff]
        %v772 = vld [vmem:[%s446 + $0x9e0] sm:$0xff]
        %v773 = vld [vmem:[%s446 + $0x9e8] sm:$0xff]
        %v774 = vld [vmem:[%s446 + $0x9f0] sm:$0xff]
        %v775 = vld [vmem:[%s446 + $0x9f8] sm:$0xff]
        %v776 = vld [vmem:[%s446 + $0xa00] sm:$0xff]
        %v777 = vld [vmem:[%s446 + $0xa08] sm:$0xff]
        %v778 = vld [vmem:[%s446 + $0xa10] sm:$0xff]
        %v779 = vld [vmem:[%s446 + $0xa18] sm:$0xff]
        %v780 = vld [vmem:[%s446 + $0xa20] sm:$0xff]
        %v781 = vld [vmem:[%s446 + $0xa28] sm:$0xff]
        %v782 = vld [vmem:[%s446 + $0xa30] sm:$0xff]
        %v783 = vld [vmem:[%s446 + $0xa38] sm:$0xff]
        %v784 = vld [vmem:[%s446 + $0xa40] sm:$0xff]
        %v785 = vld [vmem:[%s446 + $0xa48] sm:$0xff]
        %v786 = vld [vmem:[%s446 + $0xa50] sm:$0xff]
        %v787 = vld [vmem:[%s446 + $0xa58] sm:$0xff]
        %v788 = vld [vmem:[%s446 + $0xa60] sm:$0xff]
        %v789 = vld [vmem:[%s446 + $0xa68] sm:$0xff]
        %v790 = vld [vmem:[%s446 + $0xa70] sm:$0xff]
        %v791 = vld [vmem:[%s446 + $0xa78] sm:$0xff]
        %v792 = vld [vmem:[%s446 + $0xa80] sm:$0xff]
        %v793 = vld [vmem:[%s446 + $0xa88] sm:$0xff]
        %v794 = vld [vmem:[%s446 + $0xa90] sm:$0xff]
        %v795 = vld [vmem:[%s446 + $0xa98] sm:$0xff]
        %v796 = vld [vmem:[%s446 + $0xaa0] sm:$0xff]
        %v797 = vld [vmem:[%s446 + $0xaa8] sm:$0xff]
        %v798 = vld [vmem:[%s446 + $0xab0] sm:$0xff]
        %v799 = vld [vmem:[%s446 + $0xab8] sm:$0xff]
        %v800 = vld [vmem:[%s446 + $0xac0] sm:$0xff]
        %v801 = vld [vmem:[%s446 + $0xac8] sm:$0xff]
        %v802 = vld [vmem:[%s446 + $0xad0] sm:$0xff]
        %v803 = vld [vmem:[%s446 + $0xad8] sm:$0xff]
        %v804 = vld [vmem:[%s446 + $0xae0] sm:$0xff]
        %v805 = vld [vmem:[%s446 + $0xae8] sm:$0xff]
        %v806 = vld [vmem:[%s446 + $0xaf0] sm:$0xff]
        %v807 = vld [vmem:[%s446 + $0xaf8] sm:$0xff]
        %v808 = vld [vmem:[%s446 + $0xb00] sm:$0xff]
        %v809 = vld [vmem:[%s446 + $0xb08] sm:$0xff]
        %v810 = vld [vmem:[%s446 + $0xb10] sm:$0xff]
        %v811 = vld [vmem:[%s446 + $0xb18] sm:$0xff]
        %v812 = vld [vmem:[%s446 + $0xb20] sm:$0xff]
        %v813 = vld [vmem:[%s446 + $0xb28] sm:$0xff]
        %v814 = vld [vmem:[%s446 + $0xb30] sm:$0xff]
        %v815 = vld [vmem:[%s446 + $0xb38] sm:$0xff]
        %v816 = vld [vmem:[%s446 + $0xb40] sm:$0xff]
        %v817 = vld [vmem:[%s446 + $0xb48] sm:$0xff]
        %v818 = vld [vmem:[%s446 + $0xb50] sm:$0xff]
        %v819 = vld [vmem:[%s446 + $0xb58] sm:$0xff]
        %v820 = vld [vmem:[%s446 + $0xb60] sm:$0xff]
        %v821 = vld [vmem:[%s446 + $0xb68] sm:$0xff]
        %v822 = vld [vmem:[%s446 + $0xb70] sm:$0xff]
        %v823 = vld [vmem:[%s446 + $0xb78] sm:$0xff]
        %v824 = vld [vmem:[%s446 + $0xb80] sm:$0xff]
        %v825 = vld [vmem:[%s446 + $0xb88] sm:$0xff]
        %v826 = vld [vmem:[%s446 + $0xb90] sm:$0xff]
        %v827 = vld [vmem:[%s446 + $0xb98] sm:$0xff]
        %v828 = vld [vmem:[%s446 + $0xba0] sm:$0xff]
        %v829 = vld [vmem:[%s446 + $0xba8] sm:$0xff]
        %v830 = vld [vmem:[%s446 + $0xbb0] sm:$0xff]
        %v831 = vld [vmem:[%s446 + $0xbb8] sm:$0xff]
        %v832 = vld [vmem:[%s446 + $0xbc0] sm:$0xff]
        %v833 = vld [vmem:[%s446 + $0xbc8] sm:$0xff]
        %v834 = vld [vmem:[%s446 + $0xbd0] sm:$0xff]
        %v835 = vld [vmem:[%s446 + $0xbd8] sm:$0xff]
        %v836 = vld [vmem:[%s446 + $0xbe0] sm:$0xff]
        %v837 = vld [vmem:[%s446 + $0xbe8] sm:$0xff]
        %v838 = vld [vmem:[%s446 + $0xbf0] sm:$0xff]
        %v839 = vld [vmem:[%s446 + $0xbf8] sm:$0xff]
        %v840 = vld [vmem:[%s446 + $0xc00] sm:$0xff]
        %v841 = vld [vmem:[%s446 + $0xc08] sm:$0xff]
        %v842 = vld [vmem:[%s446 + $0xc10] sm:$0xff]
        %v843 = vld [vmem:[%s446 + $0xc18] sm:$0xff]
        %v844 = vld [vmem:[%s446 + $0xc20] sm:$0xff]
        %v845 = vld [vmem:[%s446 + $0xc28] sm:$0xff]
        %v846 = vld [vmem:[%s446 + $0xc30] sm:$0xff]
        %v847 = vld [vmem:[%s446 + $0xc38] sm:$0xff]
        %v848 = vld [vmem:[%s446 + $0xc40] sm:$0xff]
        %v849 = vld [vmem:[%s446 + $0xc48] sm:$0xff]
        %v850 = vld [vmem:[%s446 + $0xc50] sm:$0xff]
        %v851 = vld [vmem:[%s446 + $0xc58] sm:$0xff]
        %v852 = vld [vmem:[%s446 + $0xc60] sm:$0xff]
        %v853 = vld [vmem:[%s446 + $0xc68] sm:$0xff]
        %v854 = vld [vmem:[%s446 + $0xc70] sm:$0xff]
        %v855 = vld [vmem:[%s446 + $0xc78] sm:$0xff]
        %v856 = vld [vmem:[%s446 + $0xc80] sm:$0xff]
        %v857 = vld [vmem:[%s446 + $0xc88] sm:$0xff]
        %v858 = vld [vmem:[%s446 + $0xc90] sm:$0xff]
        %v859 = vld [vmem:[%s446 + $0xc98] sm:$0xff]
        %v860 = vld [vmem:[%s446 + $0xca0] sm:$0xff]
        %v861 = vld [vmem:[%s446 + $0xca8] sm:$0xff]
        %v862 = vld [vmem:[%s446 + $0xcb0] sm:$0xff]
        %v863 = vld [vmem:[%s446 + $0xcb8] sm:$0xff]
        %v864 = vld [vmem:[%s446 + $0xcc0] sm:$0xff]
        %v865 = vld [vmem:[%s446 + $0xcc8] sm:$0xff]
        %v866 = vld [vmem:[%s446 + $0xcd0] sm:$0xff]
        %v867 = vld [vmem:[%s446 + $0xcd8] sm:$0xff]
        %v868 = vld [vmem:[%s446 + $0xce0] sm:$0xff]
        %v869 = vld [vmem:[%s446 + $0xce8] sm:$0xff]
        %v870 = vld [vmem:[%s446 + $0xcf0] sm:$0xff]
        %v871 = vld [vmem:[%s446 + $0xcf8] sm:$0xff]
        %v872 = vld [vmem:[%s446 + $0xd00] sm:$0xff]
        %v873 = vld [vmem:[%s446 + $0xd08] sm:$0xff]
        %v874 = vld [vmem:[%s446 + $0xd10] sm:$0xff]
        %v875 = vld [vmem:[%s446 + $0xd18] sm:$0xff]
        %v876 = vld [vmem:[%s446 + $0xd20] sm:$0xff]
        %v877 = vld [vmem:[%s446 + $0xd28] sm:$0xff]
        %v878 = vld [vmem:[%s446 + $0xd30] sm:$0xff]
        %v879 = vld [vmem:[%s446 + $0xd38] sm:$0xff]
        %v880 = vld [vmem:[%s446 + $0xd40] sm:$0xff]
        %v881 = vld [vmem:[%s446 + $0xd48] sm:$0xff]
        %v882 = vld [vmem:[%s446 + $0xd50] sm:$0xff]
        %v883 = vld [vmem:[%s446 + $0xd58] sm:$0xff]
        %v884 = vld [vmem:[%s446 + $0xd60] sm:$0xff]
        %v885 = vld [vmem:[%s446 + $0xd68] sm:$0xff]
        %v886 = vld [vmem:[%s446 + $0xd70] sm:$0xff]
        %v887 = vld [vmem:[%s446 + $0xd78] sm:$0xff]
        %v888 = vld [vmem:[%s446 + $0xd80] sm:$0xff]
        %v889 = vld [vmem:[%s446 + $0xd88] sm:$0xff]
        %v890 = vld [vmem:[%s446 + $0xd90] sm:$0xff]
        %v891 = vld [vmem:[%s446 + $0xd98] sm:$0xff]
        %v892 = vld [vmem:[%s446 + $0xda0] sm:$0xff]
        %v893 = vld [vmem:[%s446 + $0xda8] sm:$0xff]
        %v894 = vld [vmem:[%s446 + $0xdb0] sm:$0xff]
        %v895 = vld [vmem:[%s446 + $0xdb8] sm:$0xff]
        %v896 = vld [vmem:[%s446 + $0xdc0] sm:$0xff]
        %v897 = vld [vmem:[%s446 + $0xdc8] sm:$0xff]
        %v898 = vld [vmem:[%s446 + $0xdd0] sm:$0xff]
        %v899 = vld [vmem:[%s446 + $0xdd8] sm:$0xff]
        %v900 = vld [vmem:[%s446 + $0xde0] sm:$0xff]
        %v901 = vld [vmem:[%s446 + $0xde8] sm:$0xff]
        %v902 = vld [vmem:[%s446 + $0xdf0] sm:$0xff]
        %v903 = vld [vmem:[%s446 + $0xdf8] sm:$0xff]
        %v904 = vld [vmem:[%s446 + $0xe00] sm:$0xff]
        %v905 = vld [vmem:[%s446 + $0xe08] sm:$0xff]
        %v906 = vld [vmem:[%s446 + $0xe10] sm:$0xff]
        %v907 = vld [vmem:[%s446 + $0xe18] sm:$0xff]
        %v908 = vld [vmem:[%s446 + $0xe20] sm:$0xff]
        %v909 = vld [vmem:[%s446 + $0xe28] sm:$0xff]
        %v910 = vld [vmem:[%s446 + $0xe30] sm:$0xff]
        %v911 = vld [vmem:[%s446 + $0xe38] sm:$0xff]
        %v912 = vld [vmem:[%s446 + $0xe40] sm:$0xff]
        %v913 = vld [vmem:[%s446 + $0xe48] sm:$0xff]
        %v914 = vld [vmem:[%s446 + $0xe50] sm:$0xff]
        %v915 = vld [vmem:[%s446 + $0xe58] sm:$0xff]
        %v916 = vld [vmem:[%s446 + $0xe60] sm:$0xff]
        %v917 = vld [vmem:[%s446 + $0xe68] sm:$0xff]
        %v918 = vld [vmem:[%s446 + $0xe70] sm:$0xff]
        %v919 = vld [vmem:[%s446 + $0xe78] sm:$0xff]
        %v920 = vld [vmem:[%s446 + $0xe80] sm:$0xff]
        %v921 = vld [vmem:[%s446 + $0xe88] sm:$0xff]
        %v922 = vld [vmem:[%s446 + $0xe90] sm:$0xff]
        %v923 = vld [vmem:[%s446 + $0xe98] sm:$0xff]
        %v924 = vld [vmem:[%s446 + $0xea0] sm:$0xff]
        %v925 = vld [vmem:[%s446 + $0xea8] sm:$0xff]
        %v926 = vld [vmem:[%s446 + $0xeb0] sm:$0xff]
        %v927 = vld [vmem:[%s446 + $0xeb8] sm:$0xff]
        %v928 = vld [vmem:[%s446 + $0xec0] sm:$0xff]
        %v929 = vld [vmem:[%s446 + $0xec8] sm:$0xff]
        %v930 = vld [vmem:[%s446 + $0xed0] sm:$0xff]
        %v931 = vld [vmem:[%s446 + $0xed8] sm:$0xff]
        %v932 = vld [vmem:[%s446 + $0xee0] sm:$0xff]
        %v933 = vld [vmem:[%s446 + $0xee8] sm:$0xff]
        %v934 = vld [vmem:[%s446 + $0xef0] sm:$0xff]
        %v935 = vld [vmem:[%s446 + $0xef8] sm:$0xff]
        %v936 = vld [vmem:[%s446 + $0xf00] sm:$0xff]
        %v937 = vld [vmem:[%s446 + $0xf08] sm:$0xff]
        %v938 = vld [vmem:[%s446 + $0xf10] sm:$0xff]
        %v939 = vld [vmem:[%s446 + $0xf18] sm:$0xff]
        %v940 = vld [vmem:[%s446 + $0xf20] sm:$0xff]
        %v941 = vld [vmem:[%s446 + $0xf28] sm:$0xff]
        %v942 = vld [vmem:[%s446 + $0xf30] sm:$0xff]
        %v943 = vld [vmem:[%s446 + $0xf38] sm:$0xff]
        %v944 = vld [vmem:[%s446 + $0xf40] sm:$0xff]
        %v945 = vld [vmem:[%s446 + $0xf48] sm:$0xff]
        %v946 = vld [vmem:[%s446 + $0xf50] sm:$0xff]
        %v947 = vld [vmem:[%s446 + $0xf58] sm:$0xff]
        %v948 = vld [vmem:[%s446 + $0xf60] sm:$0xff]
        %v949 = vld [vmem:[%s446 + $0xf68] sm:$0xff]
        %v950 = vld [vmem:[%s446 + $0xf70] sm:$0xff]
        %v951 = vld [vmem:[%s446 + $0xf78] sm:$0xff]
        %v952 = vld [vmem:[%s446 + $0xf80] sm:$0xff]
        %v953 = vld [vmem:[%s446 + $0xf88] sm:$0xff]
        %v954 = vld [vmem:[%s446 + $0xf90] sm:$0xff]
        %v955 = vld [vmem:[%s446 + $0xf98] sm:$0xff]
        %v956 = vld [vmem:[%s446 + $0xfa0] sm:$0xff]
        %v957 = vld [vmem:[%s446 + $0xfa8] sm:$0xff]
        %v958 = vld [vmem:[%s446 + $0xfb0] sm:$0xff]
        %v959 = vld [vmem:[%s446 + $0xfb8] sm:$0xff]
        %v960 = vld [vmem:[%s446 + $0xfc0] sm:$0xff]
        %v961 = vld [vmem:[%s446 + $0xfc8] sm:$0xff]
        %v962 = vld [vmem:[%s446 + $0xfd0] sm:$0xff]
        %v963 = vld [vmem:[%s446 + $0xfd8] sm:$0xff]
        %v964 = vld [vmem:[%s446 + $0xfe0] sm:$0xff]
        %v965 = vld [vmem:[%s446 + $0xfe8] sm:$0xff]
        %v966 = vld [vmem:[%s446 + $0xff0] sm:$0xff]
        %v967 = vld [vmem:[%s446 + $0xff8] sm:$0xff]
        %v968 = vld [vmem:[%s374] sm:$0xff]
        %v969 = vld [vmem:[%s374 + $0x8] sm:$0xff]
        %v970 = vld [vmem:[%s374 + $0x10] sm:$0xff]
        %v971 = vld [vmem:[%s374 + $0x18] sm:$0xff]
        %v972 = vld [vmem:[%s374 + $0x20] sm:$0xff]
        %v973 = vld [vmem:[%s374 + $0x28] sm:$0xff]
        %v974 = vld [vmem:[%s374 + $0x30] sm:$0xff]
        %v975 = vld [vmem:[%s374 + $0x38] sm:$0xff]
        %v976 = vld [vmem:[%s374 + $0x40] sm:$0xff]
        %v977 = vld [vmem:[%s374 + $0x48] sm:$0xff]
        %v978 = vld [vmem:[%s374 + $0x50] sm:$0xff]
        %v979 = vld [vmem:[%s374 + $0x58] sm:$0xff]
        %v980 = vld [vmem:[%s374 + $0x60] sm:$0xff]
        %v981 = vld [vmem:[%s374 + $0x68] sm:$0xff]
        %v982 = vld [vmem:[%s374 + $0x70] sm:$0xff]
        %v983 = vld [vmem:[%s374 + $0x78] sm:$0xff]
        %v984 = vld [vmem:[%s374 + $0x80] sm:$0xff]
        %v985 = vld [vmem:[%s374 + $0x88] sm:$0xff]
        %v986 = vld [vmem:[%s374 + $0x90] sm:$0xff]
        %v987 = vld [vmem:[%s374 + $0x98] sm:$0xff]
        %v988 = vld [vmem:[%s374 + $0xa0] sm:$0xff]
        %v989 = vld [vmem:[%s374 + $0xa8] sm:$0xff]
        %v990 = vld [vmem:[%s374 + $0xb0] sm:$0xff]
        %v991 = vld [vmem:[%s374 + $0xb8] sm:$0xff]
        %v992 = vld [vmem:[%s374 + $0xc0] sm:$0xff]
        %v993 = vld [vmem:[%s374 + $0xc8] sm:$0xff]
        %v994 = vld [vmem:[%s374 + $0xd0] sm:$0xff]
        %v995 = vld [vmem:[%s374 + $0xd8] sm:$0xff]
        %v996 = vld [vmem:[%s374 + $0xe0] sm:$0xff]
        %v997 = vld [vmem:[%s374 + $0xe8] sm:$0xff]
        %v998 = vld [vmem:[%s374 + $0xf0] sm:$0xff]
        %v999 = vld [vmem:[%s374 + $0xf8] sm:$0xff]
        %v1000 = vld [vmem:[%s374 + $0x100] sm:$0xff]
        %v1001 = vld [vmem:[%s374 + $0x108] sm:$0xff]
        %v1002 = vld [vmem:[%s374 + $0x110] sm:$0xff]
        %v1003 = vld [vmem:[%s374 + $0x118] sm:$0xff]
        %v1004 = vld [vmem:[%s374 + $0x120] sm:$0xff]
        %v1005 = vld [vmem:[%s374 + $0x128] sm:$0xff]
        %v1006 = vld [vmem:[%s374 + $0x130] sm:$0xff]
        %v1007 = vld [vmem:[%s374 + $0x138] sm:$0xff]
        %v1008 = vld [vmem:[%s374 + $0x140] sm:$0xff]
        %v1009 = vld [vmem:[%s374 + $0x148] sm:$0xff]
        %v1010 = vld [vmem:[%s374 + $0x150] sm:$0xff]
        %v1011 = vld [vmem:[%s374 + $0x158] sm:$0xff]
        %v1012 = vld [vmem:[%s374 + $0x160] sm:$0xff]
        %v1013 = vld [vmem:[%s374 + $0x168] sm:$0xff]
        %v1014 = vld [vmem:[%s374 + $0x170] sm:$0xff]
        %v1015 = vld [vmem:[%s374 + $0x178] sm:$0xff]
        %v1016 = vld [vmem:[%s374 + $0x180] sm:$0xff]
        %v1017 = vld [vmem:[%s374 + $0x188] sm:$0xff]
        %v1018 = vld [vmem:[%s374 + $0x190] sm:$0xff]
        %v1019 = vld [vmem:[%s374 + $0x198] sm:$0xff]
        %v1020 = vld [vmem:[%s374 + $0x1a0] sm:$0xff]
        %v1021 = vld [vmem:[%s374 + $0x1a8] sm:$0xff]
        %v1022 = vld [vmem:[%s374 + $0x1b0] sm:$0xff]
        %v1023 = vld [vmem:[%s374 + $0x1b8] sm:$0xff]
        %v1024 = vld [vmem:[%s374 + $0x1c0] sm:$0xff]
        %v1025 = vld [vmem:[%s374 + $0x1c8] sm:$0xff]
        %v1026 = vld [vmem:[%s374 + $0x1d0] sm:$0xff]
        %v1027 = vld [vmem:[%s374 + $0x1d8] sm:$0xff]
        %v1028 = vld [vmem:[%s374 + $0x1e0] sm:$0xff]
        %v1029 = vld [vmem:[%s374 + $0x1e8] sm:$0xff]
        %v1030 = vld [vmem:[%s374 + $0x1f0] sm:$0xff]
        %v1031 = vld [vmem:[%s374 + $0x1f8] sm:$0xff]
        %v1032 = vld [vmem:[%s374 + $0x200] sm:$0xff]
        %v1033 = vld [vmem:[%s374 + $0x208] sm:$0xff]
        %v1034 = vld [vmem:[%s374 + $0x210] sm:$0xff]
        %v1035 = vld [vmem:[%s374 + $0x218] sm:$0xff]
        %v1036 = vld [vmem:[%s374 + $0x220] sm:$0xff]
        %v1037 = vld [vmem:[%s374 + $0x228] sm:$0xff]
        %v1038 = vld [vmem:[%s374 + $0x230] sm:$0xff]
        %v1039 = vld [vmem:[%s374 + $0x238] sm:$0xff]
        %v1040 = vld [vmem:[%s374 + $0x240] sm:$0xff]
        %v1041 = vld [vmem:[%s374 + $0x248] sm:$0xff]
        %v1042 = vld [vmem:[%s374 + $0x250] sm:$0xff]
        %v1043 = vld [vmem:[%s374 + $0x258] sm:$0xff]
        %v1044 = vld [vmem:[%s374 + $0x260] sm:$0xff]
        %v1045 = vld [vmem:[%s374 + $0x268] sm:$0xff]
        %v1046 = vld [vmem:[%s374 + $0x270] sm:$0xff]
        %v1047 = vld [vmem:[%s374 + $0x278] sm:$0xff]
        %v1048 = vld [vmem:[%s374 + $0x280] sm:$0xff]
        %v1049 = vld [vmem:[%s374 + $0x288] sm:$0xff]
        %v1050 = vld [vmem:[%s374 + $0x290] sm:$0xff]
        %v1051 = vld [vmem:[%s374 + $0x298] sm:$0xff]
        %v1052 = vld [vmem:[%s374 + $0x2a0] sm:$0xff]
        %v1053 = vld [vmem:[%s374 + $0x2a8] sm:$0xff]
        %v1054 = vld [vmem:[%s374 + $0x2b0] sm:$0xff]
        %v1055 = vld [vmem:[%s374 + $0x2b8] sm:$0xff]
        %v1056 = vld [vmem:[%s374 + $0x2c0] sm:$0xff]
        %v1057 = vld [vmem:[%s374 + $0x2c8] sm:$0xff]
        %v1058 = vld [vmem:[%s374 + $0x2d0] sm:$0xff]
        %v1059 = vld [vmem:[%s374 + $0x2d8] sm:$0xff]
        %v1060 = vld [vmem:[%s374 + $0x2e0] sm:$0xff]
        %v1061 = vld [vmem:[%s374 + $0x2e8] sm:$0xff]
        %v1062 = vld [vmem:[%s374 + $0x2f0] sm:$0xff]
        %v1063 = vld [vmem:[%s374 + $0x2f8] sm:$0xff]
        %v1064 = vld [vmem:[%s374 + $0x300] sm:$0xff]
        %v1065 = vld [vmem:[%s374 + $0x308] sm:$0xff]
        %v1066 = vld [vmem:[%s374 + $0x310] sm:$0xff]
        %v1067 = vld [vmem:[%s374 + $0x318] sm:$0xff]
        %v1068 = vld [vmem:[%s374 + $0x320] sm:$0xff]
        %v1069 = vld [vmem:[%s374 + $0x328] sm:$0xff]
        %v1070 = vld [vmem:[%s374 + $0x330] sm:$0xff]
        %v1071 = vld [vmem:[%s374 + $0x338] sm:$0xff]
        %v1072 = vld [vmem:[%s374 + $0x340] sm:$0xff]
        %v1073 = vld [vmem:[%s374 + $0x348] sm:$0xff]
        %v1074 = vld [vmem:[%s374 + $0x350] sm:$0xff]
        %v1075 = vld [vmem:[%s374 + $0x358] sm:$0xff]
        %v1076 = vld [vmem:[%s374 + $0x360] sm:$0xff]
        %v1077 = vld [vmem:[%s374 + $0x368] sm:$0xff]
        %v1078 = vld [vmem:[%s374 + $0x370] sm:$0xff]
        %v1079 = vld [vmem:[%s374 + $0x378] sm:$0xff]
        %v1080 = vld [vmem:[%s374 + $0x380] sm:$0xff]
        %v1081 = vld [vmem:[%s374 + $0x388] sm:$0xff]
        %v1082 = vld [vmem:[%s374 + $0x390] sm:$0xff]
        %v1083 = vld [vmem:[%s374 + $0x398] sm:$0xff]
        %v1084 = vld [vmem:[%s374 + $0x3a0] sm:$0xff]
        %v1085 = vld [vmem:[%s374 + $0x3a8] sm:$0xff]
        %v1086 = vld [vmem:[%s374 + $0x3b0] sm:$0xff]
        %v1087 = vld [vmem:[%s374 + $0x3b8] sm:$0xff]
        %v1088 = vld [vmem:[%s374 + $0x3c0] sm:$0xff]
        %v1089 = vld [vmem:[%s374 + $0x3c8] sm:$0xff]
        %v1090 = vld [vmem:[%s374 + $0x3d0] sm:$0xff]
        %v1091 = vld [vmem:[%s374 + $0x3d8] sm:$0xff]
        %v1092 = vld [vmem:[%s374 + $0x3e0] sm:$0xff]
        %v1093 = vld [vmem:[%s374 + $0x3e8] sm:$0xff]
        %v1094 = vld [vmem:[%s374 + $0x3f0] sm:$0xff]
        %v1095 = vld [vmem:[%s374 + $0x3f8] sm:$0xff]
        %v1096 = vld [vmem:[%s374 + $0x400] sm:$0xff]
        %v1097 = vld [vmem:[%s374 + $0x408] sm:$0xff]
        %v1098 = vld [vmem:[%s374 + $0x410] sm:$0xff]
        %v1099 = vld [vmem:[%s374 + $0x418] sm:$0xff]
        %v1100 = vld [vmem:[%s374 + $0x420] sm:$0xff]
        %v1101 = vld [vmem:[%s374 + $0x428] sm:$0xff]
        %v1102 = vld [vmem:[%s374 + $0x430] sm:$0xff]
        %v1103 = vld [vmem:[%s374 + $0x438] sm:$0xff]
        %v1104 = vld [vmem:[%s374 + $0x440] sm:$0xff]
        %v1105 = vld [vmem:[%s374 + $0x448] sm:$0xff]
        %v1106 = vld [vmem:[%s374 + $0x450] sm:$0xff]
        %v1107 = vld [vmem:[%s374 + $0x458] sm:$0xff]
        %v1108 = vld [vmem:[%s374 + $0x460] sm:$0xff]
        %v1109 = vld [vmem:[%s374 + $0x468] sm:$0xff]
        %v1110 = vld [vmem:[%s374 + $0x470] sm:$0xff]
        %v1111 = vld [vmem:[%s374 + $0x478] sm:$0xff]
        %v1112 = vld [vmem:[%s374 + $0x480] sm:$0xff]
        %v1113 = vld [vmem:[%s374 + $0x488] sm:$0xff]
        %v1114 = vld [vmem:[%s374 + $0x490] sm:$0xff]
        %v1115 = vld [vmem:[%s374 + $0x498] sm:$0xff]
        %v1116 = vld [vmem:[%s374 + $0x4a0] sm:$0xff]
        %v1117 = vld [vmem:[%s374 + $0x4a8] sm:$0xff]
        %v1118 = vld [vmem:[%s374 + $0x4b0] sm:$0xff]
        %v1119 = vld [vmem:[%s374 + $0x4b8] sm:$0xff]
        %v1120 = vld [vmem:[%s374 + $0x4c0] sm:$0xff]
        %v1121 = vld [vmem:[%s374 + $0x4c8] sm:$0xff]
        %v1122 = vld [vmem:[%s374 + $0x4d0] sm:$0xff]
        %v1123 = vld [vmem:[%s374 + $0x4d8] sm:$0xff]
        %v1124 = vld [vmem:[%s374 + $0x4e0] sm:$0xff]
        %v1125 = vld [vmem:[%s374 + $0x4e8] sm:$0xff]
        %v1126 = vld [vmem:[%s374 + $0x4f0] sm:$0xff]
        %v1127 = vld [vmem:[%s374 + $0x4f8] sm:$0xff]
        %v1128 = vld [vmem:[%s374 + $0x500] sm:$0xff]
        %v1129 = vld [vmem:[%s374 + $0x508] sm:$0xff]
        %v1130 = vld [vmem:[%s374 + $0x510] sm:$0xff]
        %v1131 = vld [vmem:[%s374 + $0x518] sm:$0xff]
        %v1132 = vld [vmem:[%s374 + $0x520] sm:$0xff]
        %v1133 = vld [vmem:[%s374 + $0x528] sm:$0xff]
        %v1134 = vld [vmem:[%s374 + $0x530] sm:$0xff]
        %v1135 = vld [vmem:[%s374 + $0x538] sm:$0xff]
        %v1136 = vld [vmem:[%s374 + $0x540] sm:$0xff]
        %v1137 = vld [vmem:[%s374 + $0x548] sm:$0xff]
        %v1138 = vld [vmem:[%s374 + $0x550] sm:$0xff]
        %v1139 = vld [vmem:[%s374 + $0x558] sm:$0xff]
        %v1140 = vld [vmem:[%s374 + $0x560] sm:$0xff]
        %v1141 = vld [vmem:[%s374 + $0x568] sm:$0xff]
        %v1142 = vld [vmem:[%s374 + $0x570] sm:$0xff]
        %v1143 = vld [vmem:[%s374 + $0x578] sm:$0xff]
        %v1144 = vld [vmem:[%s374 + $0x580] sm:$0xff]
        %v1145 = vld [vmem:[%s374 + $0x588] sm:$0xff]
        %v1146 = vld [vmem:[%s374 + $0x590] sm:$0xff]
        %v1147 = vld [vmem:[%s374 + $0x598] sm:$0xff]
        %v1148 = vld [vmem:[%s374 + $0x5a0] sm:$0xff]
        %v1149 = vld [vmem:[%s374 + $0x5a8] sm:$0xff]
        %v1150 = vld [vmem:[%s374 + $0x5b0] sm:$0xff]
        %v1151 = vld [vmem:[%s374 + $0x5b8] sm:$0xff]
        %v1152 = vld [vmem:[%s374 + $0x5c0] sm:$0xff]
        %v1153 = vld [vmem:[%s374 + $0x5c8] sm:$0xff]
        %v1154 = vld [vmem:[%s374 + $0x5d0] sm:$0xff]
        %v1155 = vld [vmem:[%s374 + $0x5d8] sm:$0xff]
        %v1156 = vld [vmem:[%s374 + $0x5e0] sm:$0xff]
        %v1157 = vld [vmem:[%s374 + $0x5e8] sm:$0xff]
        %v1158 = vld [vmem:[%s374 + $0x5f0] sm:$0xff]
        %v1159 = vld [vmem:[%s374 + $0x5f8] sm:$0xff]
        %v1160 = vld [vmem:[%s374 + $0x600] sm:$0xff]
        %v1161 = vld [vmem:[%s374 + $0x608] sm:$0xff]
        %v1162 = vld [vmem:[%s374 + $0x610] sm:$0xff]
        %v1163 = vld [vmem:[%s374 + $0x618] sm:$0xff]
        %v1164 = vld [vmem:[%s374 + $0x620] sm:$0xff]
        %v1165 = vld [vmem:[%s374 + $0x628] sm:$0xff]
        %v1166 = vld [vmem:[%s374 + $0x630] sm:$0xff]
        %v1167 = vld [vmem:[%s374 + $0x638] sm:$0xff]
        %v1168 = vld [vmem:[%s374 + $0x640] sm:$0xff]
        %v1169 = vld [vmem:[%s374 + $0x648] sm:$0xff]
        %v1170 = vld [vmem:[%s374 + $0x650] sm:$0xff]
        %v1171 = vld [vmem:[%s374 + $0x658] sm:$0xff]
        %v1172 = vld [vmem:[%s374 + $0x660] sm:$0xff]
        %v1173 = vld [vmem:[%s374 + $0x668] sm:$0xff]
        %v1174 = vld [vmem:[%s374 + $0x670] sm:$0xff]
        %v1175 = vld [vmem:[%s374 + $0x678] sm:$0xff]
        %v1176 = vld [vmem:[%s374 + $0x680] sm:$0xff]
        %v1177 = vld [vmem:[%s374 + $0x688] sm:$0xff]
        %v1178 = vld [vmem:[%s374 + $0x690] sm:$0xff]
        %v1179 = vld [vmem:[%s374 + $0x698] sm:$0xff]
        %v1180 = vld [vmem:[%s374 + $0x6a0] sm:$0xff]
        %v1181 = vld [vmem:[%s374 + $0x6a8] sm:$0xff]
        %v1182 = vld [vmem:[%s374 + $0x6b0] sm:$0xff]
        %v1183 = vld [vmem:[%s374 + $0x6b8] sm:$0xff]
        %v1184 = vld [vmem:[%s374 + $0x6c0] sm:$0xff]
        %v1185 = vld [vmem:[%s374 + $0x6c8] sm:$0xff]
        %v1186 = vld [vmem:[%s374 + $0x6d0] sm:$0xff]
        %v1187 = vld [vmem:[%s374 + $0x6d8] sm:$0xff]
        %v1188 = vld [vmem:[%s374 + $0x6e0] sm:$0xff]
        %v1189 = vld [vmem:[%s374 + $0x6e8] sm:$0xff]
        %v1190 = vld [vmem:[%s374 + $0x6f0] sm:$0xff]
        %v1191 = vld [vmem:[%s374 + $0x6f8] sm:$0xff]
        %v1192 = vld [vmem:[%s374 + $0x700] sm:$0xff]
        %v1193 = vld [vmem:[%s374 + $0x708] sm:$0xff]
        %v1194 = vld [vmem:[%s374 + $0x710] sm:$0xff]
        %v1195 = vld [vmem:[%s374 + $0x718] sm:$0xff]
        %v1196 = vld [vmem:[%s374 + $0x720] sm:$0xff]
        %v1197 = vld [vmem:[%s374 + $0x728] sm:$0xff]
        %v1198 = vld [vmem:[%s374 + $0x730] sm:$0xff]
        %v1199 = vld [vmem:[%s374 + $0x738] sm:$0xff]
        %v1200 = vld [vmem:[%s374 + $0x740] sm:$0xff]
        %v1201 = vld [vmem:[%s374 + $0x748] sm:$0xff]
        %v1202 = vld [vmem:[%s374 + $0x750] sm:$0xff]
        %v1203 = vld [vmem:[%s374 + $0x758] sm:$0xff]
        %v1204 = vld [vmem:[%s374 + $0x760] sm:$0xff]
        %v1205 = vld [vmem:[%s374 + $0x768] sm:$0xff]
        %v1206 = vld [vmem:[%s374 + $0x770] sm:$0xff]
        %v1207 = vld [vmem:[%s374 + $0x778] sm:$0xff]
        %v1208 = vld [vmem:[%s374 + $0x780] sm:$0xff]
        %v1209 = vld [vmem:[%s374 + $0x788] sm:$0xff]
        %v1210 = vld [vmem:[%s374 + $0x790] sm:$0xff]
        %v1211 = vld [vmem:[%s374 + $0x798] sm:$0xff]
        %v1212 = vld [vmem:[%s374 + $0x7a0] sm:$0xff]
        %v1213 = vld [vmem:[%s374 + $0x7a8] sm:$0xff]
        %v1214 = vld [vmem:[%s374 + $0x7b0] sm:$0xff]
        %v1215 = vld [vmem:[%s374 + $0x7b8] sm:$0xff]
        %v1216 = vld [vmem:[%s374 + $0x7c0] sm:$0xff]
        %v1217 = vld [vmem:[%s374 + $0x7c8] sm:$0xff]
        %v1218 = vld [vmem:[%s374 + $0x7d0] sm:$0xff]
        %v1219 = vld [vmem:[%s374 + $0x7d8] sm:$0xff]
        %v1220 = vld [vmem:[%s374 + $0x7e0] sm:$0xff]
        %v1221 = vld [vmem:[%s374 + $0x7e8] sm:$0xff]
        %v1222 = vld [vmem:[%s374 + $0x7f0] sm:$0xff]
        %v1223 = vld [vmem:[%s374 + $0x7f8] sm:$0xff]
        %v1224 = vld [vmem:[%s374 + $0x800] sm:$0xff]
        %v1225 = vld [vmem:[%s374 + $0x808] sm:$0xff]
        %v1226 = vld [vmem:[%s374 + $0x810] sm:$0xff]
        %v1227 = vld [vmem:[%s374 + $0x818] sm:$0xff]
        %v1228 = vld [vmem:[%s374 + $0x820] sm:$0xff]
        %v1229 = vld [vmem:[%s374 + $0x828] sm:$0xff]
        %v1230 = vld [vmem:[%s374 + $0x830] sm:$0xff]
        %v1231 = vld [vmem:[%s374 + $0x838] sm:$0xff]
        %v1232 = vld [vmem:[%s374 + $0x840] sm:$0xff]
        %v1233 = vld [vmem:[%s374 + $0x848] sm:$0xff]
        %v1234 = vld [vmem:[%s374 + $0x850] sm:$0xff]
        %v1235 = vld [vmem:[%s374 + $0x858] sm:$0xff]
        %v1236 = vld [vmem:[%s374 + $0x860] sm:$0xff]
        %v1237 = vld [vmem:[%s374 + $0x868] sm:$0xff]
        %v1238 = vld [vmem:[%s374 + $0x870] sm:$0xff]
        %v1239 = vld [vmem:[%s374 + $0x878] sm:$0xff]
        %v1240 = vld [vmem:[%s374 + $0x880] sm:$0xff]
        %v1241 = vld [vmem:[%s374 + $0x888] sm:$0xff]
        %v1242 = vld [vmem:[%s374 + $0x890] sm:$0xff]
        %v1243 = vld [vmem:[%s374 + $0x898] sm:$0xff]
        %v1244 = vld [vmem:[%s374 + $0x8a0] sm:$0xff]
        %v1245 = vld [vmem:[%s374 + $0x8a8] sm:$0xff]
        %v1246 = vld [vmem:[%s374 + $0x8b0] sm:$0xff]
        %v1247 = vld [vmem:[%s374 + $0x8b8] sm:$0xff]
        %v1248 = vld [vmem:[%s374 + $0x8c0] sm:$0xff]
        %v1249 = vld [vmem:[%s374 + $0x8c8] sm:$0xff]
        %v1250 = vld [vmem:[%s374 + $0x8d0] sm:$0xff]
        %v1251 = vld [vmem:[%s374 + $0x8d8] sm:$0xff]
        %v1252 = vld [vmem:[%s374 + $0x8e0] sm:$0xff]
        %v1253 = vld [vmem:[%s374 + $0x8e8] sm:$0xff]
        %v1254 = vld [vmem:[%s374 + $0x8f0] sm:$0xff]
        %v1255 = vld [vmem:[%s374 + $0x8f8] sm:$0xff]
        %v1256 = vld [vmem:[%s374 + $0x900] sm:$0xff]
        %v1257 = vld [vmem:[%s374 + $0x908] sm:$0xff]
        %v1258 = vld [vmem:[%s374 + $0x910] sm:$0xff]
        %v1259 = vld [vmem:[%s374 + $0x918] sm:$0xff]
        %v1260 = vld [vmem:[%s374 + $0x920] sm:$0xff]
        %v1261 = vld [vmem:[%s374 + $0x928] sm:$0xff]
        %v1262 = vld [vmem:[%s374 + $0x930] sm:$0xff]
        %v1263 = vld [vmem:[%s374 + $0x938] sm:$0xff]
        %v1264 = vld [vmem:[%s374 + $0x940] sm:$0xff]
        %v1265 = vld [vmem:[%s374 + $0x948] sm:$0xff]
        %v1266 = vld [vmem:[%s374 + $0x950] sm:$0xff]
        %v1267 = vld [vmem:[%s374 + $0x958] sm:$0xff]
        %v1268 = vld [vmem:[%s374 + $0x960] sm:$0xff]
        %v1269 = vld [vmem:[%s374 + $0x968] sm:$0xff]
        %v1270 = vld [vmem:[%s374 + $0x970] sm:$0xff]
        %v1271 = vld [vmem:[%s374 + $0x978] sm:$0xff]
        %v1272 = vld [vmem:[%s374 + $0x980] sm:$0xff]
        %v1273 = vld [vmem:[%s374 + $0x988] sm:$0xff]
        %v1274 = vld [vmem:[%s374 + $0x990] sm:$0xff]
        %v1275 = vld [vmem:[%s374 + $0x998] sm:$0xff]
        %v1276 = vld [vmem:[%s374 + $0x9a0] sm:$0xff]
        %v1277 = vld [vmem:[%s374 + $0x9a8] sm:$0xff]
        %v1278 = vld [vmem:[%s374 + $0x9b0] sm:$0xff]
        %v1279 = vld [vmem:[%s374 + $0x9b8] sm:$0xff]
        %v1280 = vld [vmem:[%s374 + $0x9c0] sm:$0xff]
        %v1281 = vld [vmem:[%s374 + $0x9c8] sm:$0xff]
        %v1282 = vld [vmem:[%s374 + $0x9d0] sm:$0xff]
        %v1283 = vld [vmem:[%s374 + $0x9d8] sm:$0xff]
        %v1284 = vld [vmem:[%s374 + $0x9e0] sm:$0xff]
        %v1285 = vld [vmem:[%s374 + $0x9e8] sm:$0xff]
        %v1286 = vld [vmem:[%s374 + $0x9f0] sm:$0xff]
        %v1287 = vld [vmem:[%s374 + $0x9f8] sm:$0xff]
        %v1288 = vld [vmem:[%s374 + $0xa00] sm:$0xff]
        %v1289 = vld [vmem:[%s374 + $0xa08] sm:$0xff]
        %v1290 = vld [vmem:[%s374 + $0xa10] sm:$0xff]
        %v1291 = vld [vmem:[%s374 + $0xa18] sm:$0xff]
        %v1292 = vld [vmem:[%s374 + $0xa20] sm:$0xff]
        %v1293 = vld [vmem:[%s374 + $0xa28] sm:$0xff]
        %v1294 = vld [vmem:[%s374 + $0xa30] sm:$0xff]
        %v1295 = vld [vmem:[%s374 + $0xa38] sm:$0xff]
        %v1296 = vld [vmem:[%s374 + $0xa40] sm:$0xff]
        %v1297 = vld [vmem:[%s374 + $0xa48] sm:$0xff]
        %v1298 = vld [vmem:[%s374 + $0xa50] sm:$0xff]
        %v1299 = vld [vmem:[%s374 + $0xa58] sm:$0xff]
        %v1300 = vld [vmem:[%s374 + $0xa60] sm:$0xff]
        %v1301 = vld [vmem:[%s374 + $0xa68] sm:$0xff]
        %v1302 = vld [vmem:[%s374 + $0xa70] sm:$0xff]
        %v1303 = vld [vmem:[%s374 + $0xa78] sm:$0xff]
        %v1304 = vld [vmem:[%s374 + $0xa80] sm:$0xff]
        %v1305 = vld [vmem:[%s374 + $0xa88] sm:$0xff]
        %v1306 = vld [vmem:[%s374 + $0xa90] sm:$0xff]
        %v1307 = vld [vmem:[%s374 + $0xa98] sm:$0xff]
        %v1308 = vld [vmem:[%s374 + $0xaa0] sm:$0xff]
        %v1309 = vld [vmem:[%s374 + $0xaa8] sm:$0xff]
        %v1310 = vld [vmem:[%s374 + $0xab0] sm:$0xff]
        %v1311 = vld [vmem:[%s374 + $0xab8] sm:$0xff]
        %v1312 = vld [vmem:[%s374 + $0xac0] sm:$0xff]
        %v1313 = vld [vmem:[%s374 + $0xac8] sm:$0xff]
        %v1314 = vld [vmem:[%s374 + $0xad0] sm:$0xff]
        %v1315 = vld [vmem:[%s374 + $0xad8] sm:$0xff]
        %v1316 = vld [vmem:[%s374 + $0xae0] sm:$0xff]
        %v1317 = vld [vmem:[%s374 + $0xae8] sm:$0xff]
        %v1318 = vld [vmem:[%s374 + $0xaf0] sm:$0xff]
        %v1319 = vld [vmem:[%s374 + $0xaf8] sm:$0xff]
        %v1320 = vld [vmem:[%s374 + $0xb00] sm:$0xff]
        %v1321 = vld [vmem:[%s374 + $0xb08] sm:$0xff]
        %v1322 = vld [vmem:[%s374 + $0xb10] sm:$0xff]
        %v1323 = vld [vmem:[%s374 + $0xb18] sm:$0xff]
        %v1324 = vld [vmem:[%s374 + $0xb20] sm:$0xff]
        %v1325 = vld [vmem:[%s374 + $0xb28] sm:$0xff]
        %v1326 = vld [vmem:[%s374 + $0xb30] sm:$0xff]
        %v1327 = vld [vmem:[%s374 + $0xb38] sm:$0xff]
        %v1328 = vld [vmem:[%s374 + $0xb40] sm:$0xff]
        %v1329 = vld [vmem:[%s374 + $0xb48] sm:$0xff]
        %v1330 = vld [vmem:[%s374 + $0xb50] sm:$0xff]
        %v1331 = vld [vmem:[%s374 + $0xb58] sm:$0xff]
        %v1332 = vld [vmem:[%s374 + $0xb60] sm:$0xff]
        %v1333 = vld [vmem:[%s374 + $0xb68] sm:$0xff]
        %v1334 = vld [vmem:[%s374 + $0xb70] sm:$0xff]
        %v1335 = vld [vmem:[%s374 + $0xb78] sm:$0xff]
        %v1336 = vld [vmem:[%s374 + $0xb80] sm:$0xff]
        %v1337 = vld [vmem:[%s374 + $0xb88] sm:$0xff]
        %v1338 = vld [vmem:[%s374 + $0xb90] sm:$0xff]
        %v1339 = vld [vmem:[%s374 + $0xb98] sm:$0xff]
        %v1340 = vld [vmem:[%s374 + $0xba0] sm:$0xff]
        %v1341 = vld [vmem:[%s374 + $0xba8] sm:$0xff]
        %v1342 = vld [vmem:[%s374 + $0xbb0] sm:$0xff]
        %v1343 = vld [vmem:[%s374 + $0xbb8] sm:$0xff]
        %v1344 = vld [vmem:[%s374 + $0xbc0] sm:$0xff]
        %v1345 = vld [vmem:[%s374 + $0xbc8] sm:$0xff]
        %v1346 = vld [vmem:[%s374 + $0xbd0] sm:$0xff]
        %v1347 = vld [vmem:[%s374 + $0xbd8] sm:$0xff]
        %v1348 = vld [vmem:[%s374 + $0xbe0] sm:$0xff]
        %v1349 = vld [vmem:[%s374 + $0xbe8] sm:$0xff]
        %v1350 = vld [vmem:[%s374 + $0xbf0] sm:$0xff]
        %v1351 = vld [vmem:[%s374 + $0xbf8] sm:$0xff]
        %v1352 = vld [vmem:[%s374 + $0xc00] sm:$0xff]
        %v1353 = vld [vmem:[%s374 + $0xc08] sm:$0xff]
        %v1354 = vld [vmem:[%s374 + $0xc10] sm:$0xff]
        %v1355 = vld [vmem:[%s374 + $0xc18] sm:$0xff]
        %v1356 = vld [vmem:[%s374 + $0xc20] sm:$0xff]
        %v1357 = vld [vmem:[%s374 + $0xc28] sm:$0xff]
        %v1358 = vld [vmem:[%s374 + $0xc30] sm:$0xff]
        %v1359 = vld [vmem:[%s374 + $0xc38] sm:$0xff]
        %v1360 = vld [vmem:[%s374 + $0xc40] sm:$0xff]
        %v1361 = vld [vmem:[%s374 + $0xc48] sm:$0xff]
        %v1362 = vld [vmem:[%s374 + $0xc50] sm:$0xff]
        %v1363 = vld [vmem:[%s374 + $0xc58] sm:$0xff]
        %v1364 = vld [vmem:[%s374 + $0xc60] sm:$0xff]
        %v1365 = vld [vmem:[%s374 + $0xc68] sm:$0xff]
        %v1366 = vld [vmem:[%s374 + $0xc70] sm:$0xff]
        %v1367 = vld [vmem:[%s374 + $0xc78] sm:$0xff]
        %v1368 = vld [vmem:[%s374 + $0xc80] sm:$0xff]
        %v1369 = vld [vmem:[%s374 + $0xc88] sm:$0xff]
        %v1370 = vld [vmem:[%s374 + $0xc90] sm:$0xff]
        %v1371 = vld [vmem:[%s374 + $0xc98] sm:$0xff]
        %v1372 = vld [vmem:[%s374 + $0xca0] sm:$0xff]
        %v1373 = vld [vmem:[%s374 + $0xca8] sm:$0xff]
        %v1374 = vld [vmem:[%s374 + $0xcb0] sm:$0xff]
        %v1375 = vld [vmem:[%s374 + $0xcb8] sm:$0xff]
        %v1376 = vld [vmem:[%s374 + $0xcc0] sm:$0xff]
        %v1377 = vld [vmem:[%s374 + $0xcc8] sm:$0xff]
        %v1378 = vld [vmem:[%s374 + $0xcd0] sm:$0xff]
        %v1379 = vld [vmem:[%s374 + $0xcd8] sm:$0xff]
        %v1380 = vld [vmem:[%s374 + $0xce0] sm:$0xff]
        %v1381 = vld [vmem:[%s374 + $0xce8] sm:$0xff]
        %v1382 = vld [vmem:[%s374 + $0xcf0] sm:$0xff]
        %v1383 = vld [vmem:[%s374 + $0xcf8] sm:$0xff]
        %v1384 = vld [vmem:[%s374 + $0xd00] sm:$0xff]
        %v1385 = vld [vmem:[%s374 + $0xd08] sm:$0xff]
        %v1386 = vld [vmem:[%s374 + $0xd10] sm:$0xff]
        %v1387 = vld [vmem:[%s374 + $0xd18] sm:$0xff]
        %v1388 = vld [vmem:[%s374 + $0xd20] sm:$0xff]
        %v1389 = vld [vmem:[%s374 + $0xd28] sm:$0xff]
        %v1390 = vld [vmem:[%s374 + $0xd30] sm:$0xff]
        %v1391 = vld [vmem:[%s374 + $0xd38] sm:$0xff]
        %v1392 = vld [vmem:[%s374 + $0xd40] sm:$0xff]
        %v1393 = vld [vmem:[%s374 + $0xd48] sm:$0xff]
        %v1394 = vld [vmem:[%s374 + $0xd50] sm:$0xff]
        %v1395 = vld [vmem:[%s374 + $0xd58] sm:$0xff]
        %v1396 = vld [vmem:[%s374 + $0xd60] sm:$0xff]
        %v1397 = vld [vmem:[%s374 + $0xd68] sm:$0xff]
        %v1398 = vld [vmem:[%s374 + $0xd70] sm:$0xff]
        %v1399 = vld [vmem:[%s374 + $0xd78] sm:$0xff]
        %v1400 = vld [vmem:[%s374 + $0xd80] sm:$0xff]
        %v1401 = vld [vmem:[%s374 + $0xd88] sm:$0xff]
        %v1402 = vld [vmem:[%s374 + $0xd90] sm:$0xff]
        %v1403 = vld [vmem:[%s374 + $0xd98] sm:$0xff]
        %v1404 = vld [vmem:[%s374 + $0xda0] sm:$0xff]
        %v1405 = vld [vmem:[%s374 + $0xda8] sm:$0xff]
        %v1406 = vld [vmem:[%s374 + $0xdb0] sm:$0xff]
        %v1407 = vld [vmem:[%s374 + $0xdb8] sm:$0xff]
        %v1408 = vld [vmem:[%s374 + $0xdc0] sm:$0xff]
        %v1409 = vld [vmem:[%s374 + $0xdc8] sm:$0xff]
        %v1410 = vld [vmem:[%s374 + $0xdd0] sm:$0xff]
        %v1411 = vld [vmem:[%s374 + $0xdd8] sm:$0xff]
        %v1412 = vld [vmem:[%s374 + $0xde0] sm:$0xff]
        %v1413 = vld [vmem:[%s374 + $0xde8] sm:$0xff]
        %v1414 = vld [vmem:[%s374 + $0xdf0] sm:$0xff]
        %v1415 = vld [vmem:[%s374 + $0xdf8] sm:$0xff]
        %v1416 = vld [vmem:[%s374 + $0xe00] sm:$0xff]
        %v1417 = vld [vmem:[%s374 + $0xe08] sm:$0xff]
        %v1418 = vld [vmem:[%s374 + $0xe10] sm:$0xff]
        %v1419 = vld [vmem:[%s374 + $0xe18] sm:$0xff]
        %v1420 = vld [vmem:[%s374 + $0xe20] sm:$0xff]
        %v1421 = vld [vmem:[%s374 + $0xe28] sm:$0xff]
        %v1422 = vld [vmem:[%s374 + $0xe30] sm:$0xff]
        %v1423 = vld [vmem:[%s374 + $0xe38] sm:$0xff]
        %v1424 = vld [vmem:[%s374 + $0xe40] sm:$0xff]
        %v1425 = vld [vmem:[%s374 + $0xe48] sm:$0xff]
        %v1426 = vld [vmem:[%s374 + $0xe50] sm:$0xff]
        %v1427 = vld [vmem:[%s374 + $0xe58] sm:$0xff]
        %v1428 = vld [vmem:[%s374 + $0xe60] sm:$0xff]
        %v1429 = vld [vmem:[%s374 + $0xe68] sm:$0xff]
        %v1430 = vld [vmem:[%s374 + $0xe70] sm:$0xff]
        %v1431 = vld [vmem:[%s374 + $0xe78] sm:$0xff]
        %v1432 = vld [vmem:[%s374 + $0xe80] sm:$0xff]
        %v1433 = vld [vmem:[%s374 + $0xe88] sm:$0xff]
        %v1434 = vld [vmem:[%s374 + $0xe90] sm:$0xff]
        %v1435 = vld [vmem:[%s374 + $0xe98] sm:$0xff]
        %v1436 = vld [vmem:[%s374 + $0xea0] sm:$0xff]
        %v1437 = vld [vmem:[%s374 + $0xea8] sm:$0xff]
        %v1438 = vld [vmem:[%s374 + $0xeb0] sm:$0xff]
        %v1439 = vld [vmem:[%s374 + $0xeb8] sm:$0xff]
        %v1440 = vld [vmem:[%s374 + $0xec0] sm:$0xff]
        %v1441 = vld [vmem:[%s374 + $0xec8] sm:$0xff]
        %v1442 = vld [vmem:[%s374 + $0xed0] sm:$0xff]
        %v1443 = vld [vmem:[%s374 + $0xed8] sm:$0xff]
        %v1444 = vld [vmem:[%s374 + $0xee0] sm:$0xff]
        %v1445 = vld [vmem:[%s374 + $0xee8] sm:$0xff]
        %v1446 = vld [vmem:[%s374 + $0xef0] sm:$0xff]
        %v1447 = vld [vmem:[%s374 + $0xef8] sm:$0xff]
        %v1448 = vld [vmem:[%s374 + $0xf00] sm:$0xff]
        %v1449 = vld [vmem:[%s374 + $0xf08] sm:$0xff]
        %v1450 = vld [vmem:[%s374 + $0xf10] sm:$0xff]
        %v1451 = vld [vmem:[%s374 + $0xf18] sm:$0xff]
        %v1452 = vld [vmem:[%s374 + $0xf20] sm:$0xff]
        %v1453 = vld [vmem:[%s374 + $0xf28] sm:$0xff]
        %v1454 = vld [vmem:[%s374 + $0xf30] sm:$0xff]
        %v1455 = vld [vmem:[%s374 + $0xf38] sm:$0xff]
        %v1456 = vld [vmem:[%s374 + $0xf40] sm:$0xff]
        %v1457 = vld [vmem:[%s374 + $0xf48] sm:$0xff]
        %v1458 = vld [vmem:[%s374 + $0xf50] sm:$0xff]
        %v1459 = vld [vmem:[%s374 + $0xf58] sm:$0xff]
        %v1460 = vld [vmem:[%s374 + $0xf60] sm:$0xff]
        %v1461 = vld [vmem:[%s374 + $0xf68] sm:$0xff]
        %v1462 = vld [vmem:[%s374 + $0xf70] sm:$0xff]
        %v1463 = vld [vmem:[%s374 + $0xf78] sm:$0xff]
        %v1464 = vld [vmem:[%s374 + $0xf80] sm:$0xff]
        %v1465 = vld [vmem:[%s374 + $0xf88] sm:$0xff]
        %v1466 = vld [vmem:[%s374 + $0xf90] sm:$0xff]
        %v1467 = vld [vmem:[%s374 + $0xf98] sm:$0xff]
        %v1468 = vld [vmem:[%s374 + $0xfa0] sm:$0xff]
        %v1469 = vld [vmem:[%s374 + $0xfa8] sm:$0xff]
        %v1470 = vld [vmem:[%s374 + $0xfb0] sm:$0xff]
        %v1471 = vld [vmem:[%s374 + $0xfb8] sm:$0xff]
        %v1472 = vld [vmem:[%s374 + $0xfc0] sm:$0xff]
        %v1473 = vld [vmem:[%s374 + $0xfc8] sm:$0xff]
        %v1474 = vld [vmem:[%s374 + $0xfd0] sm:$0xff]
        %v1475 = vld [vmem:[%s374 + $0xfd8] sm:$0xff]
        %v1476 = vld [vmem:[%s374 + $0xfe0] sm:$0xff]
        %v1477 = vld [vmem:[%s374 + $0xfe8] sm:$0xff]
        %v1478 = vld [vmem:[%s374 + $0xff0] sm:$0xff]
        %v1479 = vld [vmem:[%s374 + $0xff8] sm:$0xff]
        %v1480 = vmul.f32 %v968, 0.9996
        %v1481 = vmul.f32 %v969, 0.9996
        %v1482 = vmul.f32 %v970, 0.9996
        %v1483 = vmul.f32 %v971, 0.9996
        %v1484 = vmul.f32 %v972, 0.9996
        %v1485 = vmul.f32 %v973, 0.9996
        %v1486 = vmul.f32 %v974, 0.9996
        %v1487 = vmul.f32 %v975, 0.9996
        %v1488 = vmul.f32 %v976, 0.9996
        %v1489 = vmul.f32 %v977, 0.9996
        %v1490 = vmul.f32 %v978, 0.9996
        %v1491 = vmul.f32 %v979, 0.9996
        %v1492 = vmul.f32 %v980, 0.9996
        %v1493 = vmul.f32 %v981, 0.9996
        %v1494 = vmul.f32 %v982, 0.9996
        %v1495 = vmul.f32 %v983, 0.9996
        %v1496 = vmul.f32 %v984, 0.9996
        %v1497 = vmul.f32 %v985, 0.9996
        %v1498 = vmul.f32 %v986, 0.9996
        %v1499 = vmul.f32 %v987, 0.9996
        %v1500 = vmul.f32 %v988, 0.9996
        %v1501 = vmul.f32 %v989, 0.9996
        %v1502 = vmul.f32 %v990, 0.9996
        %v1503 = vmul.f32 %v991, 0.9996
        %v1504 = vmul.f32 %v992, 0.9996
        %v1505 = vmul.f32 %v993, 0.9996
        %v1506 = vmul.f32 %v994, 0.9996
        %v1507 = vmul.f32 %v995, 0.9996
        %v1508 = vmul.f32 %v996, 0.9996
        %v1509 = vmul.f32 %v997, 0.9996
        %v1510 = vmul.f32 %v998, 0.9996
        %v1511 = vmul.f32 %v999, 0.9996
        %v1512 = vmul.f32 %v1000, 0.9996
        %v1513 = vmul.f32 %v1001, 0.9996
        %v1514 = vmul.f32 %v1002, 0.9996
        %v1515 = vmul.f32 %v1003, 0.9996
        %v1516 = vmul.f32 %v1004, 0.9996
        %v1517 = vmul.f32 %v1005, 0.9996
        %v1518 = vmul.f32 %v1006, 0.9996
        %v1519 = vmul.f32 %v1007, 0.9996
        %v1520 = vmul.f32 %v1008, 0.9996
        %v1521 = vmul.f32 %v1009, 0.9996
        %v1522 = vmul.f32 %v1010, 0.9996
        %v1523 = vmul.f32 %v1011, 0.9996
        %v1524 = vmul.f32 %v1012, 0.9996
        %v1525 = vmul.f32 %v1013, 0.9996
        %v1526 = vmul.f32 %v1014, 0.9996
        %v1527 = vmul.f32 %v1015, 0.9996
        %v1528 = vmul.f32 %v1016, 0.9996
        %v1529 = vmul.f32 %v1017, 0.9996
        %v1530 = vmul.f32 %v1018, 0.9996
        %v1531 = vmul.f32 %v1019, 0.9996
        %v1532 = vmul.f32 %v1020, 0.9996
        %v1533 = vmul.f32 %v1021, 0.9996
        %v1534 = vmul.f32 %v1022, 0.9996
        %v1535 = vmul.f32 %v1023, 0.9996
        %v1536 = vmul.f32 %v1024, 0.9996
        %v1537 = vmul.f32 %v1025, 0.9996
        %v1538 = vmul.f32 %v1026, 0.9996
        %v1539 = vmul.f32 %v1027, 0.9996
        %v1540 = vmul.f32 %v1028, 0.9996
        %v1541 = vmul.f32 %v1029, 0.9996
        %v1542 = vmul.f32 %v1030, 0.9996
        %v1543 = vmul.f32 %v1031, 0.9996
        %v1544 = vmul.f32 %v1032, 0.9996
        %v1545 = vmul.f32 %v1033, 0.9996
        %v1546 = vmul.f32 %v1034, 0.9996
        %v1547 = vmul.f32 %v1035, 0.9996
        %v1548 = vmul.f32 %v1036, 0.9996
        %v1549 = vmul.f32 %v1037, 0.9996
        %v1550 = vmul.f32 %v1038, 0.9996
        %v1551 = vmul.f32 %v1039, 0.9996
        %v1552 = vmul.f32 %v1040, 0.9996
        %v1553 = vmul.f32 %v1041, 0.9996
        %v1554 = vmul.f32 %v1042, 0.9996
        %v1555 = vmul.f32 %v1043, 0.9996
        %v1556 = vmul.f32 %v1044, 0.9996
        %v1557 = vmul.f32 %v1045, 0.9996
        %v1558 = vmul.f32 %v1046, 0.9996
        %v1559 = vmul.f32 %v1047, 0.9996
        %v1560 = vmul.f32 %v1048, 0.9996
        %v1561 = vmul.f32 %v1049, 0.9996
        %v1562 = vmul.f32 %v1050, 0.9996
        %v1563 = vmul.f32 %v1051, 0.9996
        %v1564 = vmul.f32 %v1052, 0.9996
        %v1565 = vmul.f32 %v1053, 0.9996
        %v1566 = vmul.f32 %v1054, 0.9996
        %v1567 = vmul.f32 %v1055, 0.9996
        %v1568 = vmul.f32 %v1056, 0.9996
        %v1569 = vmul.f32 %v1057, 0.9996
        %v1570 = vmul.f32 %v1058, 0.9996
        %v1571 = vmul.f32 %v1059, 0.9996
        %v1572 = vmul.f32 %v1060, 0.9996
        %v1573 = vmul.f32 %v1061, 0.9996
        %v1574 = vmul.f32 %v1062, 0.9996
        %v1575 = vmul.f32 %v1063, 0.9996
        %v1576 = vmul.f32 %v1064, 0.9996
        %v1577 = vmul.f32 %v1065, 0.9996
        %v1578 = vmul.f32 %v1066, 0.9996
        %v1579 = vmul.f32 %v1067, 0.9996
        %v1580 = vmul.f32 %v1068, 0.9996
        %v1581 = vmul.f32 %v1069, 0.9996
        %v1582 = vmul.f32 %v1070, 0.9996
        %v1583 = vmul.f32 %v1071, 0.9996
        %v1584 = vmul.f32 %v1072, 0.9996
        %v1585 = vmul.f32 %v1073, 0.9996
        %v1586 = vmul.f32 %v1074, 0.9996
        %v1587 = vmul.f32 %v1075, 0.9996
        %v1588 = vmul.f32 %v1076, 0.9996
        %v1589 = vmul.f32 %v1077, 0.9996
        %v1590 = vmul.f32 %v1078, 0.9996
        %v1591 = vmul.f32 %v1079, 0.9996
        %v1592 = vmul.f32 %v1080, 0.9996
        %v1593 = vmul.f32 %v1081, 0.9996
        %v1594 = vmul.f32 %v1082, 0.9996
        %v1595 = vmul.f32 %v1083, 0.9996
        %v1596 = vmul.f32 %v1084, 0.9996
        %v1597 = vmul.f32 %v1085, 0.9996
        %v1598 = vmul.f32 %v1086, 0.9996
        %v1599 = vmul.f32 %v1087, 0.9996
        %v1600 = vmul.f32 %v1088, 0.9996
        %v1601 = vmul.f32 %v1089, 0.9996
        %v1602 = vmul.f32 %v1090, 0.9996
        %v1603 = vmul.f32 %v1091, 0.9996
        %v1604 = vmul.f32 %v1092, 0.9996
        %v1605 = vmul.f32 %v1093, 0.9996
        %v1606 = vmul.f32 %v1094, 0.9996
        %v1607 = vmul.f32 %v1095, 0.9996
        %v1608 = vmul.f32 %v1096, 0.9996
        %v1609 = vmul.f32 %v1097, 0.9996
        %v1610 = vmul.f32 %v1098, 0.9996
        %v1611 = vmul.f32 %v1099, 0.9996
        %v1612 = vmul.f32 %v1100, 0.9996
        %v1613 = vmul.f32 %v1101, 0.9996
        %v1614 = vmul.f32 %v1102, 0.9996
        %v1615 = vmul.f32 %v1103, 0.9996
        %v1616 = vmul.f32 %v1104, 0.9996
        %v1617 = vmul.f32 %v1105, 0.9996
        %v1618 = vmul.f32 %v1106, 0.9996
        %v1619 = vmul.f32 %v1107, 0.9996
        %v1620 = vmul.f32 %v1108, 0.9996
        %v1621 = vmul.f32 %v1109, 0.9996
        %v1622 = vmul.f32 %v1110, 0.9996
        %v1623 = vmul.f32 %v1111, 0.9996
        %v1624 = vmul.f32 %v1112, 0.9996
        %v1625 = vmul.f32 %v1113, 0.9996
        %v1626 = vmul.f32 %v1114, 0.9996
        %v1627 = vmul.f32 %v1115, 0.9996
        %v1628 = vmul.f32 %v1116, 0.9996
        %v1629 = vmul.f32 %v1117, 0.9996
        %v1630 = vmul.f32 %v1118, 0.9996
        %v1631 = vmul.f32 %v1119, 0.9996
        %v1632 = vmul.f32 %v1120, 0.9996
        %v1633 = vmul.f32 %v1121, 0.9996
        %v1634 = vmul.f32 %v1122, 0.9996
        %v1635 = vmul.f32 %v1123, 0.9996
        %v1636 = vmul.f32 %v1124, 0.9996
        %v1637 = vmul.f32 %v1125, 0.9996
        %v1638 = vmul.f32 %v1126, 0.9996
        %v1639 = vmul.f32 %v1127, 0.9996
        %v1640 = vmul.f32 %v1128, 0.9996
        %v1641 = vmul.f32 %v1129, 0.9996
        %v1642 = vmul.f32 %v1130, 0.9996
        %v1643 = vmul.f32 %v1131, 0.9996
        %v1644 = vmul.f32 %v1132, 0.9996
        %v1645 = vmul.f32 %v1133, 0.9996
        %v1646 = vmul.f32 %v1134, 0.9996
        %v1647 = vmul.f32 %v1135, 0.9996
        %v1648 = vmul.f32 %v1136, 0.9996
        %v1649 = vmul.f32 %v1137, 0.9996
        %v1650 = vmul.f32 %v1138, 0.9996
        %v1651 = vmul.f32 %v1139, 0.9996
        %v1652 = vmul.f32 %v1140, 0.9996
        %v1653 = vmul.f32 %v1141, 0.9996
        %v1654 = vmul.f32 %v1142, 0.9996
        %v1655 = vmul.f32 %v1143, 0.9996
        %v1656 = vmul.f32 %v1144, 0.9996
        %v1657 = vmul.f32 %v1145, 0.9996
        %v1658 = vmul.f32 %v1146, 0.9996
        %v1659 = vmul.f32 %v1147, 0.9996
        %v1660 = vmul.f32 %v1148, 0.9996
        %v1661 = vmul.f32 %v1149, 0.9996
        %v1662 = vmul.f32 %v1150, 0.9996
        %v1663 = vmul.f32 %v1151, 0.9996
        %v1664 = vmul.f32 %v1152, 0.9996
        %v1665 = vmul.f32 %v1153, 0.9996
        %v1666 = vmul.f32 %v1154, 0.9996
        %v1667 = vmul.f32 %v1155, 0.9996
        %v1668 = vmul.f32 %v1156, 0.9996
        %v1669 = vmul.f32 %v1157, 0.9996
        %v1670 = vmul.f32 %v1158, 0.9996
        %v1671 = vmul.f32 %v1159, 0.9996
        %v1672 = vmul.f32 %v1160, 0.9996
        %v1673 = vmul.f32 %v1161, 0.9996
        %v1674 = vmul.f32 %v1162, 0.9996
        %v1675 = vmul.f32 %v1163, 0.9996
        %v1676 = vmul.f32 %v1164, 0.9996
        %v1677 = vmul.f32 %v1165, 0.9996
        %v1678 = vmul.f32 %v1166, 0.9996
        %v1679 = vmul.f32 %v1167, 0.9996
        %v1680 = vmul.f32 %v1168, 0.9996
        %v1681 = vmul.f32 %v1169, 0.9996
        %v1682 = vmul.f32 %v1170, 0.9996
        %v1683 = vmul.f32 %v1171, 0.9996
        %v1684 = vmul.f32 %v1172, 0.9996
        %v1685 = vmul.f32 %v1173, 0.9996
        %v1686 = vmul.f32 %v1174, 0.9996
        %v1687 = vmul.f32 %v1175, 0.9996
        %v1688 = vmul.f32 %v1176, 0.9996
        %v1689 = vmul.f32 %v1177, 0.9996
        %v1690 = vmul.f32 %v1178, 0.9996
        %v1691 = vmul.f32 %v1179, 0.9996
        %v1692 = vmul.f32 %v1180, 0.9996
        %v1693 = vmul.f32 %v1181, 0.9996
        %v1694 = vmul.f32 %v1182, 0.9996
        %v1695 = vmul.f32 %v1183, 0.9996
        %v1696 = vmul.f32 %v1184, 0.9996
        %v1697 = vmul.f32 %v1185, 0.9996
        %v1698 = vmul.f32 %v1186, 0.9996
        %v1699 = vmul.f32 %v1187, 0.9996
        %v1700 = vmul.f32 %v1188, 0.9996
        %v1701 = vmul.f32 %v1189, 0.9996
        %v1702 = vmul.f32 %v1190, 0.9996
        %v1703 = vmul.f32 %v1191, 0.9996
        %v1704 = vmul.f32 %v1192, 0.9996
        %v1705 = vmul.f32 %v1193, 0.9996
        %v1706 = vmul.f32 %v1194, 0.9996
        %v1707 = vmul.f32 %v1195, 0.9996
        %v1708 = vmul.f32 %v1196, 0.9996
        %v1709 = vmul.f32 %v1197, 0.9996
        %v1710 = vmul.f32 %v1198, 0.9996
        %v1711 = vmul.f32 %v1199, 0.9996
        %v1712 = vmul.f32 %v1200, 0.9996
        %v1713 = vmul.f32 %v1201, 0.9996
        %v1714 = vmul.f32 %v1202, 0.9996
        %v1715 = vmul.f32 %v1203, 0.9996
        %v1716 = vmul.f32 %v1204, 0.9996
        %v1717 = vmul.f32 %v1205, 0.9996
        %v1718 = vmul.f32 %v1206, 0.9996
        %v1719 = vmul.f32 %v1207, 0.9996
        %v1720 = vmul.f32 %v1208, 0.9996
        %v1721 = vmul.f32 %v1209, 0.9996
        %v1722 = vmul.f32 %v1210, 0.9996
        %v1723 = vmul.f32 %v1211, 0.9996
        %v1724 = vmul.f32 %v1212, 0.9996
        %v1725 = vmul.f32 %v1213, 0.9996
        %v1726 = vmul.f32 %v1214, 0.9996
        %v1727 = vmul.f32 %v1215, 0.9996
        %v1728 = vmul.f32 %v1216, 0.9996
        %v1729 = vmul.f32 %v1217, 0.9996
        %v1730 = vmul.f32 %v1218, 0.9996
        %v1731 = vmul.f32 %v1219, 0.9996
        %v1732 = vmul.f32 %v1220, 0.9996
        %v1733 = vmul.f32 %v1221, 0.9996
        %v1734 = vmul.f32 %v1222, 0.9996
        %v1735 = vmul.f32 %v1223, 0.9996
        %v1736 = vmul.f32 %v1224, 0.9996
        %v1737 = vmul.f32 %v1225, 0.9996
        %v1738 = vmul.f32 %v1226, 0.9996
        %v1739 = vmul.f32 %v1227, 0.9996
        %v1740 = vmul.f32 %v1228, 0.9996
        %v1741 = vmul.f32 %v1229, 0.9996
        %v1742 = vmul.f32 %v1230, 0.9996
        %v1743 = vmul.f32 %v1231, 0.9996
        %v1744 = vmul.f32 %v1232, 0.9996
        %v1745 = vmul.f32 %v1233, 0.9996
        %v1746 = vmul.f32 %v1234, 0.9996
        %v1747 = vmul.f32 %v1235, 0.9996
        %v1748 = vmul.f32 %v1236, 0.9996
        %v1749 = vmul.f32 %v1237, 0.9996
        %v1750 = vmul.f32 %v1238, 0.9996
        %v1751 = vmul.f32 %v1239, 0.9996
        %v1752 = vmul.f32 %v1240, 0.9996
        %v1753 = vmul.f32 %v1241, 0.9996
        %v1754 = vmul.f32 %v1242, 0.9996
        %v1755 = vmul.f32 %v1243, 0.9996
        %v1756 = vmul.f32 %v1244, 0.9996
        %v1757 = vmul.f32 %v1245, 0.9996
        %v1758 = vmul.f32 %v1246, 0.9996
        %v1759 = vmul.f32 %v1247, 0.9996
        %v1760 = vmul.f32 %v1248, 0.9996
        %v1761 = vmul.f32 %v1249, 0.9996
        %v1762 = vmul.f32 %v1250, 0.9996
        %v1763 = vmul.f32 %v1251, 0.9996
        %v1764 = vmul.f32 %v1252, 0.9996
        %v1765 = vmul.f32 %v1253, 0.9996
        %v1766 = vmul.f32 %v1254, 0.9996
        %v1767 = vmul.f32 %v1255, 0.9996
        %v1768 = vmul.f32 %v1256, 0.9996
        %v1769 = vmul.f32 %v1257, 0.9996
        %v1770 = vmul.f32 %v1258, 0.9996
        %v1771 = vmul.f32 %v1259, 0.9996
        %v1772 = vmul.f32 %v1260, 0.9996
        %v1773 = vmul.f32 %v1261, 0.9996
        %v1774 = vmul.f32 %v1262, 0.9996
        %v1775 = vmul.f32 %v1263, 0.9996
        %v1776 = vmul.f32 %v1264, 0.9996
        %v1777 = vmul.f32 %v1265, 0.9996
        %v1778 = vmul.f32 %v1266, 0.9996
        %v1779 = vmul.f32 %v1267, 0.9996
        %v1780 = vmul.f32 %v1268, 0.9996
        %v1781 = vmul.f32 %v1269, 0.9996
        %v1782 = vmul.f32 %v1270, 0.9996
        %v1783 = vmul.f32 %v1271, 0.9996
        %v1784 = vmul.f32 %v1272, 0.9996
        %v1785 = vmul.f32 %v1273, 0.9996
        %v1786 = vmul.f32 %v1274, 0.9996
        %v1787 = vmul.f32 %v1275, 0.9996
        %v1788 = vmul.f32 %v1276, 0.9996
        %v1789 = vmul.f32 %v1277, 0.9996
        %v1790 = vmul.f32 %v1278, 0.9996
        %v1791 = vmul.f32 %v1279, 0.9996
        %v1792 = vmul.f32 %v1280, 0.9996
        %v1793 = vmul.f32 %v1281, 0.9996
        %v1794 = vmul.f32 %v1282, 0.9996
        %v1795 = vmul.f32 %v1283, 0.9996
        %v1796 = vmul.f32 %v1284, 0.9996
        %v1797 = vmul.f32 %v1285, 0.9996
        %v1798 = vmul.f32 %v1286, 0.9996
        %v1799 = vmul.f32 %v1287, 0.9996
        %v1800 = vmul.f32 %v1288, 0.9996
        %v1801 = vmul.f32 %v1289, 0.9996
        %v1802 = vmul.f32 %v1290, 0.9996
        %v1803 = vmul.f32 %v1291, 0.9996
        %v1804 = vmul.f32 %v1292, 0.9996
        %v1805 = vmul.f32 %v1293, 0.9996
        %v1806 = vmul.f32 %v1294, 0.9996
        %v1807 = vmul.f32 %v1295, 0.9996
        %v1808 = vmul.f32 %v1296, 0.9996
        %v1809 = vmul.f32 %v1297, 0.9996
        %v1810 = vmul.f32 %v1298, 0.9996
        %v1811 = vmul.f32 %v1299, 0.9996
        %v1812 = vmul.f32 %v1300, 0.9996
        %v1813 = vmul.f32 %v1301, 0.9996
        %v1814 = vmul.f32 %v1302, 0.9996
        %v1815 = vmul.f32 %v1303, 0.9996
        %v1816 = vmul.f32 %v1304, 0.9996
        %v1817 = vmul.f32 %v1305, 0.9996
        %v1818 = vmul.f32 %v1306, 0.9996
        %v1819 = vmul.f32 %v1307, 0.9996
        %v1820 = vmul.f32 %v1308, 0.9996
        %v1821 = vmul.f32 %v1309, 0.9996
        %v1822 = vmul.f32 %v1310, 0.9996
        %v1823 = vmul.f32 %v1311, 0.9996
        %v1824 = vmul.f32 %v1312, 0.9996
        %v1825 = vmul.f32 %v1313, 0.9996
        %v1826 = vmul.f32 %v1314, 0.9996
        %v1827 = vmul.f32 %v1315, 0.9996
        %v1828 = vmul.f32 %v1316, 0.9996
        %v1829 = vmul.f32 %v1317, 0.9996
        %v1830 = vmul.f32 %v1318, 0.9996
        %v1831 = vmul.f32 %v1319, 0.9996
        %v1832 = vmul.f32 %v1320, 0.9996
        %v1833 = vmul.f32 %v1321, 0.9996
        %v1834 = vmul.f32 %v1322, 0.9996
        %v1835 = vmul.f32 %v1323, 0.9996
        %v1836 = vmul.f32 %v1324, 0.9996
        %v1837 = vmul.f32 %v1325, 0.9996
        %v1838 = vmul.f32 %v1326, 0.9996
        %v1839 = vmul.f32 %v1327, 0.9996
        %v1840 = vmul.f32 %v1328, 0.9996
        %v1841 = vmul.f32 %v1329, 0.9996
        %v1842 = vmul.f32 %v1330, 0.9996
        %v1843 = vmul.f32 %v1331, 0.9996
        %v1844 = vmul.f32 %v1332, 0.9996
        %v1845 = vmul.f32 %v1333, 0.9996
        %v1846 = vmul.f32 %v1334, 0.9996
        %v1847 = vmul.f32 %v1335, 0.9996
        %v1848 = vmul.f32 %v1336, 0.9996
        %v1849 = vmul.f32 %v1337, 0.9996
        %v1850 = vmul.f32 %v1338, 0.9996
        %v1851 = vmul.f32 %v1339, 0.9996
        %v1852 = vmul.f32 %v1340, 0.9996
        %v1853 = vmul.f32 %v1341, 0.9996
        %v1854 = vmul.f32 %v1342, 0.9996
        %v1855 = vmul.f32 %v1343, 0.9996
        %v1856 = vmul.f32 %v1344, 0.9996
        %v1857 = vmul.f32 %v1345, 0.9996
        %v1858 = vmul.f32 %v1346, 0.9996
        %v1859 = vmul.f32 %v1347, 0.9996
        %v1860 = vmul.f32 %v1348, 0.9996
        %v1861 = vmul.f32 %v1349, 0.9996
        %v1862 = vmul.f32 %v1350, 0.9996
        %v1863 = vmul.f32 %v1351, 0.9996
        %v1864 = vmul.f32 %v1352, 0.9996
        %v1865 = vmul.f32 %v1353, 0.9996
        %v1866 = vmul.f32 %v1354, 0.9996
        %v1867 = vmul.f32 %v1355, 0.9996
        %v1868 = vmul.f32 %v1356, 0.9996
        %v1869 = vmul.f32 %v1357, 0.9996
        %v1870 = vmul.f32 %v1358, 0.9996
        %v1871 = vmul.f32 %v1359, 0.9996
        %v1872 = vmul.f32 %v1360, 0.9996
        %v1873 = vmul.f32 %v1361, 0.9996
        %v1874 = vmul.f32 %v1362, 0.9996
        %v1875 = vmul.f32 %v1363, 0.9996
        %v1876 = vmul.f32 %v1364, 0.9996
        %v1877 = vmul.f32 %v1365, 0.9996
        %v1878 = vmul.f32 %v1366, 0.9996
        %v1879 = vmul.f32 %v1367, 0.9996
        %v1880 = vmul.f32 %v1368, 0.9996
        %v1881 = vmul.f32 %v1369, 0.9996
        %v1882 = vmul.f32 %v1370, 0.9996
        %v1883 = vmul.f32 %v1371, 0.9996
        %v1884 = vmul.f32 %v1372, 0.9996
        %v1885 = vmul.f32 %v1373, 0.9996
        %v1886 = vmul.f32 %v1374, 0.9996
        %v1887 = vmul.f32 %v1375, 0.9996
        %v1888 = vmul.f32 %v1376, 0.9996
        %v1889 = vmul.f32 %v1377, 0.9996
        %v1890 = vmul.f32 %v1378, 0.9996
        %v1891 = vmul.f32 %v1379, 0.9996
        %v1892 = vmul.f32 %v1380, 0.9996
        %v1893 = vmul.f32 %v1381, 0.9996
        %v1894 = vmul.f32 %v1382, 0.9996
        %v1895 = vmul.f32 %v1383, 0.9996
        %v1896 = vmul.f32 %v1384, 0.9996
        %v1897 = vmul.f32 %v1385, 0.9996
        %v1898 = vmul.f32 %v1386, 0.9996
        %v1899 = vmul.f32 %v1387, 0.9996
        %v1900 = vmul.f32 %v1388, 0.9996
        %v1901 = vmul.f32 %v1389, 0.9996
        %v1902 = vmul.f32 %v1390, 0.9996
        %v1903 = vmul.f32 %v1391, 0.9996
        %v1904 = vmul.f32 %v1392, 0.9996
        %v1905 = vmul.f32 %v1393, 0.9996
        %v1906 = vmul.f32 %v1394, 0.9996
        %v1907 = vmul.f32 %v1395, 0.9996
        %v1908 = vmul.f32 %v1396, 0.9996
        %v1909 = vmul.f32 %v1397, 0.9996
        %v1910 = vmul.f32 %v1398, 0.9996
        %v1911 = vmul.f32 %v1399, 0.9996
        %v1912 = vmul.f32 %v1400, 0.9996
        %v1913 = vmul.f32 %v1401, 0.9996
        %v1914 = vmul.f32 %v1402, 0.9996
        %v1915 = vmul.f32 %v1403, 0.9996
        %v1916 = vmul.f32 %v1404, 0.9996
        %v1917 = vmul.f32 %v1405, 0.9996
        %v1918 = vmul.f32 %v1406, 0.9996
        %v1919 = vmul.f32 %v1407, 0.9996
        %v1920 = vmul.f32 %v1408, 0.9996
        %v1921 = vmul.f32 %v1409, 0.9996
        %v1922 = vmul.f32 %v1410, 0.9996
        %v1923 = vmul.f32 %v1411, 0.9996
        %v1924 = vmul.f32 %v1412, 0.9996
        %v1925 = vmul.f32 %v1413, 0.9996
        %v1926 = vmul.f32 %v1414, 0.9996
        %v1927 = vmul.f32 %v1415, 0.9996
        %v1928 = vmul.f32 %v1416, 0.9996
        %v1929 = vmul.f32 %v1417, 0.9996
        %v1930 = vmul.f32 %v1418, 0.9996
        %v1931 = vmul.f32 %v1419, 0.9996
        %v1932 = vmul.f32 %v1420, 0.9996
        %v1933 = vmul.f32 %v1421, 0.9996
        %v1934 = vmul.f32 %v1422, 0.9996
        %v1935 = vmul.f32 %v1423, 0.9996
        %v1936 = vmul.f32 %v1424, 0.9996
        %v1937 = vmul.f32 %v1425, 0.9996
        %v1938 = vmul.f32 %v1426, 0.9996
        %v1939 = vmul.f32 %v1427, 0.9996
        %v1940 = vmul.f32 %v1428, 0.9996
        %v1941 = vmul.f32 %v1429, 0.9996
        %v1942 = vmul.f32 %v1430, 0.9996
        %v1943 = vmul.f32 %v1431, 0.9996
        %v1944 = vmul.f32 %v1432, 0.9996
        %v1945 = vmul.f32 %v1433, 0.9996
        %v1946 = vmul.f32 %v1434, 0.9996
        %v1947 = vmul.f32 %v1435, 0.9996
        %v1948 = vmul.f32 %v1436, 0.9996
        %v1949 = vmul.f32 %v1437, 0.9996
        %v1950 = vmul.f32 %v1438, 0.9996
        %v1951 = vmul.f32 %v1439, 0.9996
        %v1952 = vmul.f32 %v1440, 0.9996
        %v1953 = vmul.f32 %v1441, 0.9996
        %v1954 = vmul.f32 %v1442, 0.9996
        %v1955 = vmul.f32 %v1443, 0.9996
        %v1956 = vmul.f32 %v1444, 0.9996
        %v1957 = vmul.f32 %v1445, 0.9996
        %v1958 = vmul.f32 %v1446, 0.9996
        %v1959 = vmul.f32 %v1447, 0.9996
        %v1960 = vmul.f32 %v1448, 0.9996
        %v1961 = vmul.f32 %v1449, 0.9996
        %v1962 = vmul.f32 %v1450, 0.9996
        %v1963 = vmul.f32 %v1451, 0.9996
        %v1964 = vmul.f32 %v1452, 0.9996
        %v1965 = vmul.f32 %v1453, 0.9996
        %v1966 = vmul.f32 %v1454, 0.9996
        %v1967 = vmul.f32 %v1455, 0.9996
        %v1968 = vmul.f32 %v1456, 0.9996
        %v1969 = vmul.f32 %v1457, 0.9996
        %v1970 = vmul.f32 %v1458, 0.9996
        %v1971 = vmul.f32 %v1459, 0.9996
        %v1972 = vmul.f32 %v1460, 0.9996
        %v1973 = vmul.f32 %v1461, 0.9996
        %v1974 = vmul.f32 %v1462, 0.9996
        %v1975 = vmul.f32 %v1463, 0.9996
        %v1976 = vmul.f32 %v1464, 0.9996
        %v1977 = vmul.f32 %v1465, 0.9996
        %v1978 = vmul.f32 %v1466, 0.9996
        %v1979 = vmul.f32 %v1467, 0.9996
        %v1980 = vmul.f32 %v1468, 0.9996
        %v1981 = vmul.f32 %v1469, 0.9996
        %v1982 = vmul.f32 %v1470, 0.9996
        %v1983 = vmul.f32 %v1471, 0.9996
        %v1984 = vmul.f32 %v1472, 0.9996
        %v1985 = vmul.f32 %v1473, 0.9996
        %v1986 = vmul.f32 %v1474, 0.9996
        %v1987 = vmul.f32 %v1475, 0.9996
        %v1988 = vmul.f32 %v1476, 0.9996
        %v1989 = vmul.f32 %v1477, 0.9996
        %v1990 = vmul.f32 %v1478, 0.9996
        %v1991 = vmul.f32 %v1479, 0.9996
        %v1992 = vmul.f32 %v456, 0.0004
        %v1993 = vmul.f32 %v457, 0.0004
        %v1994 = vmul.f32 %v458, 0.0004
        %v1995 = vmul.f32 %v459, 0.0004
        %v1996 = vmul.f32 %v460, 0.0004
        %v1997 = vmul.f32 %v461, 0.0004
        %v1998 = vmul.f32 %v462, 0.0004
        %v1999 = vmul.f32 %v463, 0.0004
        %v2000 = vmul.f32 %v464, 0.0004
        %v2001 = vmul.f32 %v465, 0.0004
        %v2002 = vmul.f32 %v466, 0.0004
        %v2003 = vmul.f32 %v467, 0.0004
        %v2004 = vmul.f32 %v468, 0.0004
        %v2005 = vmul.f32 %v469, 0.0004
        %v2006 = vmul.f32 %v470, 0.0004
        %v2007 = vmul.f32 %v471, 0.0004
        %v2008 = vmul.f32 %v472, 0.0004
        %v2009 = vmul.f32 %v473, 0.0004
        %v2010 = vmul.f32 %v474, 0.0004
        %v2011 = vmul.f32 %v475, 0.0004
        %v2012 = vmul.f32 %v476, 0.0004
        %v2013 = vmul.f32 %v477, 0.0004
        %v2014 = vmul.f32 %v478, 0.0004
        %v2015 = vmul.f32 %v479, 0.0004
        %v2016 = vmul.f32 %v480, 0.0004
        %v2017 = vmul.f32 %v481, 0.0004
        %v2018 = vmul.f32 %v482, 0.0004
        %v2019 = vmul.f32 %v483, 0.0004
        %v2020 = vmul.f32 %v484, 0.0004
        %v2021 = vmul.f32 %v485, 0.0004
        %v2022 = vmul.f32 %v486, 0.0004
        %v2023 = vmul.f32 %v487, 0.0004
        %v2024 = vmul.f32 %v488, 0.0004
        %v2025 = vmul.f32 %v489, 0.0004
        %v2026 = vmul.f32 %v490, 0.0004
        %v2027 = vmul.f32 %v491, 0.0004
        %v2028 = vmul.f32 %v492, 0.0004
        %v2029 = vmul.f32 %v493, 0.0004
        %v2030 = vmul.f32 %v494, 0.0004
        %v2031 = vmul.f32 %v495, 0.0004
        %v2032 = vmul.f32 %v496, 0.0004
        %v2033 = vmul.f32 %v497, 0.0004
        %v2034 = vmul.f32 %v498, 0.0004
        %v2035 = vmul.f32 %v499, 0.0004
        %v2036 = vmul.f32 %v500, 0.0004
        %v2037 = vmul.f32 %v501, 0.0004
        %v2038 = vmul.f32 %v502, 0.0004
        %v2039 = vmul.f32 %v503, 0.0004
        %v2040 = vmul.f32 %v504, 0.0004
        %v2041 = vmul.f32 %v505, 0.0004
        %v2042 = vmul.f32 %v506, 0.0004
        %v2043 = vmul.f32 %v507, 0.0004
        %v2044 = vmul.f32 %v508, 0.0004
        %v2045 = vmul.f32 %v509, 0.0004
        %v2046 = vmul.f32 %v510, 0.0004
        %v2047 = vmul.f32 %v511, 0.0004
        %v2048 = vmul.f32 %v512, 0.0004
        %v2049 = vmul.f32 %v513, 0.0004
        %v2050 = vmul.f32 %v514, 0.0004
        %v2051 = vmul.f32 %v515, 0.0004
        %v2052 = vmul.f32 %v516, 0.0004
        %v2053 = vmul.f32 %v517, 0.0004
        %v2054 = vmul.f32 %v518, 0.0004
        %v2055 = vmul.f32 %v519, 0.0004
        %v2056 = vmul.f32 %v520, 0.0004
        %v2057 = vmul.f32 %v521, 0.0004
        %v2058 = vmul.f32 %v522, 0.0004
        %v2059 = vmul.f32 %v523, 0.0004
        %v2060 = vmul.f32 %v524, 0.0004
        %v2061 = vmul.f32 %v525, 0.0004
        %v2062 = vmul.f32 %v526, 0.0004
        %v2063 = vmul.f32 %v527, 0.0004
        %v2064 = vmul.f32 %v528, 0.0004
        %v2065 = vmul.f32 %v529, 0.0004
        %v2066 = vmul.f32 %v530, 0.0004
        %v2067 = vmul.f32 %v531, 0.0004
        %v2068 = vmul.f32 %v532, 0.0004
        %v2069 = vmul.f32 %v533, 0.0004
        %v2070 = vmul.f32 %v534, 0.0004
        %v2071 = vmul.f32 %v535, 0.0004
        %v2072 = vmul.f32 %v536, 0.0004
        %v2073 = vmul.f32 %v537, 0.0004
        %v2074 = vmul.f32 %v538, 0.0004
        %v2075 = vmul.f32 %v539, 0.0004
        %v2076 = vmul.f32 %v540, 0.0004
        %v2077 = vmul.f32 %v541, 0.0004
        %v2078 = vmul.f32 %v542, 0.0004
        %v2079 = vmul.f32 %v543, 0.0004
        %v2080 = vmul.f32 %v544, 0.0004
        %v2081 = vmul.f32 %v545, 0.0004
        %v2082 = vmul.f32 %v546, 0.0004
        %v2083 = vmul.f32 %v547, 0.0004
        %v2084 = vmul.f32 %v548, 0.0004
        %v2085 = vmul.f32 %v549, 0.0004
        %v2086 = vmul.f32 %v550, 0.0004
        %v2087 = vmul.f32 %v551, 0.0004
        %v2088 = vmul.f32 %v552, 0.0004
        %v2089 = vmul.f32 %v553, 0.0004
        %v2090 = vmul.f32 %v554, 0.0004
        %v2091 = vmul.f32 %v555, 0.0004
        %v2092 = vmul.f32 %v556, 0.0004
        %v2093 = vmul.f32 %v557, 0.0004
        %v2094 = vmul.f32 %v558, 0.0004
        %v2095 = vmul.f32 %v559, 0.0004
        %v2096 = vmul.f32 %v560, 0.0004
        %v2097 = vmul.f32 %v561, 0.0004
        %v2098 = vmul.f32 %v562, 0.0004
        %v2099 = vmul.f32 %v563, 0.0004
        %v2100 = vmul.f32 %v564, 0.0004
        %v2101 = vmul.f32 %v565, 0.0004
        %v2102 = vmul.f32 %v566, 0.0004
        %v2103 = vmul.f32 %v567, 0.0004
        %v2104 = vmul.f32 %v568, 0.0004
        %v2105 = vmul.f32 %v569, 0.0004
        %v2106 = vmul.f32 %v570, 0.0004
        %v2107 = vmul.f32 %v571, 0.0004
        %v2108 = vmul.f32 %v572, 0.0004
        %v2109 = vmul.f32 %v573, 0.0004
        %v2110 = vmul.f32 %v574, 0.0004
        %v2111 = vmul.f32 %v575, 0.0004
        %v2112 = vmul.f32 %v576, 0.0004
        %v2113 = vmul.f32 %v577, 0.0004
        %v2114 = vmul.f32 %v578, 0.0004
        %v2115 = vmul.f32 %v579, 0.0004
        %v2116 = vmul.f32 %v580, 0.0004
        %v2117 = vmul.f32 %v581, 0.0004
        %v2118 = vmul.f32 %v582, 0.0004
        %v2119 = vmul.f32 %v583, 0.0004
        %v2120 = vmul.f32 %v584, 0.0004
        %v2121 = vmul.f32 %v585, 0.0004
        %v2122 = vmul.f32 %v586, 0.0004
        %v2123 = vmul.f32 %v587, 0.0004
        %v2124 = vmul.f32 %v588, 0.0004
        %v2125 = vmul.f32 %v589, 0.0004
        %v2126 = vmul.f32 %v590, 0.0004
        %v2127 = vmul.f32 %v591, 0.0004
        %v2128 = vmul.f32 %v592, 0.0004
        %v2129 = vmul.f32 %v593, 0.0004
        %v2130 = vmul.f32 %v594, 0.0004
        %v2131 = vmul.f32 %v595, 0.0004
        %v2132 = vmul.f32 %v596, 0.0004
        %v2133 = vmul.f32 %v597, 0.0004
        %v2134 = vmul.f32 %v598, 0.0004
        %v2135 = vmul.f32 %v599, 0.0004
        %v2136 = vmul.f32 %v600, 0.0004
        %v2137 = vmul.f32 %v601, 0.0004
        %v2138 = vmul.f32 %v602, 0.0004
        %v2139 = vmul.f32 %v603, 0.0004
        %v2140 = vmul.f32 %v604, 0.0004
        %v2141 = vmul.f32 %v605, 0.0004
        %v2142 = vmul.f32 %v606, 0.0004
        %v2143 = vmul.f32 %v607, 0.0004
        %v2144 = vmul.f32 %v608, 0.0004
        %v2145 = vmul.f32 %v609, 0.0004
        %v2146 = vmul.f32 %v610, 0.0004
        %v2147 = vmul.f32 %v611, 0.0004
        %v2148 = vmul.f32 %v612, 0.0004
        %v2149 = vmul.f32 %v613, 0.0004
        %v2150 = vmul.f32 %v614, 0.0004
        %v2151 = vmul.f32 %v615, 0.0004
        %v2152 = vmul.f32 %v616, 0.0004
        %v2153 = vmul.f32 %v617, 0.0004
        %v2154 = vmul.f32 %v618, 0.0004
        %v2155 = vmul.f32 %v619, 0.0004
        %v2156 = vmul.f32 %v620, 0.0004
        %v2157 = vmul.f32 %v621, 0.0004
        %v2158 = vmul.f32 %v622, 0.0004
        %v2159 = vmul.f32 %v623, 0.0004
        %v2160 = vmul.f32 %v624, 0.0004
        %v2161 = vmul.f32 %v625, 0.0004
        %v2162 = vmul.f32 %v626, 0.0004
        %v2163 = vmul.f32 %v627, 0.0004
        %v2164 = vmul.f32 %v628, 0.0004
        %v2165 = vmul.f32 %v629, 0.0004
        %v2166 = vmul.f32 %v630, 0.0004
        %v2167 = vmul.f32 %v631, 0.0004
        %v2168 = vmul.f32 %v632, 0.0004
        %v2169 = vmul.f32 %v633, 0.0004
        %v2170 = vmul.f32 %v634, 0.0004
        %v2171 = vmul.f32 %v635, 0.0004
        %v2172 = vmul.f32 %v636, 0.0004
        %v2173 = vmul.f32 %v637, 0.0004
        %v2174 = vmul.f32 %v638, 0.0004
        %v2175 = vmul.f32 %v639, 0.0004
        %v2176 = vmul.f32 %v640, 0.0004
        %v2177 = vmul.f32 %v641, 0.0004
        %v2178 = vmul.f32 %v642, 0.0004
        %v2179 = vmul.f32 %v643, 0.0004
        %v2180 = vmul.f32 %v644, 0.0004
        %v2181 = vmul.f32 %v645, 0.0004
        %v2182 = vmul.f32 %v646, 0.0004
        %v2183 = vmul.f32 %v647, 0.0004
        %v2184 = vmul.f32 %v648, 0.0004
        %v2185 = vmul.f32 %v649, 0.0004
        %v2186 = vmul.f32 %v650, 0.0004
        %v2187 = vmul.f32 %v651, 0.0004
        %v2188 = vmul.f32 %v652, 0.0004
        %v2189 = vmul.f32 %v653, 0.0004
        %v2190 = vmul.f32 %v654, 0.0004
        %v2191 = vmul.f32 %v655, 0.0004
        %v2192 = vmul.f32 %v656, 0.0004
        %v2193 = vmul.f32 %v657, 0.0004
        %v2194 = vmul.f32 %v658, 0.0004
        %v2195 = vmul.f32 %v659, 0.0004
        %v2196 = vmul.f32 %v660, 0.0004
        %v2197 = vmul.f32 %v661, 0.0004
        %v2198 = vmul.f32 %v662, 0.0004
        %v2199 = vmul.f32 %v663, 0.0004
        %v2200 = vmul.f32 %v664, 0.0004
        %v2201 = vmul.f32 %v665, 0.0004
        %v2202 = vmul.f32 %v666, 0.0004
        %v2203 = vmul.f32 %v667, 0.0004
        %v2204 = vmul.f32 %v668, 0.0004
        %v2205 = vmul.f32 %v669, 0.0004
        %v2206 = vmul.f32 %v670, 0.0004
        %v2207 = vmul.f32 %v671, 0.0004
        %v2208 = vmul.f32 %v672, 0.0004
        %v2209 = vmul.f32 %v673, 0.0004
        %v2210 = vmul.f32 %v674, 0.0004
        %v2211 = vmul.f32 %v675, 0.0004
        %v2212 = vmul.f32 %v676, 0.0004
        %v2213 = vmul.f32 %v677, 0.0004
        %v2214 = vmul.f32 %v678, 0.0004
        %v2215 = vmul.f32 %v679, 0.0004
        %v2216 = vmul.f32 %v680, 0.0004
        %v2217 = vmul.f32 %v681, 0.0004
        %v2218 = vmul.f32 %v682, 0.0004
        %v2219 = vmul.f32 %v683, 0.0004
        %v2220 = vmul.f32 %v684, 0.0004
        %v2221 = vmul.f32 %v685, 0.0004
        %v2222 = vmul.f32 %v686, 0.0004
        %v2223 = vmul.f32 %v687, 0.0004
        %v2224 = vmul.f32 %v688, 0.0004
        %v2225 = vmul.f32 %v689, 0.0004
        %v2226 = vmul.f32 %v690, 0.0004
        %v2227 = vmul.f32 %v691, 0.0004
        %v2228 = vmul.f32 %v692, 0.0004
        %v2229 = vmul.f32 %v693, 0.0004
        %v2230 = vmul.f32 %v694, 0.0004
        %v2231 = vmul.f32 %v695, 0.0004
        %v2232 = vmul.f32 %v696, 0.0004
        %v2233 = vmul.f32 %v697, 0.0004
        %v2234 = vmul.f32 %v698, 0.0004
        %v2235 = vmul.f32 %v699, 0.0004
        %v2236 = vmul.f32 %v700, 0.0004
        %v2237 = vmul.f32 %v701, 0.0004
        %v2238 = vmul.f32 %v702, 0.0004
        %v2239 = vmul.f32 %v703, 0.0004
        %v2240 = vmul.f32 %v704, 0.0004
        %v2241 = vmul.f32 %v705, 0.0004
        %v2242 = vmul.f32 %v706, 0.0004
        %v2243 = vmul.f32 %v707, 0.0004
        %v2244 = vmul.f32 %v708, 0.0004
        %v2245 = vmul.f32 %v709, 0.0004
        %v2246 = vmul.f32 %v710, 0.0004
        %v2247 = vmul.f32 %v711, 0.0004
        %v2248 = vmul.f32 %v712, 0.0004
        %v2249 = vmul.f32 %v713, 0.0004
        %v2250 = vmul.f32 %v714, 0.0004
        %v2251 = vmul.f32 %v715, 0.0004
        %v2252 = vmul.f32 %v716, 0.0004
        %v2253 = vmul.f32 %v717, 0.0004
        %v2254 = vmul.f32 %v718, 0.0004
        %v2255 = vmul.f32 %v719, 0.0004
        %v2256 = vmul.f32 %v720, 0.0004
        %v2257 = vmul.f32 %v721, 0.0004
        %v2258 = vmul.f32 %v722, 0.0004
        %v2259 = vmul.f32 %v723, 0.0004
        %v2260 = vmul.f32 %v724, 0.0004
        %v2261 = vmul.f32 %v725, 0.0004
        %v2262 = vmul.f32 %v726, 0.0004
        %v2263 = vmul.f32 %v727, 0.0004
        %v2264 = vmul.f32 %v728, 0.0004
        %v2265 = vmul.f32 %v729, 0.0004
        %v2266 = vmul.f32 %v730, 0.0004
        %v2267 = vmul.f32 %v731, 0.0004
        %v2268 = vmul.f32 %v732, 0.0004
        %v2269 = vmul.f32 %v733, 0.0004
        %v2270 = vmul.f32 %v734, 0.0004
        %v2271 = vmul.f32 %v735, 0.0004
        %v2272 = vmul.f32 %v736, 0.0004
        %v2273 = vmul.f32 %v737, 0.0004
        %v2274 = vmul.f32 %v738, 0.0004
        %v2275 = vmul.f32 %v739, 0.0004
        %v2276 = vmul.f32 %v740, 0.0004
        %v2277 = vmul.f32 %v741, 0.0004
        %v2278 = vmul.f32 %v742, 0.0004
        %v2279 = vmul.f32 %v743, 0.0004
        %v2280 = vmul.f32 %v744, 0.0004
        %v2281 = vmul.f32 %v745, 0.0004
        %v2282 = vmul.f32 %v746, 0.0004
        %v2283 = vmul.f32 %v747, 0.0004
        %v2284 = vmul.f32 %v748, 0.0004
        %v2285 = vmul.f32 %v749, 0.0004
        %v2286 = vmul.f32 %v750, 0.0004
        %v2287 = vmul.f32 %v751, 0.0004
        %v2288 = vmul.f32 %v752, 0.0004
        %v2289 = vmul.f32 %v753, 0.0004
        %v2290 = vmul.f32 %v754, 0.0004
        %v2291 = vmul.f32 %v755, 0.0004
        %v2292 = vmul.f32 %v756, 0.0004
        %v2293 = vmul.f32 %v757, 0.0004
        %v2294 = vmul.f32 %v758, 0.0004
        %v2295 = vmul.f32 %v759, 0.0004
        %v2296 = vmul.f32 %v760, 0.0004
        %v2297 = vmul.f32 %v761, 0.0004
        %v2298 = vmul.f32 %v762, 0.0004
        %v2299 = vmul.f32 %v763, 0.0004
        %v2300 = vmul.f32 %v764, 0.0004
        %v2301 = vmul.f32 %v765, 0.0004
        %v2302 = vmul.f32 %v766, 0.0004
        %v2303 = vmul.f32 %v767, 0.0004
        %v2304 = vmul.f32 %v768, 0.0004
        %v2305 = vmul.f32 %v769, 0.0004
        %v2306 = vmul.f32 %v770, 0.0004
        %v2307 = vmul.f32 %v771, 0.0004
        %v2308 = vmul.f32 %v772, 0.0004
        %v2309 = vmul.f32 %v773, 0.0004
        %v2310 = vmul.f32 %v774, 0.0004
        %v2311 = vmul.f32 %v775, 0.0004
        %v2312 = vmul.f32 %v776, 0.0004
        %v2313 = vmul.f32 %v777, 0.0004
        %v2314 = vmul.f32 %v778, 0.0004
        %v2315 = vmul.f32 %v779, 0.0004
        %v2316 = vmul.f32 %v780, 0.0004
        %v2317 = vmul.f32 %v781, 0.0004
        %v2318 = vmul.f32 %v782, 0.0004
        %v2319 = vmul.f32 %v783, 0.0004
        %v2320 = vmul.f32 %v784, 0.0004
        %v2321 = vmul.f32 %v785, 0.0004
        %v2322 = vmul.f32 %v786, 0.0004
        %v2323 = vmul.f32 %v787, 0.0004
        %v2324 = vmul.f32 %v788, 0.0004
        %v2325 = vmul.f32 %v789, 0.0004
        %v2326 = vmul.f32 %v790, 0.0004
        %v2327 = vmul.f32 %v791, 0.0004
        %v2328 = vmul.f32 %v792, 0.0004
        %v2329 = vmul.f32 %v793, 0.0004
        %v2330 = vmul.f32 %v794, 0.0004
        %v2331 = vmul.f32 %v795, 0.0004
        %v2332 = vmul.f32 %v796, 0.0004
        %v2333 = vmul.f32 %v797, 0.0004
        %v2334 = vmul.f32 %v798, 0.0004
        %v2335 = vmul.f32 %v799, 0.0004
        %v2336 = vmul.f32 %v800, 0.0004
        %v2337 = vmul.f32 %v801, 0.0004
        %v2338 = vmul.f32 %v802, 0.0004
        %v2339 = vmul.f32 %v803, 0.0004
        %v2340 = vmul.f32 %v804, 0.0004
        %v2341 = vmul.f32 %v805, 0.0004
        %v2342 = vmul.f32 %v806, 0.0004
        %v2343 = vmul.f32 %v807, 0.0004
        %v2344 = vmul.f32 %v808, 0.0004
        %v2345 = vmul.f32 %v809, 0.0004
        %v2346 = vmul.f32 %v810, 0.0004
        %v2347 = vmul.f32 %v811, 0.0004
        %v2348 = vmul.f32 %v812, 0.0004
        %v2349 = vmul.f32 %v813, 0.0004
        %v2350 = vmul.f32 %v814, 0.0004
        %v2351 = vmul.f32 %v815, 0.0004
        %v2352 = vmul.f32 %v816, 0.0004
        %v2353 = vmul.f32 %v817, 0.0004
        %v2354 = vmul.f32 %v818, 0.0004
        %v2355 = vmul.f32 %v819, 0.0004
        %v2356 = vmul.f32 %v820, 0.0004
        %v2357 = vmul.f32 %v821, 0.0004
        %v2358 = vmul.f32 %v822, 0.0004
        %v2359 = vmul.f32 %v823, 0.0004
        %v2360 = vmul.f32 %v824, 0.0004
        %v2361 = vmul.f32 %v825, 0.0004
        %v2362 = vmul.f32 %v826, 0.0004
        %v2363 = vmul.f32 %v827, 0.0004
        %v2364 = vmul.f32 %v828, 0.0004
        %v2365 = vmul.f32 %v829, 0.0004
        %v2366 = vmul.f32 %v830, 0.0004
        %v2367 = vmul.f32 %v831, 0.0004
        %v2368 = vmul.f32 %v832, 0.0004
        %v2369 = vmul.f32 %v833, 0.0004
        %v2370 = vmul.f32 %v834, 0.0004
        %v2371 = vmul.f32 %v835, 0.0004
        %v2372 = vmul.f32 %v836, 0.0004
        %v2373 = vmul.f32 %v837, 0.0004
        %v2374 = vmul.f32 %v838, 0.0004
        %v2375 = vmul.f32 %v839, 0.0004
        %v2376 = vmul.f32 %v840, 0.0004
        %v2377 = vmul.f32 %v841, 0.0004
        %v2378 = vmul.f32 %v842, 0.0004
        %v2379 = vmul.f32 %v843, 0.0004
        %v2380 = vmul.f32 %v844, 0.0004
        %v2381 = vmul.f32 %v845, 0.0004
        %v2382 = vmul.f32 %v846, 0.0004
        %v2383 = vmul.f32 %v847, 0.0004
        %v2384 = vmul.f32 %v848, 0.0004
        %v2385 = vmul.f32 %v849, 0.0004
        %v2386 = vmul.f32 %v850, 0.0004
        %v2387 = vmul.f32 %v851, 0.0004
        %v2388 = vmul.f32 %v852, 0.0004
        %v2389 = vmul.f32 %v853, 0.0004
        %v2390 = vmul.f32 %v854, 0.0004
        %v2391 = vmul.f32 %v855, 0.0004
        %v2392 = vmul.f32 %v856, 0.0004
        %v2393 = vmul.f32 %v857, 0.0004
        %v2394 = vmul.f32 %v858, 0.0004
        %v2395 = vmul.f32 %v859, 0.0004
        %v2396 = vmul.f32 %v860, 0.0004
        %v2397 = vmul.f32 %v861, 0.0004
        %v2398 = vmul.f32 %v862, 0.0004
        %v2399 = vmul.f32 %v863, 0.0004
        %v2400 = vmul.f32 %v864, 0.0004
        %v2401 = vmul.f32 %v865, 0.0004
        %v2402 = vmul.f32 %v866, 0.0004
        %v2403 = vmul.f32 %v867, 0.0004
        %v2404 = vmul.f32 %v868, 0.0004
        %v2405 = vmul.f32 %v869, 0.0004
        %v2406 = vmul.f32 %v870, 0.0004
        %v2407 = vmul.f32 %v871, 0.0004
        %v2408 = vmul.f32 %v872, 0.0004
        %v2409 = vmul.f32 %v873, 0.0004
        %v2410 = vmul.f32 %v874, 0.0004
        %v2411 = vmul.f32 %v875, 0.0004
        %v2412 = vmul.f32 %v876, 0.0004
        %v2413 = vmul.f32 %v877, 0.0004
        %v2414 = vmul.f32 %v878, 0.0004
        %v2415 = vmul.f32 %v879, 0.0004
        %v2416 = vmul.f32 %v880, 0.0004
        %v2417 = vmul.f32 %v881, 0.0004
        %v2418 = vmul.f32 %v882, 0.0004
        %v2419 = vmul.f32 %v883, 0.0004
        %v2420 = vmul.f32 %v884, 0.0004
        %v2421 = vmul.f32 %v885, 0.0004
        %v2422 = vmul.f32 %v886, 0.0004
        %v2423 = vmul.f32 %v887, 0.0004
        %v2424 = vmul.f32 %v888, 0.0004
        %v2425 = vmul.f32 %v889, 0.0004
        %v2426 = vmul.f32 %v890, 0.0004
        %v2427 = vmul.f32 %v891, 0.0004
        %v2428 = vmul.f32 %v892, 0.0004
        %v2429 = vmul.f32 %v893, 0.0004
        %v2430 = vmul.f32 %v894, 0.0004
        %v2431 = vmul.f32 %v895, 0.0004
        %v2432 = vmul.f32 %v896, 0.0004
        %v2433 = vmul.f32 %v897, 0.0004
        %v2434 = vmul.f32 %v898, 0.0004
        %v2435 = vmul.f32 %v899, 0.0004
        %v2436 = vmul.f32 %v900, 0.0004
        %v2437 = vmul.f32 %v901, 0.0004
        %v2438 = vmul.f32 %v902, 0.0004
        %v2439 = vmul.f32 %v903, 0.0004
        %v2440 = vmul.f32 %v904, 0.0004
        %v2441 = vmul.f32 %v905, 0.0004
        %v2442 = vmul.f32 %v906, 0.0004
        %v2443 = vmul.f32 %v907, 0.0004
        %v2444 = vmul.f32 %v908, 0.0004
        %v2445 = vmul.f32 %v909, 0.0004
        %v2446 = vmul.f32 %v910, 0.0004
        %v2447 = vmul.f32 %v911, 0.0004
        %v2448 = vmul.f32 %v912, 0.0004
        %v2449 = vmul.f32 %v913, 0.0004
        %v2450 = vmul.f32 %v914, 0.0004
        %v2451 = vmul.f32 %v915, 0.0004
        %v2452 = vmul.f32 %v916, 0.0004
        %v2453 = vmul.f32 %v917, 0.0004
        %v2454 = vmul.f32 %v918, 0.0004
        %v2455 = vmul.f32 %v919, 0.0004
        %v2456 = vmul.f32 %v920, 0.0004
        %v2457 = vmul.f32 %v921, 0.0004
        %v2458 = vmul.f32 %v922, 0.0004
        %v2459 = vmul.f32 %v923, 0.0004
        %v2460 = vmul.f32 %v924, 0.0004
        %v2461 = vmul.f32 %v925, 0.0004
        %v2462 = vmul.f32 %v926, 0.0004
        %v2463 = vmul.f32 %v927, 0.0004
        %v2464 = vmul.f32 %v928, 0.0004
        %v2465 = vmul.f32 %v929, 0.0004
        %v2466 = vmul.f32 %v930, 0.0004
        %v2467 = vmul.f32 %v931, 0.0004
        %v2468 = vmul.f32 %v932, 0.0004
        %v2469 = vmul.f32 %v933, 0.0004
        %v2470 = vmul.f32 %v934, 0.0004
        %v2471 = vmul.f32 %v935, 0.0004
        %v2472 = vmul.f32 %v936, 0.0004
        %v2473 = vmul.f32 %v937, 0.0004
        %v2474 = vmul.f32 %v938, 0.0004
        %v2475 = vmul.f32 %v939, 0.0004
        %v2476 = vmul.f32 %v940, 0.0004
        %v2477 = vmul.f32 %v941, 0.0004
        %v2478 = vmul.f32 %v942, 0.0004
        %v2479 = vmul.f32 %v943, 0.0004
        %v2480 = vmul.f32 %v944, 0.0004
        %v2481 = vmul.f32 %v945, 0.0004
        %v2482 = vmul.f32 %v946, 0.0004
        %v2483 = vmul.f32 %v947, 0.0004
        %v2484 = vmul.f32 %v948, 0.0004
        %v2485 = vmul.f32 %v949, 0.0004
        %v2486 = vmul.f32 %v950, 0.0004
        %v2487 = vmul.f32 %v951, 0.0004
        %v2488 = vmul.f32 %v952, 0.0004
        %v2489 = vmul.f32 %v953, 0.0004
        %v2490 = vmul.f32 %v954, 0.0004
        %v2491 = vmul.f32 %v955, 0.0004
        %v2492 = vmul.f32 %v956, 0.0004
        %v2493 = vmul.f32 %v957, 0.0004
        %v2494 = vmul.f32 %v958, 0.0004
        %v2495 = vmul.f32 %v959, 0.0004
        %v2496 = vmul.f32 %v960, 0.0004
        %v2497 = vmul.f32 %v961, 0.0004
        %v2498 = vmul.f32 %v962, 0.0004
        %v2499 = vmul.f32 %v963, 0.0004
        %v2500 = vmul.f32 %v964, 0.0004
        %v2501 = vmul.f32 %v965, 0.0004
        %v2502 = vmul.f32 %v966, 0.0004
        %v2503 = vmul.f32 %v967, 0.0004
        %v2504 = vadd.f32 %v1480, %v1992
        %v2505 = vadd.f32 %v1481, %v1993
        %v2506 = vadd.f32 %v1482, %v1994
        %v2507 = vadd.f32 %v1483, %v1995
        %v2508 = vadd.f32 %v1484, %v1996
        %v2509 = vadd.f32 %v1485, %v1997
        %v2510 = vadd.f32 %v1486, %v1998
        %v2511 = vadd.f32 %v1487, %v1999
        %v2512 = vadd.f32 %v1488, %v2000
        %v2513 = vadd.f32 %v1489, %v2001
        %v2514 = vadd.f32 %v1490, %v2002
        %v2515 = vadd.f32 %v1491, %v2003
        %v2516 = vadd.f32 %v1492, %v2004
        %v2517 = vadd.f32 %v1493, %v2005
        %v2518 = vadd.f32 %v1494, %v2006
        %v2519 = vadd.f32 %v1495, %v2007
        %v2520 = vadd.f32 %v1496, %v2008
        %v2521 = vadd.f32 %v1497, %v2009
        %v2522 = vadd.f32 %v1498, %v2010
        %v2523 = vadd.f32 %v1499, %v2011
        %v2524 = vadd.f32 %v1500, %v2012
        %v2525 = vadd.f32 %v1501, %v2013
        %v2526 = vadd.f32 %v1502, %v2014
        %v2527 = vadd.f32 %v1503, %v2015
        %v2528 = vadd.f32 %v1504, %v2016
        %v2529 = vadd.f32 %v1505, %v2017
        %v2530 = vadd.f32 %v1506, %v2018
        %v2531 = vadd.f32 %v1507, %v2019
        %v2532 = vadd.f32 %v1508, %v2020
        %v2533 = vadd.f32 %v1509, %v2021
        %v2534 = vadd.f32 %v1510, %v2022
        %v2535 = vadd.f32 %v1511, %v2023
        %v2536 = vadd.f32 %v1512, %v2024
        %v2537 = vadd.f32 %v1513, %v2025
        %v2538 = vadd.f32 %v1514, %v2026
        %v2539 = vadd.f32 %v1515, %v2027
        %v2540 = vadd.f32 %v1516, %v2028
        %v2541 = vadd.f32 %v1517, %v2029
        %v2542 = vadd.f32 %v1518, %v2030
        %v2543 = vadd.f32 %v1519, %v2031
        %v2544 = vadd.f32 %v1520, %v2032
        %v2545 = vadd.f32 %v1521, %v2033
        %v2546 = vadd.f32 %v1522, %v2034
        %v2547 = vadd.f32 %v1523, %v2035
        %v2548 = vadd.f32 %v1524, %v2036
        %v2549 = vadd.f32 %v1525, %v2037
        %v2550 = vadd.f32 %v1526, %v2038
        %v2551 = vadd.f32 %v1527, %v2039
        %v2552 = vadd.f32 %v1528, %v2040
        %v2553 = vadd.f32 %v1529, %v2041
        %v2554 = vadd.f32 %v1530, %v2042
        %v2555 = vadd.f32 %v1531, %v2043
        %v2556 = vadd.f32 %v1532, %v2044
        %v2557 = vadd.f32 %v1533, %v2045
        %v2558 = vadd.f32 %v1534, %v2046
        %v2559 = vadd.f32 %v1535, %v2047
        %v2560 = vadd.f32 %v1536, %v2048
        %v2561 = vadd.f32 %v1537, %v2049
        %v2562 = vadd.f32 %v1538, %v2050
        %v2563 = vadd.f32 %v1539, %v2051
        %v2564 = vadd.f32 %v1540, %v2052
        %v2565 = vadd.f32 %v1541, %v2053
        %v2566 = vadd.f32 %v1542, %v2054
        %v2567 = vadd.f32 %v1543, %v2055
        %v2568 = vadd.f32 %v1544, %v2056
        %v2569 = vadd.f32 %v1545, %v2057
        %v2570 = vadd.f32 %v1546, %v2058
        %v2571 = vadd.f32 %v1547, %v2059
        %v2572 = vadd.f32 %v1548, %v2060
        %v2573 = vadd.f32 %v1549, %v2061
        %v2574 = vadd.f32 %v1550, %v2062
        %v2575 = vadd.f32 %v1551, %v2063
        %v2576 = vadd.f32 %v1552, %v2064
        %v2577 = vadd.f32 %v1553, %v2065
        %v2578 = vadd.f32 %v1554, %v2066
        %v2579 = vadd.f32 %v1555, %v2067
        %v2580 = vadd.f32 %v1556, %v2068
        %v2581 = vadd.f32 %v1557, %v2069
        %v2582 = vadd.f32 %v1558, %v2070
        %v2583 = vadd.f32 %v1559, %v2071
        %v2584 = vadd.f32 %v1560, %v2072
        %v2585 = vadd.f32 %v1561, %v2073
        %v2586 = vadd.f32 %v1562, %v2074
        %v2587 = vadd.f32 %v1563, %v2075
        %v2588 = vadd.f32 %v1564, %v2076
        %v2589 = vadd.f32 %v1565, %v2077
        %v2590 = vadd.f32 %v1566, %v2078
        %v2591 = vadd.f32 %v1567, %v2079
        %v2592 = vadd.f32 %v1568, %v2080
        %v2593 = vadd.f32 %v1569, %v2081
        %v2594 = vadd.f32 %v1570, %v2082
        %v2595 = vadd.f32 %v1571, %v2083
        %v2596 = vadd.f32 %v1572, %v2084
        %v2597 = vadd.f32 %v1573, %v2085
        %v2598 = vadd.f32 %v1574, %v2086
        %v2599 = vadd.f32 %v1575, %v2087
        %v2600 = vadd.f32 %v1576, %v2088
        %v2601 = vadd.f32 %v1577, %v2089
        %v2602 = vadd.f32 %v1578, %v2090
        %v2603 = vadd.f32 %v1579, %v2091
        %v2604 = vadd.f32 %v1580, %v2092
        %v2605 = vadd.f32 %v1581, %v2093
        %v2606 = vadd.f32 %v1582, %v2094
        %v2607 = vadd.f32 %v1583, %v2095
        %v2608 = vadd.f32 %v1584, %v2096
        %v2609 = vadd.f32 %v1585, %v2097
        %v2610 = vadd.f32 %v1586, %v2098
        %v2611 = vadd.f32 %v1587, %v2099
        %v2612 = vadd.f32 %v1588, %v2100
        %v2613 = vadd.f32 %v1589, %v2101
        %v2614 = vadd.f32 %v1590, %v2102
        %v2615 = vadd.f32 %v1591, %v2103
        %v2616 = vadd.f32 %v1592, %v2104
        %v2617 = vadd.f32 %v1593, %v2105
        %v2618 = vadd.f32 %v1594, %v2106
        %v2619 = vadd.f32 %v1595, %v2107
        %v2620 = vadd.f32 %v1596, %v2108
        %v2621 = vadd.f32 %v1597, %v2109
        %v2622 = vadd.f32 %v1598, %v2110
        %v2623 = vadd.f32 %v1599, %v2111
        %v2624 = vadd.f32 %v1600, %v2112
        %v2625 = vadd.f32 %v1601, %v2113
        %v2626 = vadd.f32 %v1602, %v2114
        %v2627 = vadd.f32 %v1603, %v2115
        %v2628 = vadd.f32 %v1604, %v2116
        %v2629 = vadd.f32 %v1605, %v2117
        %v2630 = vadd.f32 %v1606, %v2118
        %v2631 = vadd.f32 %v1607, %v2119
        %v2632 = vadd.f32 %v1608, %v2120
        %v2633 = vadd.f32 %v1609, %v2121
        %v2634 = vadd.f32 %v1610, %v2122
        %v2635 = vadd.f32 %v1611, %v2123
        %v2636 = vadd.f32 %v1612, %v2124
        %v2637 = vadd.f32 %v1613, %v2125
        %v2638 = vadd.f32 %v1614, %v2126
        %v2639 = vadd.f32 %v1615, %v2127
        %v2640 = vadd.f32 %v1616, %v2128
        %v2641 = vadd.f32 %v1617, %v2129
        %v2642 = vadd.f32 %v1618, %v2130
        %v2643 = vadd.f32 %v1619, %v2131
        %v2644 = vadd.f32 %v1620, %v2132
        %v2645 = vadd.f32 %v1621, %v2133
        %v2646 = vadd.f32 %v1622, %v2134
        %v2647 = vadd.f32 %v1623, %v2135
        %v2648 = vadd.f32 %v1624, %v2136
        %v2649 = vadd.f32 %v1625, %v2137
        %v2650 = vadd.f32 %v1626, %v2138
        %v2651 = vadd.f32 %v1627, %v2139
        %v2652 = vadd.f32 %v1628, %v2140
        %v2653 = vadd.f32 %v1629, %v2141
        %v2654 = vadd.f32 %v1630, %v2142
        %v2655 = vadd.f32 %v1631, %v2143
        %v2656 = vadd.f32 %v1632, %v2144
        %v2657 = vadd.f32 %v1633, %v2145
        %v2658 = vadd.f32 %v1634, %v2146
        %v2659 = vadd.f32 %v1635, %v2147
        %v2660 = vadd.f32 %v1636, %v2148
        %v2661 = vadd.f32 %v1637, %v2149
        %v2662 = vadd.f32 %v1638, %v2150
        %v2663 = vadd.f32 %v1639, %v2151
        %v2664 = vadd.f32 %v1640, %v2152
        %v2665 = vadd.f32 %v1641, %v2153
        %v2666 = vadd.f32 %v1642, %v2154
        %v2667 = vadd.f32 %v1643, %v2155
        %v2668 = vadd.f32 %v1644, %v2156
        %v2669 = vadd.f32 %v1645, %v2157
        %v2670 = vadd.f32 %v1646, %v2158
        %v2671 = vadd.f32 %v1647, %v2159
        %v2672 = vadd.f32 %v1648, %v2160
        %v2673 = vadd.f32 %v1649, %v2161
        %v2674 = vadd.f32 %v1650, %v2162
        %v2675 = vadd.f32 %v1651, %v2163
        %v2676 = vadd.f32 %v1652, %v2164
        %v2677 = vadd.f32 %v1653, %v2165
        %v2678 = vadd.f32 %v1654, %v2166
        %v2679 = vadd.f32 %v1655, %v2167
        %v2680 = vadd.f32 %v1656, %v2168
        %v2681 = vadd.f32 %v1657, %v2169
        %v2682 = vadd.f32 %v1658, %v2170
        %v2683 = vadd.f32 %v1659, %v2171
        %v2684 = vadd.f32 %v1660, %v2172
        %v2685 = vadd.f32 %v1661, %v2173
        %v2686 = vadd.f32 %v1662, %v2174
        %v2687 = vadd.f32 %v1663, %v2175
        %v2688 = vadd.f32 %v1664, %v2176
        %v2689 = vadd.f32 %v1665, %v2177
        %v2690 = vadd.f32 %v1666, %v2178
        %v2691 = vadd.f32 %v1667, %v2179
        %v2692 = vadd.f32 %v1668, %v2180
        %v2693 = vadd.f32 %v1669, %v2181
        %v2694 = vadd.f32 %v1670, %v2182
        %v2695 = vadd.f32 %v1671, %v2183
        %v2696 = vadd.f32 %v1672, %v2184
        %v2697 = vadd.f32 %v1673, %v2185
        %v2698 = vadd.f32 %v1674, %v2186
        %v2699 = vadd.f32 %v1675, %v2187
        %v2700 = vadd.f32 %v1676, %v2188
        %v2701 = vadd.f32 %v1677, %v2189
        %v2702 = vadd.f32 %v1678, %v2190
        %v2703 = vadd.f32 %v1679, %v2191
        %v2704 = vadd.f32 %v1680, %v2192
        %v2705 = vadd.f32 %v1681, %v2193
        %v2706 = vadd.f32 %v1682, %v2194
        %v2707 = vadd.f32 %v1683, %v2195
        %v2708 = vadd.f32 %v1684, %v2196
        %v2709 = vadd.f32 %v1685, %v2197
        %v2710 = vadd.f32 %v1686, %v2198
        %v2711 = vadd.f32 %v1687, %v2199
        %v2712 = vadd.f32 %v1688, %v2200
        %v2713 = vadd.f32 %v1689, %v2201
        %v2714 = vadd.f32 %v1690, %v2202
        %v2715 = vadd.f32 %v1691, %v2203
        %v2716 = vadd.f32 %v1692, %v2204
        %v2717 = vadd.f32 %v1693, %v2205
        %v2718 = vadd.f32 %v1694, %v2206
        %v2719 = vadd.f32 %v1695, %v2207
        %v2720 = vadd.f32 %v1696, %v2208
        %v2721 = vadd.f32 %v1697, %v2209
        %v2722 = vadd.f32 %v1698, %v2210
        %v2723 = vadd.f32 %v1699, %v2211
        %v2724 = vadd.f32 %v1700, %v2212
        %v2725 = vadd.f32 %v1701, %v2213
        %v2726 = vadd.f32 %v1702, %v2214
        %v2727 = vadd.f32 %v1703, %v2215
        %v2728 = vadd.f32 %v1704, %v2216
        %v2729 = vadd.f32 %v1705, %v2217
        %v2730 = vadd.f32 %v1706, %v2218
        %v2731 = vadd.f32 %v1707, %v2219
        %v2732 = vadd.f32 %v1708, %v2220
        %v2733 = vadd.f32 %v1709, %v2221
        %v2734 = vadd.f32 %v1710, %v2222
        %v2735 = vadd.f32 %v1711, %v2223
        %v2736 = vadd.f32 %v1712, %v2224
        %v2737 = vadd.f32 %v1713, %v2225
        %v2738 = vadd.f32 %v1714, %v2226
        %v2739 = vadd.f32 %v1715, %v2227
        %v2740 = vadd.f32 %v1716, %v2228
        %v2741 = vadd.f32 %v1717, %v2229
        %v2742 = vadd.f32 %v1718, %v2230
        %v2743 = vadd.f32 %v1719, %v2231
        %v2744 = vadd.f32 %v1720, %v2232
        %v2745 = vadd.f32 %v1721, %v2233
        %v2746 = vadd.f32 %v1722, %v2234
        %v2747 = vadd.f32 %v1723, %v2235
        %v2748 = vadd.f32 %v1724, %v2236
        %v2749 = vadd.f32 %v1725, %v2237
        %v2750 = vadd.f32 %v1726, %v2238
        %v2751 = vadd.f32 %v1727, %v2239
        %v2752 = vadd.f32 %v1728, %v2240
        %v2753 = vadd.f32 %v1729, %v2241
        %v2754 = vadd.f32 %v1730, %v2242
        %v2755 = vadd.f32 %v1731, %v2243
        %v2756 = vadd.f32 %v1732, %v2244
        %v2757 = vadd.f32 %v1733, %v2245
        %v2758 = vadd.f32 %v1734, %v2246
        %v2759 = vadd.f32 %v1735, %v2247
        %v2760 = vadd.f32 %v1736, %v2248
        %v2761 = vadd.f32 %v1737, %v2249
        %v2762 = vadd.f32 %v1738, %v2250
        %v2763 = vadd.f32 %v1739, %v2251
        %v2764 = vadd.f32 %v1740, %v2252
        %v2765 = vadd.f32 %v1741, %v2253
        %v2766 = vadd.f32 %v1742, %v2254
        %v2767 = vadd.f32 %v1743, %v2255
        %v2768 = vadd.f32 %v1744, %v2256
        %v2769 = vadd.f32 %v1745, %v2257
        %v2770 = vadd.f32 %v1746, %v2258
        %v2771 = vadd.f32 %v1747, %v2259
        %v2772 = vadd.f32 %v1748, %v2260
        %v2773 = vadd.f32 %v1749, %v2261
        %v2774 = vadd.f32 %v1750, %v2262
        %v2775 = vadd.f32 %v1751, %v2263
        %v2776 = vadd.f32 %v1752, %v2264
        %v2777 = vadd.f32 %v1753, %v2265
        %v2778 = vadd.f32 %v1754, %v2266
        %v2779 = vadd.f32 %v1755, %v2267
        %v2780 = vadd.f32 %v1756, %v2268
        %v2781 = vadd.f32 %v1757, %v2269
        %v2782 = vadd.f32 %v1758, %v2270
        %v2783 = vadd.f32 %v1759, %v2271
        %v2784 = vadd.f32 %v1760, %v2272
        %v2785 = vadd.f32 %v1761, %v2273
        %v2786 = vadd.f32 %v1762, %v2274
        %v2787 = vadd.f32 %v1763, %v2275
        %v2788 = vadd.f32 %v1764, %v2276
        %v2789 = vadd.f32 %v1765, %v2277
        %v2790 = vadd.f32 %v1766, %v2278
        %v2791 = vadd.f32 %v1767, %v2279
        %v2792 = vadd.f32 %v1768, %v2280
        %v2793 = vadd.f32 %v1769, %v2281
        %v2794 = vadd.f32 %v1770, %v2282
        %v2795 = vadd.f32 %v1771, %v2283
        %v2796 = vadd.f32 %v1772, %v2284
        %v2797 = vadd.f32 %v1773, %v2285
        %v2798 = vadd.f32 %v1774, %v2286
        %v2799 = vadd.f32 %v1775, %v2287
        %v2800 = vadd.f32 %v1776, %v2288
        %v2801 = vadd.f32 %v1777, %v2289
        %v2802 = vadd.f32 %v1778, %v2290
        %v2803 = vadd.f32 %v1779, %v2291
        %v2804 = vadd.f32 %v1780, %v2292
        %v2805 = vadd.f32 %v1781, %v2293
        %v2806 = vadd.f32 %v1782, %v2294
        %v2807 = vadd.f32 %v1783, %v2295
        %v2808 = vadd.f32 %v1784, %v2296
        %v2809 = vadd.f32 %v1785, %v2297
        %v2810 = vadd.f32 %v1786, %v2298
        %v2811 = vadd.f32 %v1787, %v2299
        %v2812 = vadd.f32 %v1788, %v2300
        %v2813 = vadd.f32 %v1789, %v2301
        %v2814 = vadd.f32 %v1790, %v2302
        %v2815 = vadd.f32 %v1791, %v2303
        %v2816 = vadd.f32 %v1792, %v2304
        %v2817 = vadd.f32 %v1793, %v2305
        %v2818 = vadd.f32 %v1794, %v2306
        %v2819 = vadd.f32 %v1795, %v2307
        %v2820 = vadd.f32 %v1796, %v2308
        %v2821 = vadd.f32 %v1797, %v2309
        %v2822 = vadd.f32 %v1798, %v2310
        %v2823 = vadd.f32 %v1799, %v2311
        %v2824 = vadd.f32 %v1800, %v2312
        %v2825 = vadd.f32 %v1801, %v2313
        %v2826 = vadd.f32 %v1802, %v2314
        %v2827 = vadd.f32 %v1803, %v2315
        %v2828 = vadd.f32 %v1804, %v2316
        %v2829 = vadd.f32 %v1805, %v2317
        %v2830 = vadd.f32 %v1806, %v2318
        %v2831 = vadd.f32 %v1807, %v2319
        %v2832 = vadd.f32 %v1808, %v2320
        %v2833 = vadd.f32 %v1809, %v2321
        %v2834 = vadd.f32 %v1810, %v2322
        %v2835 = vadd.f32 %v1811, %v2323
        %v2836 = vadd.f32 %v1812, %v2324
        %v2837 = vadd.f32 %v1813, %v2325
        %v2838 = vadd.f32 %v1814, %v2326
        %v2839 = vadd.f32 %v1815, %v2327
        %v2840 = vadd.f32 %v1816, %v2328
        %v2841 = vadd.f32 %v1817, %v2329
        %v2842 = vadd.f32 %v1818, %v2330
        %v2843 = vadd.f32 %v1819, %v2331
        %v2844 = vadd.f32 %v1820, %v2332
        %v2845 = vadd.f32 %v1821, %v2333
        %v2846 = vadd.f32 %v1822, %v2334
        %v2847 = vadd.f32 %v1823, %v2335
        %v2848 = vadd.f32 %v1824, %v2336
        %v2849 = vadd.f32 %v1825, %v2337
        %v2850 = vadd.f32 %v1826, %v2338
        %v2851 = vadd.f32 %v1827, %v2339
        %v2852 = vadd.f32 %v1828, %v2340
        %v2853 = vadd.f32 %v1829, %v2341
        %v2854 = vadd.f32 %v1830, %v2342
        %v2855 = vadd.f32 %v1831, %v2343
        %v2856 = vadd.f32 %v1832, %v2344
        %v2857 = vadd.f32 %v1833, %v2345
        %v2858 = vadd.f32 %v1834, %v2346
        %v2859 = vadd.f32 %v1835, %v2347
        %v2860 = vadd.f32 %v1836, %v2348
        %v2861 = vadd.f32 %v1837, %v2349
        %v2862 = vadd.f32 %v1838, %v2350
        %v2863 = vadd.f32 %v1839, %v2351
        %v2864 = vadd.f32 %v1840, %v2352
        %v2865 = vadd.f32 %v1841, %v2353
        %v2866 = vadd.f32 %v1842, %v2354
        %v2867 = vadd.f32 %v1843, %v2355
        %v2868 = vadd.f32 %v1844, %v2356
        %v2869 = vadd.f32 %v1845, %v2357
        %v2870 = vadd.f32 %v1846, %v2358
        %v2871 = vadd.f32 %v1847, %v2359
        %v2872 = vadd.f32 %v1848, %v2360
        %v2873 = vadd.f32 %v1849, %v2361
        %v2874 = vadd.f32 %v1850, %v2362
        %v2875 = vadd.f32 %v1851, %v2363
        %v2876 = vadd.f32 %v1852, %v2364
        %v2877 = vadd.f32 %v1853, %v2365
        %v2878 = vadd.f32 %v1854, %v2366
        %v2879 = vadd.f32 %v1855, %v2367
        %v2880 = vadd.f32 %v1856, %v2368
        %v2881 = vadd.f32 %v1857, %v2369
        %v2882 = vadd.f32 %v1858, %v2370
        %v2883 = vadd.f32 %v1859, %v2371
        %v2884 = vadd.f32 %v1860, %v2372
        %v2885 = vadd.f32 %v1861, %v2373
        %v2886 = vadd.f32 %v1862, %v2374
        %v2887 = vadd.f32 %v1863, %v2375
        %v2888 = vadd.f32 %v1864, %v2376
        %v2889 = vadd.f32 %v1865, %v2377
        %v2890 = vadd.f32 %v1866, %v2378
        %v2891 = vadd.f32 %v1867, %v2379
        %v2892 = vadd.f32 %v1868, %v2380
        %v2893 = vadd.f32 %v1869, %v2381
        %v2894 = vadd.f32 %v1870, %v2382
        %v2895 = vadd.f32 %v1871, %v2383
        %v2896 = vadd.f32 %v1872, %v2384
        %v2897 = vadd.f32 %v1873, %v2385
        %v2898 = vadd.f32 %v1874, %v2386
        %v2899 = vadd.f32 %v1875, %v2387
        %v2900 = vadd.f32 %v1876, %v2388
        %v2901 = vadd.f32 %v1877, %v2389
        %v2902 = vadd.f32 %v1878, %v2390
        %v2903 = vadd.f32 %v1879, %v2391
        %v2904 = vadd.f32 %v1880, %v2392
        %v2905 = vadd.f32 %v1881, %v2393
        %v2906 = vadd.f32 %v1882, %v2394
        %v2907 = vadd.f32 %v1883, %v2395
        %v2908 = vadd.f32 %v1884, %v2396
        %v2909 = vadd.f32 %v1885, %v2397
        %v2910 = vadd.f32 %v1886, %v2398
        %v2911 = vadd.f32 %v1887, %v2399
        %v2912 = vadd.f32 %v1888, %v2400
        %v2913 = vadd.f32 %v1889, %v2401
        %v2914 = vadd.f32 %v1890, %v2402
        %v2915 = vadd.f32 %v1891, %v2403
        %v2916 = vadd.f32 %v1892, %v2404
        %v2917 = vadd.f32 %v1893, %v2405
        %v2918 = vadd.f32 %v1894, %v2406
        %v2919 = vadd.f32 %v1895, %v2407
        %v2920 = vadd.f32 %v1896, %v2408
        %v2921 = vadd.f32 %v1897, %v2409
        %v2922 = vadd.f32 %v1898, %v2410
        %v2923 = vadd.f32 %v1899, %v2411
        %v2924 = vadd.f32 %v1900, %v2412
        %v2925 = vadd.f32 %v1901, %v2413
        %v2926 = vadd.f32 %v1902, %v2414
        %v2927 = vadd.f32 %v1903, %v2415
        %v2928 = vadd.f32 %v1904, %v2416
        %v2929 = vadd.f32 %v1905, %v2417
        %v2930 = vadd.f32 %v1906, %v2418
        %v2931 = vadd.f32 %v1907, %v2419
        %v2932 = vadd.f32 %v1908, %v2420
        %v2933 = vadd.f32 %v1909, %v2421
        %v2934 = vadd.f32 %v1910, %v2422
        %v2935 = vadd.f32 %v1911, %v2423
        %v2936 = vadd.f32 %v1912, %v2424
        %v2937 = vadd.f32 %v1913, %v2425
        %v2938 = vadd.f32 %v1914, %v2426
        %v2939 = vadd.f32 %v1915, %v2427
        %v2940 = vadd.f32 %v1916, %v2428
        %v2941 = vadd.f32 %v1917, %v2429
        %v2942 = vadd.f32 %v1918, %v2430
        %v2943 = vadd.f32 %v1919, %v2431
        %v2944 = vadd.f32 %v1920, %v2432
        %v2945 = vadd.f32 %v1921, %v2433
        %v2946 = vadd.f32 %v1922, %v2434
        %v2947 = vadd.f32 %v1923, %v2435
        %v2948 = vadd.f32 %v1924, %v2436
        %v2949 = vadd.f32 %v1925, %v2437
        %v2950 = vadd.f32 %v1926, %v2438
        %v2951 = vadd.f32 %v1927, %v2439
        %v2952 = vadd.f32 %v1928, %v2440
        %v2953 = vadd.f32 %v1929, %v2441
        %v2954 = vadd.f32 %v1930, %v2442
        %v2955 = vadd.f32 %v1931, %v2443
        %v2956 = vadd.f32 %v1932, %v2444
        %v2957 = vadd.f32 %v1933, %v2445
        %v2958 = vadd.f32 %v1934, %v2446
        %v2959 = vadd.f32 %v1935, %v2447
        %v2960 = vadd.f32 %v1936, %v2448
        %v2961 = vadd.f32 %v1937, %v2449
        %v2962 = vadd.f32 %v1938, %v2450
        %v2963 = vadd.f32 %v1939, %v2451
        %v2964 = vadd.f32 %v1940, %v2452
        %v2965 = vadd.f32 %v1941, %v2453
        %v2966 = vadd.f32 %v1942, %v2454
        %v2967 = vadd.f32 %v1943, %v2455
        %v2968 = vadd.f32 %v1944, %v2456
        %v2969 = vadd.f32 %v1945, %v2457
        %v2970 = vadd.f32 %v1946, %v2458
        %v2971 = vadd.f32 %v1947, %v2459
        %v2972 = vadd.f32 %v1948, %v2460
        %v2973 = vadd.f32 %v1949, %v2461
        %v2974 = vadd.f32 %v1950, %v2462
        %v2975 = vadd.f32 %v1951, %v2463
        %v2976 = vadd.f32 %v1952, %v2464
        %v2977 = vadd.f32 %v1953, %v2465
        %v2978 = vadd.f32 %v1954, %v2466
        %v2979 = vadd.f32 %v1955, %v2467
        %v2980 = vadd.f32 %v1956, %v2468
        %v2981 = vadd.f32 %v1957, %v2469
        %v2982 = vadd.f32 %v1958, %v2470
        %v2983 = vadd.f32 %v1959, %v2471
        %v2984 = vadd.f32 %v1960, %v2472
        %v2985 = vadd.f32 %v1961, %v2473
        %v2986 = vadd.f32 %v1962, %v2474
        %v2987 = vadd.f32 %v1963, %v2475
        %v2988 = vadd.f32 %v1964, %v2476
        %v2989 = vadd.f32 %v1965, %v2477
        %v2990 = vadd.f32 %v1966, %v2478
        %v2991 = vadd.f32 %v1967, %v2479
        %v2992 = vadd.f32 %v1968, %v2480
        %v2993 = vadd.f32 %v1969, %v2481
        %v2994 = vadd.f32 %v1970, %v2482
        %v2995 = vadd.f32 %v1971, %v2483
        %v2996 = vadd.f32 %v1972, %v2484
        %v2997 = vadd.f32 %v1973, %v2485
        %v2998 = vadd.f32 %v1974, %v2486
        %v2999 = vadd.f32 %v1975, %v2487
        %v3000 = vadd.f32 %v1976, %v2488
        %v3001 = vadd.f32 %v1977, %v2489
        %v3002 = vadd.f32 %v1978, %v2490
        %v3003 = vadd.f32 %v1979, %v2491
        %v3004 = vadd.f32 %v1980, %v2492
        %v3005 = vadd.f32 %v1981, %v2493
        %v3006 = vadd.f32 %v1982, %v2494
        %v3007 = vadd.f32 %v1983, %v2495
        %v3008 = vadd.f32 %v1984, %v2496
        %v3009 = vadd.f32 %v1985, %v2497
        %v3010 = vadd.f32 %v1986, %v2498
        %v3011 = vadd.f32 %v1987, %v2499
        %v3012 = vadd.f32 %v1988, %v2500
        %v3013 = vadd.f32 %v1989, %v2501
        %v3014 = vadd.f32 %v1990, %v2502
        %v3015 = vadd.f32 %v1991, %v2503
        %3016 = vst [vmem:[%s427] sm:$0xff] %v2504
        %3017 = vst [vmem:[%s427 + $0x8] sm:$0xff] %v2505
        %3018 = vst [vmem:[%s427 + $0x10] sm:$0xff] %v2506
        %3019 = vst [vmem:[%s427 + $0x18] sm:$0xff] %v2507
        %3020 = vst [vmem:[%s427 + $0x20] sm:$0xff] %v2508
        %3021 = vst [vmem:[%s427 + $0x28] sm:$0xff] %v2509
        %3022 = vst [vmem:[%s427 + $0x30] sm:$0xff] %v2510
        %3023 = vst [vmem:[%s427 + $0x38] sm:$0xff] %v2511
        %3024 = vst [vmem:[%s427 + $0x40] sm:$0xff] %v2512
        %3025 = vst [vmem:[%s427 + $0x48] sm:$0xff] %v2513
        %3026 = vst [vmem:[%s427 + $0x50] sm:$0xff] %v2514
        %3027 = vst [vmem:[%s427 + $0x58] sm:$0xff] %v2515
        %3028 = vst [vmem:[%s427 + $0x60] sm:$0xff] %v2516
        %3029 = vst [vmem:[%s427 + $0x68] sm:$0xff] %v2517
        %3030 = vst [vmem:[%s427 + $0x70] sm:$0xff] %v2518
        %3031 = vst [vmem:[%s427 + $0x78] sm:$0xff] %v2519
        %3032 = vst [vmem:[%s427 + $0x80] sm:$0xff] %v2520
        %3033 = vst [vmem:[%s427 + $0x88] sm:$0xff] %v2521
        %3034 = vst [vmem:[%s427 + $0x90] sm:$0xff] %v2522
        %3035 = vst [vmem:[%s427 + $0x98] sm:$0xff] %v2523
        %3036 = vst [vmem:[%s427 + $0xa0] sm:$0xff] %v2524
        %3037 = vst [vmem:[%s427 + $0xa8] sm:$0xff] %v2525
        %3038 = vst [vmem:[%s427 + $0xb0] sm:$0xff] %v2526
        %3039 = vst [vmem:[%s427 + $0xb8] sm:$0xff] %v2527
        %3040 = vst [vmem:[%s427 + $0xc0] sm:$0xff] %v2528
        %3041 = vst [vmem:[%s427 + $0xc8] sm:$0xff] %v2529
        %3042 = vst [vmem:[%s427 + $0xd0] sm:$0xff] %v2530
        %3043 = vst [vmem:[%s427 + $0xd8] sm:$0xff] %v2531
        %3044 = vst [vmem:[%s427 + $0xe0] sm:$0xff] %v2532
        %3045 = vst [vmem:[%s427 + $0xe8] sm:$0xff] %v2533
        %3046 = vst [vmem:[%s427 + $0xf0] sm:$0xff] %v2534
        %3047 = vst [vmem:[%s427 + $0xf8] sm:$0xff] %v2535
        %3048 = vst [vmem:[%s427 + $0x100] sm:$0xff] %v2536
        %3049 = vst [vmem:[%s427 + $0x108] sm:$0xff] %v2537
        %3050 = vst [vmem:[%s427 + $0x110] sm:$0xff] %v2538
        %3051 = vst [vmem:[%s427 + $0x118] sm:$0xff] %v2539
        %3052 = vst [vmem:[%s427 + $0x120] sm:$0xff] %v2540
        %3053 = vst [vmem:[%s427 + $0x128] sm:$0xff] %v2541
        %3054 = vst [vmem:[%s427 + $0x130] sm:$0xff] %v2542
        %3055 = vst [vmem:[%s427 + $0x138] sm:$0xff] %v2543
        %3056 = vst [vmem:[%s427 + $0x140] sm:$0xff] %v2544
        %3057 = vst [vmem:[%s427 + $0x148] sm:$0xff] %v2545
        %3058 = vst [vmem:[%s427 + $0x150] sm:$0xff] %v2546
        %3059 = vst [vmem:[%s427 + $0x158] sm:$0xff] %v2547
        %3060 = vst [vmem:[%s427 + $0x160] sm:$0xff] %v2548
        %3061 = vst [vmem:[%s427 + $0x168] sm:$0xff] %v2549
        %3062 = vst [vmem:[%s427 + $0x170] sm:$0xff] %v2550
        %3063 = vst [vmem:[%s427 + $0x178] sm:$0xff] %v2551
        %3064 = vst [vmem:[%s427 + $0x180] sm:$0xff] %v2552
        %3065 = vst [vmem:[%s427 + $0x188] sm:$0xff] %v2553
        %3066 = vst [vmem:[%s427 + $0x190] sm:$0xff] %v2554
        %3067 = vst [vmem:[%s427 + $0x198] sm:$0xff] %v2555
        %3068 = vst [vmem:[%s427 + $0x1a0] sm:$0xff] %v2556
        %3069 = vst [vmem:[%s427 + $0x1a8] sm:$0xff] %v2557
        %3070 = vst [vmem:[%s427 + $0x1b0] sm:$0xff] %v2558
        %3071 = vst [vmem:[%s427 + $0x1b8] sm:$0xff] %v2559
        %3072 = vst [vmem:[%s427 + $0x1c0] sm:$0xff] %v2560
        %3073 = vst [vmem:[%s427 + $0x1c8] sm:$0xff] %v2561
        %3074 = vst [vmem:[%s427 + $0x1d0] sm:$0xff] %v2562
        %3075 = vst [vmem:[%s427 + $0x1d8] sm:$0xff] %v2563
        %3076 = vst [vmem:[%s427 + $0x1e0] sm:$0xff] %v2564
        %3077 = vst [vmem:[%s427 + $0x1e8] sm:$0xff] %v2565
        %3078 = vst [vmem:[%s427 + $0x1f0] sm:$0xff] %v2566
        %3079 = vst [vmem:[%s427 + $0x1f8] sm:$0xff] %v2567
        %3080 = vst [vmem:[%s427 + $0x200] sm:$0xff] %v2568
        %3081 = vst [vmem:[%s427 + $0x208] sm:$0xff] %v2569
        %3082 = vst [vmem:[%s427 + $0x210] sm:$0xff] %v2570
        %3083 = vst [vmem:[%s427 + $0x218] sm:$0xff] %v2571
        %3084 = vst [vmem:[%s427 + $0x220] sm:$0xff] %v2572
        %3085 = vst [vmem:[%s427 + $0x228] sm:$0xff] %v2573
        %3086 = vst [vmem:[%s427 + $0x230] sm:$0xff] %v2574
        %3087 = vst [vmem:[%s427 + $0x238] sm:$0xff] %v2575
        %3088 = vst [vmem:[%s427 + $0x240] sm:$0xff] %v2576
        %3089 = vst [vmem:[%s427 + $0x248] sm:$0xff] %v2577
        %3090 = vst [vmem:[%s427 + $0x250] sm:$0xff] %v2578
        %3091 = vst [vmem:[%s427 + $0x258] sm:$0xff] %v2579
        %3092 = vst [vmem:[%s427 + $0x260] sm:$0xff] %v2580
        %3093 = vst [vmem:[%s427 + $0x268] sm:$0xff] %v2581
        %3094 = vst [vmem:[%s427 + $0x270] sm:$0xff] %v2582
        %3095 = vst [vmem:[%s427 + $0x278] sm:$0xff] %v2583
        %3096 = vst [vmem:[%s427 + $0x280] sm:$0xff] %v2584
        %3097 = vst [vmem:[%s427 + $0x288] sm:$0xff] %v2585
        %3098 = vst [vmem:[%s427 + $0x290] sm:$0xff] %v2586
        %3099 = vst [vmem:[%s427 + $0x298] sm:$0xff] %v2587
        %3100 = vst [vmem:[%s427 + $0x2a0] sm:$0xff] %v2588
        %3101 = vst [vmem:[%s427 + $0x2a8] sm:$0xff] %v2589
        %3102 = vst [vmem:[%s427 + $0x2b0] sm:$0xff] %v2590
        %3103 = vst [vmem:[%s427 + $0x2b8] sm:$0xff] %v2591
        %3104 = vst [vmem:[%s427 + $0x2c0] sm:$0xff] %v2592
        %3105 = vst [vmem:[%s427 + $0x2c8] sm:$0xff] %v2593
        %3106 = vst [vmem:[%s427 + $0x2d0] sm:$0xff] %v2594
        %3107 = vst [vmem:[%s427 + $0x2d8] sm:$0xff] %v2595
        %3108 = vst [vmem:[%s427 + $0x2e0] sm:$0xff] %v2596
        %3109 = vst [vmem:[%s427 + $0x2e8] sm:$0xff] %v2597
        %3110 = vst [vmem:[%s427 + $0x2f0] sm:$0xff] %v2598
        %3111 = vst [vmem:[%s427 + $0x2f8] sm:$0xff] %v2599
        %3112 = vst [vmem:[%s427 + $0x300] sm:$0xff] %v2600
        %3113 = vst [vmem:[%s427 + $0x308] sm:$0xff] %v2601
        %3114 = vst [vmem:[%s427 + $0x310] sm:$0xff] %v2602
        %3115 = vst [vmem:[%s427 + $0x318] sm:$0xff] %v2603
        %3116 = vst [vmem:[%s427 + $0x320] sm:$0xff] %v2604
        %3117 = vst [vmem:[%s427 + $0x328] sm:$0xff] %v2605
        %3118 = vst [vmem:[%s427 + $0x330] sm:$0xff] %v2606
        %3119 = vst [vmem:[%s427 + $0x338] sm:$0xff] %v2607
        %3120 = vst [vmem:[%s427 + $0x340] sm:$0xff] %v2608
        %3121 = vst [vmem:[%s427 + $0x348] sm:$0xff] %v2609
        %3122 = vst [vmem:[%s427 + $0x350] sm:$0xff] %v2610
        %3123 = vst [vmem:[%s427 + $0x358] sm:$0xff] %v2611
        %3124 = vst [vmem:[%s427 + $0x360] sm:$0xff] %v2612
        %3125 = vst [vmem:[%s427 + $0x368] sm:$0xff] %v2613
        %3126 = vst [vmem:[%s427 + $0x370] sm:$0xff] %v2614
        %3127 = vst [vmem:[%s427 + $0x378] sm:$0xff] %v2615
        %3128 = vst [vmem:[%s427 + $0x380] sm:$0xff] %v2616
        %3129 = vst [vmem:[%s427 + $0x388] sm:$0xff] %v2617
        %3130 = vst [vmem:[%s427 + $0x390] sm:$0xff] %v2618
        %3131 = vst [vmem:[%s427 + $0x398] sm:$0xff] %v2619
        %3132 = vst [vmem:[%s427 + $0x3a0] sm:$0xff] %v2620
        %3133 = vst [vmem:[%s427 + $0x3a8] sm:$0xff] %v2621
        %3134 = vst [vmem:[%s427 + $0x3b0] sm:$0xff] %v2622
        %3135 = vst [vmem:[%s427 + $0x3b8] sm:$0xff] %v2623
        %3136 = vst [vmem:[%s427 + $0x3c0] sm:$0xff] %v2624
        %3137 = vst [vmem:[%s427 + $0x3c8] sm:$0xff] %v2625
        %3138 = vst [vmem:[%s427 + $0x3d0] sm:$0xff] %v2626
        %3139 = vst [vmem:[%s427 + $0x3d8] sm:$0xff] %v2627
        %3140 = vst [vmem:[%s427 + $0x3e0] sm:$0xff] %v2628
        %3141 = vst [vmem:[%s427 + $0x3e8] sm:$0xff] %v2629
        %3142 = vst [vmem:[%s427 + $0x3f0] sm:$0xff] %v2630
        %3143 = vst [vmem:[%s427 + $0x3f8] sm:$0xff] %v2631
        %3144 = vst [vmem:[%s427 + $0x400] sm:$0xff] %v2632
        %3145 = vst [vmem:[%s427 + $0x408] sm:$0xff] %v2633
        %3146 = vst [vmem:[%s427 + $0x410] sm:$0xff] %v2634
        %3147 = vst [vmem:[%s427 + $0x418] sm:$0xff] %v2635
        %3148 = vst [vmem:[%s427 + $0x420] sm:$0xff] %v2636
        %3149 = vst [vmem:[%s427 + $0x428] sm:$0xff] %v2637
        %3150 = vst [vmem:[%s427 + $0x430] sm:$0xff] %v2638
        %3151 = vst [vmem:[%s427 + $0x438] sm:$0xff] %v2639
        %3152 = vst [vmem:[%s427 + $0x440] sm:$0xff] %v2640
        %3153 = vst [vmem:[%s427 + $0x448] sm:$0xff] %v2641
        %3154 = vst [vmem:[%s427 + $0x450] sm:$0xff] %v2642
        %3155 = vst [vmem:[%s427 + $0x458] sm:$0xff] %v2643
        %3156 = vst [vmem:[%s427 + $0x460] sm:$0xff] %v2644
        %3157 = vst [vmem:[%s427 + $0x468] sm:$0xff] %v2645
        %3158 = vst [vmem:[%s427 + $0x470] sm:$0xff] %v2646
        %3159 = vst [vmem:[%s427 + $0x478] sm:$0xff] %v2647
        %3160 = vst [vmem:[%s427 + $0x480] sm:$0xff] %v2648
        %3161 = vst [vmem:[%s427 + $0x488] sm:$0xff] %v2649
        %3162 = vst [vmem:[%s427 + $0x490] sm:$0xff] %v2650
        %3163 = vst [vmem:[%s427 + $0x498] sm:$0xff] %v2651
        %3164 = vst [vmem:[%s427 + $0x4a0] sm:$0xff] %v2652
        %3165 = vst [vmem:[%s427 + $0x4a8] sm:$0xff] %v2653
        %3166 = vst [vmem:[%s427 + $0x4b0] sm:$0xff] %v2654
        %3167 = vst [vmem:[%s427 + $0x4b8] sm:$0xff] %v2655
        %3168 = vst [vmem:[%s427 + $0x4c0] sm:$0xff] %v2656
        %3169 = vst [vmem:[%s427 + $0x4c8] sm:$0xff] %v2657
        %3170 = vst [vmem:[%s427 + $0x4d0] sm:$0xff] %v2658
        %3171 = vst [vmem:[%s427 + $0x4d8] sm:$0xff] %v2659
        %3172 = vst [vmem:[%s427 + $0x4e0] sm:$0xff] %v2660
        %3173 = vst [vmem:[%s427 + $0x4e8] sm:$0xff] %v2661
        %3174 = vst [vmem:[%s427 + $0x4f0] sm:$0xff] %v2662
        %3175 = vst [vmem:[%s427 + $0x4f8] sm:$0xff] %v2663
        %3176 = vst [vmem:[%s427 + $0x500] sm:$0xff] %v2664
        %3177 = vst [vmem:[%s427 + $0x508] sm:$0xff] %v2665
        %3178 = vst [vmem:[%s427 + $0x510] sm:$0xff] %v2666
        %3179 = vst [vmem:[%s427 + $0x518] sm:$0xff] %v2667
        %3180 = vst [vmem:[%s427 + $0x520] sm:$0xff] %v2668
        %3181 = vst [vmem:[%s427 + $0x528] sm:$0xff] %v2669
        %3182 = vst [vmem:[%s427 + $0x530] sm:$0xff] %v2670
        %3183 = vst [vmem:[%s427 + $0x538] sm:$0xff] %v2671
        %3184 = vst [vmem:[%s427 + $0x540] sm:$0xff] %v2672
        %3185 = vst [vmem:[%s427 + $0x548] sm:$0xff] %v2673
        %3186 = vst [vmem:[%s427 + $0x550] sm:$0xff] %v2674
        %3187 = vst [vmem:[%s427 + $0x558] sm:$0xff] %v2675
        %3188 = vst [vmem:[%s427 + $0x560] sm:$0xff] %v2676
        %3189 = vst [vmem:[%s427 + $0x568] sm:$0xff] %v2677
        %3190 = vst [vmem:[%s427 + $0x570] sm:$0xff] %v2678
        %3191 = vst [vmem:[%s427 + $0x578] sm:$0xff] %v2679
        %3192 = vst [vmem:[%s427 + $0x580] sm:$0xff] %v2680
        %3193 = vst [vmem:[%s427 + $0x588] sm:$0xff] %v2681
        %3194 = vst [vmem:[%s427 + $0x590] sm:$0xff] %v2682
        %3195 = vst [vmem:[%s427 + $0x598] sm:$0xff] %v2683
        %3196 = vst [vmem:[%s427 + $0x5a0] sm:$0xff] %v2684
        %3197 = vst [vmem:[%s427 + $0x5a8] sm:$0xff] %v2685
        %3198 = vst [vmem:[%s427 + $0x5b0] sm:$0xff] %v2686
        %3199 = vst [vmem:[%s427 + $0x5b8] sm:$0xff] %v2687
        %3200 = vst [vmem:[%s427 + $0x5c0] sm:$0xff] %v2688
        %3201 = vst [vmem:[%s427 + $0x5c8] sm:$0xff] %v2689
        %3202 = vst [vmem:[%s427 + $0x5d0] sm:$0xff] %v2690
        %3203 = vst [vmem:[%s427 + $0x5d8] sm:$0xff] %v2691
        %3204 = vst [vmem:[%s427 + $0x5e0] sm:$0xff] %v2692
        %3205 = vst [vmem:[%s427 + $0x5e8] sm:$0xff] %v2693
        %3206 = vst [vmem:[%s427 + $0x5f0] sm:$0xff] %v2694
        %3207 = vst [vmem:[%s427 + $0x5f8] sm:$0xff] %v2695
        %3208 = vst [vmem:[%s427 + $0x600] sm:$0xff] %v2696
        %3209 = vst [vmem:[%s427 + $0x608] sm:$0xff] %v2697
        %3210 = vst [vmem:[%s427 + $0x610] sm:$0xff] %v2698
        %3211 = vst [vmem:[%s427 + $0x618] sm:$0xff] %v2699
        %3212 = vst [vmem:[%s427 + $0x620] sm:$0xff] %v2700
        %3213 = vst [vmem:[%s427 + $0x628] sm:$0xff] %v2701
        %3214 = vst [vmem:[%s427 + $0x630] sm:$0xff] %v2702
        %3215 = vst [vmem:[%s427 + $0x638] sm:$0xff] %v2703
        %3216 = vst [vmem:[%s427 + $0x640] sm:$0xff] %v2704
        %3217 = vst [vmem:[%s427 + $0x648] sm:$0xff] %v2705
        %3218 = vst [vmem:[%s427 + $0x650] sm:$0xff] %v2706
        %3219 = vst [vmem:[%s427 + $0x658] sm:$0xff] %v2707
        %3220 = vst [vmem:[%s427 + $0x660] sm:$0xff] %v2708
        %3221 = vst [vmem:[%s427 + $0x668] sm:$0xff] %v2709
        %3222 = vst [vmem:[%s427 + $0x670] sm:$0xff] %v2710
        %3223 = vst [vmem:[%s427 + $0x678] sm:$0xff] %v2711
        %3224 = vst [vmem:[%s427 + $0x680] sm:$0xff] %v2712
        %3225 = vst [vmem:[%s427 + $0x688] sm:$0xff] %v2713
        %3226 = vst [vmem:[%s427 + $0x690] sm:$0xff] %v2714
        %3227 = vst [vmem:[%s427 + $0x698] sm:$0xff] %v2715
        %3228 = vst [vmem:[%s427 + $0x6a0] sm:$0xff] %v2716
        %3229 = vst [vmem:[%s427 + $0x6a8] sm:$0xff] %v2717
        %3230 = vst [vmem:[%s427 + $0x6b0] sm:$0xff] %v2718
        %3231 = vst [vmem:[%s427 + $0x6b8] sm:$0xff] %v2719
        %3232 = vst [vmem:[%s427 + $0x6c0] sm:$0xff] %v2720
        %3233 = vst [vmem:[%s427 + $0x6c8] sm:$0xff] %v2721
        %3234 = vst [vmem:[%s427 + $0x6d0] sm:$0xff] %v2722
        %3235 = vst [vmem:[%s427 + $0x6d8] sm:$0xff] %v2723
        %3236 = vst [vmem:[%s427 + $0x6e0] sm:$0xff] %v2724
        %3237 = vst [vmem:[%s427 + $0x6e8] sm:$0xff] %v2725
        %3238 = vst [vmem:[%s427 + $0x6f0] sm:$0xff] %v2726
        %3239 = vst [vmem:[%s427 + $0x6f8] sm:$0xff] %v2727
        %3240 = vst [vmem:[%s427 + $0x700] sm:$0xff] %v2728
        %3241 = vst [vmem:[%s427 + $0x708] sm:$0xff] %v2729
        %3242 = vst [vmem:[%s427 + $0x710] sm:$0xff] %v2730
        %3243 = vst [vmem:[%s427 + $0x718] sm:$0xff] %v2731
        %3244 = vst [vmem:[%s427 + $0x720] sm:$0xff] %v2732
        %3245 = vst [vmem:[%s427 + $0x728] sm:$0xff] %v2733
        %3246 = vst [vmem:[%s427 + $0x730] sm:$0xff] %v2734
        %3247 = vst [vmem:[%s427 + $0x738] sm:$0xff] %v2735
        %3248 = vst [vmem:[%s427 + $0x740] sm:$0xff] %v2736
        %3249 = vst [vmem:[%s427 + $0x748] sm:$0xff] %v2737
        %3250 = vst [vmem:[%s427 + $0x750] sm:$0xff] %v2738
        %3251 = vst [vmem:[%s427 + $0x758] sm:$0xff] %v2739
        %3252 = vst [vmem:[%s427 + $0x760] sm:$0xff] %v2740
        %3253 = vst [vmem:[%s427 + $0x768] sm:$0xff] %v2741
        %3254 = vst [vmem:[%s427 + $0x770] sm:$0xff] %v2742
        %3255 = vst [vmem:[%s427 + $0x778] sm:$0xff] %v2743
        %3256 = vst [vmem:[%s427 + $0x780] sm:$0xff] %v2744
        %3257 = vst [vmem:[%s427 + $0x788] sm:$0xff] %v2745
        %3258 = vst [vmem:[%s427 + $0x790] sm:$0xff] %v2746
        %3259 = vst [vmem:[%s427 + $0x798] sm:$0xff] %v2747
        %3260 = vst [vmem:[%s427 + $0x7a0] sm:$0xff] %v2748
        %3261 = vst [vmem:[%s427 + $0x7a8] sm:$0xff] %v2749
        %3262 = vst [vmem:[%s427 + $0x7b0] sm:$0xff] %v2750
        %3263 = vst [vmem:[%s427 + $0x7b8] sm:$0xff] %v2751
        %3264 = vst [vmem:[%s427 + $0x7c0] sm:$0xff] %v2752
        %3265 = vst [vmem:[%s427 + $0x7c8] sm:$0xff] %v2753
        %3266 = vst [vmem:[%s427 + $0x7d0] sm:$0xff] %v2754
        %3267 = vst [vmem:[%s427 + $0x7d8] sm:$0xff] %v2755
        %3268 = vst [vmem:[%s427 + $0x7e0] sm:$0xff] %v2756
        %3269 = vst [vmem:[%s427 + $0x7e8] sm:$0xff] %v2757
        %3270 = vst [vmem:[%s427 + $0x7f0] sm:$0xff] %v2758
        %3271 = vst [vmem:[%s427 + $0x7f8] sm:$0xff] %v2759
        %3272 = vst [vmem:[%s427 + $0x800] sm:$0xff] %v2760
        %3273 = vst [vmem:[%s427 + $0x808] sm:$0xff] %v2761
        %3274 = vst [vmem:[%s427 + $0x810] sm:$0xff] %v2762
        %3275 = vst [vmem:[%s427 + $0x818] sm:$0xff] %v2763
        %3276 = vst [vmem:[%s427 + $0x820] sm:$0xff] %v2764
        %3277 = vst [vmem:[%s427 + $0x828] sm:$0xff] %v2765
        %3278 = vst [vmem:[%s427 + $0x830] sm:$0xff] %v2766
        %3279 = vst [vmem:[%s427 + $0x838] sm:$0xff] %v2767
        %3280 = vst [vmem:[%s427 + $0x840] sm:$0xff] %v2768
        %3281 = vst [vmem:[%s427 + $0x848] sm:$0xff] %v2769
        %3282 = vst [vmem:[%s427 + $0x850] sm:$0xff] %v2770
        %3283 = vst [vmem:[%s427 + $0x858] sm:$0xff] %v2771
        %3284 = vst [vmem:[%s427 + $0x860] sm:$0xff] %v2772
        %3285 = vst [vmem:[%s427 + $0x868] sm:$0xff] %v2773
        %3286 = vst [vmem:[%s427 + $0x870] sm:$0xff] %v2774
        %3287 = vst [vmem:[%s427 + $0x878] sm:$0xff] %v2775
        %3288 = vst [vmem:[%s427 + $0x880] sm:$0xff] %v2776
        %3289 = vst [vmem:[%s427 + $0x888] sm:$0xff] %v2777
        %3290 = vst [vmem:[%s427 + $0x890] sm:$0xff] %v2778
        %3291 = vst [vmem:[%s427 + $0x898] sm:$0xff] %v2779
        %3292 = vst [vmem:[%s427 + $0x8a0] sm:$0xff] %v2780
        %3293 = vst [vmem:[%s427 + $0x8a8] sm:$0xff] %v2781
        %3294 = vst [vmem:[%s427 + $0x8b0] sm:$0xff] %v2782
        %3295 = vst [vmem:[%s427 + $0x8b8] sm:$0xff] %v2783
        %3296 = vst [vmem:[%s427 + $0x8c0] sm:$0xff] %v2784
        %3297 = vst [vmem:[%s427 + $0x8c8] sm:$0xff] %v2785
        %3298 = vst [vmem:[%s427 + $0x8d0] sm:$0xff] %v2786
        %3299 = vst [vmem:[%s427 + $0x8d8] sm:$0xff] %v2787
        %3300 = vst [vmem:[%s427 + $0x8e0] sm:$0xff] %v2788
        %3301 = vst [vmem:[%s427 + $0x8e8] sm:$0xff] %v2789
        %3302 = vst [vmem:[%s427 + $0x8f0] sm:$0xff] %v2790
        %3303 = vst [vmem:[%s427 + $0x8f8] sm:$0xff] %v2791
        %3304 = vst [vmem:[%s427 + $0x900] sm:$0xff] %v2792
        %3305 = vst [vmem:[%s427 + $0x908] sm:$0xff] %v2793
        %3306 = vst [vmem:[%s427 + $0x910] sm:$0xff] %v2794
        %3307 = vst [vmem:[%s427 + $0x918] sm:$0xff] %v2795
        %3308 = vst [vmem:[%s427 + $0x920] sm:$0xff] %v2796
        %3309 = vst [vmem:[%s427 + $0x928] sm:$0xff] %v2797
        %3310 = vst [vmem:[%s427 + $0x930] sm:$0xff] %v2798
        %3311 = vst [vmem:[%s427 + $0x938] sm:$0xff] %v2799
        %3312 = vst [vmem:[%s427 + $0x940] sm:$0xff] %v2800
        %3313 = vst [vmem:[%s427 + $0x948] sm:$0xff] %v2801
        %3314 = vst [vmem:[%s427 + $0x950] sm:$0xff] %v2802
        %3315 = vst [vmem:[%s427 + $0x958] sm:$0xff] %v2803
        %3316 = vst [vmem:[%s427 + $0x960] sm:$0xff] %v2804
        %3317 = vst [vmem:[%s427 + $0x968] sm:$0xff] %v2805
        %3318 = vst [vmem:[%s427 + $0x970] sm:$0xff] %v2806
        %3319 = vst [vmem:[%s427 + $0x978] sm:$0xff] %v2807
        %3320 = vst [vmem:[%s427 + $0x980] sm:$0xff] %v2808
        %3321 = vst [vmem:[%s427 + $0x988] sm:$0xff] %v2809
        %3322 = vst [vmem:[%s427 + $0x990] sm:$0xff] %v2810
        %3323 = vst [vmem:[%s427 + $0x998] sm:$0xff] %v2811
        %3324 = vst [vmem:[%s427 + $0x9a0] sm:$0xff] %v2812
        %3325 = vst [vmem:[%s427 + $0x9a8] sm:$0xff] %v2813
        %3326 = vst [vmem:[%s427 + $0x9b0] sm:$0xff] %v2814
        %3327 = vst [vmem:[%s427 + $0x9b8] sm:$0xff] %v2815
        %3328 = vst [vmem:[%s427 + $0x9c0] sm:$0xff] %v2816
        %3329 = vst [vmem:[%s427 + $0x9c8] sm:$0xff] %v2817
        %3330 = vst [vmem:[%s427 + $0x9d0] sm:$0xff] %v2818
        %3331 = vst [vmem:[%s427 + $0x9d8] sm:$0xff] %v2819
        %3332 = vst [vmem:[%s427 + $0x9e0] sm:$0xff] %v2820
        %3333 = vst [vmem:[%s427 + $0x9e8] sm:$0xff] %v2821
        %3334 = vst [vmem:[%s427 + $0x9f0] sm:$0xff] %v2822
        %3335 = vst [vmem:[%s427 + $0x9f8] sm:$0xff] %v2823
        %3336 = vst [vmem:[%s427 + $0xa00] sm:$0xff] %v2824
        %3337 = vst [vmem:[%s427 + $0xa08] sm:$0xff] %v2825
        %3338 = vst [vmem:[%s427 + $0xa10] sm:$0xff] %v2826
        %3339 = vst [vmem:[%s427 + $0xa18] sm:$0xff] %v2827
        %3340 = vst [vmem:[%s427 + $0xa20] sm:$0xff] %v2828
        %3341 = vst [vmem:[%s427 + $0xa28] sm:$0xff] %v2829
        %3342 = vst [vmem:[%s427 + $0xa30] sm:$0xff] %v2830
        %3343 = vst [vmem:[%s427 + $0xa38] sm:$0xff] %v2831
        %3344 = vst [vmem:[%s427 + $0xa40] sm:$0xff] %v2832
        %3345 = vst [vmem:[%s427 + $0xa48] sm:$0xff] %v2833
        %3346 = vst [vmem:[%s427 + $0xa50] sm:$0xff] %v2834
        %3347 = vst [vmem:[%s427 + $0xa58] sm:$0xff] %v2835
        %3348 = vst [vmem:[%s427 + $0xa60] sm:$0xff] %v2836
        %3349 = vst [vmem:[%s427 + $0xa68] sm:$0xff] %v2837
        %3350 = vst [vmem:[%s427 + $0xa70] sm:$0xff] %v2838
        %3351 = vst [vmem:[%s427 + $0xa78] sm:$0xff] %v2839
        %3352 = vst [vmem:[%s427 + $0xa80] sm:$0xff] %v2840
        %3353 = vst [vmem:[%s427 + $0xa88] sm:$0xff] %v2841
        %3354 = vst [vmem:[%s427 + $0xa90] sm:$0xff] %v2842
        %3355 = vst [vmem:[%s427 + $0xa98] sm:$0xff] %v2843
        %3356 = vst [vmem:[%s427 + $0xaa0] sm:$0xff] %v2844
        %3357 = vst [vmem:[%s427 + $0xaa8] sm:$0xff] %v2845
        %3358 = vst [vmem:[%s427 + $0xab0] sm:$0xff] %v2846
        %3359 = vst [vmem:[%s427 + $0xab8] sm:$0xff] %v2847
        %3360 = vst [vmem:[%s427 + $0xac0] sm:$0xff] %v2848
        %3361 = vst [vmem:[%s427 + $0xac8] sm:$0xff] %v2849
        %3362 = vst [vmem:[%s427 + $0xad0] sm:$0xff] %v2850
        %3363 = vst [vmem:[%s427 + $0xad8] sm:$0xff] %v2851
        %3364 = vst [vmem:[%s427 + $0xae0] sm:$0xff] %v2852
        %3365 = vst [vmem:[%s427 + $0xae8] sm:$0xff] %v2853
        %3366 = vst [vmem:[%s427 + $0xaf0] sm:$0xff] %v2854
        %3367 = vst [vmem:[%s427 + $0xaf8] sm:$0xff] %v2855
        %3368 = vst [vmem:[%s427 + $0xb00] sm:$0xff] %v2856
        %3369 = vst [vmem:[%s427 + $0xb08] sm:$0xff] %v2857
        %3370 = vst [vmem:[%s427 + $0xb10] sm:$0xff] %v2858
        %3371 = vst [vmem:[%s427 + $0xb18] sm:$0xff] %v2859
        %3372 = vst [vmem:[%s427 + $0xb20] sm:$0xff] %v2860
        %3373 = vst [vmem:[%s427 + $0xb28] sm:$0xff] %v2861
        %3374 = vst [vmem:[%s427 + $0xb30] sm:$0xff] %v2862
        %3375 = vst [vmem:[%s427 + $0xb38] sm:$0xff] %v2863
        %3376 = vst [vmem:[%s427 + $0xb40] sm:$0xff] %v2864
        %3377 = vst [vmem:[%s427 + $0xb48] sm:$0xff] %v2865
        %3378 = vst [vmem:[%s427 + $0xb50] sm:$0xff] %v2866
        %3379 = vst [vmem:[%s427 + $0xb58] sm:$0xff] %v2867
        %3380 = vst [vmem:[%s427 + $0xb60] sm:$0xff] %v2868
        %3381 = vst [vmem:[%s427 + $0xb68] sm:$0xff] %v2869
        %3382 = vst [vmem:[%s427 + $0xb70] sm:$0xff] %v2870
        %3383 = vst [vmem:[%s427 + $0xb78] sm:$0xff] %v2871
        %3384 = vst [vmem:[%s427 + $0xb80] sm:$0xff] %v2872
        %3385 = vst [vmem:[%s427 + $0xb88] sm:$0xff] %v2873
        %3386 = vst [vmem:[%s427 + $0xb90] sm:$0xff] %v2874
        %3387 = vst [vmem:[%s427 + $0xb98] sm:$0xff] %v2875
        %3388 = vst [vmem:[%s427 + $0xba0] sm:$0xff] %v2876
        %3389 = vst [vmem:[%s427 + $0xba8] sm:$0xff] %v2877
        %3390 = vst [vmem:[%s427 + $0xbb0] sm:$0xff] %v2878
        %3391 = vst [vmem:[%s427 + $0xbb8] sm:$0xff] %v2879
        %3392 = vst [vmem:[%s427 + $0xbc0] sm:$0xff] %v2880
        %3393 = vst [vmem:[%s427 + $0xbc8] sm:$0xff] %v2881
        %3394 = vst [vmem:[%s427 + $0xbd0] sm:$0xff] %v2882
        %3395 = vst [vmem:[%s427 + $0xbd8] sm:$0xff] %v2883
        %3396 = vst [vmem:[%s427 + $0xbe0] sm:$0xff] %v2884
        %3397 = vst [vmem:[%s427 + $0xbe8] sm:$0xff] %v2885
        %3398 = vst [vmem:[%s427 + $0xbf0] sm:$0xff] %v2886
        %3399 = vst [vmem:[%s427 + $0xbf8] sm:$0xff] %v2887
        %3400 = vst [vmem:[%s427 + $0xc00] sm:$0xff] %v2888
        %3401 = vst [vmem:[%s427 + $0xc08] sm:$0xff] %v2889
        %3402 = vst [vmem:[%s427 + $0xc10] sm:$0xff] %v2890
        %3403 = vst [vmem:[%s427 + $0xc18] sm:$0xff] %v2891
        %3404 = vst [vmem:[%s427 + $0xc20] sm:$0xff] %v2892
        %3405 = vst [vmem:[%s427 + $0xc28] sm:$0xff] %v2893
        %3406 = vst [vmem:[%s427 + $0xc30] sm:$0xff] %v2894
        %3407 = vst [vmem:[%s427 + $0xc38] sm:$0xff] %v2895
        %3408 = vst [vmem:[%s427 + $0xc40] sm:$0xff] %v2896
        %3409 = vst [vmem:[%s427 + $0xc48] sm:$0xff] %v2897
        %3410 = vst [vmem:[%s427 + $0xc50] sm:$0xff] %v2898
        %3411 = vst [vmem:[%s427 + $0xc58] sm:$0xff] %v2899
        %3412 = vst [vmem:[%s427 + $0xc60] sm:$0xff] %v2900
        %3413 = vst [vmem:[%s427 + $0xc68] sm:$0xff] %v2901
        %3414 = vst [vmem:[%s427 + $0xc70] sm:$0xff] %v2902
        %3415 = vst [vmem:[%s427 + $0xc78] sm:$0xff] %v2903
        %3416 = vst [vmem:[%s427 + $0xc80] sm:$0xff] %v2904
        %3417 = vst [vmem:[%s427 + $0xc88] sm:$0xff] %v2905
        %3418 = vst [vmem:[%s427 + $0xc90] sm:$0xff] %v2906
        %3419 = vst [vmem:[%s427 + $0xc98] sm:$0xff] %v2907
        %3420 = vst [vmem:[%s427 + $0xca0] sm:$0xff] %v2908
        %3421 = vst [vmem:[%s427 + $0xca8] sm:$0xff] %v2909
        %3422 = vst [vmem:[%s427 + $0xcb0] sm:$0xff] %v2910
        %3423 = vst [vmem:[%s427 + $0xcb8] sm:$0xff] %v2911
        %3424 = vst [vmem:[%s427 + $0xcc0] sm:$0xff] %v2912
        %3425 = vst [vmem:[%s427 + $0xcc8] sm:$0xff] %v2913
        %3426 = vst [vmem:[%s427 + $0xcd0] sm:$0xff] %v2914
        %3427 = vst [vmem:[%s427 + $0xcd8] sm:$0xff] %v2915
        %3428 = vst [vmem:[%s427 + $0xce0] sm:$0xff] %v2916
        %3429 = vst [vmem:[%s427 + $0xce8] sm:$0xff] %v2917
        %3430 = vst [vmem:[%s427 + $0xcf0] sm:$0xff] %v2918
        %3431 = vst [vmem:[%s427 + $0xcf8] sm:$0xff] %v2919
        %3432 = vst [vmem:[%s427 + $0xd00] sm:$0xff] %v2920
        %3433 = vst [vmem:[%s427 + $0xd08] sm:$0xff] %v2921
        %3434 = vst [vmem:[%s427 + $0xd10] sm:$0xff] %v2922
        %3435 = vst [vmem:[%s427 + $0xd18] sm:$0xff] %v2923
        %3436 = vst [vmem:[%s427 + $0xd20] sm:$0xff] %v2924
        %3437 = vst [vmem:[%s427 + $0xd28] sm:$0xff] %v2925
        %3438 = vst [vmem:[%s427 + $0xd30] sm:$0xff] %v2926
        %3439 = vst [vmem:[%s427 + $0xd38] sm:$0xff] %v2927
        %3440 = vst [vmem:[%s427 + $0xd40] sm:$0xff] %v2928
        %3441 = vst [vmem:[%s427 + $0xd48] sm:$0xff] %v2929
        %3442 = vst [vmem:[%s427 + $0xd50] sm:$0xff] %v2930
        %3443 = vst [vmem:[%s427 + $0xd58] sm:$0xff] %v2931
        %3444 = vst [vmem:[%s427 + $0xd60] sm:$0xff] %v2932
        %3445 = vst [vmem:[%s427 + $0xd68] sm:$0xff] %v2933
        %3446 = vst [vmem:[%s427 + $0xd70] sm:$0xff] %v2934
        %3447 = vst [vmem:[%s427 + $0xd78] sm:$0xff] %v2935
        %3448 = vst [vmem:[%s427 + $0xd80] sm:$0xff] %v2936
        %3449 = vst [vmem:[%s427 + $0xd88] sm:$0xff] %v2937
        %3450 = vst [vmem:[%s427 + $0xd90] sm:$0xff] %v2938
        %3451 = vst [vmem:[%s427 + $0xd98] sm:$0xff] %v2939
        %3452 = vst [vmem:[%s427 + $0xda0] sm:$0xff] %v2940
        %3453 = vst [vmem:[%s427 + $0xda8] sm:$0xff] %v2941
        %3454 = vst [vmem:[%s427 + $0xdb0] sm:$0xff] %v2942
        %3455 = vst [vmem:[%s427 + $0xdb8] sm:$0xff] %v2943
        %3456 = vst [vmem:[%s427 + $0xdc0] sm:$0xff] %v2944
        %3457 = vst [vmem:[%s427 + $0xdc8] sm:$0xff] %v2945
        %3458 = vst [vmem:[%s427 + $0xdd0] sm:$0xff] %v2946
        %3459 = vst [vmem:[%s427 + $0xdd8] sm:$0xff] %v2947
        %3460 = vst [vmem:[%s427 + $0xde0] sm:$0xff] %v2948
        %3461 = vst [vmem:[%s427 + $0xde8] sm:$0xff] %v2949
        %3462 = vst [vmem:[%s427 + $0xdf0] sm:$0xff] %v2950
        %3463 = vst [vmem:[%s427 + $0xdf8] sm:$0xff] %v2951
        %3464 = vst [vmem:[%s427 + $0xe00] sm:$0xff] %v2952
        %3465 = vst [vmem:[%s427 + $0xe08] sm:$0xff] %v2953
        %3466 = vst [vmem:[%s427 + $0xe10] sm:$0xff] %v2954
        %3467 = vst [vmem:[%s427 + $0xe18] sm:$0xff] %v2955
        %3468 = vst [vmem:[%s427 + $0xe20] sm:$0xff] %v2956
        %3469 = vst [vmem:[%s427 + $0xe28] sm:$0xff] %v2957
        %3470 = vst [vmem:[%s427 + $0xe30] sm:$0xff] %v2958
        %3471 = vst [vmem:[%s427 + $0xe38] sm:$0xff] %v2959
        %3472 = vst [vmem:[%s427 + $0xe40] sm:$0xff] %v2960
        %3473 = vst [vmem:[%s427 + $0xe48] sm:$0xff] %v2961
        %3474 = vst [vmem:[%s427 + $0xe50] sm:$0xff] %v2962
        %3475 = vst [vmem:[%s427 + $0xe58] sm:$0xff] %v2963
        %3476 = vst [vmem:[%s427 + $0xe60] sm:$0xff] %v2964
        %3477 = vst [vmem:[%s427 + $0xe68] sm:$0xff] %v2965
        %3478 = vst [vmem:[%s427 + $0xe70] sm:$0xff] %v2966
        %3479 = vst [vmem:[%s427 + $0xe78] sm:$0xff] %v2967
        %3480 = vst [vmem:[%s427 + $0xe80] sm:$0xff] %v2968
        %3481 = vst [vmem:[%s427 + $0xe88] sm:$0xff] %v2969
        %3482 = vst [vmem:[%s427 + $0xe90] sm:$0xff] %v2970
        %3483 = vst [vmem:[%s427 + $0xe98] sm:$0xff] %v2971
        %3484 = vst [vmem:[%s427 + $0xea0] sm:$0xff] %v2972
        %3485 = vst [vmem:[%s427 + $0xea8] sm:$0xff] %v2973
        %3486 = vst [vmem:[%s427 + $0xeb0] sm:$0xff] %v2974
        %3487 = vst [vmem:[%s427 + $0xeb8] sm:$0xff] %v2975
        %3488 = vst [vmem:[%s427 + $0xec0] sm:$0xff] %v2976
        %3489 = vst [vmem:[%s427 + $0xec8] sm:$0xff] %v2977
        %3490 = vst [vmem:[%s427 + $0xed0] sm:$0xff] %v2978
        %3491 = vst [vmem:[%s427 + $0xed8] sm:$0xff] %v2979
        %3492 = vst [vmem:[%s427 + $0xee0] sm:$0xff] %v2980
        %3493 = vst [vmem:[%s427 + $0xee8] sm:$0xff] %v2981
        %3494 = vst [vmem:[%s427 + $0xef0] sm:$0xff] %v2982
        %3495 = vst [vmem:[%s427 + $0xef8] sm:$0xff] %v2983
        %3496 = vst [vmem:[%s427 + $0xf00] sm:$0xff] %v2984
        %3497 = vst [vmem:[%s427 + $0xf08] sm:$0xff] %v2985
        %3498 = vst [vmem:[%s427 + $0xf10] sm:$0xff] %v2986
        %3499 = vst [vmem:[%s427 + $0xf18] sm:$0xff] %v2987
        %3500 = vst [vmem:[%s427 + $0xf20] sm:$0xff] %v2988
        %3501 = vst [vmem:[%s427 + $0xf28] sm:$0xff] %v2989
        %3502 = vst [vmem:[%s427 + $0xf30] sm:$0xff] %v2990
        %3503 = vst [vmem:[%s427 + $0xf38] sm:$0xff] %v2991
        %3504 = vst [vmem:[%s427 + $0xf40] sm:$0xff] %v2992
        %3505 = vst [vmem:[%s427 + $0xf48] sm:$0xff] %v2993
        %3506 = vst [vmem:[%s427 + $0xf50] sm:$0xff] %v2994
        %3507 = vst [vmem:[%s427 + $0xf58] sm:$0xff] %v2995
        %3508 = vst [vmem:[%s427 + $0xf60] sm:$0xff] %v2996
        %3509 = vst [vmem:[%s427 + $0xf68] sm:$0xff] %v2997
        %3510 = vst [vmem:[%s427 + $0xf70] sm:$0xff] %v2998
        %3511 = vst [vmem:[%s427 + $0xf78] sm:$0xff] %v2999
        %3512 = vst [vmem:[%s427 + $0xf80] sm:$0xff] %v3000
        %3513 = vst [vmem:[%s427 + $0xf88] sm:$0xff] %v3001
        %3514 = vst [vmem:[%s427 + $0xf90] sm:$0xff] %v3002
        %3515 = vst [vmem:[%s427 + $0xf98] sm:$0xff] %v3003
        %3516 = vst [vmem:[%s427 + $0xfa0] sm:$0xff] %v3004
        %3517 = vst [vmem:[%s427 + $0xfa8] sm:$0xff] %v3005
        %3518 = vst [vmem:[%s427 + $0xfb0] sm:$0xff] %v3006
        %3519 = vst [vmem:[%s427 + $0xfb8] sm:$0xff] %v3007
        %3520 = vst [vmem:[%s427 + $0xfc0] sm:$0xff] %v3008
        %3521 = vst [vmem:[%s427 + $0xfc8] sm:$0xff] %v3009
        %3522 = vst [vmem:[%s427 + $0xfd0] sm:$0xff] %v3010
        %3523 = vst [vmem:[%s427 + $0xfd8] sm:$0xff] %v3011
        %3524 = vst [vmem:[%s427 + $0xfe0] sm:$0xff] %v3012
        %3525 = vst [vmem:[%s427 + $0xfe8] sm:$0xff] %v3013
        %3526 = vst [vmem:[%s427 + $0xff0] sm:$0xff] %v3014
        %3527 = vst [vmem:[%s427 + $0xff8] sm:$0xff] %v3015
        %v3528 = vld [vmem:[#allocation2] sm:$0xff]
        %v3529 = vld [vmem:[%s434] sm:$0xff]
        %v3530 = vld [vmem:[%s434 + $0x8] sm:$0xff]
        %v3531 = vld [vmem:[%s434 + $0x10] sm:$0xff]
        %v3532 = vld [vmem:[%s434 + $0x18] sm:$0xff]
        %v3533 = vld [vmem:[%s434 + $0x20] sm:$0xff]
        %v3534 = vld [vmem:[%s434 + $0x28] sm:$0xff]
        %v3535 = vld [vmem:[%s434 + $0x30] sm:$0xff]
        %v3536 = vld [vmem:[%s434 + $0x38] sm:$0xff]
        %v3537 = vld [vmem:[%s434 + $0x40] sm:$0xff]
        %v3538 = vld [vmem:[%s434 + $0x48] sm:$0xff]
        %v3539 = vld [vmem:[%s434 + $0x50] sm:$0xff]
        %v3540 = vld [vmem:[%s434 + $0x58] sm:$0xff]
        %v3541 = vld [vmem:[%s434 + $0x60] sm:$0xff]
        %v3542 = vld [vmem:[%s434 + $0x68] sm:$0xff]
        %v3543 = vld [vmem:[%s434 + $0x70] sm:$0xff]
        %v3544 = vld [vmem:[%s434 + $0x78] sm:$0xff]
        %v3545 = vld [vmem:[%s434 + $0x80] sm:$0xff]
        %v3546 = vld [vmem:[%s434 + $0x88] sm:$0xff]
        %v3547 = vld [vmem:[%s434 + $0x90] sm:$0xff]
        %v3548 = vld [vmem:[%s434 + $0x98] sm:$0xff]
        %v3549 = vld [vmem:[%s434 + $0xa0] sm:$0xff]
        %v3550 = vld [vmem:[%s434 + $0xa8] sm:$0xff]
        %v3551 = vld [vmem:[%s434 + $0xb0] sm:$0xff]
        %v3552 = vld [vmem:[%s434 + $0xb8] sm:$0xff]
        %v3553 = vld [vmem:[%s434 + $0xc0] sm:$0xff]
        %v3554 = vld [vmem:[%s434 + $0xc8] sm:$0xff]
        %v3555 = vld [vmem:[%s434 + $0xd0] sm:$0xff]
        %v3556 = vld [vmem:[%s434 + $0xd8] sm:$0xff]
        %v3557 = vld [vmem:[%s434 + $0xe0] sm:$0xff]
        %v3558 = vld [vmem:[%s434 + $0xe8] sm:$0xff]
        %v3559 = vld [vmem:[%s434 + $0xf0] sm:$0xff]
        %v3560 = vld [vmem:[%s434 + $0xf8] sm:$0xff]
        %3561 = vmatprep.subr.mxu0 0.0
        %3562 = vmatpush1.msra.mxu0 %v456
        %3563 = vmatprep.subr.mxu0 0.0
        %3564 = vmatpush1.msra.mxu0 %v457
        %3565 = vmatprep.subr.mxu0 0.0
        %3566 = vmatpush1.msra.mxu0 %v458
        %3567 = vmatprep.subr.mxu0 0.0
        %3568 = vmatpush1.msra.mxu0 %v459
        %3569 = vmatprep.subr.mxu0 0.0
        %3570 = vmatpush1.msra.mxu0 %v460
        %3571 = vmatprep.subr.mxu0 0.0
        %3572 = vmatpush1.msra.mxu0 %v461
        %3573 = vmatprep.subr.mxu0 0.0
        %3574 = vmatpush1.msra.mxu0 %v462
        %3575 = vmatprep.subr.mxu0 0.0
        %3576 = vmatpush1.msra.mxu0 %v463
        %3577 = vmatprep.subr.mxu0 0.0
        %3578 = vmatpush1.msra.mxu0 %v464
        %3579 = vmatprep.subr.mxu0 0.0
        %3580 = vmatpush1.msra.mxu0 %v465
        %3581 = vmatprep.subr.mxu0 0.0
        %3582 = vmatpush1.msra.mxu0 %v466
        %3583 = vmatprep.subr.mxu0 0.0
        %3584 = vmatpush1.msra.mxu0 %v467
        %3585 = vmatprep.subr.mxu0 0.0
        %3586 = vmatpush1.msra.mxu0 %v468
        %3587 = vmatprep.subr.mxu0 0.0
        %3588 = vmatpush1.msra.mxu0 %v469
        %3589 = vmatprep.subr.mxu0 0.0
        %3590 = vmatpush1.msra.mxu0 %v470
        %3591 = vmatprep.subr.mxu0 0.0
        %3592 = vmatpush1.msra.mxu0 %v471
        %3593 = vmatprep.subr.mxu0 0.0
        %3594 = vmatpush1.msra.mxu0 %v472
        %3595 = vmatprep.subr.mxu0 0.0
        %3596 = vmatpush1.msra.mxu0 %v473
        %3597 = vmatprep.subr.mxu0 0.0
        %3598 = vmatpush1.msra.mxu0 %v474
        %3599 = vmatprep.subr.mxu0 0.0
        %3600 = vmatpush1.msra.mxu0 %v475
        %3601 = vmatprep.subr.mxu0 0.0
        %3602 = vmatpush1.msra.mxu0 %v476
        %3603 = vmatprep.subr.mxu0 0.0
        %3604 = vmatpush1.msra.mxu0 %v477
        %3605 = vmatprep.subr.mxu0 0.0
        %3606 = vmatpush1.msra.mxu0 %v478
        %3607 = vmatprep.subr.mxu0 0.0
        %3608 = vmatpush1.msra.mxu0 %v479
        %3609 = vmatprep.subr.mxu0 0.0
        %3610 = vmatpush1.msra.mxu0 %v480
        %3611 = vmatprep.subr.mxu0 0.0
        %3612 = vmatpush1.msra.mxu0 %v481
        %3613 = vmatprep.subr.mxu0 0.0
        %3614 = vmatpush1.msra.mxu0 %v482
        %3615 = vmatprep.subr.mxu0 0.0
        %3616 = vmatpush1.msra.mxu0 %v483
        %3617 = vmatprep.subr.mxu0 0.0
        %3618 = vmatpush1.msra.mxu0 %v484
        %3619 = vmatprep.subr.mxu0 0.0
        %3620 = vmatpush1.msra.mxu0 %v485
        %3621 = vmatprep.subr.mxu0 0.0
        %3622 = vmatpush1.msra.mxu0 %v486
        %3623 = vmatprep.subr.mxu0 0.0
        %3624 = vmatpush1.msra.mxu0 %v487
        %3625 = vmatprep.mubr.f32.mxu0 %v3530
        %3626 = vmatmul.mubr.f32.gmra.mrb[0].mxu0 %v3529
        %v3627 = vpop.f32.mrb[0].mxu0
        %v3628 = vadd.f32 0.0, %v3627
        %v3629 = vpop.f32.mrb[0].mxu0
        %3630 = vdwg.mxu0
        %3631 = vmatprep.subr.mxu0 0.0
        %3632 = vmatpush1.msra.mxu0 %v488
        %3633 = vmatprep.subr.mxu0 0.0
        %3634 = vmatpush1.msra.mxu0 %v489
        %3635 = vmatprep.subr.mxu0 0.0
        %3636 = vmatpush1.msra.mxu0 %v490
        %3637 = vmatprep.subr.mxu0 0.0
        %3638 = vmatpush1.msra.mxu0 %v491
        %3639 = vmatprep.subr.mxu0 0.0
        %3640 = vmatpush1.msra.mxu0 %v492
        %3641 = vmatprep.subr.mxu0 0.0
        %3642 = vmatpush1.msra.mxu0 %v493
        %3643 = vmatprep.subr.mxu0 0.0
        %3644 = vmatpush1.msra.mxu0 %v494
        %3645 = vmatprep.subr.mxu0 0.0
        %3646 = vmatpush1.msra.mxu0 %v495
        %3647 = vmatprep.subr.mxu0 0.0
        %3648 = vmatpush1.msra.mxu0 %v496
        %3649 = vmatprep.subr.mxu0 0.0
        %3650 = vmatpush1.msra.mxu0 %v497
        %3651 = vmatprep.subr.mxu0 0.0
        %3652 = vmatpush1.msra.mxu0 %v498
        %3653 = vmatprep.subr.mxu0 0.0
        %3654 = vmatpush1.msra.mxu0 %v499
        %3655 = vmatprep.subr.mxu0 0.0
        %3656 = vmatpush1.msra.mxu0 %v500
        %3657 = vmatprep.subr.mxu0 0.0
        %3658 = vmatpush1.msra.mxu0 %v501
        %3659 = vmatprep.subr.mxu0 0.0
        %3660 = vmatpush1.msra.mxu0 %v502
        %3661 = vmatprep.subr.mxu0 0.0
        %3662 = vmatpush1.msra.mxu0 %v503
        %3663 = vmatprep.subr.mxu0 0.0
        %3664 = vmatpush1.msra.mxu0 %v504
        %3665 = vmatprep.subr.mxu0 0.0
        %3666 = vmatpush1.msra.mxu0 %v505
        %3667 = vmatprep.subr.mxu0 0.0
        %3668 = vmatpush1.msra.mxu0 %v506
        %3669 = vmatprep.subr.mxu0 0.0
        %3670 = vmatpush1.msra.mxu0 %v507
        %3671 = vmatprep.subr.mxu0 0.0
        %3672 = vmatpush1.msra.mxu0 %v508
        %3673 = vmatprep.subr.mxu0 0.0
        %3674 = vmatpush1.msra.mxu0 %v509
        %3675 = vmatprep.subr.mxu0 0.0
        %3676 = vmatpush1.msra.mxu0 %v510
        %3677 = vmatprep.subr.mxu0 0.0
        %3678 = vmatpush1.msra.mxu0 %v511
        %3679 = vmatprep.subr.mxu0 0.0
        %3680 = vmatpush1.msra.mxu0 %v512
        %3681 = vmatprep.subr.mxu0 0.0
        %3682 = vmatpush1.msra.mxu0 %v513
        %3683 = vmatprep.subr.mxu0 0.0
        %3684 = vmatpush1.msra.mxu0 %v514
        %3685 = vmatprep.subr.mxu0 0.0
        %3686 = vmatpush1.msra.mxu0 %v515
        %3687 = vmatprep.subr.mxu0 0.0
        %3688 = vmatpush1.msra.mxu0 %v516
        %3689 = vmatprep.subr.mxu0 0.0
        %3690 = vmatpush1.msra.mxu0 %v517
        %3691 = vmatprep.subr.mxu0 0.0
        %3692 = vmatpush1.msra.mxu0 %v518
        %3693 = vmatprep.subr.mxu0 0.0
        %3694 = vmatpush1.msra.mxu0 %v519
        %3695 = vmatprep.mubr.f32.mxu0 %v3532
        %3696 = vmatmul.mubr.f32.gmra.mrb[0].mxu0 %v3531
        %v3697 = vpop.f32.mrb[0].mxu0
        %v3698 = vadd.f32 %v3628, %v3697
        %v3699 = vpop.f32.mrb[0].mxu0
        %3700 = vdwg.mxu0
        %3701 = vmatprep.subr.mxu0 0.0
        %3702 = vmatpush1.msra.mxu0 %v520
        %3703 = vmatprep.subr.mxu0 0.0
        %3704 = vmatpush1.msra.mxu0 %v521
        %3705 = vmatprep.subr.mxu0 0.0
        %3706 = vmatpush1.msra.mxu0 %v522
        %3707 = vmatprep.subr.mxu0 0.0
        %3708 = vmatpush1.msra.mxu0 %v523
        %3709 = vmatprep.subr.mxu0 0.0
        %3710 = vmatpush1.msra.mxu0 %v524
        %3711 = vmatprep.subr.mxu0 0.0
        %3712 = vmatpush1.msra.mxu0 %v525
        %3713 = vmatprep.subr.mxu0 0.0
        %3714 = vmatpush1.msra.mxu0 %v526
        %3715 = vmatprep.subr.mxu0 0.0
        %3716 = vmatpush1.msra.mxu0 %v527
        %3717 = vmatprep.subr.mxu0 0.0
        %3718 = vmatpush1.msra.mxu0 %v528
        %3719 = vmatprep.subr.mxu0 0.0
        %3720 = vmatpush1.msra.mxu0 %v529
        %3721 = vmatprep.subr.mxu0 0.0
        %3722 = vmatpush1.msra.mxu0 %v530
        %3723 = vmatprep.subr.mxu0 0.0
        %3724 = vmatpush1.msra.mxu0 %v531
        %3725 = vmatprep.subr.mxu0 0.0
        %3726 = vmatpush1.msra.mxu0 %v532
        %3727 = vmatprep.subr.mxu0 0.0
        %3728 = vmatpush1.msra.mxu0 %v533
        %3729 = vmatprep.subr.mxu0 0.0
        %3730 = vmatpush1.msra.mxu0 %v534
        %3731 = vmatprep.subr.mxu0 0.0
        %3732 = vmatpush1.msra.mxu0 %v535
        %3733 = vmatprep.subr.mxu0 0.0
        %3734 = vmatpush1.msra.mxu0 %v536
        %3735 = vmatprep.subr.mxu0 0.0
        %3736 = vmatpush1.msra.mxu0 %v537
        %3737 = vmatprep.subr.mxu0 0.0
        %3738 = vmatpush1.msra.mxu0 %v538
        %3739 = vmatprep.subr.mxu0 0.0
        %3740 = vmatpush1.msra.mxu0 %v539
        %3741 = vmatprep.subr.mxu0 0.0
        %3742 = vmatpush1.msra.mxu0 %v540
        %3743 = vmatprep.subr.mxu0 0.0
        %3744 = vmatpush1.msra.mxu0 %v541
        %3745 = vmatprep.subr.mxu0 0.0
        %3746 = vmatpush1.msra.mxu0 %v542
        %3747 = vmatprep.subr.mxu0 0.0
        %3748 = vmatpush1.msra.mxu0 %v543
        %3749 = vmatprep.subr.mxu0 0.0
        %3750 = vmatpush1.msra.mxu0 %v544
        %3751 = vmatprep.subr.mxu0 0.0
        %3752 = vmatpush1.msra.mxu0 %v545
        %3753 = vmatprep.subr.mxu0 0.0
        %3754 = vmatpush1.msra.mxu0 %v546
        %3755 = vmatprep.subr.mxu0 0.0
        %3756 = vmatpush1.msra.mxu0 %v547
        %3757 = vmatprep.subr.mxu0 0.0
        %3758 = vmatpush1.msra.mxu0 %v548
        %3759 = vmatprep.subr.mxu0 0.0
        %3760 = vmatpush1.msra.mxu0 %v549
        %3761 = vmatprep.subr.mxu0 0.0
        %3762 = vmatpush1.msra.mxu0 %v550
        %3763 = vmatprep.subr.mxu0 0.0
        %3764 = vmatpush1.msra.mxu0 %v551
        %3765 = vmatprep.mubr.f32.mxu0 %v3534
        %3766 = vmatmul.mubr.f32.gmra.mrb[0].mxu0 %v3533
        %v3767 = vpop.f32.mrb[0].mxu0
        %v3768 = vadd.f32 %v3698, %v3767
        %v3769 = vpop.f32.mrb[0].mxu0
        %3770 = vdwg.mxu0
        %3771 = vmatprep.subr.mxu0 0.0
        %3772 = vmatpush1.msra.mxu0 %v552
        %3773 = vmatprep.subr.mxu0 0.0
        %3774 = vmatpush1.msra.mxu0 %v553
        %3775 = vmatprep.subr.mxu0 0.0
        %3776 = vmatpush1.msra.mxu0 %v554
        %3777 = vmatprep.subr.mxu0 0.0
        %3778 = vmatpush1.msra.mxu0 %v555
        %3779 = vmatprep.subr.mxu0 0.0
        %3780 = vmatpush1.msra.mxu0 %v556
        %3781 = vmatprep.subr.mxu0 0.0
        %3782 = vmatpush1.msra.mxu0 %v557
        %3783 = vmatprep.subr.mxu0 0.0
        %3784 = vmatpush1.msra.mxu0 %v558
        %3785 = vmatprep.subr.mxu0 0.0
        %3786 = vmatpush1.msra.mxu0 %v559
        %3787 = vmatprep.subr.mxu0 0.0
        %3788 = vmatpush1.msra.mxu0 %v560
        %3789 = vmatprep.subr.mxu0 0.0
        %3790 = vmatpush1.msra.mxu0 %v561
        %3791 = vmatprep.subr.mxu0 0.0
        %3792 = vmatpush1.msra.mxu0 %v562
        %3793 = vmatprep.subr.mxu0 0.0
        %3794 = vmatpush1.msra.mxu0 %v563
        %3795 = vmatprep.subr.mxu0 0.0
        %3796 = vmatpush1.msra.mxu0 %v564
        %3797 = vmatprep.subr.mxu0 0.0
        %3798 = vmatpush1.msra.mxu0 %v565
        %3799 = vmatprep.subr.mxu0 0.0
        %3800 = vmatpush1.msra.mxu0 %v566
        %3801 = vmatprep.subr.mxu0 0.0
        %3802 = vmatpush1.msra.mxu0 %v567
        %3803 = vmatprep.subr.mxu0 0.0
        %3804 = vmatpush1.msra.mxu0 %v568
        %3805 = vmatprep.subr.mxu0 0.0
        %3806 = vmatpush1.msra.mxu0 %v569
        %3807 = vmatprep.subr.mxu0 0.0
        %3808 = vmatpush1.msra.mxu0 %v570
        %3809 = vmatprep.subr.mxu0 0.0
        %3810 = vmatpush1.msra.mxu0 %v571
        %3811 = vmatprep.subr.mxu0 0.0
        %3812 = vmatpush1.msra.mxu0 %v572
        %3813 = vmatprep.subr.mxu0 0.0
        %3814 = vmatpush1.msra.mxu0 %v573
        %3815 = vmatprep.subr.mxu0 0.0
        %3816 = vmatpush1.msra.mxu0 %v574
        %3817 = vmatprep.subr.mxu0 0.0
        %3818 = vmatpush1.msra.mxu0 %v575
        %3819 = vmatprep.subr.mxu0 0.0
        %3820 = vmatpush1.msra.mxu0 %v576
        %3821 = vmatprep.subr.mxu0 0.0
        %3822 = vmatpush1.msra.mxu0 %v577
        %3823 = vmatprep.subr.mxu0 0.0
        %3824 = vmatpush1.msra.mxu0 %v578
        %3825 = vmatprep.subr.mxu0 0.0
        %3826 = vmatpush1.msra.mxu0 %v579
        %3827 = vmatprep.subr.mxu0 0.0
        %3828 = vmatpush1.msra.mxu0 %v580
        %3829 = vmatprep.subr.mxu0 0.0
        %3830 = vmatpush1.msra.mxu0 %v581
        %3831 = vmatprep.subr.mxu0 0.0
        %3832 = vmatpush1.msra.mxu0 %v582
        %3833 = vmatprep.subr.mxu0 0.0
        %3834 = vmatpush1.msra.mxu0 %v583
        %3835 = vmatprep.mubr.f32.mxu0 %v3536
        %3836 = vmatmul.mubr.f32.gmra.mrb[0].mxu0 %v3535
        %v3837 = vpop.f32.mrb[0].mxu0
        %v3838 = vadd.f32 %v3768, %v3837
        %v3839 = vpop.f32.mrb[0].mxu0
        %3840 = vdwg.mxu0
        %3841 = vmatprep.subr.mxu0 0.0
        %3842 = vmatpush1.msra.mxu0 %v584
        %3843 = vmatprep.subr.mxu0 0.0
        %3844 = vmatpush1.msra.mxu0 %v585
        %3845 = vmatprep.subr.mxu0 0.0
        %3846 = vmatpush1.msra.mxu0 %v586
        %3847 = vmatprep.subr.mxu0 0.0
        %3848 = vmatpush1.msra.mxu0 %v587
        %3849 = vmatprep.subr.mxu0 0.0
        %3850 = vmatpush1.msra.mxu0 %v588
        %3851 = vmatprep.subr.mxu0 0.0
        %3852 = vmatpush1.msra.mxu0 %v589
        %3853 = vmatprep.subr.mxu0 0.0
        %3854 = vmatpush1.msra.mxu0 %v590
        %3855 = vmatprep.subr.mxu0 0.0
        %3856 = vmatpush1.msra.mxu0 %v591
        %3857 = vmatprep.subr.mxu0 0.0
        %3858 = vmatpush1.msra.mxu0 %v592
        %3859 = vmatprep.subr.mxu0 0.0
        %3860 = vmatpush1.msra.mxu0 %v593
        %3861 = vmatprep.subr.mxu0 0.0
        %3862 = vmatpush1.msra.mxu0 %v594
        %3863 = vmatprep.subr.mxu0 0.0
        %3864 = vmatpush1.msra.mxu0 %v595
        %3865 = vmatprep.subr.mxu0 0.0
        %3866 = vmatpush1.msra.mxu0 %v596
        %3867 = vmatprep.subr.mxu0 0.0
        %3868 = vmatpush1.msra.mxu0 %v597
        %3869 = vmatprep.subr.mxu0 0.0
        %3870 = vmatpush1.msra.mxu0 %v598
        %3871 = vmatprep.subr.mxu0 0.0
        %3872 = vmatpush1.msra.mxu0 %v599
        %3873 = vmatprep.subr.mxu0 0.0
        %3874 = vmatpush1.msra.mxu0 %v600
        %3875 = vmatprep.subr.mxu0 0.0
        %3876 = vmatpush1.msra.mxu0 %v601
        %3877 = vmatprep.subr.mxu0 0.0
        %3878 = vmatpush1.msra.mxu0 %v602
        %3879 = vmatprep.subr.mxu0 0.0
        %3880 = vmatpush1.msra.mxu0 %v603
        %3881 = vmatprep.subr.mxu0 0.0
        %3882 = vmatpush1.msra.mxu0 %v604
        %3883 = vmatprep.subr.mxu0 0.0
        %3884 = vmatpush1.msra.mxu0 %v605
        %3885 = vmatprep.subr.mxu0 0.0
        %3886 = vmatpush1.msra.mxu0 %v606
        %3887 = vmatprep.subr.mxu0 0.0
        %3888 = vmatpush1.msra.mxu0 %v607
        %3889 = vmatprep.subr.mxu0 0.0
        %3890 = vmatpush1.msra.mxu0 %v608
        %3891 = vmatprep.subr.mxu0 0.0
        %3892 = vmatpush1.msra.mxu0 %v609
        %3893 = vmatprep.subr.mxu0 0.0
        %3894 = vmatpush1.msra.mxu0 %v610
        %3895 = vmatprep.subr.mxu0 0.0
        %3896 = vmatpush1.msra.mxu0 %v611
        %3897 = vmatprep.subr.mxu0 0.0
        %3898 = vmatpush1.msra.mxu0 %v612
        %3899 = vmatprep.subr.mxu0 0.0
        %3900 = vmatpush1.msra.mxu0 %v613
        %3901 = vmatprep.subr.mxu0 0.0
        %3902 = vmatpush1.msra.mxu0 %v614
        %3903 = vmatprep.subr.mxu0 0.0
        %3904 = vmatpush1.msra.mxu0 %v615
        %3905 = vmatprep.mubr.f32.mxu0 %v3538
        %3906 = vmatmul.mubr.f32.gmra.mrb[0].mxu0 %v3537
        %v3907 = vpop.f32.mrb[0].mxu0
        %v3908 = vadd.f32 %v3838, %v3907
        %v3909 = vpop.f32.mrb[0].mxu0
        %3910 = vdwg.mxu0
        %3911 = vmatprep.subr.mxu0 0.0
        %3912 = vmatpush1.msra.mxu0 %v616
        %3913 = vmatprep.subr.mxu0 0.0
        %3914 = vmatpush1.msra.mxu0 %v617
        %3915 = vmatprep.subr.mxu0 0.0
        %3916 = vmatpush1.msra.mxu0 %v618
        %3917 = vmatprep.subr.mxu0 0.0
        %3918 = vmatpush1.msra.mxu0 %v619
        %3919 = vmatprep.subr.mxu0 0.0
        %3920 = vmatpush1.msra.mxu0 %v620
        %3921 = vmatprep.subr.mxu0 0.0
        %3922 = vmatpush1.msra.mxu0 %v621
        %3923 = vmatprep.subr.mxu0 0.0
        %3924 = vmatpush1.msra.mxu0 %v622
        %3925 = vmatprep.subr.mxu0 0.0
        %3926 = vmatpush1.msra.mxu0 %v623
        %3927 = vmatprep.subr.mxu0 0.0
        %3928 = vmatpush1.msra.mxu0 %v624
        %3929 = vmatprep.subr.mxu0 0.0
        %3930 = vmatpush1.msra.mxu0 %v625
        %3931 = vmatprep.subr.mxu0 0.0
        %3932 = vmatpush1.msra.mxu0 %v626
        %3933 = vmatprep.subr.mxu0 0.0
        %3934 = vmatpush1.msra.mxu0 %v627
        %3935 = vmatprep.subr.mxu0 0.0
        %3936 = vmatpush1.msra.mxu0 %v628
        %3937 = vmatprep.subr.mxu0 0.0
        %3938 = vmatpush1.msra.mxu0 %v629
        %3939 = vmatprep.subr.mxu0 0.0
        %3940 = vmatpush1.msra.mxu0 %v630
        %3941 = vmatprep.subr.mxu0 0.0
        %3942 = vmatpush1.msra.mxu0 %v631
        %3943 = vmatprep.subr.mxu0 0.0
        %3944 = vmatpush1.msra.mxu0 %v632
        %3945 = vmatprep.subr.mxu0 0.0
        %3946 = vmatpush1.msra.mxu0 %v633
        %3947 = vmatprep.subr.mxu0 0.0
        %3948 = vmatpush1.msra.mxu0 %v634
        %3949 = vmatprep.subr.mxu0 0.0
        %3950 = vmatpush1.msra.mxu0 %v635
        %3951 = vmatprep.subr.mxu0 0.0
        %3952 = vmatpush1.msra.mxu0 %v636
        %3953 = vmatprep.subr.mxu0 0.0
        %3954 = vmatpush1.msra.mxu0 %v637
        %3955 = vmatprep.subr.mxu0 0.0
        %3956 = vmatpush1.msra.mxu0 %v638
        %3957 = vmatprep.subr.mxu0 0.0
        %3958 = vmatpush1.msra.mxu0 %v639
        %3959 = vmatprep.subr.mxu0 0.0
        %3960 = vmatpush1.msra.mxu0 %v640
        %3961 = vmatprep.subr.mxu0 0.0
        %3962 = vmatpush1.msra.mxu0 %v641
        %3963 = vmatprep.subr.mxu0 0.0
        %3964 = vmatpush1.msra.mxu0 %v642
        %3965 = vmatprep.subr.mxu0 0.0
        %3966 = vmatpush1.msra.mxu0 %v643
        %3967 = vmatprep.subr.mxu0 0.0
        %3968 = vmatpush1.msra.mxu0 %v644
        %3969 = vmatprep.subr.mxu0 0.0
        %3970 = vmatpush1.msra.mxu0 %v645
        %3971 = vmatprep.subr.mxu0 0.0
        %3972 = vmatpush1.msra.mxu0 %v646
        %3973 = vmatprep.subr.mxu0 0.0
        %3974 = vmatpush1.msra.mxu0 %v647
        %3975 = vmatprep.mubr.f32.mxu0 %v3540
        %3976 = vmatmul.mubr.f32.gmra.mrb[0].mxu0 %v3539
        %v3977 = vpop.f32.mrb[0].mxu0
        %v3978 = vadd.f32 %v3908, %v3977
        %v3979 = vpop.f32.mrb[0].mxu0
        %3980 = vdwg.mxu0
        %3981 = vmatprep.subr.mxu0 0.0
        %3982 = vmatpush1.msra.mxu0 %v648
        %3983 = vmatprep.subr.mxu0 0.0
        %3984 = vmatpush1.msra.mxu0 %v649
        %3985 = vmatprep.subr.mxu0 0.0
        %3986 = vmatpush1.msra.mxu0 %v650
        %3987 = vmatprep.subr.mxu0 0.0
        %3988 = vmatpush1.msra.mxu0 %v651
        %3989 = vmatprep.subr.mxu0 0.0
        %3990 = vmatpush1.msra.mxu0 %v652
        %3991 = vmatprep.subr.mxu0 0.0
        %3992 = vmatpush1.msra.mxu0 %v653
        %3993 = vmatprep.subr.mxu0 0.0
        %3994 = vmatpush1.msra.mxu0 %v654
        %3995 = vmatprep.subr.mxu0 0.0
        %3996 = vmatpush1.msra.mxu0 %v655
        %3997 = vmatprep.subr.mxu0 0.0
        %3998 = vmatpush1.msra.mxu0 %v656
        %3999 = vmatprep.subr.mxu0 0.0
        %4000 = vmatpush1.msra.mxu0 %v657
        %4001 = vmatprep.subr.mxu0 0.0
        %4002 = vmatpush1.msra.mxu0 %v658
        %4003 = vmatprep.subr.mxu0 0.0
        %4004 = vmatpush1.msra.mxu0 %v659
        %4005 = vmatprep.subr.mxu0 0.0
        %4006 = vmatpush1.msra.mxu0 %v660
        %4007 = vmatprep.subr.mxu0 0.0
        %4008 = vmatpush1.msra.mxu0 %v661
        %4009 = vmatprep.subr.mxu0 0.0
        %4010 = vmatpush1.msra.mxu0 %v662
        %4011 = vmatprep.subr.mxu0 0.0
        %4012 = vmatpush1.msra.mxu0 %v663
        %4013 = vmatprep.subr.mxu0 0.0
        %4014 = vmatpush1.msra.mxu0 %v664
        %4015 = vmatprep.subr.mxu0 0.0
        %4016 = vmatpush1.msra.mxu0 %v665
        %4017 = vmatprep.subr.mxu0 0.0
        %4018 = vmatpush1.msra.mxu0 %v666
        %4019 = vmatprep.subr.mxu0 0.0
        %4020 = vmatpush1.msra.mxu0 %v667
        %4021 = vmatprep.subr.mxu0 0.0
        %4022 = vmatpush1.msra.mxu0 %v668
        %4023 = vmatprep.subr.mxu0 0.0
        %4024 = vmatpush1.msra.mxu0 %v669
        %4025 = vmatprep.subr.mxu0 0.0
        %4026 = vmatpush1.msra.mxu0 %v670
        %4027 = vmatprep.subr.mxu0 0.0
        %4028 = vmatpush1.msra.mxu0 %v671
        %4029 = vmatprep.subr.mxu0 0.0
        %4030 = vmatpush1.msra.mxu0 %v672
        %4031 = vmatprep.subr.mxu0 0.0
        %4032 = vmatpush1.msra.mxu0 %v673
        %4033 = vmatprep.subr.mxu0 0.0
        %4034 = vmatpush1.msra.mxu0 %v674
        %4035 = vmatprep.subr.mxu0 0.0
        %4036 = vmatpush1.msra.mxu0 %v675
        %4037 = vmatprep.subr.mxu0 0.0
        %4038 = vmatpush1.msra.mxu0 %v676
        %4039 = vmatprep.subr.mxu0 0.0
        %4040 = vmatpush1.msra.mxu0 %v677
        %4041 = vmatprep.subr.mxu0 0.0
        %4042 = vmatpush1.msra.mxu0 %v678
        %4043 = vmatprep.subr.mxu0 0.0
        %4044 = vmatpush1.msra.mxu0 %v679
        %4045 = vmatprep.mubr.f32.mxu0 %v3542
        %4046 = vmatmul.mubr.f32.gmra.mrb[0].mxu0 %v3541
        %v4047 = vpop.f32.mrb[0].mxu0
        %v4048 = vadd.f32 %v3978, %v4047
        %v4049 = vpop.f32.mrb[0].mxu0
        %4050 = vdwg.mxu0
        %4051 = vmatprep.subr.mxu0 0.0
        %4052 = vmatpush1.msra.mxu0 %v680
        %4053 = vmatprep.subr.mxu0 0.0
        %4054 = vmatpush1.msra.mxu0 %v681
        %4055 = vmatprep.subr.mxu0 0.0
        %4056 = vmatpush1.msra.mxu0 %v682
        %4057 = vmatprep.subr.mxu0 0.0
        %4058 = vmatpush1.msra.mxu0 %v683
        %4059 = vmatprep.subr.mxu0 0.0
        %4060 = vmatpush1.msra.mxu0 %v684
        %4061 = vmatprep.subr.mxu0 0.0
        %4062 = vmatpush1.msra.mxu0 %v685
        %4063 = vmatprep.subr.mxu0 0.0
        %4064 = vmatpush1.msra.mxu0 %v686
        %4065 = vmatprep.subr.mxu0 0.0
        %4066 = vmatpush1.msra.mxu0 %v687
        %4067 = vmatprep.subr.mxu0 0.0
        %4068 = vmatpush1.msra.mxu0 %v688
        %4069 = vmatprep.subr.mxu0 0.0
        %4070 = vmatpush1.msra.mxu0 %v689
        %4071 = vmatprep.subr.mxu0 0.0
        %4072 = vmatpush1.msra.mxu0 %v690
        %4073 = vmatprep.subr.mxu0 0.0
        %4074 = vmatpush1.msra.mxu0 %v691
        %4075 = vmatprep.subr.mxu0 0.0
        %4076 = vmatpush1.msra.mxu0 %v692
        %4077 = vmatprep.subr.mxu0 0.0
        %4078 = vmatpush1.msra.mxu0 %v693
        %4079 = vmatprep.subr.mxu0 0.0
        %4080 = vmatpush1.msra.mxu0 %v694
        %4081 = vmatprep.subr.mxu0 0.0
        %4082 = vmatpush1.msra.mxu0 %v695
        %4083 = vmatprep.subr.mxu0 0.0
        %4084 = vmatpush1.msra.mxu0 %v696
        %4085 = vmatprep.subr.mxu0 0.0
        %4086 = vmatpush1.msra.mxu0 %v697
        %4087 = vmatprep.subr.mxu0 0.0
        %4088 = vmatpush1.msra.mxu0 %v698
        %4089 = vmatprep.subr.mxu0 0.0
        %4090 = vmatpush1.msra.mxu0 %v699
        %4091 = vmatprep.subr.mxu0 0.0
        %4092 = vmatpush1.msra.mxu0 %v700
        %4093 = vmatprep.subr.mxu0 0.0
        %4094 = vmatpush1.msra.mxu0 %v701
        %4095 = vmatprep.subr.mxu0 0.0
        %4096 = vmatpush1.msra.mxu0 %v702
        %4097 = vmatprep.subr.mxu0 0.0
        %4098 = vmatpush1.msra.mxu0 %v703
        %4099 = vmatprep.subr.mxu0 0.0
        %4100 = vmatpush1.msra.mxu0 %v704
        %4101 = vmatprep.subr.mxu0 0.0
        %4102 = vmatpush1.msra.mxu0 %v705
        %4103 = vmatprep.subr.mxu0 0.0
        %4104 = vmatpush1.msra.mxu0 %v706
        %4105 = vmatprep.subr.mxu0 0.0
        %4106 = vmatpush1.msra.mxu0 %v707
        %4107 = vmatprep.subr.mxu0 0.0
        %4108 = vmatpush1.msra.mxu0 %v708
        %4109 = vmatprep.subr.mxu0 0.0
        %4110 = vmatpush1.msra.mxu0 %v709
        %4111 = vmatprep.subr.mxu0 0.0
        %4112 = vmatpush1.msra.mxu0 %v710
        %4113 = vmatprep.subr.mxu0 0.0
        %4114 = vmatpush1.msra.mxu0 %v711
        %4115 = vmatprep.mubr.f32.mxu0 %v3544
        %4116 = vmatmul.mubr.f32.gmra.mrb[0].mxu0 %v3543
        %v4117 = vpop.f32.mrb[0].mxu0
        %v4118 = vadd.f32 %v4048, %v4117
        %v4119 = vpop.f32.mrb[0].mxu0
        %4120 = vdwg.mxu0
        %4121 = vmatprep.subr.mxu0 0.0
        %4122 = vmatpush1.msra.mxu0 %v712
        %4123 = vmatprep.subr.mxu0 0.0
        %4124 = vmatpush1.msra.mxu0 %v713
        %4125 = vmatprep.subr.mxu0 0.0
        %4126 = vmatpush1.msra.mxu0 %v714
        %4127 = vmatprep.subr.mxu0 0.0
        %4128 = vmatpush1.msra.mxu0 %v715
        %4129 = vmatprep.subr.mxu0 0.0
        %4130 = vmatpush1.msra.mxu0 %v716
        %4131 = vmatprep.subr.mxu0 0.0
        %4132 = vmatpush1.msra.mxu0 %v717
        %4133 = vmatprep.subr.mxu0 0.0
        %4134 = vmatpush1.msra.mxu0 %v718
        %4135 = vmatprep.subr.mxu0 0.0
        %4136 = vmatpush1.msra.mxu0 %v719
        %4137 = vmatprep.subr.mxu0 0.0
        %4138 = vmatpush1.msra.mxu0 %v720
        %4139 = vmatprep.subr.mxu0 0.0
        %4140 = vmatpush1.msra.mxu0 %v721
        %4141 = vmatprep.subr.mxu0 0.0
        %4142 = vmatpush1.msra.mxu0 %v722
        %4143 = vmatprep.subr.mxu0 0.0
        %4144 = vmatpush1.msra.mxu0 %v723
        %4145 = vmatprep.subr.mxu0 0.0
        %4146 = vmatpush1.msra.mxu0 %v724
        %4147 = vmatprep.subr.mxu0 0.0
        %4148 = vmatpush1.msra.mxu0 %v725
        %4149 = vmatprep.subr.mxu0 0.0
        %4150 = vmatpush1.msra.mxu0 %v726
        %4151 = vmatprep.subr.mxu0 0.0
        %4152 = vmatpush1.msra.mxu0 %v727
        %4153 = vmatprep.subr.mxu0 0.0
        %4154 = vmatpush1.msra.mxu0 %v728
        %4155 = vmatprep.subr.mxu0 0.0
        %4156 = vmatpush1.msra.mxu0 %v729
        %4157 = vmatprep.subr.mxu0 0.0
        %4158 = vmatpush1.msra.mxu0 %v730
        %4159 = vmatprep.subr.mxu0 0.0
        %4160 = vmatpush1.msra.mxu0 %v731
        %4161 = vmatprep.subr.mxu0 0.0
        %4162 = vmatpush1.msra.mxu0 %v732
        %4163 = vmatprep.subr.mxu0 0.0
        %4164 = vmatpush1.msra.mxu0 %v733
        %4165 = vmatprep.subr.mxu0 0.0
        %4166 = vmatpush1.msra.mxu0 %v734
        %4167 = vmatprep.subr.mxu0 0.0
        %4168 = vmatpush1.msra.mxu0 %v735
        %4169 = vmatprep.subr.mxu0 0.0
        %4170 = vmatpush1.msra.mxu0 %v736
        %4171 = vmatprep.subr.mxu0 0.0
        %4172 = vmatpush1.msra.mxu0 %v737
        %4173 = vmatprep.subr.mxu0 0.0
        %4174 = vmatpush1.msra.mxu0 %v738
        %4175 = vmatprep.subr.mxu0 0.0
        %4176 = vmatpush1.msra.mxu0 %v739
        %4177 = vmatprep.subr.mxu0 0.0
        %4178 = vmatpush1.msra.mxu0 %v740
        %4179 = vmatprep.subr.mxu0 0.0
        %4180 = vmatpush1.msra.mxu0 %v741
        %4181 = vmatprep.subr.mxu0 0.0
        %4182 = vmatpush1.msra.mxu0 %v742
        %4183 = vmatprep.subr.mxu0 0.0
        %4184 = vmatpush1.msra.mxu0 %v743
        %4185 = vmatprep.mubr.f32.mxu0 %v3546
        %4186 = vmatmul.mubr.f32.gmra.mrb[0].mxu0 %v3545
        %v4187 = vpop.f32.mrb[0].mxu0
        %v4188 = vadd.f32 %v4118, %v4187
        %v4189 = vpop.f32.mrb[0].mxu0
        %4190 = vdwg.mxu0
        %4191 = vmatprep.subr.mxu0 0.0
        %4192 = vmatpush1.msra.mxu0 %v744
        %4193 = vmatprep.subr.mxu0 0.0
        %4194 = vmatpush1.msra.mxu0 %v745
        %4195 = vmatprep.subr.mxu0 0.0
        %4196 = vmatpush1.msra.mxu0 %v746
        %4197 = vmatprep.subr.mxu0 0.0
        %4198 = vmatpush1.msra.mxu0 %v747
        %4199 = vmatprep.subr.mxu0 0.0
        %4200 = vmatpush1.msra.mxu0 %v748
        %4201 = vmatprep.subr.mxu0 0.0
        %4202 = vmatpush1.msra.mxu0 %v749
        %4203 = vmatprep.subr.mxu0 0.0
        %4204 = vmatpush1.msra.mxu0 %v750
        %4205 = vmatprep.subr.mxu0 0.0
        %4206 = vmatpush1.msra.mxu0 %v751
        %4207 = vmatprep.subr.mxu0 0.0
        %4208 = vmatpush1.msra.mxu0 %v752
        %4209 = vmatprep.subr.mxu0 0.0
        %4210 = vmatpush1.msra.mxu0 %v753
        %4211 = vmatprep.subr.mxu0 0.0
        %4212 = vmatpush1.msra.mxu0 %v754
        %4213 = vmatprep.subr.mxu0 0.0
        %4214 = vmatpush1.msra.mxu0 %v755
        %4215 = vmatprep.subr.mxu0 0.0
        %4216 = vmatpush1.msra.mxu0 %v756
        %4217 = vmatprep.subr.mxu0 0.0
        %4218 = vmatpush1.msra.mxu0 %v757
        %4219 = vmatprep.subr.mxu0 0.0
        %4220 = vmatpush1.msra.mxu0 %v758
        %4221 = vmatprep.subr.mxu0 0.0
        %4222 = vmatpush1.msra.mxu0 %v759
        %4223 = vmatprep.subr.mxu0 0.0
        %4224 = vmatpush1.msra.mxu0 %v760
        %4225 = vmatprep.subr.mxu0 0.0
        %4226 = vmatpush1.msra.mxu0 %v761
        %4227 = vmatprep.subr.mxu0 0.0
        %4228 = vmatpush1.msra.mxu0 %v762
        %4229 = vmatprep.subr.mxu0 0.0
        %4230 = vmatpush1.msra.mxu0 %v763
        %4231 = vmatprep.subr.mxu0 0.0
        %4232 = vmatpush1.msra.mxu0 %v764
        %4233 = vmatprep.subr.mxu0 0.0
        %4234 = vmatpush1.msra.mxu0 %v765
        %4235 = vmatprep.subr.mxu0 0.0
        %4236 = vmatpush1.msra.mxu0 %v766
        %4237 = vmatprep.subr.mxu0 0.0
        %4238 = vmatpush1.msra.mxu0 %v767
        %4239 = vmatprep.subr.mxu0 0.0
        %4240 = vmatpush1.msra.mxu0 %v768
        %4241 = vmatprep.subr.mxu0 0.0
        %4242 = vmatpush1.msra.mxu0 %v769
        %4243 = vmatprep.subr.mxu0 0.0
        %4244 = vmatpush1.msra.mxu0 %v770
        %4245 = vmatprep.subr.mxu0 0.0
        %4246 = vmatpush1.msra.mxu0 %v771
        %4247 = vmatprep.subr.mxu0 0.0
        %4248 = vmatpush1.msra.mxu0 %v772
        %4249 = vmatprep.subr.mxu0 0.0
        %4250 = vmatpush1.msra.mxu0 %v773
        %4251 = vmatprep.subr.mxu0 0.0
        %4252 = vmatpush1.msra.mxu0 %v774
        %4253 = vmatprep.subr.mxu0 0.0
        %4254 = vmatpush1.msra.mxu0 %v775
        %4255 = vmatprep.mubr.f32.mxu0 %v3548
        %4256 = vmatmul.mubr.f32.gmra.mrb[0].mxu0 %v3547
        %v4257 = vpop.f32.mrb[0].mxu0
        %v4258 = vadd.f32 %v4188, %v4257
        %v4259 = vpop.f32.mrb[0].mxu0
        %4260 = vdwg.mxu0
        %4261 = vmatprep.subr.mxu0 0.0
        %4262 = vmatpush1.msra.mxu0 %v776
        %4263 = vmatprep.subr.mxu0 0.0
        %4264 = vmatpush1.msra.mxu0 %v777
        %4265 = vmatprep.subr.mxu0 0.0
        %4266 = vmatpush1.msra.mxu0 %v778
        %4267 = vmatprep.subr.mxu0 0.0
        %4268 = vmatpush1.msra.mxu0 %v779
        %4269 = vmatprep.subr.mxu0 0.0
        %4270 = vmatpush1.msra.mxu0 %v780
        %4271 = vmatprep.subr.mxu0 0.0
        %4272 = vmatpush1.msra.mxu0 %v781
        %4273 = vmatprep.subr.mxu0 0.0
        %4274 = vmatpush1.msra.mxu0 %v782
        %4275 = vmatprep.subr.mxu0 0.0
        %4276 = vmatpush1.msra.mxu0 %v783
        %4277 = vmatprep.subr.mxu0 0.0
        %4278 = vmatpush1.msra.mxu0 %v784
        %4279 = vmatprep.subr.mxu0 0.0
        %4280 = vmatpush1.msra.mxu0 %v785
        %4281 = vmatprep.subr.mxu0 0.0
        %4282 = vmatpush1.msra.mxu0 %v786
        %4283 = vmatprep.subr.mxu0 0.0
        %4284 = vmatpush1.msra.mxu0 %v787
        %4285 = vmatprep.subr.mxu0 0.0
        %4286 = vmatpush1.msra.mxu0 %v788
        %4287 = vmatprep.subr.mxu0 0.0
        %4288 = vmatpush1.msra.mxu0 %v789
        %4289 = vmatprep.subr.mxu0 0.0
        %4290 = vmatpush1.msra.mxu0 %v790
        %4291 = vmatprep.subr.mxu0 0.0
        %4292 = vmatpush1.msra.mxu0 %v791
        %4293 = vmatprep.subr.mxu0 0.0
        %4294 = vmatpush1.msra.mxu0 %v792
        %4295 = vmatprep.subr.mxu0 0.0
        %4296 = vmatpush1.msra.mxu0 %v793
        %4297 = vmatprep.subr.mxu0 0.0
        %4298 = vmatpush1.msra.mxu0 %v794
        %4299 = vmatprep.subr.mxu0 0.0
        %4300 = vmatpush1.msra.mxu0 %v795
        %4301 = vmatprep.subr.mxu0 0.0
        %4302 = vmatpush1.msra.mxu0 %v796
        %4303 = vmatprep.subr.mxu0 0.0
        %4304 = vmatpush1.msra.mxu0 %v797
        %4305 = vmatprep.subr.mxu0 0.0
        %4306 = vmatpush1.msra.mxu0 %v798
        %4307 = vmatprep.subr.mxu0 0.0
        %4308 = vmatpush1.msra.mxu0 %v799
        %4309 = vmatprep.subr.mxu0 0.0
        %4310 = vmatpush1.msra.mxu0 %v800
        %4311 = vmatprep.subr.mxu0 0.0
        %4312 = vmatpush1.msra.mxu0 %v801
        %4313 = vmatprep.subr.mxu0 0.0
        %4314 = vmatpush1.msra.mxu0 %v802
        %4315 = vmatprep.subr.mxu0 0.0
        %4316 = vmatpush1.msra.mxu0 %v803
        %4317 = vmatprep.subr.mxu0 0.0
        %4318 = vmatpush1.msra.mxu0 %v804
        %4319 = vmatprep.subr.mxu0 0.0
        %4320 = vmatpush1.msra.mxu0 %v805
        %4321 = vmatprep.subr.mxu0 0.0
        %4322 = vmatpush1.msra.mxu0 %v806
        %4323 = vmatprep.subr.mxu0 0.0
        %4324 = vmatpush1.msra.mxu0 %v807
        %4325 = vmatprep.mubr.f32.mxu0 %v3550
        %4326 = vmatmul.mubr.f32.gmra.mrb[0].mxu0 %v3549
        %v4327 = vpop.f32.mrb[0].mxu0
        %v4328 = vadd.f32 %v4258, %v4327
        %v4329 = vpop.f32.mrb[0].mxu0
        %4330 = vdwg.mxu0
        %4331 = vmatprep.subr.mxu0 0.0
        %4332 = vmatpush1.msra.mxu0 %v808
        %4333 = vmatprep.subr.mxu0 0.0
        %4334 = vmatpush1.msra.mxu0 %v809
        %4335 = vmatprep.subr.mxu0 0.0
        %4336 = vmatpush1.msra.mxu0 %v810
        %4337 = vmatprep.subr.mxu0 0.0
        %4338 = vmatpush1.msra.mxu0 %v811
        %4339 = vmatprep.subr.mxu0 0.0
        %4340 = vmatpush1.msra.mxu0 %v812
        %4341 = vmatprep.subr.mxu0 0.0
        %4342 = vmatpush1.msra.mxu0 %v813
        %4343 = vmatprep.subr.mxu0 0.0
        %4344 = vmatpush1.msra.mxu0 %v814
        %4345 = vmatprep.subr.mxu0 0.0
        %4346 = vmatpush1.msra.mxu0 %v815
        %4347 = vmatprep.subr.mxu0 0.0
        %4348 = vmatpush1.msra.mxu0 %v816
        %4349 = vmatprep.subr.mxu0 0.0
        %4350 = vmatpush1.msra.mxu0 %v817
        %4351 = vmatprep.subr.mxu0 0.0
        %4352 = vmatpush1.msra.mxu0 %v818
        %4353 = vmatprep.subr.mxu0 0.0
        %4354 = vmatpush1.msra.mxu0 %v819
        %4355 = vmatprep.subr.mxu0 0.0
        %4356 = vmatpush1.msra.mxu0 %v820
        %4357 = vmatprep.subr.mxu0 0.0
        %4358 = vmatpush1.msra.mxu0 %v821
        %4359 = vmatprep.subr.mxu0 0.0
        %4360 = vmatpush1.msra.mxu0 %v822
        %4361 = vmatprep.subr.mxu0 0.0
        %4362 = vmatpush1.msra.mxu0 %v823
        %4363 = vmatprep.subr.mxu0 0.0
        %4364 = vmatpush1.msra.mxu0 %v824
        %4365 = vmatprep.subr.mxu0 0.0
        %4366 = vmatpush1.msra.mxu0 %v825
        %4367 = vmatprep.subr.mxu0 0.0
        %4368 = vmatpush1.msra.mxu0 %v826
        %4369 = vmatprep.subr.mxu0 0.0
        %4370 = vmatpush1.msra.mxu0 %v827
        %4371 = vmatprep.subr.mxu0 0.0
        %4372 = vmatpush1.msra.mxu0 %v828
        %4373 = vmatprep.subr.mxu0 0.0
        %4374 = vmatpush1.msra.mxu0 %v829
        %4375 = vmatprep.subr.mxu0 0.0
        %4376 = vmatpush1.msra.mxu0 %v830
        %4377 = vmatprep.subr.mxu0 0.0
        %4378 = vmatpush1.msra.mxu0 %v831
        %4379 = vmatprep.subr.mxu0 0.0
        %4380 = vmatpush1.msra.mxu0 %v832
        %4381 = vmatprep.subr.mxu0 0.0
        %4382 = vmatpush1.msra.mxu0 %v833
        %4383 = vmatprep.subr.mxu0 0.0
        %4384 = vmatpush1.msra.mxu0 %v834
        %4385 = vmatprep.subr.mxu0 0.0
        %4386 = vmatpush1.msra.mxu0 %v835
        %4387 = vmatprep.subr.mxu0 0.0
        %4388 = vmatpush1.msra.mxu0 %v836
        %4389 = vmatprep.subr.mxu0 0.0
        %4390 = vmatpush1.msra.mxu0 %v837
        %4391 = vmatprep.subr.mxu0 0.0
        %4392 = vmatpush1.msra.mxu0 %v838
        %4393 = vmatprep.subr.mxu0 0.0
        %4394 = vmatpush1.msra.mxu0 %v839
        %4395 = vmatprep.mubr.f32.mxu0 %v3552
        %4396 = vmatmul.mubr.f32.gmra.mrb[0].mxu0 %v3551
        %v4397 = vpop.f32.mrb[0].mxu0
        %v4398 = vadd.f32 %v4328, %v4397
        %v4399 = vpop.f32.mrb[0].mxu0
        %4400 = vdwg.mxu0
        %4401 = vmatprep.subr.mxu0 0.0
        %4402 = vmatpush1.msra.mxu0 %v840
        %4403 = vmatprep.subr.mxu0 0.0
        %4404 = vmatpush1.msra.mxu0 %v841
        %4405 = vmatprep.subr.mxu0 0.0
        %4406 = vmatpush1.msra.mxu0 %v842
        %4407 = vmatprep.subr.mxu0 0.0
        %4408 = vmatpush1.msra.mxu0 %v843
        %4409 = vmatprep.subr.mxu0 0.0
        %4410 = vmatpush1.msra.mxu0 %v844
        %4411 = vmatprep.subr.mxu0 0.0
        %4412 = vmatpush1.msra.mxu0 %v845
        %4413 = vmatprep.subr.mxu0 0.0
        %4414 = vmatpush1.msra.mxu0 %v846
        %4415 = vmatprep.subr.mxu0 0.0
        %4416 = vmatpush1.msra.mxu0 %v847
        %4417 = vmatprep.subr.mxu0 0.0
        %4418 = vmatpush1.msra.mxu0 %v848
        %4419 = vmatprep.subr.mxu0 0.0
        %4420 = vmatpush1.msra.mxu0 %v849
        %4421 = vmatprep.subr.mxu0 0.0
        %4422 = vmatpush1.msra.mxu0 %v850
        %4423 = vmatprep.subr.mxu0 0.0
        %4424 = vmatpush1.msra.mxu0 %v851
        %4425 = vmatprep.subr.mxu0 0.0
        %4426 = vmatpush1.msra.mxu0 %v852
        %4427 = vmatprep.subr.mxu0 0.0
        %4428 = vmatpush1.msra.mxu0 %v853
        %4429 = vmatprep.subr.mxu0 0.0
        %4430 = vmatpush1.msra.mxu0 %v854
        %4431 = vmatprep.subr.mxu0 0.0
        %4432 = vmatpush1.msra.mxu0 %v855
        %4433 = vmatprep.subr.mxu0 0.0
        %4434 = vmatpush1.msra.mxu0 %v856
        %4435 = vmatprep.subr.mxu0 0.0
        %4436 = vmatpush1.msra.mxu0 %v857
        %4437 = vmatprep.subr.mxu0 0.0
        %4438 = vmatpush1.msra.mxu0 %v858
        %4439 = vmatprep.subr.mxu0 0.0
        %4440 = vmatpush1.msra.mxu0 %v859
        %4441 = vmatprep.subr.mxu0 0.0
        %4442 = vmatpush1.msra.mxu0 %v860
        %4443 = vmatprep.subr.mxu0 0.0
        %4444 = vmatpush1.msra.mxu0 %v861
        %4445 = vmatprep.subr.mxu0 0.0
        %4446 = vmatpush1.msra.mxu0 %v862
        %4447 = vmatprep.subr.mxu0 0.0
        %4448 = vmatpush1.msra.mxu0 %v863
        %4449 = vmatprep.subr.mxu0 0.0
        %4450 = vmatpush1.msra.mxu0 %v864
        %4451 = vmatprep.subr.mxu0 0.0
        %4452 = vmatpush1.msra.mxu0 %v865
        %4453 = vmatprep.subr.mxu0 0.0
        %4454 = vmatpush1.msra.mxu0 %v866
        %4455 = vmatprep.subr.mxu0 0.0
        %4456 = vmatpush1.msra.mxu0 %v867
        %4457 = vmatprep.subr.mxu0 0.0
        %4458 = vmatpush1.msra.mxu0 %v868
        %4459 = vmatprep.subr.mxu0 0.0
        %4460 = vmatpush1.msra.mxu0 %v869
        %4461 = vmatprep.subr.mxu0 0.0
        %4462 = vmatpush1.msra.mxu0 %v870
        %4463 = vmatprep.subr.mxu0 0.0
        %4464 = vmatpush1.msra.mxu0 %v871
        %4465 = vmatprep.mubr.f32.mxu0 %v3554
        %4466 = vmatmul.mubr.f32.gmra.mrb[0].mxu0 %v3553
        %v4467 = vpop.f32.mrb[0].mxu0
        %v4468 = vadd.f32 %v4398, %v4467
        %v4469 = vpop.f32.mrb[0].mxu0
        %4470 = vdwg.mxu0
        %4471 = vmatprep.subr.mxu0 0.0
        %4472 = vmatpush1.msra.mxu0 %v872
        %4473 = vmatprep.subr.mxu0 0.0
        %4474 = vmatpush1.msra.mxu0 %v873
        %4475 = vmatprep.subr.mxu0 0.0
        %4476 = vmatpush1.msra.mxu0 %v874
        %4477 = vmatprep.subr.mxu0 0.0
        %4478 = vmatpush1.msra.mxu0 %v875
        %4479 = vmatprep.subr.mxu0 0.0
        %4480 = vmatpush1.msra.mxu0 %v876
        %4481 = vmatprep.subr.mxu0 0.0
        %4482 = vmatpush1.msra.mxu0 %v877
        %4483 = vmatprep.subr.mxu0 0.0
        %4484 = vmatpush1.msra.mxu0 %v878
        %4485 = vmatprep.subr.mxu0 0.0
        %4486 = vmatpush1.msra.mxu0 %v879
        %4487 = vmatprep.subr.mxu0 0.0
        %4488 = vmatpush1.msra.mxu0 %v880
        %4489 = vmatprep.subr.mxu0 0.0
        %4490 = vmatpush1.msra.mxu0 %v881
        %4491 = vmatprep.subr.mxu0 0.0
        %4492 = vmatpush1.msra.mxu0 %v882
        %4493 = vmatprep.subr.mxu0 0.0
        %4494 = vmatpush1.msra.mxu0 %v883
        %4495 = vmatprep.subr.mxu0 0.0
        %4496 = vmatpush1.msra.mxu0 %v884
        %4497 = vmatprep.subr.mxu0 0.0
        %4498 = vmatpush1.msra.mxu0 %v885
        %4499 = vmatprep.subr.mxu0 0.0
        %4500 = vmatpush1.msra.mxu0 %v886
        %4501 = vmatprep.subr.mxu0 0.0
        %4502 = vmatpush1.msra.mxu0 %v887
        %4503 = vmatprep.subr.mxu0 0.0
        %4504 = vmatpush1.msra.mxu0 %v888
        %4505 = vmatprep.subr.mxu0 0.0
        %4506 = vmatpush1.msra.mxu0 %v889
        %4507 = vmatprep.subr.mxu0 0.0
        %4508 = vmatpush1.msra.mxu0 %v890
        %4509 = vmatprep.subr.mxu0 0.0
        %4510 = vmatpush1.msra.mxu0 %v891
        %4511 = vmatprep.subr.mxu0 0.0
        %4512 = vmatpush1.msra.mxu0 %v892
        %4513 = vmatprep.subr.mxu0 0.0
        %4514 = vmatpush1.msra.mxu0 %v893
        %4515 = vmatprep.subr.mxu0 0.0
        %4516 = vmatpush1.msra.mxu0 %v894
        %4517 = vmatprep.subr.mxu0 0.0
        %4518 = vmatpush1.msra.mxu0 %v895
        %4519 = vmatprep.subr.mxu0 0.0
        %4520 = vmatpush1.msra.mxu0 %v896
        %4521 = vmatprep.subr.mxu0 0.0
        %4522 = vmatpush1.msra.mxu0 %v897
        %4523 = vmatprep.subr.mxu0 0.0
        %4524 = vmatpush1.msra.mxu0 %v898
        %4525 = vmatprep.subr.mxu0 0.0
        %4526 = vmatpush1.msra.mxu0 %v899
        %4527 = vmatprep.subr.mxu0 0.0
        %4528 = vmatpush1.msra.mxu0 %v900
        %4529 = vmatprep.subr.mxu0 0.0
        %4530 = vmatpush1.msra.mxu0 %v901
        %4531 = vmatprep.subr.mxu0 0.0
        %4532 = vmatpush1.msra.mxu0 %v902
        %4533 = vmatprep.subr.mxu0 0.0
        %4534 = vmatpush1.msra.mxu0 %v903
        %4535 = vmatprep.mubr.f32.mxu0 %v3556
        %4536 = vmatmul.mubr.f32.gmra.mrb[0].mxu0 %v3555
        %v4537 = vpop.f32.mrb[0].mxu0
        %v4538 = vadd.f32 %v4468, %v4537
        %v4539 = vpop.f32.mrb[0].mxu0
        %4540 = vdwg.mxu0
        %4541 = vmatprep.subr.mxu0 0.0
        %4542 = vmatpush1.msra.mxu0 %v904
        %4543 = vmatprep.subr.mxu0 0.0
        %4544 = vmatpush1.msra.mxu0 %v905
        %4545 = vmatprep.subr.mxu0 0.0
        %4546 = vmatpush1.msra.mxu0 %v906
        %4547 = vmatprep.subr.mxu0 0.0
        %4548 = vmatpush1.msra.mxu0 %v907
        %4549 = vmatprep.subr.mxu0 0.0
        %4550 = vmatpush1.msra.mxu0 %v908
        %4551 = vmatprep.subr.mxu0 0.0
        %4552 = vmatpush1.msra.mxu0 %v909
        %4553 = vmatprep.subr.mxu0 0.0
        %4554 = vmatpush1.msra.mxu0 %v910
        %4555 = vmatprep.subr.mxu0 0.0
        %4556 = vmatpush1.msra.mxu0 %v911
        %4557 = vmatprep.subr.mxu0 0.0
        %4558 = vmatpush1.msra.mxu0 %v912
        %4559 = vmatprep.subr.mxu0 0.0
        %4560 = vmatpush1.msra.mxu0 %v913
        %4561 = vmatprep.subr.mxu0 0.0
        %4562 = vmatpush1.msra.mxu0 %v914
        %4563 = vmatprep.subr.mxu0 0.0
        %4564 = vmatpush1.msra.mxu0 %v915
        %4565 = vmatprep.subr.mxu0 0.0
        %4566 = vmatpush1.msra.mxu0 %v916
        %4567 = vmatprep.subr.mxu0 0.0
        %4568 = vmatpush1.msra.mxu0 %v917
        %4569 = vmatprep.subr.mxu0 0.0
        %4570 = vmatpush1.msra.mxu0 %v918
        %4571 = vmatprep.subr.mxu0 0.0
        %4572 = vmatpush1.msra.mxu0 %v919
        %4573 = vmatprep.subr.mxu0 0.0
        %4574 = vmatpush1.msra.mxu0 %v920
        %4575 = vmatprep.subr.mxu0 0.0
        %4576 = vmatpush1.msra.mxu0 %v921
        %4577 = vmatprep.subr.mxu0 0.0
        %4578 = vmatpush1.msra.mxu0 %v922
        %4579 = vmatprep.subr.mxu0 0.0
        %4580 = vmatpush1.msra.mxu0 %v923
        %4581 = vmatprep.subr.mxu0 0.0
        %4582 = vmatpush1.msra.mxu0 %v924
        %4583 = vmatprep.subr.mxu0 0.0
        %4584 = vmatpush1.msra.mxu0 %v925
        %4585 = vmatprep.subr.mxu0 0.0
        %4586 = vmatpush1.msra.mxu0 %v926
        %4587 = vmatprep.subr.mxu0 0.0
        %4588 = vmatpush1.msra.mxu0 %v927
        %4589 = vmatprep.subr.mxu0 0.0
        %4590 = vmatpush1.msra.mxu0 %v928
        %4591 = vmatprep.subr.mxu0 0.0
        %4592 = vmatpush1.msra.mxu0 %v929
        %4593 = vmatprep.subr.mxu0 0.0
        %4594 = vmatpush1.msra.mxu0 %v930
        %4595 = vmatprep.subr.mxu0 0.0
        %4596 = vmatpush1.msra.mxu0 %v931
        %4597 = vmatprep.subr.mxu0 0.0
        %4598 = vmatpush1.msra.mxu0 %v932
        %4599 = vmatprep.subr.mxu0 0.0
        %4600 = vmatpush1.msra.mxu0 %v933
        %4601 = vmatprep.subr.mxu0 0.0
        %4602 = vmatpush1.msra.mxu0 %v934
        %4603 = vmatprep.subr.mxu0 0.0
        %4604 = vmatpush1.msra.mxu0 %v935
        %4605 = vmatprep.mubr.f32.mxu0 %v3558
        %4606 = vmatmul.mubr.f32.gmra.mrb[0].mxu0 %v3557
        %v4607 = vpop.f32.mrb[0].mxu0
        %v4608 = vadd.f32 %v4538, %v4607
        %v4609 = vpop.f32.mrb[0].mxu0
        %4610 = vdwg.mxu0
        %4611 = vmatprep.subr.mxu0 0.0
        %4612 = vmatpush1.msra.mxu0 %v936
        %4613 = vmatprep.subr.mxu0 0.0
        %4614 = vmatpush1.msra.mxu0 %v937
        %4615 = vmatprep.subr.mxu0 0.0
        %4616 = vmatpush1.msra.mxu0 %v938
        %4617 = vmatprep.subr.mxu0 0.0
        %4618 = vmatpush1.msra.mxu0 %v939
        %4619 = vmatprep.subr.mxu0 0.0
        %4620 = vmatpush1.msra.mxu0 %v940
        %4621 = vmatprep.subr.mxu0 0.0
        %4622 = vmatpush1.msra.mxu0 %v941
        %4623 = vmatprep.subr.mxu0 0.0
        %4624 = vmatpush1.msra.mxu0 %v942
        %4625 = vmatprep.subr.mxu0 0.0
        %4626 = vmatpush1.msra.mxu0 %v943
        %4627 = vmatprep.subr.mxu0 0.0
        %4628 = vmatpush1.msra.mxu0 %v944
        %4629 = vmatprep.subr.mxu0 0.0
        %4630 = vmatpush1.msra.mxu0 %v945
        %4631 = vmatprep.subr.mxu0 0.0
        %4632 = vmatpush1.msra.mxu0 %v946
        %4633 = vmatprep.subr.mxu0 0.0
        %4634 = vmatpush1.msra.mxu0 %v947
        %4635 = vmatprep.subr.mxu0 0.0
        %4636 = vmatpush1.msra.mxu0 %v948
        %4637 = vmatprep.subr.mxu0 0.0
        %4638 = vmatpush1.msra.mxu0 %v949
        %4639 = vmatprep.subr.mxu0 0.0
        %4640 = vmatpush1.msra.mxu0 %v950
        %4641 = vmatprep.subr.mxu0 0.0
        %4642 = vmatpush1.msra.mxu0 %v951
        %4643 = vmatprep.subr.mxu0 0.0
        %4644 = vmatpush1.msra.mxu0 %v952
        %4645 = vmatprep.subr.mxu0 0.0
        %4646 = vmatpush1.msra.mxu0 %v953
        %4647 = vmatprep.subr.mxu0 0.0
        %4648 = vmatpush1.msra.mxu0 %v954
        %4649 = vmatprep.subr.mxu0 0.0
        %4650 = vmatpush1.msra.mxu0 %v955
        %4651 = vmatprep.subr.mxu0 0.0
        %4652 = vmatpush1.msra.mxu0 %v956
        %4653 = vmatprep.subr.mxu0 0.0
        %4654 = vmatpush1.msra.mxu0 %v957
        %4655 = vmatprep.subr.mxu0 0.0
        %4656 = vmatpush1.msra.mxu0 %v958
        %4657 = vmatprep.subr.mxu0 0.0
        %4658 = vmatpush1.msra.mxu0 %v959
        %4659 = vmatprep.subr.mxu0 0.0
        %4660 = vmatpush1.msra.mxu0 %v960
        %4661 = vmatprep.subr.mxu0 0.0
        %4662 = vmatpush1.msra.mxu0 %v961
        %4663 = vmatprep.subr.mxu0 0.0
        %4664 = vmatpush1.msra.mxu0 %v962
        %4665 = vmatprep.subr.mxu0 0.0
        %4666 = vmatpush1.msra.mxu0 %v963
        %4667 = vmatprep.subr.mxu0 0.0
        %4668 = vmatpush1.msra.mxu0 %v964
        %4669 = vmatprep.subr.mxu0 0.0
        %4670 = vmatpush1.msra.mxu0 %v965
        %4671 = vmatprep.subr.mxu0 0.0
        %4672 = vmatpush1.msra.mxu0 %v966
        %4673 = vmatprep.subr.mxu0 0.0
        %4674 = vmatpush1.msra.mxu0 %v967
        %4675 = vmatprep.mubr.f32.mxu0 %v3560
        %4676 = vmatmul.mubr.f32.gmra.mrb[0].mxu0 %v3559
        %v4677 = vpop.f32.mrb[0].mxu0
        %v4678 = vadd.f32 %v4608, %v4677
        %v4679 = vpop.f32.mrb[0].mxu0
        %4680 = vdwg.mxu0
        %v4681 = vadd.f32 %v3528, %v4678
        %4682 = vst [vmem:[#allocation2] sm:$0xff] %v4681
        %v4683 = vld [vmem:[#allocation3] sm:$0xff]
        %v4684 = vld [vmem:[%s440] sm:$0xff]
        %v4685 = vld [vmem:[%s440 + $0x8] sm:$0xff]
        %v4686 = vld [vmem:[%s440 + $0x10] sm:$0xff]
        %v4687 = vld [vmem:[%s440 + $0x18] sm:$0xff]
        %v4688 = vld [vmem:[%s440 + $0x20] sm:$0xff]
        %v4689 = vld [vmem:[%s440 + $0x28] sm:$0xff]
        %v4690 = vld [vmem:[%s440 + $0x30] sm:$0xff]
        %v4691 = vld [vmem:[%s440 + $0x38] sm:$0xff]
        %v4692 = vld [vmem:[%s440 + $0x40] sm:$0xff]
        %v4693 = vld [vmem:[%s440 + $0x48] sm:$0xff]
        %v4694 = vld [vmem:[%s440 + $0x50] sm:$0xff]
        %v4695 = vld [vmem:[%s440 + $0x58] sm:$0xff]
        %v4696 = vld [vmem:[%s440 + $0x60] sm:$0xff]
        %v4697 = vld [vmem:[%s440 + $0x68] sm:$0xff]
        %v4698 = vld [vmem:[%s440 + $0x70] sm:$0xff]
        %v4699 = vld [vmem:[%s440 + $0x78] sm:$0xff]
        %v4700 = vld [vmem:[%s440 + $0x80] sm:$0xff]
        %v4701 = vld [vmem:[%s440 + $0x88] sm:$0xff]
        %v4702 = vld [vmem:[%s440 + $0x90] sm:$0xff]
        %v4703 = vld [vmem:[%s440 + $0x98] sm:$0xff]
        %v4704 = vld [vmem:[%s440 + $0xa0] sm:$0xff]
        %v4705 = vld [vmem:[%s440 + $0xa8] sm:$0xff]
        %v4706 = vld [vmem:[%s440 + $0xb0] sm:$0xff]
        %v4707 = vld [vmem:[%s440 + $0xb8] sm:$0xff]
        %v4708 = vld [vmem:[%s440 + $0xc0] sm:$0xff]
        %v4709 = vld [vmem:[%s440 + $0xc8] sm:$0xff]
        %v4710 = vld [vmem:[%s440 + $0xd0] sm:$0xff]
        %v4711 = vld [vmem:[%s440 + $0xd8] sm:$0xff]
        %v4712 = vld [vmem:[%s440 + $0xe0] sm:$0xff]
        %v4713 = vld [vmem:[%s440 + $0xe8] sm:$0xff]
        %v4714 = vld [vmem:[%s440 + $0xf0] sm:$0xff]
        %v4715 = vld [vmem:[%s440 + $0xf8] sm:$0xff]
        %4716 = vmatprep.subr.mxu0 0.0
        %4717 = vmatpush1.msra.mxu0 %v2504
        %4718 = vmatprep.subr.mxu0 0.0
        %4719 = vmatpush1.msra.mxu0 %v2505
        %4720 = vmatprep.subr.mxu0 0.0
        %4721 = vmatpush1.msra.mxu0 %v2506
        %4722 = vmatprep.subr.mxu0 0.0
        %4723 = vmatpush1.msra.mxu0 %v2507
        %4724 = vmatprep.subr.mxu0 0.0
        %4725 = vmatpush1.msra.mxu0 %v2508
        %4726 = vmatprep.subr.mxu0 0.0
        %4727 = vmatpush1.msra.mxu0 %v2509
        %4728 = vmatprep.subr.mxu0 0.0
        %4729 = vmatpush1.msra.mxu0 %v2510
        %4730 = vmatprep.subr.mxu0 0.0
        %4731 = vmatpush1.msra.mxu0 %v2511
        %4732 = vmatprep.subr.mxu0 0.0
        %4733 = vmatpush1.msra.mxu0 %v2512
        %4734 = vmatprep.subr.mxu0 0.0
        %4735 = vmatpush1.msra.mxu0 %v2513
        %4736 = vmatprep.subr.mxu0 0.0
        %4737 = vmatpush1.msra.mxu0 %v2514
        %4738 = vmatprep.subr.mxu0 0.0
        %4739 = vmatpush1.msra.mxu0 %v2515
        %4740 = vmatprep.subr.mxu0 0.0
        %4741 = vmatpush1.msra.mxu0 %v2516
        %4742 = vmatprep.subr.mxu0 0.0
        %4743 = vmatpush1.msra.mxu0 %v2517
        %4744 = vmatprep.subr.mxu0 0.0
        %4745 = vmatpush1.msra.mxu0 %v2518
        %4746 = vmatprep.subr.mxu0 0.0
        %4747 = vmatpush1.msra.mxu0 %v2519
        %4748 = vmatprep.subr.mxu0 0.0
        %4749 = vmatpush1.msra.mxu0 %v2520
        %4750 = vmatprep.subr.mxu0 0.0
        %4751 = vmatpush1.msra.mxu0 %v2521
        %4752 = vmatprep.subr.mxu0 0.0
        %4753 = vmatpush1.msra.mxu0 %v2522
        %4754 = vmatprep.subr.mxu0 0.0
        %4755 = vmatpush1.msra.mxu0 %v2523
        %4756 = vmatprep.subr.mxu0 0.0
        %4757 = vmatpush1.msra.mxu0 %v2524
        %4758 = vmatprep.subr.mxu0 0.0
        %4759 = vmatpush1.msra.mxu0 %v2525
        %4760 = vmatprep.subr.mxu0 0.0
        %4761 = vmatpush1.msra.mxu0 %v2526
        %4762 = vmatprep.subr.mxu0 0.0
        %4763 = vmatpush1.msra.mxu0 %v2527
        %4764 = vmatprep.subr.mxu0 0.0
        %4765 = vmatpush1.msra.mxu0 %v2528
        %4766 = vmatprep.subr.mxu0 0.0
        %4767 = vmatpush1.msra.mxu0 %v2529
        %4768 = vmatprep.subr.mxu0 0.0
        %4769 = vmatpush1.msra.mxu0 %v2530
        %4770 = vmatprep.subr.mxu0 0.0
        %4771 = vmatpush1.msra.mxu0 %v2531
        %4772 = vmatprep.subr.mxu0 0.0
        %4773 = vmatpush1.msra.mxu0 %v2532
        %4774 = vmatprep.subr.mxu0 0.0
        %4775 = vmatpush1.msra.mxu0 %v2533
        %4776 = vmatprep.subr.mxu0 0.0
        %4777 = vmatpush1.msra.mxu0 %v2534
        %4778 = vmatprep.subr.mxu0 0.0
        %4779 = vmatpush1.msra.mxu0 %v2535
        %4780 = vmatprep.mubr.f32.mxu0 %v4685
        %4781 = vmatmul.mubr.f32.gmra.mrb[0].mxu0 %v4684
        %v4782 = vpop.f32.mrb[0].mxu0
        %v4783 = vadd.f32 0.0, %v4782
        %v4784 = vpop.f32.mrb[0].mxu0
        %4785 = vdwg.mxu0
        %4786 = vmatprep.subr.mxu0 0.0
        %4787 = vmatpush1.msra.mxu0 %v2536
        %4788 = vmatprep.subr.mxu0 0.0
        %4789 = vmatpush1.msra.mxu0 %v2537
        %4790 = vmatprep.subr.mxu0 0.0
        %4791 = vmatpush1.msra.mxu0 %v2538
        %4792 = vmatprep.subr.mxu0 0.0
        %4793 = vmatpush1.msra.mxu0 %v2539
        %4794 = vmatprep.subr.mxu0 0.0
        %4795 = vmatpush1.msra.mxu0 %v2540
        %4796 = vmatprep.subr.mxu0 0.0
        %4797 = vmatpush1.msra.mxu0 %v2541
        %4798 = vmatprep.subr.mxu0 0.0
        %4799 = vmatpush1.msra.mxu0 %v2542
        %4800 = vmatprep.subr.mxu0 0.0
        %4801 = vmatpush1.msra.mxu0 %v2543
        %4802 = vmatprep.subr.mxu0 0.0
        %4803 = vmatpush1.msra.mxu0 %v2544
        %4804 = vmatprep.subr.mxu0 0.0
        %4805 = vmatpush1.msra.mxu0 %v2545
        %4806 = vmatprep.subr.mxu0 0.0
        %4807 = vmatpush1.msra.mxu0 %v2546
        %4808 = vmatprep.subr.mxu0 0.0
        %4809 = vmatpush1.msra.mxu0 %v2547
        %4810 = vmatprep.subr.mxu0 0.0
        %4811 = vmatpush1.msra.mxu0 %v2548
        %4812 = vmatprep.subr.mxu0 0.0
        %4813 = vmatpush1.msra.mxu0 %v2549
        %4814 = vmatprep.subr.mxu0 0.0
        %4815 = vmatpush1.msra.mxu0 %v2550
        %4816 = vmatprep.subr.mxu0 0.0
        %4817 = vmatpush1.msra.mxu0 %v2551
        %4818 = vmatprep.subr.mxu0 0.0
        %4819 = vmatpush1.msra.mxu0 %v2552
        %4820 = vmatprep.subr.mxu0 0.0
        %4821 = vmatpush1.msra.mxu0 %v2553
        %4822 = vmatprep.subr.mxu0 0.0
        %4823 = vmatpush1.msra.mxu0 %v2554
        %4824 = vmatprep.subr.mxu0 0.0
        %4825 = vmatpush1.msra.mxu0 %v2555
        %4826 = vmatprep.subr.mxu0 0.0
        %4827 = vmatpush1.msra.mxu0 %v2556
        %4828 = vmatprep.subr.mxu0 0.0
        %4829 = vmatpush1.msra.mxu0 %v2557
        %4830 = vmatprep.subr.mxu0 0.0
        %4831 = vmatpush1.msra.mxu0 %v2558
        %4832 = vmatprep.subr.mxu0 0.0
        %4833 = vmatpush1.msra.mxu0 %v2559
        %4834 = vmatprep.subr.mxu0 0.0
        %4835 = vmatpush1.msra.mxu0 %v2560
        %4836 = vmatprep.subr.mxu0 0.0
        %4837 = vmatpush1.msra.mxu0 %v2561
        %4838 = vmatprep.subr.mxu0 0.0
        %4839 = vmatpush1.msra.mxu0 %v2562
        %4840 = vmatprep.subr.mxu0 0.0
        %4841 = vmatpush1.msra.mxu0 %v2563
        %4842 = vmatprep.subr.mxu0 0.0
        %4843 = vmatpush1.msra.mxu0 %v2564
        %4844 = vmatprep.subr.mxu0 0.0
        %4845 = vmatpush1.msra.mxu0 %v2565
        %4846 = vmatprep.subr.mxu0 0.0
        %4847 = vmatpush1.msra.mxu0 %v2566
        %4848 = vmatprep.subr.mxu0 0.0
        %4849 = vmatpush1.msra.mxu0 %v2567
        %4850 = vmatprep.mubr.f32.mxu0 %v4687
        %4851 = vmatmul.mubr.f32.gmra.mrb[0].mxu0 %v4686
        %v4852 = vpop.f32.mrb[0].mxu0
        %v4853 = vadd.f32 %v4783, %v4852
        %v4854 = vpop.f32.mrb[0].mxu0
        %4855 = vdwg.mxu0
        %4856 = vmatprep.subr.mxu0 0.0
        %4857 = vmatpush1.msra.mxu0 %v2568
        %4858 = vmatprep.subr.mxu0 0.0
        %4859 = vmatpush1.msra.mxu0 %v2569
        %4860 = vmatprep.subr.mxu0 0.0
        %4861 = vmatpush1.msra.mxu0 %v2570
        %4862 = vmatprep.subr.mxu0 0.0
        %4863 = vmatpush1.msra.mxu0 %v2571
        %4864 = vmatprep.subr.mxu0 0.0
        %4865 = vmatpush1.msra.mxu0 %v2572
        %4866 = vmatprep.subr.mxu0 0.0
        %4867 = vmatpush1.msra.mxu0 %v2573
        %4868 = vmatprep.subr.mxu0 0.0
        %4869 = vmatpush1.msra.mxu0 %v2574
        %4870 = vmatprep.subr.mxu0 0.0
        %4871 = vmatpush1.msra.mxu0 %v2575
        %4872 = vmatprep.subr.mxu0 0.0
        %4873 = vmatpush1.msra.mxu0 %v2576
        %4874 = vmatprep.subr.mxu0 0.0
        %4875 = vmatpush1.msra.mxu0 %v2577
        %4876 = vmatprep.subr.mxu0 0.0
        %4877 = vmatpush1.msra.mxu0 %v2578
        %4878 = vmatprep.subr.mxu0 0.0
        %4879 = vmatpush1.msra.mxu0 %v2579
        %4880 = vmatprep.subr.mxu0 0.0
        %4881 = vmatpush1.msra.mxu0 %v2580
        %4882 = vmatprep.subr.mxu0 0.0
        %4883 = vmatpush1.msra.mxu0 %v2581
        %4884 = vmatprep.subr.mxu0 0.0
        %4885 = vmatpush1.msra.mxu0 %v2582
        %4886 = vmatprep.subr.mxu0 0.0
        %4887 = vmatpush1.msra.mxu0 %v2583
        %4888 = vmatprep.subr.mxu0 0.0
        %4889 = vmatpush1.msra.mxu0 %v2584
        %4890 = vmatprep.subr.mxu0 0.0
        %4891 = vmatpush1.msra.mxu0 %v2585
        %4892 = vmatprep.subr.mxu0 0.0
        %4893 = vmatpush1.msra.mxu0 %v2586
        %4894 = vmatprep.subr.mxu0 0.0
        %4895 = vmatpush1.msra.mxu0 %v2587
        %4896 = vmatprep.subr.mxu0 0.0
        %4897 = vmatpush1.msra.mxu0 %v2588
        %4898 = vmatprep.subr.mxu0 0.0
        %4899 = vmatpush1.msra.mxu0 %v2589
        %4900 = vmatprep.subr.mxu0 0.0
        %4901 = vmatpush1.msra.mxu0 %v2590
        %4902 = vmatprep.subr.mxu0 0.0
        %4903 = vmatpush1.msra.mxu0 %v2591
        %4904 = vmatprep.subr.mxu0 0.0
        %4905 = vmatpush1.msra.mxu0 %v2592
        %4906 = vmatprep.subr.mxu0 0.0
        %4907 = vmatpush1.msra.mxu0 %v2593
        %4908 = vmatprep.subr.mxu0 0.0
        %4909 = vmatpush1.msra.mxu0 %v2594
        %4910 = vmatprep.subr.mxu0 0.0
        %4911 = vmatpush1.msra.mxu0 %v2595
        %4912 = vmatprep.subr.mxu0 0.0
        %4913 = vmatpush1.msra.mxu0 %v2596
        %4914 = vmatprep.subr.mxu0 0.0
        %4915 = vmatpush1.msra.mxu0 %v2597
        %4916 = vmatprep.subr.mxu0 0.0
        %4917 = vmatpush1.msra.mxu0 %v2598
        %4918 = vmatprep.subr.mxu0 0.0
        %4919 = vmatpush1.msra.mxu0 %v2599
        %4920 = vmatprep.mubr.f32.mxu0 %v4689
        %4921 = vmatmul.mubr.f32.gmra.mrb[0].mxu0 %v4688
        %v4922 = vpop.f32.mrb[0].mxu0
        %v4923 = vadd.f32 %v4853, %v4922
        %v4924 = vpop.f32.mrb[0].mxu0
        %4925 = vdwg.mxu0
        %4926 = vmatprep.subr.mxu0 0.0
        %4927 = vmatpush1.msra.mxu0 %v2600
        %4928 = vmatprep.subr.mxu0 0.0
        %4929 = vmatpush1.msra.mxu0 %v2601
        %4930 = vmatprep.subr.mxu0 0.0
        %4931 = vmatpush1.msra.mxu0 %v2602
        %4932 = vmatprep.subr.mxu0 0.0
        %4933 = vmatpush1.msra.mxu0 %v2603
        %4934 = vmatprep.subr.mxu0 0.0
        %4935 = vmatpush1.msra.mxu0 %v2604
        %4936 = vmatprep.subr.mxu0 0.0
        %4937 = vmatpush1.msra.mxu0 %v2605
        %4938 = vmatprep.subr.mxu0 0.0
        %4939 = vmatpush1.msra.mxu0 %v2606
        %4940 = vmatprep.subr.mxu0 0.0
        %4941 = vmatpush1.msra.mxu0 %v2607
        %4942 = vmatprep.subr.mxu0 0.0
        %4943 = vmatpush1.msra.mxu0 %v2608
        %4944 = vmatprep.subr.mxu0 0.0
        %4945 = vmatpush1.msra.mxu0 %v2609
        %4946 = vmatprep.subr.mxu0 0.0
        %4947 = vmatpush1.msra.mxu0 %v2610
        %4948 = vmatprep.subr.mxu0 0.0
        %4949 = vmatpush1.msra.mxu0 %v2611
        %4950 = vmatprep.subr.mxu0 0.0
        %4951 = vmatpush1.msra.mxu0 %v2612
        %4952 = vmatprep.subr.mxu0 0.0
        %4953 = vmatpush1.msra.mxu0 %v2613
        %4954 = vmatprep.subr.mxu0 0.0
        %4955 = vmatpush1.msra.mxu0 %v2614
        %4956 = vmatprep.subr.mxu0 0.0
        %4957 = vmatpush1.msra.mxu0 %v2615
        %4958 = vmatprep.subr.mxu0 0.0
        %4959 = vmatpush1.msra.mxu0 %v2616
        %4960 = vmatprep.subr.mxu0 0.0
        %4961 = vmatpush1.msra.mxu0 %v2617
        %4962 = vmatprep.subr.mxu0 0.0
        %4963 = vmatpush1.msra.mxu0 %v2618
        %4964 = vmatprep.subr.mxu0 0.0
        %4965 = vmatpush1.msra.mxu0 %v2619
        %4966 = vmatprep.subr.mxu0 0.0
        %4967 = vmatpush1.msra.mxu0 %v2620
        %4968 = vmatprep.subr.mxu0 0.0
        %4969 = vmatpush1.msra.mxu0 %v2621
        %4970 = vmatprep.subr.mxu0 0.0
        %4971 = vmatpush1.msra.mxu0 %v2622
        %4972 = vmatprep.subr.mxu0 0.0
        %4973 = vmatpush1.msra.mxu0 %v2623
        %4974 = vmatprep.subr.mxu0 0.0
        %4975 = vmatpush1.msra.mxu0 %v2624
        %4976 = vmatprep.subr.mxu0 0.0
        %4977 = vmatpush1.msra.mxu0 %v2625
        %4978 = vmatprep.subr.mxu0 0.0
        %4979 = vmatpush1.msra.mxu0 %v2626
        %4980 = vmatprep.subr.mxu0 0.0
        %4981 = vmatpush1.msra.mxu0 %v2627
        %4982 = vmatprep.subr.mxu0 0.0
        %4983 = vmatpush1.msra.mxu0 %v2628
        %4984 = vmatprep.subr.mxu0 0.0
        %4985 = vmatpush1.msra.mxu0 %v2629
        %4986 = vmatprep.subr.mxu0 0.0
        %4987 = vmatpush1.msra.mxu0 %v2630
        %4988 = vmatprep.subr.mxu0 0.0
        %4989 = vmatpush1.msra.mxu0 %v2631
        %4990 = vmatprep.mubr.f32.mxu0 %v4691
        %4991 = vmatmul.mubr.f32.gmra.mrb[0].mxu0 %v4690
        %v4992 = vpop.f32.mrb[0].mxu0
        %v4993 = vadd.f32 %v4923, %v4992
        %v4994 = vpop.f32.mrb[0].mxu0
        %4995 = vdwg.mxu0
        %4996 = vmatprep.subr.mxu0 0.0
        %4997 = vmatpush1.msra.mxu0 %v2632
        %4998 = vmatprep.subr.mxu0 0.0
        %4999 = vmatpush1.msra.mxu0 %v2633
        %5000 = vmatprep.subr.mxu0 0.0
        %5001 = vmatpush1.msra.mxu0 %v2634
        %5002 = vmatprep.subr.mxu0 0.0
        %5003 = vmatpush1.msra.mxu0 %v2635
        %5004 = vmatprep.subr.mxu0 0.0
        %5005 = vmatpush1.msra.mxu0 %v2636
        %5006 = vmatprep.subr.mxu0 0.0
        %5007 = vmatpush1.msra.mxu0 %v2637
        %5008 = vmatprep.subr.mxu0 0.0
        %5009 = vmatpush1.msra.mxu0 %v2638
        %5010 = vmatprep.subr.mxu0 0.0
        %5011 = vmatpush1.msra.mxu0 %v2639
        %5012 = vmatprep.subr.mxu0 0.0
        %5013 = vmatpush1.msra.mxu0 %v2640
        %5014 = vmatprep.subr.mxu0 0.0
        %5015 = vmatpush1.msra.mxu0 %v2641
        %5016 = vmatprep.subr.mxu0 0.0
        %5017 = vmatpush1.msra.mxu0 %v2642
        %5018 = vmatprep.subr.mxu0 0.0
        %5019 = vmatpush1.msra.mxu0 %v2643
        %5020 = vmatprep.subr.mxu0 0.0
        %5021 = vmatpush1.msra.mxu0 %v2644
        %5022 = vmatprep.subr.mxu0 0.0
        %5023 = vmatpush1.msra.mxu0 %v2645
        %5024 = vmatprep.subr.mxu0 0.0
        %5025 = vmatpush1.msra.mxu0 %v2646
        %5026 = vmatprep.subr.mxu0 0.0
        %5027 = vmatpush1.msra.mxu0 %v2647
        %5028 = vmatprep.subr.mxu0 0.0
        %5029 = vmatpush1.msra.mxu0 %v2648
        %5030 = vmatprep.subr.mxu0 0.0
        %5031 = vmatpush1.msra.mxu0 %v2649
        %5032 = vmatprep.subr.mxu0 0.0
        %5033 = vmatpush1.msra.mxu0 %v2650
        %5034 = vmatprep.subr.mxu0 0.0
        %5035 = vmatpush1.msra.mxu0 %v2651
        %5036 = vmatprep.subr.mxu0 0.0
        %5037 = vmatpush1.msra.mxu0 %v2652
        %5038 = vmatprep.subr.mxu0 0.0
        %5039 = vmatpush1.msra.mxu0 %v2653
        %5040 = vmatprep.subr.mxu0 0.0
        %5041 = vmatpush1.msra.mxu0 %v2654
        %5042 = vmatprep.subr.mxu0 0.0
        %5043 = vmatpush1.msra.mxu0 %v2655
        %5044 = vmatprep.subr.mxu0 0.0
        %5045 = vmatpush1.msra.mxu0 %v2656
        %5046 = vmatprep.subr.mxu0 0.0
        %5047 = vmatpush1.msra.mxu0 %v2657
        %5048 = vmatprep.subr.mxu0 0.0
        %5049 = vmatpush1.msra.mxu0 %v2658
        %5050 = vmatprep.subr.mxu0 0.0
        %5051 = vmatpush1.msra.mxu0 %v2659
        %5052 = vmatprep.subr.mxu0 0.0
        %5053 = vmatpush1.msra.mxu0 %v2660
        %5054 = vmatprep.subr.mxu0 0.0
        %5055 = vmatpush1.msra.mxu0 %v2661
        %5056 = vmatprep.subr.mxu0 0.0
        %5057 = vmatpush1.msra.mxu0 %v2662
        %5058 = vmatprep.subr.mxu0 0.0
        %5059 = vmatpush1.msra.mxu0 %v2663
        %5060 = vmatprep.mubr.f32.mxu0 %v4693
        %5061 = vmatmul.mubr.f32.gmra.mrb[0].mxu0 %v4692
        %v5062 = vpop.f32.mrb[0].mxu0
        %v5063 = vadd.f32 %v4993, %v5062
        %v5064 = vpop.f32.mrb[0].mxu0
        %5065 = vdwg.mxu0
        %5066 = vmatprep.subr.mxu0 0.0
        %5067 = vmatpush1.msra.mxu0 %v2664
        %5068 = vmatprep.subr.mxu0 0.0
        %5069 = vmatpush1.msra.mxu0 %v2665
        %5070 = vmatprep.subr.mxu0 0.0
        %5071 = vmatpush1.msra.mxu0 %v2666
        %5072 = vmatprep.subr.mxu0 0.0
        %5073 = vmatpush1.msra.mxu0 %v2667
        %5074 = vmatprep.subr.mxu0 0.0
        %5075 = vmatpush1.msra.mxu0 %v2668
        %5076 = vmatprep.subr.mxu0 0.0
        %5077 = vmatpush1.msra.mxu0 %v2669
        %5078 = vmatprep.subr.mxu0 0.0
        %5079 = vmatpush1.msra.mxu0 %v2670
        %5080 = vmatprep.subr.mxu0 0.0
        %5081 = vmatpush1.msra.mxu0 %v2671
        %5082 = vmatprep.subr.mxu0 0.0
        %5083 = vmatpush1.msra.mxu0 %v2672
        %5084 = vmatprep.subr.mxu0 0.0
        %5085 = vmatpush1.msra.mxu0 %v2673
        %5086 = vmatprep.subr.mxu0 0.0
        %5087 = vmatpush1.msra.mxu0 %v2674
        %5088 = vmatprep.subr.mxu0 0.0
        %5089 = vmatpush1.msra.mxu0 %v2675
        %5090 = vmatprep.subr.mxu0 0.0
        %5091 = vmatpush1.msra.mxu0 %v2676
        %5092 = vmatprep.subr.mxu0 0.0
        %5093 = vmatpush1.msra.mxu0 %v2677
        %5094 = vmatprep.subr.mxu0 0.0
        %5095 = vmatpush1.msra.mxu0 %v2678
        %5096 = vmatprep.subr.mxu0 0.0
        %5097 = vmatpush1.msra.mxu0 %v2679
        %5098 = vmatprep.subr.mxu0 0.0
        %5099 = vmatpush1.msra.mxu0 %v2680
        %5100 = vmatprep.subr.mxu0 0.0
        %5101 = vmatpush1.msra.mxu0 %v2681
        %5102 = vmatprep.subr.mxu0 0.0
        %5103 = vmatpush1.msra.mxu0 %v2682
        %5104 = vmatprep.subr.mxu0 0.0
        %5105 = vmatpush1.msra.mxu0 %v2683
        %5106 = vmatprep.subr.mxu0 0.0
        %5107 = vmatpush1.msra.mxu0 %v2684
        %5108 = vmatprep.subr.mxu0 0.0
        %5109 = vmatpush1.msra.mxu0 %v2685
        %5110 = vmatprep.subr.mxu0 0.0
        %5111 = vmatpush1.msra.mxu0 %v2686
        %5112 = vmatprep.subr.mxu0 0.0
        %5113 = vmatpush1.msra.mxu0 %v2687
        %5114 = vmatprep.subr.mxu0 0.0
        %5115 = vmatpush1.msra.mxu0 %v2688
        %5116 = vmatprep.subr.mxu0 0.0
        %5117 = vmatpush1.msra.mxu0 %v2689
        %5118 = vmatprep.subr.mxu0 0.0
        %5119 = vmatpush1.msra.mxu0 %v2690
        %5120 = vmatprep.subr.mxu0 0.0
        %5121 = vmatpush1.msra.mxu0 %v2691
        %5122 = vmatprep.subr.mxu0 0.0
        %5123 = vmatpush1.msra.mxu0 %v2692
        %5124 = vmatprep.subr.mxu0 0.0
        %5125 = vmatpush1.msra.mxu0 %v2693
        %5126 = vmatprep.subr.mxu0 0.0
        %5127 = vmatpush1.msra.mxu0 %v2694
        %5128 = vmatprep.subr.mxu0 0.0
        %5129 = vmatpush1.msra.mxu0 %v2695
        %5130 = vmatprep.mubr.f32.mxu0 %v4695
        %5131 = vmatmul.mubr.f32.gmra.mrb[0].mxu0 %v4694
        %v5132 = vpop.f32.mrb[0].mxu0
        %v5133 = vadd.f32 %v5063, %v5132
        %v5134 = vpop.f32.mrb[0].mxu0
        %5135 = vdwg.mxu0
        %5136 = vmatprep.subr.mxu0 0.0
        %5137 = vmatpush1.msra.mxu0 %v2696
        %5138 = vmatprep.subr.mxu0 0.0
        %5139 = vmatpush1.msra.mxu0 %v2697
        %5140 = vmatprep.subr.mxu0 0.0
        %5141 = vmatpush1.msra.mxu0 %v2698
        %5142 = vmatprep.subr.mxu0 0.0
        %5143 = vmatpush1.msra.mxu0 %v2699
        %5144 = vmatprep.subr.mxu0 0.0
        %5145 = vmatpush1.msra.mxu0 %v2700
        %5146 = vmatprep.subr.mxu0 0.0
        %5147 = vmatpush1.msra.mxu0 %v2701
        %5148 = vmatprep.subr.mxu0 0.0
        %5149 = vmatpush1.msra.mxu0 %v2702
        %5150 = vmatprep.subr.mxu0 0.0
        %5151 = vmatpush1.msra.mxu0 %v2703
        %5152 = vmatprep.subr.mxu0 0.0
        %5153 = vmatpush1.msra.mxu0 %v2704
        %5154 = vmatprep.subr.mxu0 0.0
        %5155 = vmatpush1.msra.mxu0 %v2705
        %5156 = vmatprep.subr.mxu0 0.0
        %5157 = vmatpush1.msra.mxu0 %v2706
        %5158 = vmatprep.subr.mxu0 0.0
        %5159 = vmatpush1.msra.mxu0 %v2707
        %5160 = vmatprep.subr.mxu0 0.0
        %5161 = vmatpush1.msra.mxu0 %v2708
        %5162 = vmatprep.subr.mxu0 0.0
        %5163 = vmatpush1.msra.mxu0 %v2709
        %5164 = vmatprep.subr.mxu0 0.0
        %5165 = vmatpush1.msra.mxu0 %v2710
        %5166 = vmatprep.subr.mxu0 0.0
        %5167 = vmatpush1.msra.mxu0 %v2711
        %5168 = vmatprep.subr.mxu0 0.0
        %5169 = vmatpush1.msra.mxu0 %v2712
        %5170 = vmatprep.subr.mxu0 0.0
        %5171 = vmatpush1.msra.mxu0 %v2713
        %5172 = vmatprep.subr.mxu0 0.0
        %5173 = vmatpush1.msra.mxu0 %v2714
        %5174 = vmatprep.subr.mxu0 0.0
        %5175 = vmatpush1.msra.mxu0 %v2715
        %5176 = vmatprep.subr.mxu0 0.0
        %5177 = vmatpush1.msra.mxu0 %v2716
        %5178 = vmatprep.subr.mxu0 0.0
        %5179 = vmatpush1.msra.mxu0 %v2717
        %5180 = vmatprep.subr.mxu0 0.0
        %5181 = vmatpush1.msra.mxu0 %v2718
        %5182 = vmatprep.subr.mxu0 0.0
        %5183 = vmatpush1.msra.mxu0 %v2719
        %5184 = vmatprep.subr.mxu0 0.0
        %5185 = vmatpush1.msra.mxu0 %v2720
        %5186 = vmatprep.subr.mxu0 0.0
        %5187 = vmatpush1.msra.mxu0 %v2721
        %5188 = vmatprep.subr.mxu0 0.0
        %5189 = vmatpush1.msra.mxu0 %v2722
        %5190 = vmatprep.subr.mxu0 0.0
        %5191 = vmatpush1.msra.mxu0 %v2723
        %5192 = vmatprep.subr.mxu0 0.0
        %5193 = vmatpush1.msra.mxu0 %v2724
        %5194 = vmatprep.subr.mxu0 0.0
        %5195 = vmatpush1.msra.mxu0 %v2725
        %5196 = vmatprep.subr.mxu0 0.0
        %5197 = vmatpush1.msra.mxu0 %v2726
        %5198 = vmatprep.subr.mxu0 0.0
        %5199 = vmatpush1.msra.mxu0 %v2727
        %5200 = vmatprep.mubr.f32.mxu0 %v4697
        %5201 = vmatmul.mubr.f32.gmra.mrb[0].mxu0 %v4696
        %v5202 = vpop.f32.mrb[0].mxu0
        %v5203 = vadd.f32 %v5133, %v5202
        %v5204 = vpop.f32.mrb[0].mxu0
        %5205 = vdwg.mxu0
        %5206 = vmatprep.subr.mxu0 0.0
        %5207 = vmatpush1.msra.mxu0 %v2728
        %5208 = vmatprep.subr.mxu0 0.0
        %5209 = vmatpush1.msra.mxu0 %v2729
        %5210 = vmatprep.subr.mxu0 0.0
        %5211 = vmatpush1.msra.mxu0 %v2730
        %5212 = vmatprep.subr.mxu0 0.0
        %5213 = vmatpush1.msra.mxu0 %v2731
        %5214 = vmatprep.subr.mxu0 0.0
        %5215 = vmatpush1.msra.mxu0 %v2732
        %5216 = vmatprep.subr.mxu0 0.0
        %5217 = vmatpush1.msra.mxu0 %v2733
        %5218 = vmatprep.subr.mxu0 0.0
        %5219 = vmatpush1.msra.mxu0 %v2734
        %5220 = vmatprep.subr.mxu0 0.0
        %5221 = vmatpush1.msra.mxu0 %v2735
        %5222 = vmatprep.subr.mxu0 0.0
        %5223 = vmatpush1.msra.mxu0 %v2736
        %5224 = vmatprep.subr.mxu0 0.0
        %5225 = vmatpush1.msra.mxu0 %v2737
        %5226 = vmatprep.subr.mxu0 0.0
        %5227 = vmatpush1.msra.mxu0 %v2738
        %5228 = vmatprep.subr.mxu0 0.0
        %5229 = vmatpush1.msra.mxu0 %v2739
        %5230 = vmatprep.subr.mxu0 0.0
        %5231 = vmatpush1.msra.mxu0 %v2740
        %5232 = vmatprep.subr.mxu0 0.0
        %5233 = vmatpush1.msra.mxu0 %v2741
        %5234 = vmatprep.subr.mxu0 0.0
        %5235 = vmatpush1.msra.mxu0 %v2742
        %5236 = vmatprep.subr.mxu0 0.0
        %5237 = vmatpush1.msra.mxu0 %v2743
        %5238 = vmatprep.subr.mxu0 0.0
        %5239 = vmatpush1.msra.mxu0 %v2744
        %5240 = vmatprep.subr.mxu0 0.0
        %5241 = vmatpush1.msra.mxu0 %v2745
        %5242 = vmatprep.subr.mxu0 0.0
        %5243 = vmatpush1.msra.mxu0 %v2746
        %5244 = vmatprep.subr.mxu0 0.0
        %5245 = vmatpush1.msra.mxu0 %v2747
        %5246 = vmatprep.subr.mxu0 0.0
        %5247 = vmatpush1.msra.mxu0 %v2748
        %5248 = vmatprep.subr.mxu0 0.0
        %5249 = vmatpush1.msra.mxu0 %v2749
        %5250 = vmatprep.subr.mxu0 0.0
        %5251 = vmatpush1.msra.mxu0 %v2750
        %5252 = vmatprep.subr.mxu0 0.0
        %5253 = vmatpush1.msra.mxu0 %v2751
        %5254 = vmatprep.subr.mxu0 0.0
        %5255 = vmatpush1.msra.mxu0 %v2752
        %5256 = vmatprep.subr.mxu0 0.0
        %5257 = vmatpush1.msra.mxu0 %v2753
        %5258 = vmatprep.subr.mxu0 0.0
        %5259 = vmatpush1.msra.mxu0 %v2754
        %5260 = vmatprep.subr.mxu0 0.0
        %5261 = vmatpush1.msra.mxu0 %v2755
        %5262 = vmatprep.subr.mxu0 0.0
        %5263 = vmatpush1.msra.mxu0 %v2756
        %5264 = vmatprep.subr.mxu0 0.0
        %5265 = vmatpush1.msra.mxu0 %v2757
        %5266 = vmatprep.subr.mxu0 0.0
        %5267 = vmatpush1.msra.mxu0 %v2758
        %5268 = vmatprep.subr.mxu0 0.0
        %5269 = vmatpush1.msra.mxu0 %v2759
        %5270 = vmatprep.mubr.f32.mxu0 %v4699
        %5271 = vmatmul.mubr.f32.gmra.mrb[0].mxu0 %v4698
        %v5272 = vpop.f32.mrb[0].mxu0
        %v5273 = vadd.f32 %v5203, %v5272
        %v5274 = vpop.f32.mrb[0].mxu0
        %5275 = vdwg.mxu0
        %5276 = vmatprep.subr.mxu0 0.0
        %5277 = vmatpush1.msra.mxu0 %v2760
        %5278 = vmatprep.subr.mxu0 0.0
        %5279 = vmatpush1.msra.mxu0 %v2761
        %5280 = vmatprep.subr.mxu0 0.0
        %5281 = vmatpush1.msra.mxu0 %v2762
        %5282 = vmatprep.subr.mxu0 0.0
        %5283 = vmatpush1.msra.mxu0 %v2763
        %5284 = vmatprep.subr.mxu0 0.0
        %5285 = vmatpush1.msra.mxu0 %v2764
        %5286 = vmatprep.subr.mxu0 0.0
        %5287 = vmatpush1.msra.mxu0 %v2765
        %5288 = vmatprep.subr.mxu0 0.0
        %5289 = vmatpush1.msra.mxu0 %v2766
        %5290 = vmatprep.subr.mxu0 0.0
        %5291 = vmatpush1.msra.mxu0 %v2767
        %5292 = vmatprep.subr.mxu0 0.0
        %5293 = vmatpush1.msra.mxu0 %v2768
        %5294 = vmatprep.subr.mxu0 0.0
        %5295 = vmatpush1.msra.mxu0 %v2769
        %5296 = vmatprep.subr.mxu0 0.0
        %5297 = vmatpush1.msra.mxu0 %v2770
        %5298 = vmatprep.subr.mxu0 0.0
        %5299 = vmatpush1.msra.mxu0 %v2771
        %5300 = vmatprep.subr.mxu0 0.0
        %5301 = vmatpush1.msra.mxu0 %v2772
        %5302 = vmatprep.subr.mxu0 0.0
        %5303 = vmatpush1.msra.mxu0 %v2773
        %5304 = vmatprep.subr.mxu0 0.0
        %5305 = vmatpush1.msra.mxu0 %v2774
        %5306 = vmatprep.subr.mxu0 0.0
        %5307 = vmatpush1.msra.mxu0 %v2775
        %5308 = vmatprep.subr.mxu0 0.0
        %5309 = vmatpush1.msra.mxu0 %v2776
        %5310 = vmatprep.subr.mxu0 0.0
        %5311 = vmatpush1.msra.mxu0 %v2777
        %5312 = vmatprep.subr.mxu0 0.0
        %5313 = vmatpush1.msra.mxu0 %v2778
        %5314 = vmatprep.subr.mxu0 0.0
        %5315 = vmatpush1.msra.mxu0 %v2779
        %5316 = vmatprep.subr.mxu0 0.0
        %5317 = vmatpush1.msra.mxu0 %v2780
        %5318 = vmatprep.subr.mxu0 0.0
        %5319 = vmatpush1.msra.mxu0 %v2781
        %5320 = vmatprep.subr.mxu0 0.0
        %5321 = vmatpush1.msra.mxu0 %v2782
        %5322 = vmatprep.subr.mxu0 0.0
        %5323 = vmatpush1.msra.mxu0 %v2783
        %5324 = vmatprep.subr.mxu0 0.0
        %5325 = vmatpush1.msra.mxu0 %v2784
        %5326 = vmatprep.subr.mxu0 0.0
        %5327 = vmatpush1.msra.mxu0 %v2785
        %5328 = vmatprep.subr.mxu0 0.0
        %5329 = vmatpush1.msra.mxu0 %v2786
        %5330 = vmatprep.subr.mxu0 0.0
        %5331 = vmatpush1.msra.mxu0 %v2787
        %5332 = vmatprep.subr.mxu0 0.0
        %5333 = vmatpush1.msra.mxu0 %v2788
        %5334 = vmatprep.subr.mxu0 0.0
        %5335 = vmatpush1.msra.mxu0 %v2789
        %5336 = vmatprep.subr.mxu0 0.0
        %5337 = vmatpush1.msra.mxu0 %v2790
        %5338 = vmatprep.subr.mxu0 0.0
        %5339 = vmatpush1.msra.mxu0 %v2791
        %5340 = vmatprep.mubr.f32.mxu0 %v4701
        %5341 = vmatmul.mubr.f32.gmra.mrb[0].mxu0 %v4700
        %v5342 = vpop.f32.mrb[0].mxu0
        %v5343 = vadd.f32 %v5273, %v5342
        %v5344 = vpop.f32.mrb[0].mxu0
        %5345 = vdwg.mxu0
        %5346 = vmatprep.subr.mxu0 0.0
        %5347 = vmatpush1.msra.mxu0 %v2792
        %5348 = vmatprep.subr.mxu0 0.0
        %5349 = vmatpush1.msra.mxu0 %v2793
        %5350 = vmatprep.subr.mxu0 0.0
        %5351 = vmatpush1.msra.mxu0 %v2794
        %5352 = vmatprep.subr.mxu0 0.0
        %5353 = vmatpush1.msra.mxu0 %v2795
        %5354 = vmatprep.subr.mxu0 0.0
        %5355 = vmatpush1.msra.mxu0 %v2796
        %5356 = vmatprep.subr.mxu0 0.0
        %5357 = vmatpush1.msra.mxu0 %v2797
        %5358 = vmatprep.subr.mxu0 0.0
        %5359 = vmatpush1.msra.mxu0 %v2798
        %5360 = vmatprep.subr.mxu0 0.0
        %5361 = vmatpush1.msra.mxu0 %v2799
        %5362 = vmatprep.subr.mxu0 0.0
        %5363 = vmatpush1.msra.mxu0 %v2800
        %5364 = vmatprep.subr.mxu0 0.0
        %5365 = vmatpush1.msra.mxu0 %v2801
        %5366 = vmatprep.subr.mxu0 0.0
        %5367 = vmatpush1.msra.mxu0 %v2802
        %5368 = vmatprep.subr.mxu0 0.0
        %5369 = vmatpush1.msra.mxu0 %v2803
        %5370 = vmatprep.subr.mxu0 0.0
        %5371 = vmatpush1.msra.mxu0 %v2804
        %5372 = vmatprep.subr.mxu0 0.0
        %5373 = vmatpush1.msra.mxu0 %v2805
        %5374 = vmatprep.subr.mxu0 0.0
        %5375 = vmatpush1.msra.mxu0 %v2806
        %5376 = vmatprep.subr.mxu0 0.0
        %5377 = vmatpush1.msra.mxu0 %v2807
        %5378 = vmatprep.subr.mxu0 0.0
        %5379 = vmatpush1.msra.mxu0 %v2808
        %5380 = vmatprep.subr.mxu0 0.0
        %5381 = vmatpush1.msra.mxu0 %v2809
        %5382 = vmatprep.subr.mxu0 0.0
        %5383 = vmatpush1.msra.mxu0 %v2810
        %5384 = vmatprep.subr.mxu0 0.0
        %5385 = vmatpush1.msra.mxu0 %v2811
        %5386 = vmatprep.subr.mxu0 0.0
        %5387 = vmatpush1.msra.mxu0 %v2812
        %5388 = vmatprep.subr.mxu0 0.0
        %5389 = vmatpush1.msra.mxu0 %v2813
        %5390 = vmatprep.subr.mxu0 0.0
        %5391 = vmatpush1.msra.mxu0 %v2814
        %5392 = vmatprep.subr.mxu0 0.0
        %5393 = vmatpush1.msra.mxu0 %v2815
        %5394 = vmatprep.subr.mxu0 0.0
        %5395 = vmatpush1.msra.mxu0 %v2816
        %5396 = vmatprep.subr.mxu0 0.0
        %5397 = vmatpush1.msra.mxu0 %v2817
        %5398 = vmatprep.subr.mxu0 0.0
        %5399 = vmatpush1.msra.mxu0 %v2818
        %5400 = vmatprep.subr.mxu0 0.0
        %5401 = vmatpush1.msra.mxu0 %v2819
        %5402 = vmatprep.subr.mxu0 0.0
        %5403 = vmatpush1.msra.mxu0 %v2820
        %5404 = vmatprep.subr.mxu0 0.0
        %5405 = vmatpush1.msra.mxu0 %v2821
        %5406 = vmatprep.subr.mxu0 0.0
        %5407 = vmatpush1.msra.mxu0 %v2822
        %5408 = vmatprep.subr.mxu0 0.0
        %5409 = vmatpush1.msra.mxu0 %v2823
        %5410 = vmatprep.mubr.f32.mxu0 %v4703
        %5411 = vmatmul.mubr.f32.gmra.mrb[0].mxu0 %v4702
        %v5412 = vpop.f32.mrb[0].mxu0
        %v5413 = vadd.f32 %v5343, %v5412
        %v5414 = vpop.f32.mrb[0].mxu0
        %5415 = vdwg.mxu0
        %5416 = vmatprep.subr.mxu0 0.0
        %5417 = vmatpush1.msra.mxu0 %v2824
        %5418 = vmatprep.subr.mxu0 0.0
        %5419 = vmatpush1.msra.mxu0 %v2825
        %5420 = vmatprep.subr.mxu0 0.0
        %5421 = vmatpush1.msra.mxu0 %v2826
        %5422 = vmatprep.subr.mxu0 0.0
        %5423 = vmatpush1.msra.mxu0 %v2827
        %5424 = vmatprep.subr.mxu0 0.0
        %5425 = vmatpush1.msra.mxu0 %v2828
        %5426 = vmatprep.subr.mxu0 0.0
        %5427 = vmatpush1.msra.mxu0 %v2829
        %5428 = vmatprep.subr.mxu0 0.0
        %5429 = vmatpush1.msra.mxu0 %v2830
        %5430 = vmatprep.subr.mxu0 0.0
        %5431 = vmatpush1.msra.mxu0 %v2831
        %5432 = vmatprep.subr.mxu0 0.0
        %5433 = vmatpush1.msra.mxu0 %v2832
        %5434 = vmatprep.subr.mxu0 0.0
        %5435 = vmatpush1.msra.mxu0 %v2833
        %5436 = vmatprep.subr.mxu0 0.0
        %5437 = vmatpush1.msra.mxu0 %v2834
        %5438 = vmatprep.subr.mxu0 0.0
        %5439 = vmatpush1.msra.mxu0 %v2835
        %5440 = vmatprep.subr.mxu0 0.0
        %5441 = vmatpush1.msra.mxu0 %v2836
        %5442 = vmatprep.subr.mxu0 0.0
        %5443 = vmatpush1.msra.mxu0 %v2837
        %5444 = vmatprep.subr.mxu0 0.0
        %5445 = vmatpush1.msra.mxu0 %v2838
        %5446 = vmatprep.subr.mxu0 0.0
        %5447 = vmatpush1.msra.mxu0 %v2839
        %5448 = vmatprep.subr.mxu0 0.0
        %5449 = vmatpush1.msra.mxu0 %v2840
        %5450 = vmatprep.subr.mxu0 0.0
        %5451 = vmatpush1.msra.mxu0 %v2841
        %5452 = vmatprep.subr.mxu0 0.0
        %5453 = vmatpush1.msra.mxu0 %v2842
        %5454 = vmatprep.subr.mxu0 0.0
        %5455 = vmatpush1.msra.mxu0 %v2843
        %5456 = vmatprep.subr.mxu0 0.0
        %5457 = vmatpush1.msra.mxu0 %v2844
        %5458 = vmatprep.subr.mxu0 0.0
        %5459 = vmatpush1.msra.mxu0 %v2845
        %5460 = vmatprep.subr.mxu0 0.0
        %5461 = vmatpush1.msra.mxu0 %v2846
        %5462 = vmatprep.subr.mxu0 0.0
        %5463 = vmatpush1.msra.mxu0 %v2847
        %5464 = vmatprep.subr.mxu0 0.0
        %5465 = vmatpush1.msra.mxu0 %v2848
        %5466 = vmatprep.subr.mxu0 0.0
        %5467 = vmatpush1.msra.mxu0 %v2849
        %5468 = vmatprep.subr.mxu0 0.0
        %5469 = vmatpush1.msra.mxu0 %v2850
        %5470 = vmatprep.subr.mxu0 0.0
        %5471 = vmatpush1.msra.mxu0 %v2851
        %5472 = vmatprep.subr.mxu0 0.0
        %5473 = vmatpush1.msra.mxu0 %v2852
        %5474 = vmatprep.subr.mxu0 0.0
        %5475 = vmatpush1.msra.mxu0 %v2853
        %5476 = vmatprep.subr.mxu0 0.0
        %5477 = vmatpush1.msra.mxu0 %v2854
        %5478 = vmatprep.subr.mxu0 0.0
        %5479 = vmatpush1.msra.mxu0 %v2855
        %5480 = vmatprep.mubr.f32.mxu0 %v4705
        %5481 = vmatmul.mubr.f32.gmra.mrb[0].mxu0 %v4704
        %v5482 = vpop.f32.mrb[0].mxu0
        %v5483 = vadd.f32 %v5413, %v5482
        %v5484 = vpop.f32.mrb[0].mxu0
        %5485 = vdwg.mxu0
        %5486 = vmatprep.subr.mxu0 0.0
        %5487 = vmatpush1.msra.mxu0 %v2856
        %5488 = vmatprep.subr.mxu0 0.0
        %5489 = vmatpush1.msra.mxu0 %v2857
        %5490 = vmatprep.subr.mxu0 0.0
        %5491 = vmatpush1.msra.mxu0 %v2858
        %5492 = vmatprep.subr.mxu0 0.0
        %5493 = vmatpush1.msra.mxu0 %v2859
        %5494 = vmatprep.subr.mxu0 0.0
        %5495 = vmatpush1.msra.mxu0 %v2860
        %5496 = vmatprep.subr.mxu0 0.0
        %5497 = vmatpush1.msra.mxu0 %v2861
        %5498 = vmatprep.subr.mxu0 0.0
        %5499 = vmatpush1.msra.mxu0 %v2862
        %5500 = vmatprep.subr.mxu0 0.0
        %5501 = vmatpush1.msra.mxu0 %v2863
        %5502 = vmatprep.subr.mxu0 0.0
        %5503 = vmatpush1.msra.mxu0 %v2864
        %5504 = vmatprep.subr.mxu0 0.0
        %5505 = vmatpush1.msra.mxu0 %v2865
        %5506 = vmatprep.subr.mxu0 0.0
        %5507 = vmatpush1.msra.mxu0 %v2866
        %5508 = vmatprep.subr.mxu0 0.0
        %5509 = vmatpush1.msra.mxu0 %v2867
        %5510 = vmatprep.subr.mxu0 0.0
        %5511 = vmatpush1.msra.mxu0 %v2868
        %5512 = vmatprep.subr.mxu0 0.0
        %5513 = vmatpush1.msra.mxu0 %v2869
        %5514 = vmatprep.subr.mxu0 0.0
        %5515 = vmatpush1.msra.mxu0 %v2870
        %5516 = vmatprep.subr.mxu0 0.0
        %5517 = vmatpush1.msra.mxu0 %v2871
        %5518 = vmatprep.subr.mxu0 0.0
        %5519 = vmatpush1.msra.mxu0 %v2872
        %5520 = vmatprep.subr.mxu0 0.0
        %5521 = vmatpush1.msra.mxu0 %v2873
        %5522 = vmatprep.subr.mxu0 0.0
        %5523 = vmatpush1.msra.mxu0 %v2874
        %5524 = vmatprep.subr.mxu0 0.0
        %5525 = vmatpush1.msra.mxu0 %v2875
        %5526 = vmatprep.subr.mxu0 0.0
        %5527 = vmatpush1.msra.mxu0 %v2876
        %5528 = vmatprep.subr.mxu0 0.0
        %5529 = vmatpush1.msra.mxu0 %v2877
        %5530 = vmatprep.subr.mxu0 0.0
        %5531 = vmatpush1.msra.mxu0 %v2878
        %5532 = vmatprep.subr.mxu0 0.0
        %5533 = vmatpush1.msra.mxu0 %v2879
        %5534 = vmatprep.subr.mxu0 0.0
        %5535 = vmatpush1.msra.mxu0 %v2880
        %5536 = vmatprep.subr.mxu0 0.0
        %5537 = vmatpush1.msra.mxu0 %v2881
        %5538 = vmatprep.subr.mxu0 0.0
        %5539 = vmatpush1.msra.mxu0 %v2882
        %5540 = vmatprep.subr.mxu0 0.0
        %5541 = vmatpush1.msra.mxu0 %v2883
        %5542 = vmatprep.subr.mxu0 0.0
        %5543 = vmatpush1.msra.mxu0 %v2884
        %5544 = vmatprep.subr.mxu0 0.0
        %5545 = vmatpush1.msra.mxu0 %v2885
        %5546 = vmatprep.subr.mxu0 0.0
        %5547 = vmatpush1.msra.mxu0 %v2886
        %5548 = vmatprep.subr.mxu0 0.0
        %5549 = vmatpush1.msra.mxu0 %v2887
        %5550 = vmatprep.mubr.f32.mxu0 %v4707
        %5551 = vmatmul.mubr.f32.gmra.mrb[0].mxu0 %v4706
        %v5552 = vpop.f32.mrb[0].mxu0
        %v5553 = vadd.f32 %v5483, %v5552
        %v5554 = vpop.f32.mrb[0].mxu0
        %5555 = vdwg.mxu0
        %5556 = vmatprep.subr.mxu0 0.0
        %5557 = vmatpush1.msra.mxu0 %v2888
        %5558 = vmatprep.subr.mxu0 0.0
        %5559 = vmatpush1.msra.mxu0 %v2889
        %5560 = vmatprep.subr.mxu0 0.0
        %5561 = vmatpush1.msra.mxu0 %v2890
        %5562 = vmatprep.subr.mxu0 0.0
        %5563 = vmatpush1.msra.mxu0 %v2891
        %5564 = vmatprep.subr.mxu0 0.0
        %5565 = vmatpush1.msra.mxu0 %v2892
        %5566 = vmatprep.subr.mxu0 0.0
        %5567 = vmatpush1.msra.mxu0 %v2893
        %5568 = vmatprep.subr.mxu0 0.0
        %5569 = vmatpush1.msra.mxu0 %v2894
        %5570 = vmatprep.subr.mxu0 0.0
        %5571 = vmatpush1.msra.mxu0 %v2895
        %5572 = vmatprep.subr.mxu0 0.0
        %5573 = vmatpush1.msra.mxu0 %v2896
        %5574 = vmatprep.subr.mxu0 0.0
        %5575 = vmatpush1.msra.mxu0 %v2897
        %5576 = vmatprep.subr.mxu0 0.0
        %5577 = vmatpush1.msra.mxu0 %v2898
        %5578 = vmatprep.subr.mxu0 0.0
        %5579 = vmatpush1.msra.mxu0 %v2899
        %5580 = vmatprep.subr.mxu0 0.0
        %5581 = vmatpush1.msra.mxu0 %v2900
        %5582 = vmatprep.subr.mxu0 0.0
        %5583 = vmatpush1.msra.mxu0 %v2901
        %5584 = vmatprep.subr.mxu0 0.0
        %5585 = vmatpush1.msra.mxu0 %v2902
        %5586 = vmatprep.subr.mxu0 0.0
        %5587 = vmatpush1.msra.mxu0 %v2903
        %5588 = vmatprep.subr.mxu0 0.0
        %5589 = vmatpush1.msra.mxu0 %v2904
        %5590 = vmatprep.subr.mxu0 0.0
        %5591 = vmatpush1.msra.mxu0 %v2905
        %5592 = vmatprep.subr.mxu0 0.0
        %5593 = vmatpush1.msra.mxu0 %v2906
        %5594 = vmatprep.subr.mxu0 0.0
        %5595 = vmatpush1.msra.mxu0 %v2907
        %5596 = vmatprep.subr.mxu0 0.0
        %5597 = vmatpush1.msra.mxu0 %v2908
        %5598 = vmatprep.subr.mxu0 0.0
        %5599 = vmatpush1.msra.mxu0 %v2909
        %5600 = vmatprep.subr.mxu0 0.0
        %5601 = vmatpush1.msra.mxu0 %v2910
        %5602 = vmatprep.subr.mxu0 0.0
        %5603 = vmatpush1.msra.mxu0 %v2911
        %5604 = vmatprep.subr.mxu0 0.0
        %5605 = vmatpush1.msra.mxu0 %v2912
        %5606 = vmatprep.subr.mxu0 0.0
        %5607 = vmatpush1.msra.mxu0 %v2913
        %5608 = vmatprep.subr.mxu0 0.0
        %5609 = vmatpush1.msra.mxu0 %v2914
        %5610 = vmatprep.subr.mxu0 0.0
        %5611 = vmatpush1.msra.mxu0 %v2915
        %5612 = vmatprep.subr.mxu0 0.0
        %5613 = vmatpush1.msra.mxu0 %v2916
        %5614 = vmatprep.subr.mxu0 0.0
        %5615 = vmatpush1.msra.mxu0 %v2917
        %5616 = vmatprep.subr.mxu0 0.0
        %5617 = vmatpush1.msra.mxu0 %v2918
        %5618 = vmatprep.subr.mxu0 0.0
        %5619 = vmatpush1.msra.mxu0 %v2919
        %5620 = vmatprep.mubr.f32.mxu0 %v4709
        %5621 = vmatmul.mubr.f32.gmra.mrb[0].mxu0 %v4708
        %v5622 = vpop.f32.mrb[0].mxu0
        %v5623 = vadd.f32 %v5553, %v5622
        %v5624 = vpop.f32.mrb[0].mxu0
        %5625 = vdwg.mxu0
        %5626 = vmatprep.subr.mxu0 0.0
        %5627 = vmatpush1.msra.mxu0 %v2920
        %5628 = vmatprep.subr.mxu0 0.0
        %5629 = vmatpush1.msra.mxu0 %v2921
        %5630 = vmatprep.subr.mxu0 0.0
        %5631 = vmatpush1.msra.mxu0 %v2922
        %5632 = vmatprep.subr.mxu0 0.0
        %5633 = vmatpush1.msra.mxu0 %v2923
        %5634 = vmatprep.subr.mxu0 0.0
        %5635 = vmatpush1.msra.mxu0 %v2924
        %5636 = vmatprep.subr.mxu0 0.0
        %5637 = vmatpush1.msra.mxu0 %v2925
        %5638 = vmatprep.subr.mxu0 0.0
        %5639 = vmatpush1.msra.mxu0 %v2926
        %5640 = vmatprep.subr.mxu0 0.0
        %5641 = vmatpush1.msra.mxu0 %v2927
        %5642 = vmatprep.subr.mxu0 0.0
        %5643 = vmatpush1.msra.mxu0 %v2928
        %5644 = vmatprep.subr.mxu0 0.0
        %5645 = vmatpush1.msra.mxu0 %v2929
        %5646 = vmatprep.subr.mxu0 0.0
        %5647 = vmatpush1.msra.mxu0 %v2930
        %5648 = vmatprep.subr.mxu0 0.0
        %5649 = vmatpush1.msra.mxu0 %v2931
        %5650 = vmatprep.subr.mxu0 0.0
        %5651 = vmatpush1.msra.mxu0 %v2932
        %5652 = vmatprep.subr.mxu0 0.0
        %5653 = vmatpush1.msra.mxu0 %v2933
        %5654 = vmatprep.subr.mxu0 0.0
        %5655 = vmatpush1.msra.mxu0 %v2934
        %5656 = vmatprep.subr.mxu0 0.0
        %5657 = vmatpush1.msra.mxu0 %v2935
        %5658 = vmatprep.subr.mxu0 0.0
        %5659 = vmatpush1.msra.mxu0 %v2936
        %5660 = vmatprep.subr.mxu0 0.0
        %5661 = vmatpush1.msra.mxu0 %v2937
        %5662 = vmatprep.subr.mxu0 0.0
        %5663 = vmatpush1.msra.mxu0 %v2938
        %5664 = vmatprep.subr.mxu0 0.0
        %5665 = vmatpush1.msra.mxu0 %v2939
        %5666 = vmatprep.subr.mxu0 0.0
        %5667 = vmatpush1.msra.mxu0 %v2940
        %5668 = vmatprep.subr.mxu0 0.0
        %5669 = vmatpush1.msra.mxu0 %v2941
        %5670 = vmatprep.subr.mxu0 0.0
        %5671 = vmatpush1.msra.mxu0 %v2942
        %5672 = vmatprep.subr.mxu0 0.0
        %5673 = vmatpush1.msra.mxu0 %v2943
        %5674 = vmatprep.subr.mxu0 0.0
        %5675 = vmatpush1.msra.mxu0 %v2944
        %5676 = vmatprep.subr.mxu0 0.0
        %5677 = vmatpush1.msra.mxu0 %v2945
        %5678 = vmatprep.subr.mxu0 0.0
        %5679 = vmatpush1.msra.mxu0 %v2946
        %5680 = vmatprep.subr.mxu0 0.0
        %5681 = vmatpush1.msra.mxu0 %v2947
        %5682 = vmatprep.subr.mxu0 0.0
        %5683 = vmatpush1.msra.mxu0 %v2948
        %5684 = vmatprep.subr.mxu0 0.0
        %5685 = vmatpush1.msra.mxu0 %v2949
        %5686 = vmatprep.subr.mxu0 0.0
        %5687 = vmatpush1.msra.mxu0 %v2950
        %5688 = vmatprep.subr.mxu0 0.0
        %5689 = vmatpush1.msra.mxu0 %v2951
        %5690 = vmatprep.mubr.f32.mxu0 %v4711
        %5691 = vmatmul.mubr.f32.gmra.mrb[0].mxu0 %v4710
        %v5692 = vpop.f32.mrb[0].mxu0
        %v5693 = vadd.f32 %v5623, %v5692
        %v5694 = vpop.f32.mrb[0].mxu0
        %5695 = vdwg.mxu0
        %5696 = vmatprep.subr.mxu0 0.0
        %5697 = vmatpush1.msra.mxu0 %v2952
        %5698 = vmatprep.subr.mxu0 0.0
        %5699 = vmatpush1.msra.mxu0 %v2953
        %5700 = vmatprep.subr.mxu0 0.0
        %5701 = vmatpush1.msra.mxu0 %v2954
        %5702 = vmatprep.subr.mxu0 0.0
        %5703 = vmatpush1.msra.mxu0 %v2955
        %5704 = vmatprep.subr.mxu0 0.0
        %5705 = vmatpush1.msra.mxu0 %v2956
        %5706 = vmatprep.subr.mxu0 0.0
        %5707 = vmatpush1.msra.mxu0 %v2957
        %5708 = vmatprep.subr.mxu0 0.0
        %5709 = vmatpush1.msra.mxu0 %v2958
        %5710 = vmatprep.subr.mxu0 0.0
        %5711 = vmatpush1.msra.mxu0 %v2959
        %5712 = vmatprep.subr.mxu0 0.0
        %5713 = vmatpush1.msra.mxu0 %v2960
        %5714 = vmatprep.subr.mxu0 0.0
        %5715 = vmatpush1.msra.mxu0 %v2961
        %5716 = vmatprep.subr.mxu0 0.0
        %5717 = vmatpush1.msra.mxu0 %v2962
        %5718 = vmatprep.subr.mxu0 0.0
        %5719 = vmatpush1.msra.mxu0 %v2963
        %5720 = vmatprep.subr.mxu0 0.0
        %5721 = vmatpush1.msra.mxu0 %v2964
        %5722 = vmatprep.subr.mxu0 0.0
        %5723 = vmatpush1.msra.mxu0 %v2965
        %5724 = vmatprep.subr.mxu0 0.0
        %5725 = vmatpush1.msra.mxu0 %v2966
        %5726 = vmatprep.subr.mxu0 0.0
        %5727 = vmatpush1.msra.mxu0 %v2967
        %5728 = vmatprep.subr.mxu0 0.0
        %5729 = vmatpush1.msra.mxu0 %v2968
        %5730 = vmatprep.subr.mxu0 0.0
        %5731 = vmatpush1.msra.mxu0 %v2969
        %5732 = vmatprep.subr.mxu0 0.0
        %5733 = vmatpush1.msra.mxu0 %v2970
        %5734 = vmatprep.subr.mxu0 0.0
        %5735 = vmatpush1.msra.mxu0 %v2971
        %5736 = vmatprep.subr.mxu0 0.0
        %5737 = vmatpush1.msra.mxu0 %v2972
        %5738 = vmatprep.subr.mxu0 0.0
        %5739 = vmatpush1.msra.mxu0 %v2973
        %5740 = vmatprep.subr.mxu0 0.0
        %5741 = vmatpush1.msra.mxu0 %v2974
        %5742 = vmatprep.subr.mxu0 0.0
        %5743 = vmatpush1.msra.mxu0 %v2975
        %5744 = vmatprep.subr.mxu0 0.0
        %5745 = vmatpush1.msra.mxu0 %v2976
        %5746 = vmatprep.subr.mxu0 0.0
        %5747 = vmatpush1.msra.mxu0 %v2977
        %5748 = vmatprep.subr.mxu0 0.0
        %5749 = vmatpush1.msra.mxu0 %v2978
        %5750 = vmatprep.subr.mxu0 0.0
        %5751 = vmatpush1.msra.mxu0 %v2979
        %5752 = vmatprep.subr.mxu0 0.0
        %5753 = vmatpush1.msra.mxu0 %v2980
        %5754 = vmatprep.subr.mxu0 0.0
        %5755 = vmatpush1.msra.mxu0 %v2981
        %5756 = vmatprep.subr.mxu0 0.0
        %5757 = vmatpush1.msra.mxu0 %v2982
        %5758 = vmatprep.subr.mxu0 0.0
        %5759 = vmatpush1.msra.mxu0 %v2983
        %5760 = vmatprep.mubr.f32.mxu0 %v4713
        %5761 = vmatmul.mubr.f32.gmra.mrb[0].mxu0 %v4712
        %v5762 = vpop.f32.mrb[0].mxu0
        %v5763 = vadd.f32 %v5693, %v5762
        %v5764 = vpop.f32.mrb[0].mxu0
        %5765 = vdwg.mxu0
        %5766 = vmatprep.subr.mxu0 0.0
        %5767 = vmatpush1.msra.mxu0 %v2984
        %5768 = vmatprep.subr.mxu0 0.0
        %5769 = vmatpush1.msra.mxu0 %v2985
        %5770 = vmatprep.subr.mxu0 0.0
        %5771 = vmatpush1.msra.mxu0 %v2986
        %5772 = vmatprep.subr.mxu0 0.0
        %5773 = vmatpush1.msra.mxu0 %v2987
        %5774 = vmatprep.subr.mxu0 0.0
        %5775 = vmatpush1.msra.mxu0 %v2988
        %5776 = vmatprep.subr.mxu0 0.0
        %5777 = vmatpush1.msra.mxu0 %v2989
        %5778 = vmatprep.subr.mxu0 0.0
        %5779 = vmatpush1.msra.mxu0 %v2990
        %5780 = vmatprep.subr.mxu0 0.0
        %5781 = vmatpush1.msra.mxu0 %v2991
        %5782 = vmatprep.subr.mxu0 0.0
        %5783 = vmatpush1.msra.mxu0 %v2992
        %5784 = vmatprep.subr.mxu0 0.0
        %5785 = vmatpush1.msra.mxu0 %v2993
        %5786 = vmatprep.subr.mxu0 0.0
        %5787 = vmatpush1.msra.mxu0 %v2994
        %5788 = vmatprep.subr.mxu0 0.0
        %5789 = vmatpush1.msra.mxu0 %v2995
        %5790 = vmatprep.subr.mxu0 0.0
        %5791 = vmatpush1.msra.mxu0 %v2996
        %5792 = vmatprep.subr.mxu0 0.0
        %5793 = vmatpush1.msra.mxu0 %v2997
        %5794 = vmatprep.subr.mxu0 0.0
        %5795 = vmatpush1.msra.mxu0 %v2998
        %5796 = vmatprep.subr.mxu0 0.0
        %5797 = vmatpush1.msra.mxu0 %v2999
        %5798 = vmatprep.subr.mxu0 0.0
        %5799 = vmatpush1.msra.mxu0 %v3000
        %5800 = vmatprep.subr.mxu0 0.0
        %5801 = vmatpush1.msra.mxu0 %v3001
        %5802 = vmatprep.subr.mxu0 0.0
        %5803 = vmatpush1.msra.mxu0 %v3002
        %5804 = vmatprep.subr.mxu0 0.0
        %5805 = vmatpush1.msra.mxu0 %v3003
        %5806 = vmatprep.subr.mxu0 0.0
        %5807 = vmatpush1.msra.mxu0 %v3004
        %5808 = vmatprep.subr.mxu0 0.0
        %5809 = vmatpush1.msra.mxu0 %v3005
        %5810 = vmatprep.subr.mxu0 0.0
        %5811 = vmatpush1.msra.mxu0 %v3006
        %5812 = vmatprep.subr.mxu0 0.0
        %5813 = vmatpush1.msra.mxu0 %v3007
        %5814 = vmatprep.subr.mxu0 0.0
        %5815 = vmatpush1.msra.mxu0 %v3008
        %5816 = vmatprep.subr.mxu0 0.0
        %5817 = vmatpush1.msra.mxu0 %v3009
        %5818 = vmatprep.subr.mxu0 0.0
        %5819 = vmatpush1.msra.mxu0 %v3010
        %5820 = vmatprep.subr.mxu0 0.0
        %5821 = vmatpush1.msra.mxu0 %v3011
        %5822 = vmatprep.subr.mxu0 0.0
        %5823 = vmatpush1.msra.mxu0 %v3012
        %5824 = vmatprep.subr.mxu0 0.0
        %5825 = vmatpush1.msra.mxu0 %v3013
        %5826 = vmatprep.subr.mxu0 0.0
        %5827 = vmatpush1.msra.mxu0 %v3014
        %5828 = vmatprep.subr.mxu0 0.0
        %5829 = vmatpush1.msra.mxu0 %v3015
        %5830 = vmatprep.mubr.f32.mxu0 %v4715
        %5831 = vmatmul.mubr.f32.gmra.mrb[0].mxu0 %v4714
        %v5832 = vpop.f32.mrb[0].mxu0
        %v5833 = vadd.f32 %v5763, %v5832
        %v5834 = vpop.f32.mrb[0].mxu0
        %5835 = vdwg.mxu0
        %v5836 = vadd.f32 %v4683, %v5833
        %5837 = vst [vmem:[#allocation3] sm:$0xff] %v5836
        %p5838 = scmp.eq.s32.totalorder %s31, 1
        // Predicated region
        $region57: #{tpu_custom_call.1} parent=43 // pred_check
          %p5839 = pneg %p5838
        $region58: #{tpu_custom_call.1} parent=43 // pred_check_branch
          %5841 = sbr.rel (%p5839) target = $region60
        $region59: #{tpu_custom_call.1} parent=43 // pred_region
          %v5842 = vld [vmem:[%s4] sm:$0x1]
          %v5843 = vld [vmem:[#allocation7] sm:$0x1]
          %v5844 = vmul.f32 %v5843, 0.9996
          %v5845 = vmul.f32 %v5842, 0.0004
          %v5846 = vadd.f32 %v5844, %v5845
          %5847 = vst [vmem:[#allocation15] sm:$0x1] %v5846
          %v5848 = vld [vmem:[#allocation2] sm:$0xff]
          %v5850 = vlaneseq
          %v5851 = vshrl.u32 %v5850, 7
          %v5852 = vsub.s32 0, %v5851
          %v5853 = vrot.slane %v5842, %v5852
          %v5855 = vadd.f32 %v5848, %v5853
          %v5856 = vld [vmem:[#allocation3] sm:$0xff]
          %v5858 = vlaneseq
          %v5859 = vshrl.u32 %v5858, 7
          %v5860 = vsub.s32 0, %v5859
          %v5861 = vrot.slane %v5846, %v5860
          %v5863 = vadd.f32 %v5856, %v5861
          %v5864 = vmul.f32 %v5855, %v5855
          %5865 = vadd.xlane.f32.xlu0 %v5864
          %v5866 = vpop.xlane.xlu0 %5865
          %v5867 = vrsqrt.pop %v5866
          %v5868 = vmul.f32 %v5866, %v5867
          %vm5869 = vcmp.eq.f32.partialorder %v5866, inf
          %v5870 = vsel %vm5869, %v5866, %v5868
          %vm5871 = vcmp.eq.f32.partialorder %v5866, 0.0
          %v5872 = vand.u32 %v5866, 2147483648
          %v5873 = vsel %vm5871, %v5872, %v5870
          %v5874 = vmul.f32 %v5863, %v5863
          %5875 = vadd.xlane.f32.xlu0 %v5874
          %v5876 = vpop.xlane.xlu0 %5875
          %v5877 = vrsqrt.pop %v5876
          %v5878 = vmul.f32 %v5876, %v5877
          %vm5879 = vcmp.eq.f32.partialorder %v5876, inf
          %v5880 = vsel %vm5879, %v5876, %v5878
          %vm5881 = vcmp.eq.f32.partialorder %v5876, 0.0
          %v5882 = vand.u32 %v5876, 2147483648
          %v5883 = vsel %vm5881, %v5882, %v5880
          %v5884 = vmax.f32 %v5873, 1e-12
          %v5885 = vrcp.pop %v5884
          %v5886 = vmul.f32 %v5855, %v5885
          %v5887 = vmax.f32 %v5883, 1e-12
          %v5888 = vrcp.pop %v5887
          %v5889 = vmul.f32 %v5863, %v5888
          %5890 = vst [vmem:[#allocation9] sm:$0xff] %v5886
          %5891 = vst [vmem:[#allocation10] sm:$0xff] %v5889
          %v5892 = vmul.f32 %v5886, %v5889
          %5893 = vadd.xlane.f32.xlu0 %v5892
          %v5894 = vpop.xlane.xlu0 %5893
          %v5895 = vmul.f32 %v5894, 14.285714
          %5896 = vst [vmem:[#allocation12] sm:$0xff] %v5895
        $region60: #{tpu_custom_call.1} parent=43 // pred_fallthru
          _
        %s5897 = sand.u32 %s31, 1
        %s5898 = scalar_lea.sflag [#allocation14], %s5897
        %s5899 = sand.u32 %s248, 1
        %s5900 = smul.addr %s5899, 4096
        %s5901 = scalar_lea.vmem [#allocation13], %s5900
        // Predicated region
        $region61: #{tpu_custom_call.1} parent=43 // pred_check
          %p5902 = pneg %p190
        $region62: #{tpu_custom_call.1} parent=43 // pred_check_branch
          %5904 = sbr.rel (%p5902) target = $region64
        $region63: #{tpu_custom_call.1} parent=43 // pred_region
          %s5906 = ssub.s32 128, 128
          %5907 = vsyncadd [#allocation6], %s5906
          %s5909 = sshll.u32 [#allocation9], 4
          %s5910 = int_to_ptr.vmem [resolvable:$true] %s5909
          %5912 = dma.vmem_to_hbm [thread:$0]  %s5910, 128, %s6, [#allocation6]
        $region64: #{tpu_custom_call.1} parent=43 // pred_fallthru
          _
        // Predicated region
        $region65: #{tpu_custom_call.1} parent=43 // pred_check
          %p5913 = pneg %p211
        $region66: #{tpu_custom_call.1} parent=43 // pred_check_branch
          %5915 = sbr.rel (%p5913) target = $region68
        $region67: #{tpu_custom_call.1} parent=43 // pred_region
          %s5917 = ssub.s32 128, 128
          %5918 = vsyncadd [#allocation11], %s5917
          %s5920 = sshll.u32 [#allocation10], 4
          %s5921 = int_to_ptr.vmem [resolvable:$true] %s5920
          %5923 = dma.vmem_to_hbm [thread:$0]  %s5921, 128, %s7, [#allocation11]
        $region68: #{tpu_custom_call.1} parent=43 // pred_fallthru
          _
        // Predicated region
        $region69: #{tpu_custom_call.1} parent=43 // pred_check
          %p5924 = pneg %p232
        $region70: #{tpu_custom_call.1} parent=43 // pred_check_branch
          %5926 = sbr.rel (%p5924) target = $region72
        $region71: #{tpu_custom_call.1} parent=43 // pred_region
          %s5928 = ssub.s32 128, 128
          %5929 = vsyncadd [#allocation11], %s5928
          %s5931 = sshll.u32 [#allocation12], 4
          %s5932 = int_to_ptr.vmem [resolvable:$true] %s5931
          %5934 = dma.vmem_to_hbm [thread:$0]  %s5932, 128, %s8, [#allocation11]
        $region72: #{tpu_custom_call.1} parent=43 // pred_fallthru
          _
        // Predicated region
        $region73: #{tpu_custom_call.1} parent=43 // pred_check
          %p5935 = pneg %p258
        $region74: #{tpu_custom_call.1} parent=43 // pred_check_branch
          %5937 = sbr.rel (%p5935) target = $region76
        $region75: #{tpu_custom_call.1} parent=43 // pred_region
          %s5938 = smul.u32 512, %s31
          %s5940 = ssub.s32 65536, 65536
          %5941 = vsyncadd %s5898, %s5940
          %s5942 = smul.addr %s5938, 128
          %s5943 = scalar_lea.hbm %s9, %s5942
          %s5944 = sshll.u32 %s5901, 4
          %s5945 = int_to_ptr.vmem [resolvable:$true] %s5944
          %5950 = dma.vmem_to_hbm [thread:$0]  %s5945, 65536, %s5943, %s5898, 128, 128, 8
        $region76: #{tpu_custom_call.1} parent=43 // pred_fallthru
          _
        // Predicated region
        $region77: #{tpu_custom_call.1} parent=43 // pred_check
          %p5951 = pneg %p279
        $region78: #{tpu_custom_call.1} parent=43 // pred_check_branch
          %5953 = sbr.rel (%p5951) target = $region80
        $region79: #{tpu_custom_call.1} parent=43 // pred_region
          %s5955 = ssub.s32 16, 16
          %5956 = vsyncadd [#allocation14], %s5955
          %s5958 = sshll.u32 [#allocation15], 4
          %s5959 = int_to_ptr.vmem [resolvable:$true] %s5958
          %5961 = dma.vmem_to_hbm [thread:$0]  %s5959, 16, %s10, [#allocation14]
        $region80: #{tpu_custom_call.1} parent=43 // pred_fallthru
          _
        // Predicated region
        $region81: #{tpu_custom_call.1} parent=43 // pred_check
          %p5962 = pneg %p190
        $region82: #{tpu_custom_call.1} parent=43 // pred_check_branch
          %5964 = sbr.rel (%p5962) target = $region84
        $region83: #{tpu_custom_call.1} parent=43 // pred_region
          %5965 = dma.done [#allocation6], 128
        $region84: #{tpu_custom_call.1} parent=43 // pred_fallthru
          _
        // Predicated region
        $region85: #{tpu_custom_call.1} parent=43 // pred_check
          %p5966 = pneg %p211
        $region86: #{tpu_custom_call.1} parent=43 // pred_check_branch
          %5968 = sbr.rel (%p5966) target = $region88
        $region87: #{tpu_custom_call.1} parent=43 // pred_region
          %5969 = dma.done [#allocation11], 128
        $region88: #{tpu_custom_call.1} parent=43 // pred_fallthru
          _
        // Predicated region
        $region89: #{tpu_custom_call.1} parent=43 // pred_check
          %p5970 = pneg %p232
        $region90: #{tpu_custom_call.1} parent=43 // pred_check_branch
          %5972 = sbr.rel (%p5970) target = $region92
        $region91: #{tpu_custom_call.1} parent=43 // pred_region
          %5973 = dma.done [#allocation11], 128
        $region92: #{tpu_custom_call.1} parent=43 // pred_fallthru
          _
        // Predicated region
        $region93: #{tpu_custom_call.1} parent=43 // pred_check
          %p5974 = pneg %p279
        $region94: #{tpu_custom_call.1} parent=43 // pred_check_branch
          %5976 = sbr.rel (%p5974) target = $region96
        $region95: #{tpu_custom_call.1} parent=43 // pred_region
          %5977 = dma.done [#allocation14], 16
        $region96: #{tpu_custom_call.1} parent=43 // pred_fallthru
          _
      $region44: #{tpu_custom_call.1} parent=5 // pred_fallthru
        _
      %p5978 = scmp.le.s32.totalorder 2, %s26
      // Predicated region
      $region97: #{tpu_custom_call.1} parent=5 // pred_check
        %p5979 = pneg %p5978
      $region98: #{tpu_custom_call.1} parent=5 // pred_check_branch
        %5981 = sbr.rel (%p5979) target = $region100
      $region99: #{tpu_custom_call.1} parent=5 // pred_region
        %s5982 = ssub.s32 %s26, 2
        // Predicated region
        $region101: #{tpu_custom_call.1} parent=99 // pred_check
          %p5983 = pneg %p264
        $region102: #{tpu_custom_call.1} parent=99 // pred_check_branch
          %5985 = sbr.rel (%p5983) target = $region104
        $region103: #{tpu_custom_call.1} parent=99 // pred_region
          %s5986 = sand.u32 %s32, 1
          %s5987 = scalar_lea.sflag [#allocation14], %s5986
          %s5988 = sand.u32 %s249, 1
          %s5989 = smul.addr %s5988, 4096
          %s5990 = scalar_lea.vmem [#allocation13], %s5989
          %5991 = dma.done %s5987, 65536
        $region104: #{tpu_custom_call.1} parent=99 // pred_fallthru
          _
      $region100: #{tpu_custom_call.1} parent=5 // pred_fallthru
        _
    $region6: #{tpu_custom_call.1} parent=1 // loop_footer
      %s30 = sadd.s32 1, %s26
    $region7: #{tpu_custom_call.1} parent=1 // loop_footer_branch
      %25 = sbr.rel target = $region3
    $region8: #{tpu_custom_call.1} parent=1 // loop_exit
      _
    %5992 = vsyncpa [#allocation5], 1
    %s5993 = scalar_lea.sflag [#allocation5], 1
    %5994 = vsyncpa %s5993, 1
    %5995 = vsyncpa [#allocation8], 1
    %5996 = vsyncpa [#allocation6], 1
    %s5997 = scalar_lea.sflag [#allocation6], 1
    %5998 = vsyncpa %s5997, 1
    %5999 = vsyncpa [#allocation11], 1
    %6000 = vsyncpa [#allocation14], 1
    %s6001 = scalar_lea.sflag [#allocation14], 1
    %6002 = vsyncpa %s6001, 1

</llo_original>
